<compile_context>
chip_gen: v7x
topology: tpu7x:2x2x1
jax: 0.10.0
libtpu: 0.0.40
codegen_flags: <defaults>
</compile_context>

<pallas_src>
import functools

import jax
import jax.numpy as jnp
from jax import lax
from jax.experimental import pallas as pl
from jax.experimental.pallas import tpu as pltpu

VMEM = pltpu.MemorySpace.VMEM
PAD = 16  # sublane-aligned padding rows in the conv scratch (>= W + 1 for 3x3)


def _vmem_specs(n):
    return [pl.BlockSpec(memory_space=VMEM) for _ in range(n)]


# ---------------------------------------------------------------------------
# Kernel 1: fused conv tower
#   conv1(1->C) -> relu -> conv2(C->C) -> relu -> conv3(C->C) + 1x1 skip -> relu
# Feature maps are (BHW, C) matrices, rows ordered (b, h, w) (NHWC order).
# ---------------------------------------------------------------------------
def make_conv_tower(B, H, W, C):
    BHW = B * H * W
    assert PAD >= W + 1, "scratch padding must cover the largest 3x3 row offset"

    def kernel(x_ref, w1_ref, b1_ref, w2_ref, b2_ref, w3_ref, b3_ref,
               ws_ref, bs_ref, out_ref, pad_ref):
        f32 = jnp.float32

        # Row index -> (h, w) coordinates (rows ordered (b, h, w)).
        row = lax.broadcasted_iota(jnp.int32, (BHW, 1), 0)
        if (W & (W - 1)) == 0 and (H & (H - 1)) == 0:
            ww = row & (W - 1)
            hh = (row >> (W.bit_length() - 1)) & (H - 1)
        else:
            ww = row % W
            hh = (row // W) % H

        # Static tap table: (row offset, float validity mask) for the 9 taps.
        taps = []
        for kh in range(3):
            for kw in range(3):
                dh, dw = kh - 1, kw - 1
                valid = ((hh + dh >= 0) & (hh + dh < H) &
                         (ww + dw >= 0) & (ww + dw < W))
                taps.append((dh * W + dw, valid.astype(f32)))

        # Zero the padded scratch once; border rows are never overwritten.
        pad_ref[...] = jnp.zeros_like(pad_ref)

        x_col = x_ref[...]                                    # (BHW, 1)

        # ---- conv1: Cin = 1 -> pure VPU (9 broadcast FMAs), no MXU ----
        pad_ref[PAD:PAD + BHW, :] = jnp.broadcast_to(x_col, (BHW, C))
        acc = jnp.zeros((BHW, C), f32)
        for t, (off, m) in enumerate(taps):
            shifted = pad_ref[PAD + off:PAD + off + BHW, :]
            acc = acc + (m * shifted) * w1_ref[t:t + 1, :]
        h = jnp.maximum(acc + b1_ref[...], 0.0)

        # ---- conv2: 9 accumulated (BHW, C) @ (C, C) matmuls ----
        pad_ref[PAD:PAD + BHW, :] = h
        acc = jnp.zeros((BHW, C), f32)
        for t, (off, m) in enumerate(taps):
            shifted = pad_ref[PAD + off:PAD + off + BHW, :]
            acc = acc + jnp.dot(m * shifted, w2_ref[t], preferred_element_type=f32)
        h = jnp.maximum(acc + b2_ref[...], 0.0)

        # ---- conv3 + 1x1 skip (from in-VMEM input), fused add + relu ----
        pad_ref[PAD:PAD + BHW, :] = h
        acc = jnp.zeros((BHW, C), f32)
        for t, (off, m) in enumerate(taps):
            shifted = pad_ref[PAD + off:PAD + off + BHW, :]
            acc = acc + jnp.dot(m * shifted, w3_ref[t], preferred_element_type=f32)
        skip = x_col * ws_ref[...] + bs_ref[...]
        out_ref[...] = jnp.maximum(acc + b3_ref[...] + skip, 0.0)

    return pl.pallas_call(
        kernel,
        out_shape=jax.ShapeDtypeStruct((BHW, C), jnp.float32),
        in_specs=_vmem_specs(9),
        out_specs=pl.BlockSpec(memory_space=VMEM),
        scratch_shapes=[pltpu.VMEM((BHW + 2 * PAD, C), jnp.float32)],
    )


# ---------------------------------------------------------------------------
# Kernel 2: fused dense heads
#   fc1 -> relu -> fc2 -> relu -> {policy log_softmax, value tanh}
# ---------------------------------------------------------------------------
def head_kernel(x_ref, w1_ref, b1_ref, w2_ref, b2_ref,
                wp_ref, bp_ref, wvr_ref, bv_ref, logp_ref, val_ref):
    f32 = jnp.float32
    h1 = jnp.maximum(
        jnp.dot(x_ref[...], w1_ref[...], preferred_element_type=f32) + b1_ref[...], 0.0)
    h2 = jnp.maximum(
        jnp.dot(h1, w2_ref[...], preferred_element_type=f32) + b2_ref[...], 0.0)

    logits = jnp.dot(h2, wp_ref[...], preferred_element_type=f32) + bp_ref[...]
    z = logits - jnp.max(logits, axis=-1, keepdims=True)
    logp_ref[...] = z - jnp.log(jnp.sum(jnp.exp(z), axis=-1, keepdims=True))

    v = jnp.sum(h2 * wvr_ref[...], axis=-1, keepdims=True) + bv_ref[...]
    val_ref[...] = jnp.tanh(v)


def heads(flat, w_fc1, b_fc1, w_fc2, b_fc2, w_p, b_p, w_v_row, b_v):
    B = flat.shape[0]
    A = w_p.shape[1]
    return pl.pallas_call(
        head_kernel,
        out_shape=(jax.ShapeDtypeStruct((B, A), jnp.float32),
                   jax.ShapeDtypeStruct((B, 1), jnp.float32)),
        in_specs=_vmem_specs(9),
        out_specs=(pl.BlockSpec(memory_space=VMEM),
                   pl.BlockSpec(memory_space=VMEM)),
    )(flat, w_fc1, b_fc1, w_fc2, b_fc2, w_p, b_p, w_v_row, b_v)


# ---------------------------------------------------------------------------
# One-time parameter re-layout (hoisted out of the hot forward path)
# ---------------------------------------------------------------------------
def prepare_params(params, H, W):
    C = params["conv1_w"].shape[0]

    def conv_taps(w):   # OIHW (Cout, Cin, 3, 3) -> (9, Cin, Cout), taps ordered (kh, kw)
        return jnp.transpose(w, (2, 3, 1, 0)).reshape(9, w.shape[1], w.shape[0])

    hid1 = params["fc1_w"].shape[0]
    # Permute fc1 columns from NCHW flatten order to NHWC flatten order so the
    # in-kernel NHWC (BHW, C) layout flattens for free.
    fc1_w = (params["fc1_w"].reshape(hid1, C, H, W)
             .transpose(2, 3, 1, 0).reshape(H * W * C, hid1))

    return dict(
        w1=conv_taps(params["conv1_w"])[:, 0, :],          # (9, C), Cin == 1
        b1=params["conv1_b"].reshape(1, C),
        w2=conv_taps(params["conv2_w"]),                    # (9, C, C)
        b2=params["conv2_b"].reshape(1, C),
        w3=conv_taps(params["conv3_w"]),                    # (9, C, C)
        b3=params["conv3_b"].reshape(1, C),
        ws=params["skip_w"].reshape(1, C),
        bs=params["skip_b"].reshape(1, C),
        fc1_w=fc1_w, fc1_b=params["fc1_b"].reshape(1, -1),
        fc2_w=params["fc2_w"].T, fc2_b=params["fc2_b"].reshape(1, -1),
        pol_w=params["policy_w"].T, pol_b=params["policy_b"].reshape(1, -1),
        val_w=params["value_w"], val_b=params["value_b"].reshape(1, 1),
    )


# ---------------------------------------------------------------------------
# Full forward (inference: dropout = identity)
# ---------------------------------------------------------------------------
def mynet_forward(prepped, x, *, conv_fn, H, W, C):
    B = x.shape[0]
    x_col = x.reshape(B * H * W, 1).astype(jnp.float32)
    merged = conv_fn(x_col,
                     prepped["w1"], prepped["b1"],
                     prepped["w2"], prepped["b2"],
                     prepped["w3"], prepped["b3"],
                     prepped["ws"], prepped["bs"])             # (BHW, C)
    flat = merged.reshape(B, H * W * C)   # NHWC flatten: row-major no-op reshape
    return heads(flat,
                 prepped["fc1_w"], prepped["fc1_b"],
                 prepped["fc2_w"], prepped["fc2_b"],
                 prepped["pol_w"], prepped["pol_b"],
                 prepped["val_w"], prepped["val_b"])


# ---------------------------------------------------------------------------
# Pure-JAX reference (mirrors the PyTorch forward exactly, original params)
# ---------------------------------------------------------------------------
def reference_forward(params, x):
    x4 = x[:, None, :, :].astype(jnp.float32)     # NCHW

    def conv(a, w, b, pad):
        out = lax.conv_general_dilated(
            a, w, (1, 1), [(pad, pad), (pad, pad)],
            dimension_numbers=("NCHW", "OIHW", "NCHW"))
        return out + b[None, :, None, None]

    skip = conv(x4, params["skip_w"], params["skip_b"], 0)
    c1 = jax.nn.relu(conv(x4, params["conv1_w"], params["conv1_b"], 1))
    c2 = jax.nn.relu(conv(c1, params["conv2_w"], params["conv2_b"], 1))
    c3 = conv(c2, params["conv3_w"], params["conv3_b"], 1)
    merged = jax.nn.relu(c3 + skip)
    flat = merged.reshape(x.shape[0], -1)
    f1 = jax.nn.relu(flat @ params["fc1_w"].T + params["fc1_b"])
    f2 = jax.nn.relu(f1 @ params["fc2_w"].T + params["fc2_b"])
    logits = f2 @ params["policy_w"].T + params["policy_b"]
    value = jnp.tanh(f2 @ params["value_w"].T + params["value_b"])
    return jax.nn.log_softmax(logits, axis=1), value


# ---------------------------------------------------------------------------
# Main
# ---------------------------------------------------------------------------
if __name__ == "__main__":
    B, H, W = 2, 8, 8            # observation_size = (8, 8)
    C = 32                       # config.num_channels (small for the test)
    HID1, HID2 = 64, 32          # config.linear_hidden
    A = 10                       # action_space_size
    FLAT = C * H * W

    key = jax.random.PRNGKey(0)
    ks = jax.random.split(key, 16)

    def init(k, shape, scale):
        return jax.random.normal(k, shape, jnp.float32) * scale

    # Deterministic synthetic parameters in PyTorch shapes (OIHW / (out, in)).
    params = {
        "conv1_w": init(ks[0], (C, 1, 3, 3), 0.10), "conv1_b": init(ks[1], (C,), 0.05),
        "conv2_w": init(ks[2], (C, C, 3, 3), 0.05), "conv2_b": init(ks[3], (C,), 0.05),
        "conv3_w": init(ks[4], (C, C, 3, 3), 0.05), "conv3_b": init(ks[5], (C,), 0.05),
        "skip_w":  init(ks[6], (C, 1, 1, 1), 0.10), "skip_b":  init(ks[7], (C,), 0.05),
        "fc1_w":   init(ks[8], (HID1, FLAT), 0.02), "fc1_b":   init(ks[9], (HID1,), 0.02),
        "fc2_w":   init(ks[10], (HID2, HID1), 0.05), "fc2_b":  init(ks[11], (HID2,), 0.02),
        "policy_w": init(ks[12], (A, HID2), 0.05),  "policy_b": init(ks[13], (A,), 0.02),
        "value_w":  init(ks[14], (1, HID2), 0.05),  "value_b":  init(ks[15], (1,), 0.02),
    }

    x = jax.random.normal(jax.random.PRNGKey(1), (B, H, W), jnp.float32)

    prepped = prepare_params(params, H, W)      # one-time weight re-layout
    conv_fn = make_conv_tower(B, H, W, C)

    fwd = jax.jit(functools.partial(mynet_forward, conv_fn=conv_fn, H=H, W=W, C=C))

    logp, value = jax.block_until_ready(fwd(prepped, x))
    ref_logp, ref_value = jax.block_until_ready(reference_forward(params, x))

    assert logp.shape == (B, A) and value.shape == (B, 1)
    assert jnp.allclose(logp, ref_logp, atol=1e-2, rtol=1e-2)
    assert jnp.allclose(value, ref_value, atol=1e-2, rtol=1e-2)

    print("KERNEL_OK")
</pallas_src>

<mosaic_0001>
module attributes {stable_mosaic.version = 11 : i64} {
  func.func @kernel(%arg0: memref<128x1xf32, #tpu.memory_space<vmem>>, %arg1: memref<9x32xf32, #tpu.memory_space<vmem>>, %arg2: memref<1x32xf32, #tpu.memory_space<vmem>>, %arg3: memref<9x32x32xf32, #tpu.memory_space<vmem>>, %arg4: memref<1x32xf32, #tpu.memory_space<vmem>>, %arg5: memref<9x32x32xf32, #tpu.memory_space<vmem>>, %arg6: memref<1x32xf32, #tpu.memory_space<vmem>>, %arg7: memref<1x32xf32, #tpu.memory_space<vmem>>, %arg8: memref<1x32xf32, #tpu.memory_space<vmem>>, %arg9: memref<128x32xf32, #tpu.memory_space<vmem>>, %arg10: memref<160x32xf32, #tpu.memory_space<vmem>>) attributes {dimension_semantics = [], scalar_prefetch = 0 : i64, scratch_operands = 1 : i64, tpu.core_type = #tpu.core_type<tc>} {
    %0 = tpu.iota {dimensions = array<i32: 0>} : vector<128x1xi32>
    %c7_i32 = arith.constant 7 : i32
    %1 = vector.broadcast %c7_i32 : i32 to vector<128x1xi32>
    %2 = arith.andi %0, %1 : vector<128x1xi32>
    %c3_i32 = arith.constant 3 : i32
    %3 = vector.broadcast %c3_i32 : i32 to vector<128x1xi32>
    %4 = arith.shrsi %0, %3 : vector<128x1xi32>
    %c7_i32_0 = arith.constant 7 : i32
    %5 = vector.broadcast %c7_i32_0 : i32 to vector<128x1xi32>
    %6 = arith.andi %4, %5 : vector<128x1xi32>
    %c-1_i32 = arith.constant -1 : i32
    %7 = vector.broadcast %c-1_i32 : i32 to vector<128x1xi32>
    %8 = arith.addi %6, %7 : vector<128x1xi32>
    %c0_i32 = arith.constant 0 : i32
    %9 = vector.broadcast %c0_i32 : i32 to vector<128x1xi32>
    %10 = arith.cmpi sge, %8, %9 : vector<128x1xi32>
    %c-1_i32_1 = arith.constant -1 : i32
    %11 = vector.broadcast %c-1_i32_1 : i32 to vector<128x1xi32>
    %12 = arith.addi %6, %11 : vector<128x1xi32>
    %c8_i32 = arith.constant 8 : i32
    %13 = vector.broadcast %c8_i32 : i32 to vector<128x1xi32>
    %14 = arith.cmpi slt, %12, %13 : vector<128x1xi32>
    %15 = arith.andi %10, %14 : vector<128x1xi1>
    %c-1_i32_2 = arith.constant -1 : i32
    %16 = vector.broadcast %c-1_i32_2 : i32 to vector<128x1xi32>
    %17 = arith.addi %2, %16 : vector<128x1xi32>
    %c0_i32_3 = arith.constant 0 : i32
    %18 = vector.broadcast %c0_i32_3 : i32 to vector<128x1xi32>
    %19 = arith.cmpi sge, %17, %18 : vector<128x1xi32>
    %20 = arith.andi %15, %19 : vector<128x1xi1>
    %c-1_i32_4 = arith.constant -1 : i32
    %21 = vector.broadcast %c-1_i32_4 : i32 to vector<128x1xi32>
    %22 = arith.addi %2, %21 : vector<128x1xi32>
    %c8_i32_5 = arith.constant 8 : i32
    %23 = vector.broadcast %c8_i32_5 : i32 to vector<128x1xi32>
    %24 = arith.cmpi slt, %22, %23 : vector<128x1xi32>
    %25 = arith.andi %20, %24 : vector<128x1xi1>
    %26 = arith.extui %25 : vector<128x1xi1> to vector<128x1xi32>
    %27 = arith.sitofp %26 : vector<128x1xi32> to vector<128x1xf32>
    %c-1_i32_6 = arith.constant -1 : i32
    %28 = vector.broadcast %c-1_i32_6 : i32 to vector<128x1xi32>
    %29 = arith.addi %6, %28 : vector<128x1xi32>
    %c0_i32_7 = arith.constant 0 : i32
    %30 = vector.broadcast %c0_i32_7 : i32 to vector<128x1xi32>
    %31 = arith.cmpi sge, %29, %30 : vector<128x1xi32>
    %c-1_i32_8 = arith.constant -1 : i32
    %32 = vector.broadcast %c-1_i32_8 : i32 to vector<128x1xi32>
    %33 = arith.addi %6, %32 : vector<128x1xi32>
    %c8_i32_9 = arith.constant 8 : i32
    %34 = vector.broadcast %c8_i32_9 : i32 to vector<128x1xi32>
    %35 = arith.cmpi slt, %33, %34 : vector<128x1xi32>
    %36 = arith.andi %31, %35 : vector<128x1xi1>
    %c0_i32_10 = arith.constant 0 : i32
    %37 = vector.broadcast %c0_i32_10 : i32 to vector<128x1xi32>
    %38 = arith.addi %2, %37 : vector<128x1xi32>
    %c0_i32_11 = arith.constant 0 : i32
    %39 = vector.broadcast %c0_i32_11 : i32 to vector<128x1xi32>
    %40 = arith.cmpi sge, %38, %39 : vector<128x1xi32>
    %41 = arith.andi %36, %40 : vector<128x1xi1>
    %c0_i32_12 = arith.constant 0 : i32
    %42 = vector.broadcast %c0_i32_12 : i32 to vector<128x1xi32>
    %43 = arith.addi %2, %42 : vector<128x1xi32>
    %c8_i32_13 = arith.constant 8 : i32
    %44 = vector.broadcast %c8_i32_13 : i32 to vector<128x1xi32>
    %45 = arith.cmpi slt, %43, %44 : vector<128x1xi32>
    %46 = arith.andi %41, %45 : vector<128x1xi1>
    %47 = arith.extui %46 : vector<128x1xi1> to vector<128x1xi32>
    %48 = arith.sitofp %47 : vector<128x1xi32> to vector<128x1xf32>
    %c-1_i32_14 = arith.constant -1 : i32
    %49 = vector.broadcast %c-1_i32_14 : i32 to vector<128x1xi32>
    %50 = arith.addi %6, %49 : vector<128x1xi32>
    %c0_i32_15 = arith.constant 0 : i32
    %51 = vector.broadcast %c0_i32_15 : i32 to vector<128x1xi32>
    %52 = arith.cmpi sge, %50, %51 : vector<128x1xi32>
    %c-1_i32_16 = arith.constant -1 : i32
    %53 = vector.broadcast %c-1_i32_16 : i32 to vector<128x1xi32>
    %54 = arith.addi %6, %53 : vector<128x1xi32>
    %c8_i32_17 = arith.constant 8 : i32
    %55 = vector.broadcast %c8_i32_17 : i32 to vector<128x1xi32>
    %56 = arith.cmpi slt, %54, %55 : vector<128x1xi32>
    %57 = arith.andi %52, %56 : vector<128x1xi1>
    %c1_i32 = arith.constant 1 : i32
    %58 = vector.broadcast %c1_i32 : i32 to vector<128x1xi32>
    %59 = arith.addi %2, %58 : vector<128x1xi32>
    %c0_i32_18 = arith.constant 0 : i32
    %60 = vector.broadcast %c0_i32_18 : i32 to vector<128x1xi32>
    %61 = arith.cmpi sge, %59, %60 : vector<128x1xi32>
    %62 = arith.andi %57, %61 : vector<128x1xi1>
    %c1_i32_19 = arith.constant 1 : i32
    %63 = vector.broadcast %c1_i32_19 : i32 to vector<128x1xi32>
    %64 = arith.addi %2, %63 : vector<128x1xi32>
    %c8_i32_20 = arith.constant 8 : i32
    %65 = vector.broadcast %c8_i32_20 : i32 to vector<128x1xi32>
    %66 = arith.cmpi slt, %64, %65 : vector<128x1xi32>
    %67 = arith.andi %62, %66 : vector<128x1xi1>
    %68 = arith.extui %67 : vector<128x1xi1> to vector<128x1xi32>
    %69 = arith.sitofp %68 : vector<128x1xi32> to vector<128x1xf32>
    %c0_i32_21 = arith.constant 0 : i32
    %70 = vector.broadcast %c0_i32_21 : i32 to vector<128x1xi32>
    %71 = arith.addi %6, %70 : vector<128x1xi32>
    %c0_i32_22 = arith.constant 0 : i32
    %72 = vector.broadcast %c0_i32_22 : i32 to vector<128x1xi32>
    %73 = arith.cmpi sge, %71, %72 : vector<128x1xi32>
    %c0_i32_23 = arith.constant 0 : i32
    %74 = vector.broadcast %c0_i32_23 : i32 to vector<128x1xi32>
    %75 = arith.addi %6, %74 : vector<128x1xi32>
    %c8_i32_24 = arith.constant 8 : i32
    %76 = vector.broadcast %c8_i32_24 : i32 to vector<128x1xi32>
    %77 = arith.cmpi slt, %75, %76 : vector<128x1xi32>
    %78 = arith.andi %73, %77 : vector<128x1xi1>
    %c-1_i32_25 = arith.constant -1 : i32
    %79 = vector.broadcast %c-1_i32_25 : i32 to vector<128x1xi32>
    %80 = arith.addi %2, %79 : vector<128x1xi32>
    %c0_i32_26 = arith.constant 0 : i32
    %81 = vector.broadcast %c0_i32_26 : i32 to vector<128x1xi32>
    %82 = arith.cmpi sge, %80, %81 : vector<128x1xi32>
    %83 = arith.andi %78, %82 : vector<128x1xi1>
    %c-1_i32_27 = arith.constant -1 : i32
    %84 = vector.broadcast %c-1_i32_27 : i32 to vector<128x1xi32>
    %85 = arith.addi %2, %84 : vector<128x1xi32>
    %c8_i32_28 = arith.constant 8 : i32
    %86 = vector.broadcast %c8_i32_28 : i32 to vector<128x1xi32>
    %87 = arith.cmpi slt, %85, %86 : vector<128x1xi32>
    %88 = arith.andi %83, %87 : vector<128x1xi1>
    %89 = arith.extui %88 : vector<128x1xi1> to vector<128x1xi32>
    %90 = arith.sitofp %89 : vector<128x1xi32> to vector<128x1xf32>
    %c0_i32_29 = arith.constant 0 : i32
    %91 = vector.broadcast %c0_i32_29 : i32 to vector<128x1xi32>
    %92 = arith.addi %6, %91 : vector<128x1xi32>
    %c0_i32_30 = arith.constant 0 : i32
    %93 = vector.broadcast %c0_i32_30 : i32 to vector<128x1xi32>
    %94 = arith.cmpi sge, %92, %93 : vector<128x1xi32>
    %c0_i32_31 = arith.constant 0 : i32
    %95 = vector.broadcast %c0_i32_31 : i32 to vector<128x1xi32>
    %96 = arith.addi %6, %95 : vector<128x1xi32>
    %c8_i32_32 = arith.constant 8 : i32
    %97 = vector.broadcast %c8_i32_32 : i32 to vector<128x1xi32>
    %98 = arith.cmpi slt, %96, %97 : vector<128x1xi32>
    %99 = arith.andi %94, %98 : vector<128x1xi1>
    %c0_i32_33 = arith.constant 0 : i32
    %100 = vector.broadcast %c0_i32_33 : i32 to vector<128x1xi32>
    %101 = arith.addi %2, %100 : vector<128x1xi32>
    %c0_i32_34 = arith.constant 0 : i32
    %102 = vector.broadcast %c0_i32_34 : i32 to vector<128x1xi32>
    %103 = arith.cmpi sge, %101, %102 : vector<128x1xi32>
    %104 = arith.andi %99, %103 : vector<128x1xi1>
    %c0_i32_35 = arith.constant 0 : i32
    %105 = vector.broadcast %c0_i32_35 : i32 to vector<128x1xi32>
    %106 = arith.addi %2, %105 : vector<128x1xi32>
    %c8_i32_36 = arith.constant 8 : i32
    %107 = vector.broadcast %c8_i32_36 : i32 to vector<128x1xi32>
    %108 = arith.cmpi slt, %106, %107 : vector<128x1xi32>
    %109 = arith.andi %104, %108 : vector<128x1xi1>
    %110 = arith.extui %109 : vector<128x1xi1> to vector<128x1xi32>
    %111 = arith.sitofp %110 : vector<128x1xi32> to vector<128x1xf32>
    %c0_i32_37 = arith.constant 0 : i32
    %112 = vector.broadcast %c0_i32_37 : i32 to vector<128x1xi32>
    %113 = arith.addi %6, %112 : vector<128x1xi32>
    %c0_i32_38 = arith.constant 0 : i32
    %114 = vector.broadcast %c0_i32_38 : i32 to vector<128x1xi32>
    %115 = arith.cmpi sge, %113, %114 : vector<128x1xi32>
    %c0_i32_39 = arith.constant 0 : i32
    %116 = vector.broadcast %c0_i32_39 : i32 to vector<128x1xi32>
    %117 = arith.addi %6, %116 : vector<128x1xi32>
    %c8_i32_40 = arith.constant 8 : i32
    %118 = vector.broadcast %c8_i32_40 : i32 to vector<128x1xi32>
    %119 = arith.cmpi slt, %117, %118 : vector<128x1xi32>
    %120 = arith.andi %115, %119 : vector<128x1xi1>
    %c1_i32_41 = arith.constant 1 : i32
    %121 = vector.broadcast %c1_i32_41 : i32 to vector<128x1xi32>
    %122 = arith.addi %2, %121 : vector<128x1xi32>
    %c0_i32_42 = arith.constant 0 : i32
    %123 = vector.broadcast %c0_i32_42 : i32 to vector<128x1xi32>
    %124 = arith.cmpi sge, %122, %123 : vector<128x1xi32>
    %125 = arith.andi %120, %124 : vector<128x1xi1>
    %c1_i32_43 = arith.constant 1 : i32
    %126 = vector.broadcast %c1_i32_43 : i32 to vector<128x1xi32>
    %127 = arith.addi %2, %126 : vector<128x1xi32>
    %c8_i32_44 = arith.constant 8 : i32
    %128 = vector.broadcast %c8_i32_44 : i32 to vector<128x1xi32>
    %129 = arith.cmpi slt, %127, %128 : vector<128x1xi32>
    %130 = arith.andi %125, %129 : vector<128x1xi1>
    %131 = arith.extui %130 : vector<128x1xi1> to vector<128x1xi32>
    %132 = arith.sitofp %131 : vector<128x1xi32> to vector<128x1xf32>
    %c1_i32_45 = arith.constant 1 : i32
    %133 = vector.broadcast %c1_i32_45 : i32 to vector<128x1xi32>
    %134 = arith.addi %6, %133 : vector<128x1xi32>
    %c0_i32_46 = arith.constant 0 : i32
    %135 = vector.broadcast %c0_i32_46 : i32 to vector<128x1xi32>
    %136 = arith.cmpi sge, %134, %135 : vector<128x1xi32>
    %c1_i32_47 = arith.constant 1 : i32
    %137 = vector.broadcast %c1_i32_47 : i32 to vector<128x1xi32>
    %138 = arith.addi %6, %137 : vector<128x1xi32>
    %c8_i32_48 = arith.constant 8 : i32
    %139 = vector.broadcast %c8_i32_48 : i32 to vector<128x1xi32>
    %140 = arith.cmpi slt, %138, %139 : vector<128x1xi32>
    %141 = arith.andi %136, %140 : vector<128x1xi1>
    %c-1_i32_49 = arith.constant -1 : i32
    %142 = vector.broadcast %c-1_i32_49 : i32 to vector<128x1xi32>
    %143 = arith.addi %2, %142 : vector<128x1xi32>
    %c0_i32_50 = arith.constant 0 : i32
    %144 = vector.broadcast %c0_i32_50 : i32 to vector<128x1xi32>
    %145 = arith.cmpi sge, %143, %144 : vector<128x1xi32>
    %146 = arith.andi %141, %145 : vector<128x1xi1>
    %c-1_i32_51 = arith.constant -1 : i32
    %147 = vector.broadcast %c-1_i32_51 : i32 to vector<128x1xi32>
    %148 = arith.addi %2, %147 : vector<128x1xi32>
    %c8_i32_52 = arith.constant 8 : i32
    %149 = vector.broadcast %c8_i32_52 : i32 to vector<128x1xi32>
    %150 = arith.cmpi slt, %148, %149 : vector<128x1xi32>
    %151 = arith.andi %146, %150 : vector<128x1xi1>
    %152 = arith.extui %151 : vector<128x1xi1> to vector<128x1xi32>
    %153 = arith.sitofp %152 : vector<128x1xi32> to vector<128x1xf32>
    %c1_i32_53 = arith.constant 1 : i32
    %154 = vector.broadcast %c1_i32_53 : i32 to vector<128x1xi32>
    %155 = arith.addi %6, %154 : vector<128x1xi32>
    %c0_i32_54 = arith.constant 0 : i32
    %156 = vector.broadcast %c0_i32_54 : i32 to vector<128x1xi32>
    %157 = arith.cmpi sge, %155, %156 : vector<128x1xi32>
    %c1_i32_55 = arith.constant 1 : i32
    %158 = vector.broadcast %c1_i32_55 : i32 to vector<128x1xi32>
    %159 = arith.addi %6, %158 : vector<128x1xi32>
    %c8_i32_56 = arith.constant 8 : i32
    %160 = vector.broadcast %c8_i32_56 : i32 to vector<128x1xi32>
    %161 = arith.cmpi slt, %159, %160 : vector<128x1xi32>
    %162 = arith.andi %157, %161 : vector<128x1xi1>
    %c0_i32_57 = arith.constant 0 : i32
    %163 = vector.broadcast %c0_i32_57 : i32 to vector<128x1xi32>
    %164 = arith.addi %2, %163 : vector<128x1xi32>
    %c0_i32_58 = arith.constant 0 : i32
    %165 = vector.broadcast %c0_i32_58 : i32 to vector<128x1xi32>
    %166 = arith.cmpi sge, %164, %165 : vector<128x1xi32>
    %167 = arith.andi %162, %166 : vector<128x1xi1>
    %c0_i32_59 = arith.constant 0 : i32
    %168 = vector.broadcast %c0_i32_59 : i32 to vector<128x1xi32>
    %169 = arith.addi %2, %168 : vector<128x1xi32>
    %c8_i32_60 = arith.constant 8 : i32
    %170 = vector.broadcast %c8_i32_60 : i32 to vector<128x1xi32>
    %171 = arith.cmpi slt, %169, %170 : vector<128x1xi32>
    %172 = arith.andi %167, %171 : vector<128x1xi1>
    %173 = arith.extui %172 : vector<128x1xi1> to vector<128x1xi32>
    %174 = arith.sitofp %173 : vector<128x1xi32> to vector<128x1xf32>
    %c1_i32_61 = arith.constant 1 : i32
    %175 = vector.broadcast %c1_i32_61 : i32 to vector<128x1xi32>
    %176 = arith.addi %6, %175 : vector<128x1xi32>
    %c0_i32_62 = arith.constant 0 : i32
    %177 = vector.broadcast %c0_i32_62 : i32 to vector<128x1xi32>
    %178 = arith.cmpi sge, %176, %177 : vector<128x1xi32>
    %c1_i32_63 = arith.constant 1 : i32
    %179 = vector.broadcast %c1_i32_63 : i32 to vector<128x1xi32>
    %180 = arith.addi %6, %179 : vector<128x1xi32>
    %c8_i32_64 = arith.constant 8 : i32
    %181 = vector.broadcast %c8_i32_64 : i32 to vector<128x1xi32>
    %182 = arith.cmpi slt, %180, %181 : vector<128x1xi32>
    %183 = arith.andi %178, %182 : vector<128x1xi1>
    %c1_i32_65 = arith.constant 1 : i32
    %184 = vector.broadcast %c1_i32_65 : i32 to vector<128x1xi32>
    %185 = arith.addi %2, %184 : vector<128x1xi32>
    %c0_i32_66 = arith.constant 0 : i32
    %186 = vector.broadcast %c0_i32_66 : i32 to vector<128x1xi32>
    %187 = arith.cmpi sge, %185, %186 : vector<128x1xi32>
    %188 = arith.andi %183, %187 : vector<128x1xi1>
    %c1_i32_67 = arith.constant 1 : i32
    %189 = vector.broadcast %c1_i32_67 : i32 to vector<128x1xi32>
    %190 = arith.addi %2, %189 : vector<128x1xi32>
    %c8_i32_68 = arith.constant 8 : i32
    %191 = vector.broadcast %c8_i32_68 : i32 to vector<128x1xi32>
    %192 = arith.cmpi slt, %190, %191 : vector<128x1xi32>
    %193 = arith.andi %188, %192 : vector<128x1xi1>
    %194 = arith.extui %193 : vector<128x1xi1> to vector<128x1xi32>
    %195 = arith.sitofp %194 : vector<128x1xi32> to vector<128x1xf32>
    %cst = arith.constant 0.000000e+00 : f32
    %196 = vector.broadcast %cst : f32 to vector<160x32xf32>
    %c0 = arith.constant 0 : index
    %c0_69 = arith.constant 0 : index
    %197 = vector.load %arg10[%c0, %c0_69] : memref<160x32xf32, #tpu.memory_space<vmem>>, vector<160x32xf32>
    tpu.vector_store %arg10[%c0, %c0_69], %196 {strides = array<i32>} : memref<160x32xf32, #tpu.memory_space<vmem>>, vector<160x32xf32>,
    %c0_70 = arith.constant 0 : index
    %c0_71 = arith.constant 0 : index
    %198 = vector.load %arg0[%c0_70, %c0_71] : memref<128x1xf32, #tpu.memory_space<vmem>>, vector<128x1xf32>
    %199 = vector.shape_cast %198 : vector<128x1xf32> to vector<128x1xf32>
    %200 = vector.broadcast %199 : vector<128x1xf32> to vector<128x32xf32>
    %c16 = arith.constant 16 : index
    %c0_72 = arith.constant 0 : index
    %201 = vector.load %arg10[%c16, %c0_72] : memref<160x32xf32, #tpu.memory_space<vmem>>, vector<128x32xf32>
    tpu.vector_store %arg10[%c16, %c0_72], %200 {strides = array<i32>} : memref<160x32xf32, #tpu.memory_space<vmem>>, vector<128x32xf32>,
    %cst_73 = arith.constant 0.000000e+00 : f32
    %202 = vector.broadcast %cst_73 : f32 to vector<128x32xf32>
    %c7 = arith.constant 7 : index
    %c0_74 = arith.constant 0 : index
    %203 = vector.load %arg10[%c7, %c0_74] : memref<160x32xf32, #tpu.memory_space<vmem>>, vector<128x32xf32>
    %204 = vector.broadcast %27 : vector<128x1xf32> to vector<128x32xf32>
    %205 = arith.mulf %204, %203 : vector<128x32xf32>
    %c0_75 = arith.constant 0 : index
    %c0_76 = arith.constant 0 : index
    %206 = vector.load %arg1[%c0_75, %c0_76] : memref<9x32xf32, #tpu.memory_space<vmem>>, vector<1x32xf32>
    %207 = vector.broadcast %206 : vector<1x32xf32> to vector<128x32xf32>
    %208 = arith.mulf %205, %207 : vector<128x32xf32>
    %209 = arith.addf %202, %208 : vector<128x32xf32>
    %c8 = arith.constant 8 : index
    %c0_77 = arith.constant 0 : index
    %210 = vector.load %arg10[%c8, %c0_77] : memref<160x32xf32, #tpu.memory_space<vmem>>, vector<128x32xf32>
    %211 = vector.broadcast %48 : vector<128x1xf32> to vector<128x32xf32>
    %212 = arith.mulf %211, %210 : vector<128x32xf32>
    %c1 = arith.constant 1 : index
    %c0_78 = arith.constant 0 : index
    %213 = vector.load %arg1[%c1, %c0_78] : memref<9x32xf32, #tpu.memory_space<vmem>>, vector<1x32xf32>
    %214 = vector.broadcast %213 : vector<1x32xf32> to vector<128x32xf32>
    %215 = arith.mulf %212, %214 : vector<128x32xf32>
    %216 = arith.addf %209, %215 : vector<128x32xf32>
    %c9 = arith.constant 9 : index
    %c0_79 = arith.constant 0 : index
    %217 = vector.load %arg10[%c9, %c0_79] : memref<160x32xf32, #tpu.memory_space<vmem>>, vector<128x32xf32>
    %218 = vector.broadcast %69 : vector<128x1xf32> to vector<128x32xf32>
    %219 = arith.mulf %218, %217 : vector<128x32xf32>
    %c2 = arith.constant 2 : index
    %c0_80 = arith.constant 0 : index
    %220 = vector.load %arg1[%c2, %c0_80] : memref<9x32xf32, #tpu.memory_space<vmem>>, vector<1x32xf32>
    %221 = vector.broadcast %220 : vector<1x32xf32> to vector<128x32xf32>
    %222 = arith.mulf %219, %221 : vector<128x32xf32>
    %223 = arith.addf %216, %222 : vector<128x32xf32>
    %c15 = arith.constant 15 : index
    %c0_81 = arith.constant 0 : index
    %224 = vector.load %arg10[%c15, %c0_81] : memref<160x32xf32, #tpu.memory_space<vmem>>, vector<128x32xf32>
    %225 = vector.broadcast %90 : vector<128x1xf32> to vector<128x32xf32>
    %226 = arith.mulf %225, %224 : vector<128x32xf32>
    %c3 = arith.constant 3 : index
    %c0_82 = arith.constant 0 : index
    %227 = vector.load %arg1[%c3, %c0_82] : memref<9x32xf32, #tpu.memory_space<vmem>>, vector<1x32xf32>
    %228 = vector.broadcast %227 : vector<1x32xf32> to vector<128x32xf32>
    %229 = arith.mulf %226, %228 : vector<128x32xf32>
    %230 = arith.addf %223, %229 : vector<128x32xf32>
    %c16_83 = arith.constant 16 : index
    %c0_84 = arith.constant 0 : index
    %231 = vector.load %arg10[%c16_83, %c0_84] : memref<160x32xf32, #tpu.memory_space<vmem>>, vector<128x32xf32>
    %232 = vector.broadcast %111 : vector<128x1xf32> to vector<128x32xf32>
    %233 = arith.mulf %232, %231 : vector<128x32xf32>
    %c4 = arith.constant 4 : index
    %c0_85 = arith.constant 0 : index
    %234 = vector.load %arg1[%c4, %c0_85] : memref<9x32xf32, #tpu.memory_space<vmem>>, vector<1x32xf32>
    %235 = vector.broadcast %234 : vector<1x32xf32> to vector<128x32xf32>
    %236 = arith.mulf %233, %235 : vector<128x32xf32>
    %237 = arith.addf %230, %236 : vector<128x32xf32>
    %c17 = arith.constant 17 : index
    %c0_86 = arith.constant 0 : index
    %238 = vector.load %arg10[%c17, %c0_86] : memref<160x32xf32, #tpu.memory_space<vmem>>, vector<128x32xf32>
    %239 = vector.broadcast %132 : vector<128x1xf32> to vector<128x32xf32>
    %240 = arith.mulf %239, %238 : vector<128x32xf32>
    %c5 = arith.constant 5 : index
    %c0_87 = arith.constant 0 : index
    %241 = vector.load %arg1[%c5, %c0_87] : memref<9x32xf32, #tpu.memory_space<vmem>>, vector<1x32xf32>
    %242 = vector.broadcast %241 : vector<1x32xf32> to vector<128x32xf32>
    %243 = arith.mulf %240, %242 : vector<128x32xf32>
    %244 = arith.addf %237, %243 : vector<128x32xf32>
    %c23 = arith.constant 23 : index
    %c0_88 = arith.constant 0 : index
    %245 = vector.load %arg10[%c23, %c0_88] : memref<160x32xf32, #tpu.memory_space<vmem>>, vector<128x32xf32>
    %246 = vector.broadcast %153 : vector<128x1xf32> to vector<128x32xf32>
    %247 = arith.mulf %246, %245 : vector<128x32xf32>
    %c6 = arith.constant 6 : index
    %c0_89 = arith.constant 0 : index
    %248 = vector.load %arg1[%c6, %c0_89] : memref<9x32xf32, #tpu.memory_space<vmem>>, vector<1x32xf32>
    %249 = vector.broadcast %248 : vector<1x32xf32> to vector<128x32xf32>
    %250 = arith.mulf %247, %249 : vector<128x32xf32>
    %251 = arith.addf %244, %250 : vector<128x32xf32>
    %c24 = arith.constant 24 : index
    %c0_90 = arith.constant 0 : index
    %252 = vector.load %arg10[%c24, %c0_90] : memref<160x32xf32, #tpu.memory_space<vmem>>, vector<128x32xf32>
    %253 = vector.broadcast %174 : vector<128x1xf32> to vector<128x32xf32>
    %254 = arith.mulf %253, %252 : vector<128x32xf32>
    %c7_91 = arith.constant 7 : index
    %c0_92 = arith.constant 0 : index
    %255 = vector.load %arg1[%c7_91, %c0_92] : memref<9x32xf32, #tpu.memory_space<vmem>>, vector<1x32xf32>
    %256 = vector.broadcast %255 : vector<1x32xf32> to vector<128x32xf32>
    %257 = arith.mulf %254, %256 : vector<128x32xf32>
    %258 = arith.addf %251, %257 : vector<128x32xf32>
    %c25 = arith.constant 25 : index
    %c0_93 = arith.constant 0 : index
    %259 = vector.load %arg10[%c25, %c0_93] : memref<160x32xf32, #tpu.memory_space<vmem>>, vector<128x32xf32>
    %260 = vector.broadcast %195 : vector<128x1xf32> to vector<128x32xf32>
    %261 = arith.mulf %260, %259 : vector<128x32xf32>
    %c8_94 = arith.constant 8 : index
    %c0_95 = arith.constant 0 : index
    %262 = vector.load %arg1[%c8_94, %c0_95] : memref<9x32xf32, #tpu.memory_space<vmem>>, vector<1x32xf32>
    %263 = vector.broadcast %262 : vector<1x32xf32> to vector<128x32xf32>
    %264 = arith.mulf %261, %263 : vector<128x32xf32>
    %265 = arith.addf %258, %264 : vector<128x32xf32>
    %c0_96 = arith.constant 0 : index
    %c0_97 = arith.constant 0 : index
    %266 = vector.load %arg2[%c0_96, %c0_97] : memref<1x32xf32, #tpu.memory_space<vmem>>, vector<1x32xf32>
    %267 = vector.broadcast %266 : vector<1x32xf32> to vector<128x32xf32>
    %268 = arith.addf %265, %267 : vector<128x32xf32>
    %cst_98 = arith.constant 0.000000e+00 : f32
    %269 = vector.broadcast %cst_98 : f32 to vector<128x32xf32>
    %270 = arith.maximumf %268, %269 : vector<128x32xf32>
    %c16_99 = arith.constant 16 : index
    %c0_100 = arith.constant 0 : index
    %271 = vector.load %arg10[%c16_99, %c0_100] : memref<160x32xf32, #tpu.memory_space<vmem>>, vector<128x32xf32>
    tpu.vector_store %arg10[%c16_99, %c0_100], %270 {strides = array<i32>} : memref<160x32xf32, #tpu.memory_space<vmem>>, vector<128x32xf32>,
    %cst_101 = arith.constant 0.000000e+00 : f32
    %272 = vector.broadcast %cst_101 : f32 to vector<128x32xf32>
    %c7_102 = arith.constant 7 : index
    %c0_103 = arith.constant 0 : index
    %273 = vector.load %arg10[%c7_102, %c0_103] : memref<160x32xf32, #tpu.memory_space<vmem>>, vector<128x32xf32>
    %274 = vector.broadcast %27 : vector<128x1xf32> to vector<128x32xf32>
    %275 = arith.mulf %274, %273 : vector<128x32xf32>
    %c0_104 = arith.constant 0 : index
    %c0_105 = arith.constant 0 : index
    %c0_106 = arith.constant 0 : index
    %276 = vector.load %arg3[%c0_104, %c0_105, %c0_106] : memref<9x32x32xf32, #tpu.memory_space<vmem>>, vector<1x32x32xf32>
    %277 = vector.shape_cast %276 : vector<1x32x32xf32> to vector<32x32xf32>
    %cst_107 = arith.constant dense<0.000000e+00> : vector<128x32xf32>
    %278 = tpu.matmul %275, %277, %cst_107 {dimension_numbers = #tpu.dot_dimension_numbers<[1], [0], [0], [1], [0, 0, 1, 1], [], []>} : vector<128x32xf32>, vector<32x32xf32>, vector<128x32xf32> -> vector<128x32xf32>
    %279 = arith.addf %272, %278 : vector<128x32xf32>
    %c8_108 = arith.constant 8 : index
    %c0_109 = arith.constant 0 : index
    %280 = vector.load %arg10[%c8_108, %c0_109] : memref<160x32xf32, #tpu.memory_space<vmem>>, vector<128x32xf32>
    %281 = vector.broadcast %48 : vector<128x1xf32> to vector<128x32xf32>
    %282 = arith.mulf %281, %280 : vector<128x32xf32>
    %c1_110 = arith.constant 1 : index
    %c0_111 = arith.constant 0 : index
    %c0_112 = arith.constant 0 : index
    %283 = vector.load %arg3[%c1_110, %c0_111, %c0_112] : memref<9x32x32xf32, #tpu.memory_space<vmem>>, vector<1x32x32xf32>
    %284 = vector.shape_cast %283 : vector<1x32x32xf32> to vector<32x32xf32>
    %cst_113 = arith.constant dense<0.000000e+00> : vector<128x32xf32>
    %285 = tpu.matmul %282, %284, %cst_113 {dimension_numbers = #tpu.dot_dimension_numbers<[1], [0], [0], [1], [0, 0, 1, 1], [], []>} : vector<128x32xf32>, vector<32x32xf32>, vector<128x32xf32> -> vector<128x32xf32>
    %286 = arith.addf %279, %285 : vector<128x32xf32>
    %c9_114 = arith.constant 9 : index
    %c0_115 = arith.constant 0 : index
    %287 = vector.load %arg10[%c9_114, %c0_115] : memref<160x32xf32, #tpu.memory_space<vmem>>, vector<128x32xf32>
    %288 = vector.broadcast %69 : vector<128x1xf32> to vector<128x32xf32>
    %289 = arith.mulf %288, %287 : vector<128x32xf32>
    %c2_116 = arith.constant 2 : index
    %c0_117 = arith.constant 0 : index
    %c0_118 = arith.constant 0 : index
    %290 = vector.load %arg3[%c2_116, %c0_117, %c0_118] : memref<9x32x32xf32, #tpu.memory_space<vmem>>, vector<1x32x32xf32>
    %291 = vector.shape_cast %290 : vector<1x32x32xf32> to vector<32x32xf32>
    %cst_119 = arith.constant dense<0.000000e+00> : vector<128x32xf32>
    %292 = tpu.matmul %289, %291, %cst_119 {dimension_numbers = #tpu.dot_dimension_numbers<[1], [0], [0], [1], [0, 0, 1, 1], [], []>} : vector<128x32xf32>, vector<32x32xf32>, vector<128x32xf32> -> vector<128x32xf32>
    %293 = arith.addf %286, %292 : vector<128x32xf32>
    %c15_120 = arith.constant 15 : index
    %c0_121 = arith.constant 0 : index
    %294 = vector.load %arg10[%c15_120, %c0_121] : memref<160x32xf32, #tpu.memory_space<vmem>>, vector<128x32xf32>
    %295 = vector.broadcast %90 : vector<128x1xf32> to vector<128x32xf32>
    %296 = arith.mulf %295, %294 : vector<128x32xf32>
    %c3_122 = arith.constant 3 : index
    %c0_123 = arith.constant 0 : index
    %c0_124 = arith.constant 0 : index
    %297 = vector.load %arg3[%c3_122, %c0_123, %c0_124] : memref<9x32x32xf32, #tpu.memory_space<vmem>>, vector<1x32x32xf32>
    %298 = vector.shape_cast %297 : vector<1x32x32xf32> to vector<32x32xf32>
    %cst_125 = arith.constant dense<0.000000e+00> : vector<128x32xf32>
    %299 = tpu.matmul %296, %298, %cst_125 {dimension_numbers = #tpu.dot_dimension_numbers<[1], [0], [0], [1], [0, 0, 1, 1], [], []>} : vector<128x32xf32>, vector<32x32xf32>, vector<128x32xf32> -> vector<128x32xf32>
    %300 = arith.addf %293, %299 : vector<128x32xf32>
    %c16_126 = arith.constant 16 : index
    %c0_127 = arith.constant 0 : index
    %301 = vector.load %arg10[%c16_126, %c0_127] : memref<160x32xf32, #tpu.memory_space<vmem>>, vector<128x32xf32>
    %302 = vector.broadcast %111 : vector<128x1xf32> to vector<128x32xf32>
    %303 = arith.mulf %302, %301 : vector<128x32xf32>
    %c4_128 = arith.constant 4 : index
    %c0_129 = arith.constant 0 : index
    %c0_130 = arith.constant 0 : index
    %304 = vector.load %arg3[%c4_128, %c0_129, %c0_130] : memref<9x32x32xf32, #tpu.memory_space<vmem>>, vector<1x32x32xf32>
    %305 = vector.shape_cast %304 : vector<1x32x32xf32> to vector<32x32xf32>
    %cst_131 = arith.constant dense<0.000000e+00> : vector<128x32xf32>
    %306 = tpu.matmul %303, %305, %cst_131 {dimension_numbers = #tpu.dot_dimension_numbers<[1], [0], [0], [1], [0, 0, 1, 1], [], []>} : vector<128x32xf32>, vector<32x32xf32>, vector<128x32xf32> -> vector<128x32xf32>
    %307 = arith.addf %300, %306 : vector<128x32xf32>
    %c17_132 = arith.constant 17 : index
    %c0_133 = arith.constant 0 : index
    %308 = vector.load %arg10[%c17_132, %c0_133] : memref<160x32xf32, #tpu.memory_space<vmem>>, vector<128x32xf32>
    %309 = vector.broadcast %132 : vector<128x1xf32> to vector<128x32xf32>
    %310 = arith.mulf %309, %308 : vector<128x32xf32>
    %c5_134 = arith.constant 5 : index
    %c0_135 = arith.constant 0 : index
    %c0_136 = arith.constant 0 : index
    %311 = vector.load %arg3[%c5_134, %c0_135, %c0_136] : memref<9x32x32xf32, #tpu.memory_space<vmem>>, vector<1x32x32xf32>
    %312 = vector.shape_cast %311 : vector<1x32x32xf32> to vector<32x32xf32>
    %cst_137 = arith.constant dense<0.000000e+00> : vector<128x32xf32>
    %313 = tpu.matmul %310, %312, %cst_137 {dimension_numbers = #tpu.dot_dimension_numbers<[1], [0], [0], [1], [0, 0, 1, 1], [], []>} : vector<128x32xf32>, vector<32x32xf32>, vector<128x32xf32> -> vector<128x32xf32>
    %314 = arith.addf %307, %313 : vector<128x32xf32>
    %c23_138 = arith.constant 23 : index
    %c0_139 = arith.constant 0 : index
    %315 = vector.load %arg10[%c23_138, %c0_139] : memref<160x32xf32, #tpu.memory_space<vmem>>, vector<128x32xf32>
    %316 = vector.broadcast %153 : vector<128x1xf32> to vector<128x32xf32>
    %317 = arith.mulf %316, %315 : vector<128x32xf32>
    %c6_140 = arith.constant 6 : index
    %c0_141 = arith.constant 0 : index
    %c0_142 = arith.constant 0 : index
    %318 = vector.load %arg3[%c6_140, %c0_141, %c0_142] : memref<9x32x32xf32, #tpu.memory_space<vmem>>, vector<1x32x32xf32>
    %319 = vector.shape_cast %318 : vector<1x32x32xf32> to vector<32x32xf32>
    %cst_143 = arith.constant dense<0.000000e+00> : vector<128x32xf32>
    %320 = tpu.matmul %317, %319, %cst_143 {dimension_numbers = #tpu.dot_dimension_numbers<[1], [0], [0], [1], [0, 0, 1, 1], [], []>} : vector<128x32xf32>, vector<32x32xf32>, vector<128x32xf32> -> vector<128x32xf32>
    %321 = arith.addf %314, %320 : vector<128x32xf32>
    %c24_144 = arith.constant 24 : index
    %c0_145 = arith.constant 0 : index
    %322 = vector.load %arg10[%c24_144, %c0_145] : memref<160x32xf32, #tpu.memory_space<vmem>>, vector<128x32xf32>
    %323 = vector.broadcast %174 : vector<128x1xf32> to vector<128x32xf32>
    %324 = arith.mulf %323, %322 : vector<128x32xf32>
    %c7_146 = arith.constant 7 : index
    %c0_147 = arith.constant 0 : index
    %c0_148 = arith.constant 0 : index
    %325 = vector.load %arg3[%c7_146, %c0_147, %c0_148] : memref<9x32x32xf32, #tpu.memory_space<vmem>>, vector<1x32x32xf32>
    %326 = vector.shape_cast %325 : vector<1x32x32xf32> to vector<32x32xf32>
    %cst_149 = arith.constant dense<0.000000e+00> : vector<128x32xf32>
    %327 = tpu.matmul %324, %326, %cst_149 {dimension_numbers = #tpu.dot_dimension_numbers<[1], [0], [0], [1], [0, 0, 1, 1], [], []>} : vector<128x32xf32>, vector<32x32xf32>, vector<128x32xf32> -> vector<128x32xf32>
    %328 = arith.addf %321, %327 : vector<128x32xf32>
    %c25_150 = arith.constant 25 : index
    %c0_151 = arith.constant 0 : index
    %329 = vector.load %arg10[%c25_150, %c0_151] : memref<160x32xf32, #tpu.memory_space<vmem>>, vector<128x32xf32>
    %330 = vector.broadcast %195 : vector<128x1xf32> to vector<128x32xf32>
    %331 = arith.mulf %330, %329 : vector<128x32xf32>
    %c8_152 = arith.constant 8 : index
    %c0_153 = arith.constant 0 : index
    %c0_154 = arith.constant 0 : index
    %332 = vector.load %arg3[%c8_152, %c0_153, %c0_154] : memref<9x32x32xf32, #tpu.memory_space<vmem>>, vector<1x32x32xf32>
    %333 = vector.shape_cast %332 : vector<1x32x32xf32> to vector<32x32xf32>
    %cst_155 = arith.constant dense<0.000000e+00> : vector<128x32xf32>
    %334 = tpu.matmul %331, %333, %cst_155 {dimension_numbers = #tpu.dot_dimension_numbers<[1], [0], [0], [1], [0, 0, 1, 1], [], []>} : vector<128x32xf32>, vector<32x32xf32>, vector<128x32xf32> -> vector<128x32xf32>
    %335 = arith.addf %328, %334 : vector<128x32xf32>
    %c0_156 = arith.constant 0 : index
    %c0_157 = arith.constant 0 : index
    %336 = vector.load %arg4[%c0_156, %c0_157] : memref<1x32xf32, #tpu.memory_space<vmem>>, vector<1x32xf32>
    %337 = vector.broadcast %336 : vector<1x32xf32> to vector<128x32xf32>
    %338 = arith.addf %335, %337 : vector<128x32xf32>
    %cst_158 = arith.constant 0.000000e+00 : f32
    %339 = vector.broadcast %cst_158 : f32 to vector<128x32xf32>
    %340 = arith.maximumf %338, %339 : vector<128x32xf32>
    %c16_159 = arith.constant 16 : index
    %c0_160 = arith.constant 0 : index
    %341 = vector.load %arg10[%c16_159, %c0_160] : memref<160x32xf32, #tpu.memory_space<vmem>>, vector<128x32xf32>
    tpu.vector_store %arg10[%c16_159, %c0_160], %340 {strides = array<i32>} : memref<160x32xf32, #tpu.memory_space<vmem>>, vector<128x32xf32>,
    %cst_161 = arith.constant 0.000000e+00 : f32
    %342 = vector.broadcast %cst_161 : f32 to vector<128x32xf32>
    %c7_162 = arith.constant 7 : index
    %c0_163 = arith.constant 0 : index
    %343 = vector.load %arg10[%c7_162, %c0_163] : memref<160x32xf32, #tpu.memory_space<vmem>>, vector<128x32xf32>
    %344 = vector.broadcast %27 : vector<128x1xf32> to vector<128x32xf32>
    %345 = arith.mulf %344, %343 : vector<128x32xf32>
    %c0_164 = arith.constant 0 : index
    %c0_165 = arith.constant 0 : index
    %c0_166 = arith.constant 0 : index
    %346 = vector.load %arg5[%c0_164, %c0_165, %c0_166] : memref<9x32x32xf32, #tpu.memory_space<vmem>>, vector<1x32x32xf32>
    %347 = vector.shape_cast %346 : vector<1x32x32xf32> to vector<32x32xf32>
    %cst_167 = arith.constant dense<0.000000e+00> : vector<128x32xf32>
    %348 = tpu.matmul %345, %347, %cst_167 {dimension_numbers = #tpu.dot_dimension_numbers<[1], [0], [0], [1], [0, 0, 1, 1], [], []>} : vector<128x32xf32>, vector<32x32xf32>, vector<128x32xf32> -> vector<128x32xf32>
    %349 = arith.addf %342, %348 : vector<128x32xf32>
    %c8_168 = arith.constant 8 : index
    %c0_169 = arith.constant 0 : index
    %350 = vector.load %arg10[%c8_168, %c0_169] : memref<160x32xf32, #tpu.memory_space<vmem>>, vector<128x32xf32>
    %351 = vector.broadcast %48 : vector<128x1xf32> to vector<128x32xf32>
    %352 = arith.mulf %351, %350 : vector<128x32xf32>
    %c1_170 = arith.constant 1 : index
    %c0_171 = arith.constant 0 : index
    %c0_172 = arith.constant 0 : index
    %353 = vector.load %arg5[%c1_170, %c0_171, %c0_172] : memref<9x32x32xf32, #tpu.memory_space<vmem>>, vector<1x32x32xf32>
    %354 = vector.shape_cast %353 : vector<1x32x32xf32> to vector<32x32xf32>
    %cst_173 = arith.constant dense<0.000000e+00> : vector<128x32xf32>
    %355 = tpu.matmul %352, %354, %cst_173 {dimension_numbers = #tpu.dot_dimension_numbers<[1], [0], [0], [1], [0, 0, 1, 1], [], []>} : vector<128x32xf32>, vector<32x32xf32>, vector<128x32xf32> -> vector<128x32xf32>
    %356 = arith.addf %349, %355 : vector<128x32xf32>
    %c9_174 = arith.constant 9 : index
    %c0_175 = arith.constant 0 : index
    %357 = vector.load %arg10[%c9_174, %c0_175] : memref<160x32xf32, #tpu.memory_space<vmem>>, vector<128x32xf32>
    %358 = vector.broadcast %69 : vector<128x1xf32> to vector<128x32xf32>
    %359 = arith.mulf %358, %357 : vector<128x32xf32>
    %c2_176 = arith.constant 2 : index
    %c0_177 = arith.constant 0 : index
    %c0_178 = arith.constant 0 : index
    %360 = vector.load %arg5[%c2_176, %c0_177, %c0_178] : memref<9x32x32xf32, #tpu.memory_space<vmem>>, vector<1x32x32xf32>
    %361 = vector.shape_cast %360 : vector<1x32x32xf32> to vector<32x32xf32>
    %cst_179 = arith.constant dense<0.000000e+00> : vector<128x32xf32>
    %362 = tpu.matmul %359, %361, %cst_179 {dimension_numbers = #tpu.dot_dimension_numbers<[1], [0], [0], [1], [0, 0, 1, 1], [], []>} : vector<128x32xf32>, vector<32x32xf32>, vector<128x32xf32> -> vector<128x32xf32>
    %363 = arith.addf %356, %362 : vector<128x32xf32>
    %c15_180 = arith.constant 15 : index
    %c0_181 = arith.constant 0 : index
    %364 = vector.load %arg10[%c15_180, %c0_181] : memref<160x32xf32, #tpu.memory_space<vmem>>, vector<128x32xf32>
    %365 = vector.broadcast %90 : vector<128x1xf32> to vector<128x32xf32>
    %366 = arith.mulf %365, %364 : vector<128x32xf32>
    %c3_182 = arith.constant 3 : index
    %c0_183 = arith.constant 0 : index
    %c0_184 = arith.constant 0 : index
    %367 = vector.load %arg5[%c3_182, %c0_183, %c0_184] : memref<9x32x32xf32, #tpu.memory_space<vmem>>, vector<1x32x32xf32>
    %368 = vector.shape_cast %367 : vector<1x32x32xf32> to vector<32x32xf32>
    %cst_185 = arith.constant dense<0.000000e+00> : vector<128x32xf32>
    %369 = tpu.matmul %366, %368, %cst_185 {dimension_numbers = #tpu.dot_dimension_numbers<[1], [0], [0], [1], [0, 0, 1, 1], [], []>} : vector<128x32xf32>, vector<32x32xf32>, vector<128x32xf32> -> vector<128x32xf32>
    %370 = arith.addf %363, %369 : vector<128x32xf32>
    %c16_186 = arith.constant 16 : index
    %c0_187 = arith.constant 0 : index
    %371 = vector.load %arg10[%c16_186, %c0_187] : memref<160x32xf32, #tpu.memory_space<vmem>>, vector<128x32xf32>
    %372 = vector.broadcast %111 : vector<128x1xf32> to vector<128x32xf32>
    %373 = arith.mulf %372, %371 : vector<128x32xf32>
    %c4_188 = arith.constant 4 : index
    %c0_189 = arith.constant 0 : index
    %c0_190 = arith.constant 0 : index
    %374 = vector.load %arg5[%c4_188, %c0_189, %c0_190] : memref<9x32x32xf32, #tpu.memory_space<vmem>>, vector<1x32x32xf32>
    %375 = vector.shape_cast %374 : vector<1x32x32xf32> to vector<32x32xf32>
    %cst_191 = arith.constant dense<0.000000e+00> : vector<128x32xf32>
    %376 = tpu.matmul %373, %375, %cst_191 {dimension_numbers = #tpu.dot_dimension_numbers<[1], [0], [0], [1], [0, 0, 1, 1], [], []>} : vector<128x32xf32>, vector<32x32xf32>, vector<128x32xf32> -> vector<128x32xf32>
    %377 = arith.addf %370, %376 : vector<128x32xf32>
    %c17_192 = arith.constant 17 : index
    %c0_193 = arith.constant 0 : index
    %378 = vector.load %arg10[%c17_192, %c0_193] : memref<160x32xf32, #tpu.memory_space<vmem>>, vector<128x32xf32>
    %379 = vector.broadcast %132 : vector<128x1xf32> to vector<128x32xf32>
    %380 = arith.mulf %379, %378 : vector<128x32xf32>
    %c5_194 = arith.constant 5 : index
    %c0_195 = arith.constant 0 : index
    %c0_196 = arith.constant 0 : index
    %381 = vector.load %arg5[%c5_194, %c0_195, %c0_196] : memref<9x32x32xf32, #tpu.memory_space<vmem>>, vector<1x32x32xf32>
    %382 = vector.shape_cast %381 : vector<1x32x32xf32> to vector<32x32xf32>
    %cst_197 = arith.constant dense<0.000000e+00> : vector<128x32xf32>
    %383 = tpu.matmul %380, %382, %cst_197 {dimension_numbers = #tpu.dot_dimension_numbers<[1], [0], [0], [1], [0, 0, 1, 1], [], []>} : vector<128x32xf32>, vector<32x32xf32>, vector<128x32xf32> -> vector<128x32xf32>
    %384 = arith.addf %377, %383 : vector<128x32xf32>
    %c23_198 = arith.constant 23 : index
    %c0_199 = arith.constant 0 : index
    %385 = vector.load %arg10[%c23_198, %c0_199] : memref<160x32xf32, #tpu.memory_space<vmem>>, vector<128x32xf32>
    %386 = vector.broadcast %153 : vector<128x1xf32> to vector<128x32xf32>
    %387 = arith.mulf %386, %385 : vector<128x32xf32>
    %c6_200 = arith.constant 6 : index
    %c0_201 = arith.constant 0 : index
    %c0_202 = arith.constant 0 : index
    %388 = vector.load %arg5[%c6_200, %c0_201, %c0_202] : memref<9x32x32xf32, #tpu.memory_space<vmem>>, vector<1x32x32xf32>
    %389 = vector.shape_cast %388 : vector<1x32x32xf32> to vector<32x32xf32>
    %cst_203 = arith.constant dense<0.000000e+00> : vector<128x32xf32>
    %390 = tpu.matmul %387, %389, %cst_203 {dimension_numbers = #tpu.dot_dimension_numbers<[1], [0], [0], [1], [0, 0, 1, 1], [], []>} : vector<128x32xf32>, vector<32x32xf32>, vector<128x32xf32> -> vector<128x32xf32>
    %391 = arith.addf %384, %390 : vector<128x32xf32>
    %c24_204 = arith.constant 24 : index
    %c0_205 = arith.constant 0 : index
    %392 = vector.load %arg10[%c24_204, %c0_205] : memref<160x32xf32, #tpu.memory_space<vmem>>, vector<128x32xf32>
    %393 = vector.broadcast %174 : vector<128x1xf32> to vector<128x32xf32>
    %394 = arith.mulf %393, %392 : vector<128x32xf32>
    %c7_206 = arith.constant 7 : index
    %c0_207 = arith.constant 0 : index
    %c0_208 = arith.constant 0 : index
    %395 = vector.load %arg5[%c7_206, %c0_207, %c0_208] : memref<9x32x32xf32, #tpu.memory_space<vmem>>, vector<1x32x32xf32>
    %396 = vector.shape_cast %395 : vector<1x32x32xf32> to vector<32x32xf32>
    %cst_209 = arith.constant dense<0.000000e+00> : vector<128x32xf32>
    %397 = tpu.matmul %394, %396, %cst_209 {dimension_numbers = #tpu.dot_dimension_numbers<[1], [0], [0], [1], [0, 0, 1, 1], [], []>} : vector<128x32xf32>, vector<32x32xf32>, vector<128x32xf32> -> vector<128x32xf32>
    %398 = arith.addf %391, %397 : vector<128x32xf32>
    %c25_210 = arith.constant 25 : index
    %c0_211 = arith.constant 0 : index
    %399 = vector.load %arg10[%c25_210, %c0_211] : memref<160x32xf32, #tpu.memory_space<vmem>>, vector<128x32xf32>
    %400 = vector.broadcast %195 : vector<128x1xf32> to vector<128x32xf32>
    %401 = arith.mulf %400, %399 : vector<128x32xf32>
    %c8_212 = arith.constant 8 : index
    %c0_213 = arith.constant 0 : index
    %c0_214 = arith.constant 0 : index
    %402 = vector.load %arg5[%c8_212, %c0_213, %c0_214] : memref<9x32x32xf32, #tpu.memory_space<vmem>>, vector<1x32x32xf32>
    %403 = vector.shape_cast %402 : vector<1x32x32xf32> to vector<32x32xf32>
    %cst_215 = arith.constant dense<0.000000e+00> : vector<128x32xf32>
    %404 = tpu.matmul %401, %403, %cst_215 {dimension_numbers = #tpu.dot_dimension_numbers<[1], [0], [0], [1], [0, 0, 1, 1], [], []>} : vector<128x32xf32>, vector<32x32xf32>, vector<128x32xf32> -> vector<128x32xf32>
    %405 = arith.addf %398, %404 : vector<128x32xf32>
    %c0_216 = arith.constant 0 : index
    %c0_217 = arith.constant 0 : index
    %406 = vector.load %arg7[%c0_216, %c0_217] : memref<1x32xf32, #tpu.memory_space<vmem>>, vector<1x32xf32>
    %407 = vector.broadcast %198 : vector<128x1xf32> to vector<128x32xf32>
    %408 = vector.broadcast %406 : vector<1x32xf32> to vector<128x32xf32>
    %409 = arith.mulf %407, %408 : vector<128x32xf32>
    %c0_218 = arith.constant 0 : index
    %c0_219 = arith.constant 0 : index
    %410 = vector.load %arg8[%c0_218, %c0_219] : memref<1x32xf32, #tpu.memory_space<vmem>>, vector<1x32xf32>
    %411 = vector.broadcast %410 : vector<1x32xf32> to vector<128x32xf32>
    %412 = arith.addf %409, %411 : vector<128x32xf32>
    %c0_220 = arith.constant 0 : index
    %c0_221 = arith.constant 0 : index
    %413 = vector.load %arg6[%c0_220, %c0_221] : memref<1x32xf32, #tpu.memory_space<vmem>>, vector<1x32xf32>
    %414 = vector.broadcast %413 : vector<1x32xf32> to vector<128x32xf32>
    %415 = arith.addf %405, %414 : vector<128x32xf32>
    %416 = arith.addf %415, %412 : vector<128x32xf32>
    %cst_222 = arith.constant 0.000000e+00 : f32
    %417 = vector.broadcast %cst_222 : f32 to vector<128x32xf32>
    %418 = arith.maximumf %416, %417 : vector<128x32xf32>
    %c0_223 = arith.constant 0 : index
    %c0_224 = arith.constant 0 : index
    %419 = vector.load %arg9[%c0_223, %c0_224] : memref<128x32xf32, #tpu.memory_space<vmem>>, vector<128x32xf32>
    tpu.vector_store %arg9[%c0_223, %c0_224], %418 {strides = array<i32>} : memref<128x32xf32, #tpu.memory_space<vmem>>, vector<128x32xf32>,
    return
  }
}

module attributes {stable_mosaic.version = 11 : i64} {
  func.func @head_kernel(%arg0: memref<2x2048xf32, #tpu.memory_space<vmem>>, %arg1: memref<2048x64xf32, #tpu.memory_space<vmem>>, %arg2: memref<1x64xf32, #tpu.memory_space<vmem>>, %arg3: memref<64x32xf32, #tpu.memory_space<vmem>>, %arg4: memref<1x32xf32, #tpu.memory_space<vmem>>, %arg5: memref<32x10xf32, #tpu.memory_space<vmem>>, %arg6: memref<1x10xf32, #tpu.memory_space<vmem>>, %arg7: memref<1x32xf32, #tpu.memory_space<vmem>>, %arg8: memref<1x1xf32, #tpu.memory_space<vmem>>, %arg9: memref<2x10xf32, #tpu.memory_space<vmem>>, %arg10: memref<2x1xf32, #tpu.memory_space<vmem>>) attributes {dimension_semantics = [], scalar_prefetch = 0 : i64, scratch_operands = 0 : i64, tpu.core_type = #tpu.core_type<tc>} {
    %c0 = arith.constant 0 : index
    %c0_0 = arith.constant 0 : index
    %0 = vector.load %arg0[%c0, %c0_0] : memref<2x2048xf32, #tpu.memory_space<vmem>>, vector<2x2048xf32>
    %c0_1 = arith.constant 0 : index
    %c0_2 = arith.constant 0 : index
    %1 = vector.load %arg1[%c0_1, %c0_2] : memref<2048x64xf32, #tpu.memory_space<vmem>>, vector<2048x64xf32>
    %cst = arith.constant dense<0.000000e+00> : vector<2x64xf32>
    %2 = tpu.matmul %0, %1, %cst {dimension_numbers = #tpu.dot_dimension_numbers<[1], [0], [0], [1], [0, 0, 1, 1], [], []>} : vector<2x2048xf32>, vector<2048x64xf32>, vector<2x64xf32> -> vector<2x64xf32>
    %c0_3 = arith.constant 0 : index
    %c0_4 = arith.constant 0 : index
    %3 = vector.load %arg2[%c0_3, %c0_4] : memref<1x64xf32, #tpu.memory_space<vmem>>, vector<1x64xf32>
    %4 = vector.broadcast %3 : vector<1x64xf32> to vector<2x64xf32>
    %5 = arith.addf %2, %4 : vector<2x64xf32>
    %cst_5 = arith.constant 0.000000e+00 : f32
    %6 = vector.broadcast %cst_5 : f32 to vector<2x64xf32>
    %7 = arith.maximumf %5, %6 : vector<2x64xf32>
    %c0_6 = arith.constant 0 : index
    %c0_7 = arith.constant 0 : index
    %8 = vector.load %arg3[%c0_6, %c0_7] : memref<64x32xf32, #tpu.memory_space<vmem>>, vector<64x32xf32>
    %cst_8 = arith.constant dense<0.000000e+00> : vector<2x32xf32>
    %9 = tpu.matmul %7, %8, %cst_8 {dimension_numbers = #tpu.dot_dimension_numbers<[1], [0], [0], [1], [0, 0, 1, 1], [], []>} : vector<2x64xf32>, vector<64x32xf32>, vector<2x32xf32> -> vector<2x32xf32>
    %c0_9 = arith.constant 0 : index
    %c0_10 = arith.constant 0 : index
    %10 = vector.load %arg4[%c0_9, %c0_10] : memref<1x32xf32, #tpu.memory_space<vmem>>, vector<1x32xf32>
    %11 = vector.broadcast %10 : vector<1x32xf32> to vector<2x32xf32>
    %12 = arith.addf %9, %11 : vector<2x32xf32>
    %cst_11 = arith.constant 0.000000e+00 : f32
    %13 = vector.broadcast %cst_11 : f32 to vector<2x32xf32>
    %14 = arith.maximumf %12, %13 : vector<2x32xf32>
    %c0_12 = arith.constant 0 : index
    %c0_13 = arith.constant 0 : index
    %15 = vector.load %arg5[%c0_12, %c0_13] : memref<32x10xf32, #tpu.memory_space<vmem>>, vector<32x10xf32>
    %cst_14 = arith.constant dense<0.000000e+00> : vector<2x10xf32>
    %16 = tpu.matmul %14, %15, %cst_14 {dimension_numbers = #tpu.dot_dimension_numbers<[1], [0], [0], [1], [0, 0, 1, 1], [], []>} : vector<2x32xf32>, vector<32x10xf32>, vector<2x10xf32> -> vector<2x10xf32>
    %c0_15 = arith.constant 0 : index
    %c0_16 = arith.constant 0 : index
    %17 = vector.load %arg6[%c0_15, %c0_16] : memref<1x10xf32, #tpu.memory_space<vmem>>, vector<1x10xf32>
    %18 = vector.broadcast %17 : vector<1x10xf32> to vector<2x10xf32>
    %19 = arith.addf %16, %18 : vector<2x10xf32>
    %cst_17 = arith.constant dense<0xFF800000> : vector<2xf32>
    %20 = vector.multi_reduction <maximumf>, %19, %cst_17 [1] : vector<2x10xf32> to vector<2xf32>
    %21 = vector.shape_cast %20 : vector<2xf32> to vector<2x1xf32>
    %22 = vector.broadcast %21 : vector<2x1xf32> to vector<2x10xf32>
    %23 = arith.subf %19, %22 : vector<2x10xf32>
    %24 = math.exp %23 : vector<2x10xf32>
    %cst_18 = arith.constant dense<0.000000e+00> : vector<2xf32>
    %25 = vector.multi_reduction <add>, %24, %cst_18 [1] : vector<2x10xf32> to vector<2xf32>
    %26 = vector.shape_cast %25 : vector<2xf32> to vector<2x1xf32>
    %27 = math.log %26 : vector<2x1xf32>
    %28 = vector.broadcast %27 : vector<2x1xf32> to vector<2x10xf32>
    %29 = arith.subf %23, %28 : vector<2x10xf32>
    %c0_19 = arith.constant 0 : index
    %c0_20 = arith.constant 0 : index
    %30 = vector.load %arg9[%c0_19, %c0_20] : memref<2x10xf32, #tpu.memory_space<vmem>>, vector<2x10xf32>
    tpu.vector_store %arg9[%c0_19, %c0_20], %29 {strides = array<i32>} : memref<2x10xf32, #tpu.memory_space<vmem>>, vector<2x10xf32>,
    %c0_21 = arith.constant 0 : index
    %c0_22 = arith.constant 0 : index
    %31 = vector.load %arg7[%c0_21, %c0_22] : memref<1x32xf32, #tpu.memory_space<vmem>>, vector<1x32xf32>
    %32 = vector.broadcast %31 : vector<1x32xf32> to vector<2x32xf32>
    %33 = arith.mulf %14, %32 : vector<2x32xf32>
    %cst_23 = arith.constant dense<0.000000e+00> : vector<2xf32>
    %34 = vector.multi_reduction <add>, %33, %cst_23 [1] : vector<2x32xf32> to vector<2xf32>
    %35 = vector.shape_cast %34 : vector<2xf32> to vector<2x1xf32>
    %c0_24 = arith.constant 0 : index
    %c0_25 = arith.constant 0 : index
    %36 = vector.load %arg8[%c0_24, %c0_25] : memref<1x1xf32, #tpu.memory_space<vmem>>, vector<1x1xf32>
    %37 = vector.broadcast %36 : vector<1x1xf32> to vector<2x1xf32>
    %38 = arith.addf %35, %37 : vector<2x1xf32>
    %39 = math.tanh %38 : vector<2x1xf32>
    %c0_26 = arith.constant 0 : index
    %c0_27 = arith.constant 0 : index
    %40 = vector.load %arg10[%c0_26, %c0_27] : memref<2x1xf32, #tpu.memory_space<vmem>>, vector<2x1xf32>
    tpu.vector_store %arg10[%c0_26, %c0_27], %39 {strides = array<i32>} : memref<2x1xf32, #tpu.memory_space<vmem>>, vector<2x1xf32>,
    return
  }
}

</mosaic_0001>

<llo_original>
// kernel: mynet_forward.3
$region0: #{mynet_forward.3}
  #allocation0 [shape = 'u32[]', space=smem, size = 0x4, offset = 0x4, fixed_abs, tag = 'smem constant byte address 0x4 - core index']
  #allocation1 [shape = 'u32[144,128]{1,0:T(1,128)}', space=vmem, size = 0x12000, scoped, tag = 'internal scratch']
  #allocation2 [shape = 'f32[1,1]{1,0:T(1,128)S(1)}', space=vmem, size = 0x200, scoped, tag = 'scoped memory for mynet_forward.3']
  %s0 = inlined_call_operand.vmem [shape: f32[2,2048], index: 0, kind: input, shape index: {}]
  %s1 = inlined_call_operand.vmem [shape: f32[2048,64], index: 1, kind: input, shape index: {}]
  %s2 = inlined_call_operand.vmem [shape: f32[1,64], index: 2, kind: input, shape index: {}]
  %s3 = inlined_call_operand.vmem [shape: f32[64,32], index: 3, kind: input, shape index: {}]
  %s4 = inlined_call_operand.vmem [shape: f32[1,32], index: 4, kind: input, shape index: {}]
  %s5 = inlined_call_operand.vmem [shape: f32[32,10], index: 5, kind: input, shape index: {}]
  %s6 = inlined_call_operand.vmem [shape: f32[1,10], index: 6, kind: input, shape index: {}]
  %s7 = inlined_call_operand.vmem [shape: f32[1,32], index: 7, kind: input, shape index: {}]
  %s8 = inlined_call_operand.<no memory space> [shape: f32[1,1], index: 8, kind: input, shape index: {}]
  %s9 = inlined_call_operand.hbm [shape: f32[2,10], index: 9, kind: output, shape index: {0}]
  %s10 = inlined_call_operand.vmem [shape: f32[2,1], index: 10, kind: output, shape index: {1}]
  %11 = xla_tuple %s9, %s10
  %s12 = sld [smem:[#allocation0]]
  $region54: #{mynet_forward.3} parent=0
    _
  %s14 = ssub.s32 1, %s12
  %s15 = scalar_select 0, %s14, %s12
  %v16 = vstv %s8
  %17 = vst [vmem:[#allocation2] sm:$0x1] %v16
  $region1: #{mynet_forward.3} parent=0
    #allocation3 [shape = 'u8[1024]{0}', space=vmem, size = 0x400, scoped, tag = 'output window, operand 0, single buffered']
    #allocation4 [shape = 's32[1]{0}', space=sflag, size = 0x4, scoped, tag = 'scoped memory for mynet_forward.3']
    %18 = vsyncpa [#allocation4], 0
    // Predicated region
    $region2: #{mynet_forward.3} parent=1 // pred_check
      _
    $region3: #{mynet_forward.3} parent=1 // pred_check_branch
      %20 = sbr.rel (0) target = $region5
    $region4: #{mynet_forward.3} parent=1 // pred_region
      _
    $region5: #{mynet_forward.3} parent=1 // pred_fallthru
      _
    // Predicated region
    $region6: #{mynet_forward.3} parent=1 // pred_check
      _
    $region7: #{mynet_forward.3} parent=1 // pred_check_branch
      %22 = sbr.rel (0) target = $region9
    $region8: #{mynet_forward.3} parent=1 // pred_region
      _
    $region9: #{mynet_forward.3} parent=1 // pred_fallthru
      _
    // Predicated region
    $region10: #{mynet_forward.3} parent=1 // pred_check
      _
    $region11: #{mynet_forward.3} parent=1 // pred_check_branch
      %24 = sbr.rel (0) target = $region13
    $region12: #{mynet_forward.3} parent=1 // pred_region
      _
    $region13: #{mynet_forward.3} parent=1 // pred_fallthru
      _
    // Predicated region
    $region14: #{mynet_forward.3} parent=1 // pred_check
      _
    $region15: #{mynet_forward.3} parent=1 // pred_check_branch
      %26 = sbr.rel (0) target = $region17
    $region16: #{mynet_forward.3} parent=1 // pred_region
      _
    $region17: #{mynet_forward.3} parent=1 // pred_fallthru
      _
    // Predicated region
    $region18: #{mynet_forward.3} parent=1 // pred_check
      _
    $region19: #{mynet_forward.3} parent=1 // pred_check_branch
      %28 = sbr.rel (0) target = $region21
    $region20: #{mynet_forward.3} parent=1 // pred_region
      _
    $region21: #{mynet_forward.3} parent=1 // pred_fallthru
      _
    // Predicated region
    $region22: #{mynet_forward.3} parent=1 // pred_check
      _
    $region23: #{mynet_forward.3} parent=1 // pred_check_branch
      %30 = sbr.rel (0) target = $region25
    $region24: #{mynet_forward.3} parent=1 // pred_region
      _
    $region25: #{mynet_forward.3} parent=1 // pred_fallthru
      _
    // Predicated region
    $region26: #{mynet_forward.3} parent=1 // pred_check
      _
    $region27: #{mynet_forward.3} parent=1 // pred_check_branch
      %32 = sbr.rel (0) target = $region29
    $region28: #{mynet_forward.3} parent=1 // pred_region
      _
    $region29: #{mynet_forward.3} parent=1 // pred_fallthru
      _
    // Predicated region
    $region30: #{mynet_forward.3} parent=1 // pred_check
      _
    $region31: #{mynet_forward.3} parent=1 // pred_check_branch
      %34 = sbr.rel (0) target = $region33
    $region32: #{mynet_forward.3} parent=1 // pred_region
      _
    $region33: #{mynet_forward.3} parent=1 // pred_fallthru
      _
    // Predicated region
    $region34: #{mynet_forward.3} parent=1 // pred_check
      _
    $region35: #{mynet_forward.3} parent=1 // pred_check_branch
      %36 = sbr.rel (0) target = $region37
    $region36: #{mynet_forward.3} parent=1 // pred_region
      _
    $region37: #{mynet_forward.3} parent=1 // pred_fallthru
      _
    %v37 = vld [vmem:[%s0] sm:$0xff]
    %v38 = vld [vmem:[%s0 + $0x8] sm:$0xff]
    %v39 = vld [vmem:[%s0 + $0x10] sm:$0xff]
    %v40 = vld [vmem:[%s0 + $0x18] sm:$0xff]
    %v41 = vld [vmem:[%s1] sm:$0xff]
    %v42 = vld [vmem:[%s1 + $0x8] sm:$0xff]
    %v43 = vld [vmem:[%s1 + $0x10] sm:$0xff]
    %v44 = vld [vmem:[%s1 + $0x18] sm:$0xff]
    %v45 = vld [vmem:[%s1 + $0x20] sm:$0xff]
    %v46 = vld [vmem:[%s1 + $0x28] sm:$0xff]
    %v47 = vld [vmem:[%s1 + $0x30] sm:$0xff]
    %v48 = vld [vmem:[%s1 + $0x38] sm:$0xff]
    %v49 = vld [vmem:[%s1 + $0x40] sm:$0xff]
    %v50 = vld [vmem:[%s1 + $0x48] sm:$0xff]
    %v51 = vld [vmem:[%s1 + $0x50] sm:$0xff]
    %v52 = vld [vmem:[%s1 + $0x58] sm:$0xff]
    %v53 = vld [vmem:[%s1 + $0x60] sm:$0xff]
    %v54 = vld [vmem:[%s1 + $0x68] sm:$0xff]
    %v55 = vld [vmem:[%s1 + $0x70] sm:$0xff]
    %v56 = vld [vmem:[%s1 + $0x78] sm:$0xff]
    %v57 = vld [vmem:[%s1 + $0x80] sm:$0xff]
    %v58 = vld [vmem:[%s1 + $0x88] sm:$0xff]
    %v59 = vld [vmem:[%s1 + $0x90] sm:$0xff]
    %v60 = vld [vmem:[%s1 + $0x98] sm:$0xff]
    %v61 = vld [vmem:[%s1 + $0xa0] sm:$0xff]
    %v62 = vld [vmem:[%s1 + $0xa8] sm:$0xff]
    %v63 = vld [vmem:[%s1 + $0xb0] sm:$0xff]
    %v64 = vld [vmem:[%s1 + $0xb8] sm:$0xff]
    %v65 = vld [vmem:[%s1 + $0xc0] sm:$0xff]
    %v66 = vld [vmem:[%s1 + $0xc8] sm:$0xff]
    %v67 = vld [vmem:[%s1 + $0xd0] sm:$0xff]
    %v68 = vld [vmem:[%s1 + $0xd8] sm:$0xff]
    %v69 = vld [vmem:[%s1 + $0xe0] sm:$0xff]
    %v70 = vld [vmem:[%s1 + $0xe8] sm:$0xff]
    %v71 = vld [vmem:[%s1 + $0xf0] sm:$0xff]
    %v72 = vld [vmem:[%s1 + $0xf8] sm:$0xff]
    %v73 = vld [vmem:[%s1 + $0x100] sm:$0xff]
    %v74 = vld [vmem:[%s1 + $0x108] sm:$0xff]
    %v75 = vld [vmem:[%s1 + $0x110] sm:$0xff]
    %v76 = vld [vmem:[%s1 + $0x118] sm:$0xff]
    %v77 = vld [vmem:[%s1 + $0x120] sm:$0xff]
    %v78 = vld [vmem:[%s1 + $0x128] sm:$0xff]
    %v79 = vld [vmem:[%s1 + $0x130] sm:$0xff]
    %v80 = vld [vmem:[%s1 + $0x138] sm:$0xff]
    %v81 = vld [vmem:[%s1 + $0x140] sm:$0xff]
    %v82 = vld [vmem:[%s1 + $0x148] sm:$0xff]
    %v83 = vld [vmem:[%s1 + $0x150] sm:$0xff]
    %v84 = vld [vmem:[%s1 + $0x158] sm:$0xff]
    %v85 = vld [vmem:[%s1 + $0x160] sm:$0xff]
    %v86 = vld [vmem:[%s1 + $0x168] sm:$0xff]
    %v87 = vld [vmem:[%s1 + $0x170] sm:$0xff]
    %v88 = vld [vmem:[%s1 + $0x178] sm:$0xff]
    %v89 = vld [vmem:[%s1 + $0x180] sm:$0xff]
    %v90 = vld [vmem:[%s1 + $0x188] sm:$0xff]
    %v91 = vld [vmem:[%s1 + $0x190] sm:$0xff]
    %v92 = vld [vmem:[%s1 + $0x198] sm:$0xff]
    %v93 = vld [vmem:[%s1 + $0x1a0] sm:$0xff]
    %v94 = vld [vmem:[%s1 + $0x1a8] sm:$0xff]
    %v95 = vld [vmem:[%s1 + $0x1b0] sm:$0xff]
    %v96 = vld [vmem:[%s1 + $0x1b8] sm:$0xff]
    %v97 = vld [vmem:[%s1 + $0x1c0] sm:$0xff]
    %v98 = vld [vmem:[%s1 + $0x1c8] sm:$0xff]
    %v99 = vld [vmem:[%s1 + $0x1d0] sm:$0xff]
    %v100 = vld [vmem:[%s1 + $0x1d8] sm:$0xff]
    %v101 = vld [vmem:[%s1 + $0x1e0] sm:$0xff]
    %v102 = vld [vmem:[%s1 + $0x1e8] sm:$0xff]
    %v103 = vld [vmem:[%s1 + $0x1f0] sm:$0xff]
    %v104 = vld [vmem:[%s1 + $0x1f8] sm:$0xff]
    %v105 = vld [vmem:[%s1 + $0x200] sm:$0xff]
    %v106 = vld [vmem:[%s1 + $0x208] sm:$0xff]
    %v107 = vld [vmem:[%s1 + $0x210] sm:$0xff]
    %v108 = vld [vmem:[%s1 + $0x218] sm:$0xff]
    %v109 = vld [vmem:[%s1 + $0x220] sm:$0xff]
    %v110 = vld [vmem:[%s1 + $0x228] sm:$0xff]
    %v111 = vld [vmem:[%s1 + $0x230] sm:$0xff]
    %v112 = vld [vmem:[%s1 + $0x238] sm:$0xff]
    %v113 = vld [vmem:[%s1 + $0x240] sm:$0xff]
    %v114 = vld [vmem:[%s1 + $0x248] sm:$0xff]
    %v115 = vld [vmem:[%s1 + $0x250] sm:$0xff]
    %v116 = vld [vmem:[%s1 + $0x258] sm:$0xff]
    %v117 = vld [vmem:[%s1 + $0x260] sm:$0xff]
    %v118 = vld [vmem:[%s1 + $0x268] sm:$0xff]
    %v119 = vld [vmem:[%s1 + $0x270] sm:$0xff]
    %v120 = vld [vmem:[%s1 + $0x278] sm:$0xff]
    %v121 = vld [vmem:[%s1 + $0x280] sm:$0xff]
    %v122 = vld [vmem:[%s1 + $0x288] sm:$0xff]
    %v123 = vld [vmem:[%s1 + $0x290] sm:$0xff]
    %v124 = vld [vmem:[%s1 + $0x298] sm:$0xff]
    %v125 = vld [vmem:[%s1 + $0x2a0] sm:$0xff]
    %v126 = vld [vmem:[%s1 + $0x2a8] sm:$0xff]
    %v127 = vld [vmem:[%s1 + $0x2b0] sm:$0xff]
    %v128 = vld [vmem:[%s1 + $0x2b8] sm:$0xff]
    %v129 = vld [vmem:[%s1 + $0x2c0] sm:$0xff]
    %v130 = vld [vmem:[%s1 + $0x2c8] sm:$0xff]
    %v131 = vld [vmem:[%s1 + $0x2d0] sm:$0xff]
    %v132 = vld [vmem:[%s1 + $0x2d8] sm:$0xff]
    %v133 = vld [vmem:[%s1 + $0x2e0] sm:$0xff]
    %v134 = vld [vmem:[%s1 + $0x2e8] sm:$0xff]
    %v135 = vld [vmem:[%s1 + $0x2f0] sm:$0xff]
    %v136 = vld [vmem:[%s1 + $0x2f8] sm:$0xff]
    %v137 = vld [vmem:[%s1 + $0x300] sm:$0xff]
    %v138 = vld [vmem:[%s1 + $0x308] sm:$0xff]
    %v139 = vld [vmem:[%s1 + $0x310] sm:$0xff]
    %v140 = vld [vmem:[%s1 + $0x318] sm:$0xff]
    %v141 = vld [vmem:[%s1 + $0x320] sm:$0xff]
    %v142 = vld [vmem:[%s1 + $0x328] sm:$0xff]
    %v143 = vld [vmem:[%s1 + $0x330] sm:$0xff]
    %v144 = vld [vmem:[%s1 + $0x338] sm:$0xff]
    %v145 = vld [vmem:[%s1 + $0x340] sm:$0xff]
    %v146 = vld [vmem:[%s1 + $0x348] sm:$0xff]
    %v147 = vld [vmem:[%s1 + $0x350] sm:$0xff]
    %v148 = vld [vmem:[%s1 + $0x358] sm:$0xff]
    %v149 = vld [vmem:[%s1 + $0x360] sm:$0xff]
    %v150 = vld [vmem:[%s1 + $0x368] sm:$0xff]
    %v151 = vld [vmem:[%s1 + $0x370] sm:$0xff]
    %v152 = vld [vmem:[%s1 + $0x378] sm:$0xff]
    %v153 = vld [vmem:[%s1 + $0x380] sm:$0xff]
    %v154 = vld [vmem:[%s1 + $0x388] sm:$0xff]
    %v155 = vld [vmem:[%s1 + $0x390] sm:$0xff]
    %v156 = vld [vmem:[%s1 + $0x398] sm:$0xff]
    %v157 = vld [vmem:[%s1 + $0x3a0] sm:$0xff]
    %v158 = vld [vmem:[%s1 + $0x3a8] sm:$0xff]
    %v159 = vld [vmem:[%s1 + $0x3b0] sm:$0xff]
    %v160 = vld [vmem:[%s1 + $0x3b8] sm:$0xff]
    %v161 = vld [vmem:[%s1 + $0x3c0] sm:$0xff]
    %v162 = vld [vmem:[%s1 + $0x3c8] sm:$0xff]
    %v163 = vld [vmem:[%s1 + $0x3d0] sm:$0xff]
    %v164 = vld [vmem:[%s1 + $0x3d8] sm:$0xff]
    %v165 = vld [vmem:[%s1 + $0x3e0] sm:$0xff]
    %v166 = vld [vmem:[%s1 + $0x3e8] sm:$0xff]
    %v167 = vld [vmem:[%s1 + $0x3f0] sm:$0xff]
    %v168 = vld [vmem:[%s1 + $0x3f8] sm:$0xff]
    %v169 = vld [vmem:[%s1 + $0x400] sm:$0xff]
    %v170 = vld [vmem:[%s1 + $0x408] sm:$0xff]
    %v171 = vld [vmem:[%s1 + $0x410] sm:$0xff]
    %v172 = vld [vmem:[%s1 + $0x418] sm:$0xff]
    %v173 = vld [vmem:[%s1 + $0x420] sm:$0xff]
    %v174 = vld [vmem:[%s1 + $0x428] sm:$0xff]
    %v175 = vld [vmem:[%s1 + $0x430] sm:$0xff]
    %v176 = vld [vmem:[%s1 + $0x438] sm:$0xff]
    %v177 = vld [vmem:[%s1 + $0x440] sm:$0xff]
    %v178 = vld [vmem:[%s1 + $0x448] sm:$0xff]
    %v179 = vld [vmem:[%s1 + $0x450] sm:$0xff]
    %v180 = vld [vmem:[%s1 + $0x458] sm:$0xff]
    %v181 = vld [vmem:[%s1 + $0x460] sm:$0xff]
    %v182 = vld [vmem:[%s1 + $0x468] sm:$0xff]
    %v183 = vld [vmem:[%s1 + $0x470] sm:$0xff]
    %v184 = vld [vmem:[%s1 + $0x478] sm:$0xff]
    %v185 = vld [vmem:[%s1 + $0x480] sm:$0xff]
    %v186 = vld [vmem:[%s1 + $0x488] sm:$0xff]
    %v187 = vld [vmem:[%s1 + $0x490] sm:$0xff]
    %v188 = vld [vmem:[%s1 + $0x498] sm:$0xff]
    %v189 = vld [vmem:[%s1 + $0x4a0] sm:$0xff]
    %v190 = vld [vmem:[%s1 + $0x4a8] sm:$0xff]
    %v191 = vld [vmem:[%s1 + $0x4b0] sm:$0xff]
    %v192 = vld [vmem:[%s1 + $0x4b8] sm:$0xff]
    %v193 = vld [vmem:[%s1 + $0x4c0] sm:$0xff]
    %v194 = vld [vmem:[%s1 + $0x4c8] sm:$0xff]
    %v195 = vld [vmem:[%s1 + $0x4d0] sm:$0xff]
    %v196 = vld [vmem:[%s1 + $0x4d8] sm:$0xff]
    %v197 = vld [vmem:[%s1 + $0x4e0] sm:$0xff]
    %v198 = vld [vmem:[%s1 + $0x4e8] sm:$0xff]
    %v199 = vld [vmem:[%s1 + $0x4f0] sm:$0xff]
    %v200 = vld [vmem:[%s1 + $0x4f8] sm:$0xff]
    %v201 = vld [vmem:[%s1 + $0x500] sm:$0xff]
    %v202 = vld [vmem:[%s1 + $0x508] sm:$0xff]
    %v203 = vld [vmem:[%s1 + $0x510] sm:$0xff]
    %v204 = vld [vmem:[%s1 + $0x518] sm:$0xff]
    %v205 = vld [vmem:[%s1 + $0x520] sm:$0xff]
    %v206 = vld [vmem:[%s1 + $0x528] sm:$0xff]
    %v207 = vld [vmem:[%s1 + $0x530] sm:$0xff]
    %v208 = vld [vmem:[%s1 + $0x538] sm:$0xff]
    %v209 = vld [vmem:[%s1 + $0x540] sm:$0xff]
    %v210 = vld [vmem:[%s1 + $0x548] sm:$0xff]
    %v211 = vld [vmem:[%s1 + $0x550] sm:$0xff]
    %v212 = vld [vmem:[%s1 + $0x558] sm:$0xff]
    %v213 = vld [vmem:[%s1 + $0x560] sm:$0xff]
    %v214 = vld [vmem:[%s1 + $0x568] sm:$0xff]
    %v215 = vld [vmem:[%s1 + $0x570] sm:$0xff]
    %v216 = vld [vmem:[%s1 + $0x578] sm:$0xff]
    %v217 = vld [vmem:[%s1 + $0x580] sm:$0xff]
    %v218 = vld [vmem:[%s1 + $0x588] sm:$0xff]
    %v219 = vld [vmem:[%s1 + $0x590] sm:$0xff]
    %v220 = vld [vmem:[%s1 + $0x598] sm:$0xff]
    %v221 = vld [vmem:[%s1 + $0x5a0] sm:$0xff]
    %v222 = vld [vmem:[%s1 + $0x5a8] sm:$0xff]
    %v223 = vld [vmem:[%s1 + $0x5b0] sm:$0xff]
    %v224 = vld [vmem:[%s1 + $0x5b8] sm:$0xff]
    %v225 = vld [vmem:[%s1 + $0x5c0] sm:$0xff]
    %v226 = vld [vmem:[%s1 + $0x5c8] sm:$0xff]
    %v227 = vld [vmem:[%s1 + $0x5d0] sm:$0xff]
    %v228 = vld [vmem:[%s1 + $0x5d8] sm:$0xff]
    %v229 = vld [vmem:[%s1 + $0x5e0] sm:$0xff]
    %v230 = vld [vmem:[%s1 + $0x5e8] sm:$0xff]
    %v231 = vld [vmem:[%s1 + $0x5f0] sm:$0xff]
    %v232 = vld [vmem:[%s1 + $0x5f8] sm:$0xff]
    %v233 = vld [vmem:[%s1 + $0x600] sm:$0xff]
    %v234 = vld [vmem:[%s1 + $0x608] sm:$0xff]
    %v235 = vld [vmem:[%s1 + $0x610] sm:$0xff]
    %v236 = vld [vmem:[%s1 + $0x618] sm:$0xff]
    %v237 = vld [vmem:[%s1 + $0x620] sm:$0xff]
    %v238 = vld [vmem:[%s1 + $0x628] sm:$0xff]
    %v239 = vld [vmem:[%s1 + $0x630] sm:$0xff]
    %v240 = vld [vmem:[%s1 + $0x638] sm:$0xff]
    %v241 = vld [vmem:[%s1 + $0x640] sm:$0xff]
    %v242 = vld [vmem:[%s1 + $0x648] sm:$0xff]
    %v243 = vld [vmem:[%s1 + $0x650] sm:$0xff]
    %v244 = vld [vmem:[%s1 + $0x658] sm:$0xff]
    %v245 = vld [vmem:[%s1 + $0x660] sm:$0xff]
    %v246 = vld [vmem:[%s1 + $0x668] sm:$0xff]
    %v247 = vld [vmem:[%s1 + $0x670] sm:$0xff]
    %v248 = vld [vmem:[%s1 + $0x678] sm:$0xff]
    %v249 = vld [vmem:[%s1 + $0x680] sm:$0xff]
    %v250 = vld [vmem:[%s1 + $0x688] sm:$0xff]
    %v251 = vld [vmem:[%s1 + $0x690] sm:$0xff]
    %v252 = vld [vmem:[%s1 + $0x698] sm:$0xff]
    %v253 = vld [vmem:[%s1 + $0x6a0] sm:$0xff]
    %v254 = vld [vmem:[%s1 + $0x6a8] sm:$0xff]
    %v255 = vld [vmem:[%s1 + $0x6b0] sm:$0xff]
    %v256 = vld [vmem:[%s1 + $0x6b8] sm:$0xff]
    %v257 = vld [vmem:[%s1 + $0x6c0] sm:$0xff]
    %v258 = vld [vmem:[%s1 + $0x6c8] sm:$0xff]
    %v259 = vld [vmem:[%s1 + $0x6d0] sm:$0xff]
    %v260 = vld [vmem:[%s1 + $0x6d8] sm:$0xff]
    %v261 = vld [vmem:[%s1 + $0x6e0] sm:$0xff]
    %v262 = vld [vmem:[%s1 + $0x6e8] sm:$0xff]
    %v263 = vld [vmem:[%s1 + $0x6f0] sm:$0xff]
    %v264 = vld [vmem:[%s1 + $0x6f8] sm:$0xff]
    %v265 = vld [vmem:[%s1 + $0x700] sm:$0xff]
    %v266 = vld [vmem:[%s1 + $0x708] sm:$0xff]
    %v267 = vld [vmem:[%s1 + $0x710] sm:$0xff]
    %v268 = vld [vmem:[%s1 + $0x718] sm:$0xff]
    %v269 = vld [vmem:[%s1 + $0x720] sm:$0xff]
    %v270 = vld [vmem:[%s1 + $0x728] sm:$0xff]
    %v271 = vld [vmem:[%s1 + $0x730] sm:$0xff]
    %v272 = vld [vmem:[%s1 + $0x738] sm:$0xff]
    %v273 = vld [vmem:[%s1 + $0x740] sm:$0xff]
    %v274 = vld [vmem:[%s1 + $0x748] sm:$0xff]
    %v275 = vld [vmem:[%s1 + $0x750] sm:$0xff]
    %v276 = vld [vmem:[%s1 + $0x758] sm:$0xff]
    %v277 = vld [vmem:[%s1 + $0x760] sm:$0xff]
    %v278 = vld [vmem:[%s1 + $0x768] sm:$0xff]
    %v279 = vld [vmem:[%s1 + $0x770] sm:$0xff]
    %v280 = vld [vmem:[%s1 + $0x778] sm:$0xff]
    %v281 = vld [vmem:[%s1 + $0x780] sm:$0xff]
    %v282 = vld [vmem:[%s1 + $0x788] sm:$0xff]
    %v283 = vld [vmem:[%s1 + $0x790] sm:$0xff]
    %v284 = vld [vmem:[%s1 + $0x798] sm:$0xff]
    %v285 = vld [vmem:[%s1 + $0x7a0] sm:$0xff]
    %v286 = vld [vmem:[%s1 + $0x7a8] sm:$0xff]
    %v287 = vld [vmem:[%s1 + $0x7b0] sm:$0xff]
    %v288 = vld [vmem:[%s1 + $0x7b8] sm:$0xff]
    %v289 = vld [vmem:[%s1 + $0x7c0] sm:$0xff]
    %v290 = vld [vmem:[%s1 + $0x7c8] sm:$0xff]
    %v291 = vld [vmem:[%s1 + $0x7d0] sm:$0xff]
    %v292 = vld [vmem:[%s1 + $0x7d8] sm:$0xff]
    %v293 = vld [vmem:[%s1 + $0x7e0] sm:$0xff]
    %v294 = vld [vmem:[%s1 + $0x7e8] sm:$0xff]
    %v295 = vld [vmem:[%s1 + $0x7f0] sm:$0xff]
    %v296 = vld [vmem:[%s1 + $0x7f8] sm:$0xff]
    %v297 = vld [vmem:[%s2] sm:$0x1]
    %v299 = vlaneseq
    %v300 = vshrl.u32 %v299, 7
    %v301 = vsub.s32 0, %v300
    %v302 = vrot.slane %v297, %v301
    %v308 = vcombine.high %v37, %v37
    %v310 = vunpack.c.l.s4 1983009808
    %v311 = vunpack.c.0.s8 %v310
    %v312 = vlaneseq
    %v313 = vshrl.u32 %v312, 7
    %v314 = vsub.s32 %v311, %v313
    %v315 = vrot.slane %v37, %v314
    %v317 = vunpack.c.l.s4 1983009808
    %v318 = vunpack.c.0.s8 %v317
    %v319 = vlaneseq
    %v320 = vshrl.u32 %v319, 7
    %v321 = vsub.s32 %v318, %v320
    %v322 = vrot.slane %v308, %v321
    %v323 = vcombine.high %v315, %v315
    %v324 = vcombine.high %v322, %v322
    %v325 = vcombine.high %v38, %v38
    %v327 = vunpack.c.l.s4 1983009808
    %v328 = vunpack.c.0.s8 %v327
    %v329 = vlaneseq
    %v330 = vshrl.u32 %v329, 7
    %v331 = vsub.s32 %v328, %v330
    %v332 = vrot.slane %v38, %v331
    %v334 = vunpack.c.l.s4 1983009808
    %v335 = vunpack.c.0.s8 %v334
    %v336 = vlaneseq
    %v337 = vshrl.u32 %v336, 7
    %v338 = vsub.s32 %v335, %v337
    %v339 = vrot.slane %v325, %v338
    %v340 = vcombine.high %v332, %v332
    %v341 = vcombine.high %v339, %v339
    %v342 = vcombine.high %v39, %v39
    %v344 = vunpack.c.l.s4 1983009808
    %v345 = vunpack.c.0.s8 %v344
    %v346 = vlaneseq
    %v347 = vshrl.u32 %v346, 7
    %v348 = vsub.s32 %v345, %v347
    %v349 = vrot.slane %v39, %v348
    %v351 = vunpack.c.l.s4 1983009808
    %v352 = vunpack.c.0.s8 %v351
    %v353 = vlaneseq
    %v354 = vshrl.u32 %v353, 7
    %v355 = vsub.s32 %v352, %v354
    %v356 = vrot.slane %v342, %v355
    %v357 = vcombine.high %v349, %v349
    %v358 = vcombine.high %v356, %v356
    %v359 = vcombine.high %v40, %v40
    %v361 = vunpack.c.l.s4 1983009808
    %v362 = vunpack.c.0.s8 %v361
    %v363 = vlaneseq
    %v364 = vshrl.u32 %v363, 7
    %v365 = vsub.s32 %v362, %v364
    %v366 = vrot.slane %v40, %v365
    %v368 = vunpack.c.l.s4 1983009808
    %v369 = vunpack.c.0.s8 %v368
    %v370 = vlaneseq
    %v371 = vshrl.u32 %v370, 7
    %v372 = vsub.s32 %v369, %v371
    %v373 = vrot.slane %v359, %v372
    %v374 = vcombine.high %v366, %v366
    %v375 = vcombine.high %v373, %v373
    %392 = vmatprep.subr.mxu0 0.0
    %393 = vmatpush1.msra.mxu0 %v41
    %394 = vmatprep.subr.mxu0 0.0
    %395 = vmatpush1.msra.mxu0 %v42
    %396 = vmatprep.subr.mxu0 0.0
    %397 = vmatpush1.msra.mxu0 %v43
    %398 = vmatprep.subr.mxu0 0.0
    %399 = vmatpush1.msra.mxu0 %v44
    %400 = vmatprep.subr.mxu0 0.0
    %401 = vmatpush1.msra.mxu0 %v45
    %402 = vmatprep.subr.mxu0 0.0
    %403 = vmatpush1.msra.mxu0 %v46
    %404 = vmatprep.subr.mxu0 0.0
    %405 = vmatpush1.msra.mxu0 %v47
    %406 = vmatprep.subr.mxu0 0.0
    %407 = vmatpush1.msra.mxu0 %v48
    %408 = vmatprep.subr.mxu0 0.0
    %409 = vmatpush1.msra.mxu0 %v49
    %410 = vmatprep.subr.mxu0 0.0
    %411 = vmatpush1.msra.mxu0 %v50
    %412 = vmatprep.subr.mxu0 0.0
    %413 = vmatpush1.msra.mxu0 %v51
    %414 = vmatprep.subr.mxu0 0.0
    %415 = vmatpush1.msra.mxu0 %v52
    %416 = vmatprep.subr.mxu0 0.0
    %417 = vmatpush1.msra.mxu0 %v53
    %418 = vmatprep.subr.mxu0 0.0
    %419 = vmatpush1.msra.mxu0 %v54
    %420 = vmatprep.subr.mxu0 0.0
    %421 = vmatpush1.msra.mxu0 %v55
    %422 = vmatprep.subr.mxu0 0.0
    %423 = vmatpush1.msra.mxu0 %v56
    %424 = vmatprep.subr.mxu0 0.0
    %425 = vmatpush1.msra.mxu0 %v57
    %426 = vmatprep.subr.mxu0 0.0
    %427 = vmatpush1.msra.mxu0 %v58
    %428 = vmatprep.subr.mxu0 0.0
    %429 = vmatpush1.msra.mxu0 %v59
    %430 = vmatprep.subr.mxu0 0.0
    %431 = vmatpush1.msra.mxu0 %v60
    %432 = vmatprep.subr.mxu0 0.0
    %433 = vmatpush1.msra.mxu0 %v61
    %434 = vmatprep.subr.mxu0 0.0
    %435 = vmatpush1.msra.mxu0 %v62
    %436 = vmatprep.subr.mxu0 0.0
    %437 = vmatpush1.msra.mxu0 %v63
    %438 = vmatprep.subr.mxu0 0.0
    %439 = vmatpush1.msra.mxu0 %v64
    %440 = vmatprep.subr.mxu0 0.0
    %441 = vmatpush1.msra.mxu0 %v65
    %442 = vmatprep.subr.mxu0 0.0
    %443 = vmatpush1.msra.mxu0 %v66
    %444 = vmatprep.subr.mxu0 0.0
    %445 = vmatpush1.msra.mxu0 %v67
    %446 = vmatprep.subr.mxu0 0.0
    %447 = vmatpush1.msra.mxu0 %v68
    %448 = vmatprep.subr.mxu0 0.0
    %449 = vmatpush1.msra.mxu0 %v69
    %450 = vmatprep.subr.mxu0 0.0
    %451 = vmatpush1.msra.mxu0 %v70
    %452 = vmatprep.subr.mxu0 0.0
    %453 = vmatpush1.msra.mxu0 %v71
    %454 = vmatprep.subr.mxu0 0.0
    %455 = vmatpush1.msra.mxu0 %v72
    %456 = vmatprep.mubr.f32.mxu0 %v323
    %457 = vmatmul.mubr.f32.gmra.mrb[0].mxu0 %v315
    %v458 = vpop.f32.mrb[0].mxu0
    %v459 = vadd.f32 %v302, %v458
    %v460 = vpop.f32.mrb[0].mxu0
    %461 = vdwg.mxu0
    %462 = vmatprep.subr.mxu0 0.0
    %463 = vmatpush1.msra.mxu0 %v73
    %464 = vmatprep.subr.mxu0 0.0
    %465 = vmatpush1.msra.mxu0 %v74
    %466 = vmatprep.subr.mxu0 0.0
    %467 = vmatpush1.msra.mxu0 %v75
    %468 = vmatprep.subr.mxu0 0.0
    %469 = vmatpush1.msra.mxu0 %v76
    %470 = vmatprep.subr.mxu0 0.0
    %471 = vmatpush1.msra.mxu0 %v77
    %472 = vmatprep.subr.mxu0 0.0
    %473 = vmatpush1.msra.mxu0 %v78
    %474 = vmatprep.subr.mxu0 0.0
    %475 = vmatpush1.msra.mxu0 %v79
    %476 = vmatprep.subr.mxu0 0.0
    %477 = vmatpush1.msra.mxu0 %v80
    %478 = vmatprep.subr.mxu0 0.0
    %479 = vmatpush1.msra.mxu0 %v81
    %480 = vmatprep.subr.mxu0 0.0
    %481 = vmatpush1.msra.mxu0 %v82
    %482 = vmatprep.subr.mxu0 0.0
    %483 = vmatpush1.msra.mxu0 %v83
    %484 = vmatprep.subr.mxu0 0.0
    %485 = vmatpush1.msra.mxu0 %v84
    %486 = vmatprep.subr.mxu0 0.0
    %487 = vmatpush1.msra.mxu0 %v85
    %488 = vmatprep.subr.mxu0 0.0
    %489 = vmatpush1.msra.mxu0 %v86
    %490 = vmatprep.subr.mxu0 0.0
    %491 = vmatpush1.msra.mxu0 %v87
    %492 = vmatprep.subr.mxu0 0.0
    %493 = vmatpush1.msra.mxu0 %v88
    %494 = vmatprep.subr.mxu0 0.0
    %495 = vmatpush1.msra.mxu0 %v89
    %496 = vmatprep.subr.mxu0 0.0
    %497 = vmatpush1.msra.mxu0 %v90
    %498 = vmatprep.subr.mxu0 0.0
    %499 = vmatpush1.msra.mxu0 %v91
    %500 = vmatprep.subr.mxu0 0.0
    %501 = vmatpush1.msra.mxu0 %v92
    %502 = vmatprep.subr.mxu0 0.0
    %503 = vmatpush1.msra.mxu0 %v93
    %504 = vmatprep.subr.mxu0 0.0
    %505 = vmatpush1.msra.mxu0 %v94
    %506 = vmatprep.subr.mxu0 0.0
    %507 = vmatpush1.msra.mxu0 %v95
    %508 = vmatprep.subr.mxu0 0.0
    %509 = vmatpush1.msra.mxu0 %v96
    %510 = vmatprep.subr.mxu0 0.0
    %511 = vmatpush1.msra.mxu0 %v97
    %512 = vmatprep.subr.mxu0 0.0
    %513 = vmatpush1.msra.mxu0 %v98
    %514 = vmatprep.subr.mxu0 0.0
    %515 = vmatpush1.msra.mxu0 %v99
    %516 = vmatprep.subr.mxu0 0.0
    %517 = vmatpush1.msra.mxu0 %v100
    %518 = vmatprep.subr.mxu0 0.0
    %519 = vmatpush1.msra.mxu0 %v101
    %520 = vmatprep.subr.mxu0 0.0
    %521 = vmatpush1.msra.mxu0 %v102
    %522 = vmatprep.subr.mxu0 0.0
    %523 = vmatpush1.msra.mxu0 %v103
    %524 = vmatprep.subr.mxu0 0.0
    %525 = vmatpush1.msra.mxu0 %v104
    %526 = vmatprep.mubr.f32.mxu0 %v324
    %527 = vmatmul.mubr.f32.gmra.mrb[0].mxu0 %v322
    %v528 = vpop.f32.mrb[0].mxu0
    %v529 = vadd.f32 %v459, %v528
    %v530 = vpop.f32.mrb[0].mxu0
    %531 = vdwg.mxu0
    %532 = vmatprep.subr.mxu0 0.0
    %533 = vmatpush1.msra.mxu0 %v105
    %534 = vmatprep.subr.mxu0 0.0
    %535 = vmatpush1.msra.mxu0 %v106
    %536 = vmatprep.subr.mxu0 0.0
    %537 = vmatpush1.msra.mxu0 %v107
    %538 = vmatprep.subr.mxu0 0.0
    %539 = vmatpush1.msra.mxu0 %v108
    %540 = vmatprep.subr.mxu0 0.0
    %541 = vmatpush1.msra.mxu0 %v109
    %542 = vmatprep.subr.mxu0 0.0
    %543 = vmatpush1.msra.mxu0 %v110
    %544 = vmatprep.subr.mxu0 0.0
    %545 = vmatpush1.msra.mxu0 %v111
    %546 = vmatprep.subr.mxu0 0.0
    %547 = vmatpush1.msra.mxu0 %v112
    %548 = vmatprep.subr.mxu0 0.0
    %549 = vmatpush1.msra.mxu0 %v113
    %550 = vmatprep.subr.mxu0 0.0
    %551 = vmatpush1.msra.mxu0 %v114
    %552 = vmatprep.subr.mxu0 0.0
    %553 = vmatpush1.msra.mxu0 %v115
    %554 = vmatprep.subr.mxu0 0.0
    %555 = vmatpush1.msra.mxu0 %v116
    %556 = vmatprep.subr.mxu0 0.0
    %557 = vmatpush1.msra.mxu0 %v117
    %558 = vmatprep.subr.mxu0 0.0
    %559 = vmatpush1.msra.mxu0 %v118
    %560 = vmatprep.subr.mxu0 0.0
    %561 = vmatpush1.msra.mxu0 %v119
    %562 = vmatprep.subr.mxu0 0.0
    %563 = vmatpush1.msra.mxu0 %v120
    %564 = vmatprep.subr.mxu0 0.0
    %565 = vmatpush1.msra.mxu0 %v121
    %566 = vmatprep.subr.mxu0 0.0
    %567 = vmatpush1.msra.mxu0 %v122
    %568 = vmatprep.subr.mxu0 0.0
    %569 = vmatpush1.msra.mxu0 %v123
    %570 = vmatprep.subr.mxu0 0.0
    %571 = vmatpush1.msra.mxu0 %v124
    %572 = vmatprep.subr.mxu0 0.0
    %573 = vmatpush1.msra.mxu0 %v125
    %574 = vmatprep.subr.mxu0 0.0
    %575 = vmatpush1.msra.mxu0 %v126
    %576 = vmatprep.subr.mxu0 0.0
    %577 = vmatpush1.msra.mxu0 %v127
    %578 = vmatprep.subr.mxu0 0.0
    %579 = vmatpush1.msra.mxu0 %v128
    %580 = vmatprep.subr.mxu0 0.0
    %581 = vmatpush1.msra.mxu0 %v129
    %582 = vmatprep.subr.mxu0 0.0
    %583 = vmatpush1.msra.mxu0 %v130
    %584 = vmatprep.subr.mxu0 0.0
    %585 = vmatpush1.msra.mxu0 %v131
    %586 = vmatprep.subr.mxu0 0.0
    %587 = vmatpush1.msra.mxu0 %v132
    %588 = vmatprep.subr.mxu0 0.0
    %589 = vmatpush1.msra.mxu0 %v133
    %590 = vmatprep.subr.mxu0 0.0
    %591 = vmatpush1.msra.mxu0 %v134
    %592 = vmatprep.subr.mxu0 0.0
    %593 = vmatpush1.msra.mxu0 %v135
    %594 = vmatprep.subr.mxu0 0.0
    %595 = vmatpush1.msra.mxu0 %v136
    %596 = vmatprep.mubr.f32.mxu0 %v340
    %597 = vmatmul.mubr.f32.gmra.mrb[0].mxu0 %v332
    %v598 = vpop.f32.mrb[0].mxu0
    %v599 = vadd.f32 %v529, %v598
    %v600 = vpop.f32.mrb[0].mxu0
    %601 = vdwg.mxu0
    %602 = vmatprep.subr.mxu0 0.0
    %603 = vmatpush1.msra.mxu0 %v137
    %604 = vmatprep.subr.mxu0 0.0
    %605 = vmatpush1.msra.mxu0 %v138
    %606 = vmatprep.subr.mxu0 0.0
    %607 = vmatpush1.msra.mxu0 %v139
    %608 = vmatprep.subr.mxu0 0.0
    %609 = vmatpush1.msra.mxu0 %v140
    %610 = vmatprep.subr.mxu0 0.0
    %611 = vmatpush1.msra.mxu0 %v141
    %612 = vmatprep.subr.mxu0 0.0
    %613 = vmatpush1.msra.mxu0 %v142
    %614 = vmatprep.subr.mxu0 0.0
    %615 = vmatpush1.msra.mxu0 %v143
    %616 = vmatprep.subr.mxu0 0.0
    %617 = vmatpush1.msra.mxu0 %v144
    %618 = vmatprep.subr.mxu0 0.0
    %619 = vmatpush1.msra.mxu0 %v145
    %620 = vmatprep.subr.mxu0 0.0
    %621 = vmatpush1.msra.mxu0 %v146
    %622 = vmatprep.subr.mxu0 0.0
    %623 = vmatpush1.msra.mxu0 %v147
    %624 = vmatprep.subr.mxu0 0.0
    %625 = vmatpush1.msra.mxu0 %v148
    %626 = vmatprep.subr.mxu0 0.0
    %627 = vmatpush1.msra.mxu0 %v149
    %628 = vmatprep.subr.mxu0 0.0
    %629 = vmatpush1.msra.mxu0 %v150
    %630 = vmatprep.subr.mxu0 0.0
    %631 = vmatpush1.msra.mxu0 %v151
    %632 = vmatprep.subr.mxu0 0.0
    %633 = vmatpush1.msra.mxu0 %v152
    %634 = vmatprep.subr.mxu0 0.0
    %635 = vmatpush1.msra.mxu0 %v153
    %636 = vmatprep.subr.mxu0 0.0
    %637 = vmatpush1.msra.mxu0 %v154
    %638 = vmatprep.subr.mxu0 0.0
    %639 = vmatpush1.msra.mxu0 %v155
    %640 = vmatprep.subr.mxu0 0.0
    %641 = vmatpush1.msra.mxu0 %v156
    %642 = vmatprep.subr.mxu0 0.0
    %643 = vmatpush1.msra.mxu0 %v157
    %644 = vmatprep.subr.mxu0 0.0
    %645 = vmatpush1.msra.mxu0 %v158
    %646 = vmatprep.subr.mxu0 0.0
    %647 = vmatpush1.msra.mxu0 %v159
    %648 = vmatprep.subr.mxu0 0.0
    %649 = vmatpush1.msra.mxu0 %v160
    %650 = vmatprep.subr.mxu0 0.0
    %651 = vmatpush1.msra.mxu0 %v161
    %652 = vmatprep.subr.mxu0 0.0
    %653 = vmatpush1.msra.mxu0 %v162
    %654 = vmatprep.subr.mxu0 0.0
    %655 = vmatpush1.msra.mxu0 %v163
    %656 = vmatprep.subr.mxu0 0.0
    %657 = vmatpush1.msra.mxu0 %v164
    %658 = vmatprep.subr.mxu0 0.0
    %659 = vmatpush1.msra.mxu0 %v165
    %660 = vmatprep.subr.mxu0 0.0
    %661 = vmatpush1.msra.mxu0 %v166
    %662 = vmatprep.subr.mxu0 0.0
    %663 = vmatpush1.msra.mxu0 %v167
    %664 = vmatprep.subr.mxu0 0.0
    %665 = vmatpush1.msra.mxu0 %v168
    %666 = vmatprep.mubr.f32.mxu0 %v341
    %667 = vmatmul.mubr.f32.gmra.mrb[0].mxu0 %v339
    %v668 = vpop.f32.mrb[0].mxu0
    %v669 = vadd.f32 %v599, %v668
    %v670 = vpop.f32.mrb[0].mxu0
    %671 = vdwg.mxu0
    %672 = vmatprep.subr.mxu0 0.0
    %673 = vmatpush1.msra.mxu0 %v169
    %674 = vmatprep.subr.mxu0 0.0
    %675 = vmatpush1.msra.mxu0 %v170
    %676 = vmatprep.subr.mxu0 0.0
    %677 = vmatpush1.msra.mxu0 %v171
    %678 = vmatprep.subr.mxu0 0.0
    %679 = vmatpush1.msra.mxu0 %v172
    %680 = vmatprep.subr.mxu0 0.0
    %681 = vmatpush1.msra.mxu0 %v173
    %682 = vmatprep.subr.mxu0 0.0
    %683 = vmatpush1.msra.mxu0 %v174
    %684 = vmatprep.subr.mxu0 0.0
    %685 = vmatpush1.msra.mxu0 %v175
    %686 = vmatprep.subr.mxu0 0.0
    %687 = vmatpush1.msra.mxu0 %v176
    %688 = vmatprep.subr.mxu0 0.0
    %689 = vmatpush1.msra.mxu0 %v177
    %690 = vmatprep.subr.mxu0 0.0
    %691 = vmatpush1.msra.mxu0 %v178
    %692 = vmatprep.subr.mxu0 0.0
    %693 = vmatpush1.msra.mxu0 %v179
    %694 = vmatprep.subr.mxu0 0.0
    %695 = vmatpush1.msra.mxu0 %v180
    %696 = vmatprep.subr.mxu0 0.0
    %697 = vmatpush1.msra.mxu0 %v181
    %698 = vmatprep.subr.mxu0 0.0
    %699 = vmatpush1.msra.mxu0 %v182
    %700 = vmatprep.subr.mxu0 0.0
    %701 = vmatpush1.msra.mxu0 %v183
    %702 = vmatprep.subr.mxu0 0.0
    %703 = vmatpush1.msra.mxu0 %v184
    %704 = vmatprep.subr.mxu0 0.0
    %705 = vmatpush1.msra.mxu0 %v185
    %706 = vmatprep.subr.mxu0 0.0
    %707 = vmatpush1.msra.mxu0 %v186
    %708 = vmatprep.subr.mxu0 0.0
    %709 = vmatpush1.msra.mxu0 %v187
    %710 = vmatprep.subr.mxu0 0.0
    %711 = vmatpush1.msra.mxu0 %v188
    %712 = vmatprep.subr.mxu0 0.0
    %713 = vmatpush1.msra.mxu0 %v189
    %714 = vmatprep.subr.mxu0 0.0
    %715 = vmatpush1.msra.mxu0 %v190
    %716 = vmatprep.subr.mxu0 0.0
    %717 = vmatpush1.msra.mxu0 %v191
    %718 = vmatprep.subr.mxu0 0.0
    %719 = vmatpush1.msra.mxu0 %v192
    %720 = vmatprep.subr.mxu0 0.0
    %721 = vmatpush1.msra.mxu0 %v193
    %722 = vmatprep.subr.mxu0 0.0
    %723 = vmatpush1.msra.mxu0 %v194
    %724 = vmatprep.subr.mxu0 0.0
    %725 = vmatpush1.msra.mxu0 %v195
    %726 = vmatprep.subr.mxu0 0.0
    %727 = vmatpush1.msra.mxu0 %v196
    %728 = vmatprep.subr.mxu0 0.0
    %729 = vmatpush1.msra.mxu0 %v197
    %730 = vmatprep.subr.mxu0 0.0
    %731 = vmatpush1.msra.mxu0 %v198
    %732 = vmatprep.subr.mxu0 0.0
    %733 = vmatpush1.msra.mxu0 %v199
    %734 = vmatprep.subr.mxu0 0.0
    %735 = vmatpush1.msra.mxu0 %v200
    %736 = vmatprep.mubr.f32.mxu0 %v357
    %737 = vmatmul.mubr.f32.gmra.mrb[0].mxu0 %v349
    %v738 = vpop.f32.mrb[0].mxu0
    %v739 = vadd.f32 %v669, %v738
    %v740 = vpop.f32.mrb[0].mxu0
    %741 = vdwg.mxu0
    %742 = vmatprep.subr.mxu0 0.0
    %743 = vmatpush1.msra.mxu0 %v201
    %744 = vmatprep.subr.mxu0 0.0
    %745 = vmatpush1.msra.mxu0 %v202
    %746 = vmatprep.subr.mxu0 0.0
    %747 = vmatpush1.msra.mxu0 %v203
    %748 = vmatprep.subr.mxu0 0.0
    %749 = vmatpush1.msra.mxu0 %v204
    %750 = vmatprep.subr.mxu0 0.0
    %751 = vmatpush1.msra.mxu0 %v205
    %752 = vmatprep.subr.mxu0 0.0
    %753 = vmatpush1.msra.mxu0 %v206
    %754 = vmatprep.subr.mxu0 0.0
    %755 = vmatpush1.msra.mxu0 %v207
    %756 = vmatprep.subr.mxu0 0.0
    %757 = vmatpush1.msra.mxu0 %v208
    %758 = vmatprep.subr.mxu0 0.0
    %759 = vmatpush1.msra.mxu0 %v209
    %760 = vmatprep.subr.mxu0 0.0
    %761 = vmatpush1.msra.mxu0 %v210
    %762 = vmatprep.subr.mxu0 0.0
    %763 = vmatpush1.msra.mxu0 %v211
    %764 = vmatprep.subr.mxu0 0.0
    %765 = vmatpush1.msra.mxu0 %v212
    %766 = vmatprep.subr.mxu0 0.0
    %767 = vmatpush1.msra.mxu0 %v213
    %768 = vmatprep.subr.mxu0 0.0
    %769 = vmatpush1.msra.mxu0 %v214
    %770 = vmatprep.subr.mxu0 0.0
    %771 = vmatpush1.msra.mxu0 %v215
    %772 = vmatprep.subr.mxu0 0.0
    %773 = vmatpush1.msra.mxu0 %v216
    %774 = vmatprep.subr.mxu0 0.0
    %775 = vmatpush1.msra.mxu0 %v217
    %776 = vmatprep.subr.mxu0 0.0
    %777 = vmatpush1.msra.mxu0 %v218
    %778 = vmatprep.subr.mxu0 0.0
    %779 = vmatpush1.msra.mxu0 %v219
    %780 = vmatprep.subr.mxu0 0.0
    %781 = vmatpush1.msra.mxu0 %v220
    %782 = vmatprep.subr.mxu0 0.0
    %783 = vmatpush1.msra.mxu0 %v221
    %784 = vmatprep.subr.mxu0 0.0
    %785 = vmatpush1.msra.mxu0 %v222
    %786 = vmatprep.subr.mxu0 0.0
    %787 = vmatpush1.msra.mxu0 %v223
    %788 = vmatprep.subr.mxu0 0.0
    %789 = vmatpush1.msra.mxu0 %v224
    %790 = vmatprep.subr.mxu0 0.0
    %791 = vmatpush1.msra.mxu0 %v225
    %792 = vmatprep.subr.mxu0 0.0
    %793 = vmatpush1.msra.mxu0 %v226
    %794 = vmatprep.subr.mxu0 0.0
    %795 = vmatpush1.msra.mxu0 %v227
    %796 = vmatprep.subr.mxu0 0.0
    %797 = vmatpush1.msra.mxu0 %v228
    %798 = vmatprep.subr.mxu0 0.0
    %799 = vmatpush1.msra.mxu0 %v229
    %800 = vmatprep.subr.mxu0 0.0
    %801 = vmatpush1.msra.mxu0 %v230
    %802 = vmatprep.subr.mxu0 0.0
    %803 = vmatpush1.msra.mxu0 %v231
    %804 = vmatprep.subr.mxu0 0.0
    %805 = vmatpush1.msra.mxu0 %v232
    %806 = vmatprep.mubr.f32.mxu0 %v358
    %807 = vmatmul.mubr.f32.gmra.mrb[0].mxu0 %v356
    %v808 = vpop.f32.mrb[0].mxu0
    %v809 = vadd.f32 %v739, %v808
    %v810 = vpop.f32.mrb[0].mxu0
    %811 = vdwg.mxu0
    %812 = vmatprep.subr.mxu0 0.0
    %813 = vmatpush1.msra.mxu0 %v233
    %814 = vmatprep.subr.mxu0 0.0
    %815 = vmatpush1.msra.mxu0 %v234
    %816 = vmatprep.subr.mxu0 0.0
    %817 = vmatpush1.msra.mxu0 %v235
    %818 = vmatprep.subr.mxu0 0.0
    %819 = vmatpush1.msra.mxu0 %v236
    %820 = vmatprep.subr.mxu0 0.0
    %821 = vmatpush1.msra.mxu0 %v237
    %822 = vmatprep.subr.mxu0 0.0
    %823 = vmatpush1.msra.mxu0 %v238
    %824 = vmatprep.subr.mxu0 0.0
    %825 = vmatpush1.msra.mxu0 %v239
    %826 = vmatprep.subr.mxu0 0.0
    %827 = vmatpush1.msra.mxu0 %v240
    %828 = vmatprep.subr.mxu0 0.0
    %829 = vmatpush1.msra.mxu0 %v241
    %830 = vmatprep.subr.mxu0 0.0
    %831 = vmatpush1.msra.mxu0 %v242
    %832 = vmatprep.subr.mxu0 0.0
    %833 = vmatpush1.msra.mxu0 %v243
    %834 = vmatprep.subr.mxu0 0.0
    %835 = vmatpush1.msra.mxu0 %v244
    %836 = vmatprep.subr.mxu0 0.0
    %837 = vmatpush1.msra.mxu0 %v245
    %838 = vmatprep.subr.mxu0 0.0
    %839 = vmatpush1.msra.mxu0 %v246
    %840 = vmatprep.subr.mxu0 0.0
    %841 = vmatpush1.msra.mxu0 %v247
    %842 = vmatprep.subr.mxu0 0.0
    %843 = vmatpush1.msra.mxu0 %v248
    %844 = vmatprep.subr.mxu0 0.0
    %845 = vmatpush1.msra.mxu0 %v249
    %846 = vmatprep.subr.mxu0 0.0
    %847 = vmatpush1.msra.mxu0 %v250
    %848 = vmatprep.subr.mxu0 0.0
    %849 = vmatpush1.msra.mxu0 %v251
    %850 = vmatprep.subr.mxu0 0.0
    %851 = vmatpush1.msra.mxu0 %v252
    %852 = vmatprep.subr.mxu0 0.0
    %853 = vmatpush1.msra.mxu0 %v253
    %854 = vmatprep.subr.mxu0 0.0
    %855 = vmatpush1.msra.mxu0 %v254
    %856 = vmatprep.subr.mxu0 0.0
    %857 = vmatpush1.msra.mxu0 %v255
    %858 = vmatprep.subr.mxu0 0.0
    %859 = vmatpush1.msra.mxu0 %v256
    %860 = vmatprep.subr.mxu0 0.0
    %861 = vmatpush1.msra.mxu0 %v257
    %862 = vmatprep.subr.mxu0 0.0
    %863 = vmatpush1.msra.mxu0 %v258
    %864 = vmatprep.subr.mxu0 0.0
    %865 = vmatpush1.msra.mxu0 %v259
    %866 = vmatprep.subr.mxu0 0.0
    %867 = vmatpush1.msra.mxu0 %v260
    %868 = vmatprep.subr.mxu0 0.0
    %869 = vmatpush1.msra.mxu0 %v261
    %870 = vmatprep.subr.mxu0 0.0
    %871 = vmatpush1.msra.mxu0 %v262
    %872 = vmatprep.subr.mxu0 0.0
    %873 = vmatpush1.msra.mxu0 %v263
    %874 = vmatprep.subr.mxu0 0.0
    %875 = vmatpush1.msra.mxu0 %v264
    %876 = vmatprep.mubr.f32.mxu0 %v374
    %877 = vmatmul.mubr.f32.gmra.mrb[0].mxu0 %v366
    %v878 = vpop.f32.mrb[0].mxu0
    %v879 = vadd.f32 %v809, %v878
    %v880 = vpop.f32.mrb[0].mxu0
    %881 = vdwg.mxu0
    %882 = vmatprep.subr.mxu0 0.0
    %883 = vmatpush1.msra.mxu0 %v265
    %884 = vmatprep.subr.mxu0 0.0
    %885 = vmatpush1.msra.mxu0 %v266
    %886 = vmatprep.subr.mxu0 0.0
    %887 = vmatpush1.msra.mxu0 %v267
    %888 = vmatprep.subr.mxu0 0.0
    %889 = vmatpush1.msra.mxu0 %v268
    %890 = vmatprep.subr.mxu0 0.0
    %891 = vmatpush1.msra.mxu0 %v269
    %892 = vmatprep.subr.mxu0 0.0
    %893 = vmatpush1.msra.mxu0 %v270
    %894 = vmatprep.subr.mxu0 0.0
    %895 = vmatpush1.msra.mxu0 %v271
    %896 = vmatprep.subr.mxu0 0.0
    %897 = vmatpush1.msra.mxu0 %v272
    %898 = vmatprep.subr.mxu0 0.0
    %899 = vmatpush1.msra.mxu0 %v273
    %900 = vmatprep.subr.mxu0 0.0
    %901 = vmatpush1.msra.mxu0 %v274
    %902 = vmatprep.subr.mxu0 0.0
    %903 = vmatpush1.msra.mxu0 %v275
    %904 = vmatprep.subr.mxu0 0.0
    %905 = vmatpush1.msra.mxu0 %v276
    %906 = vmatprep.subr.mxu0 0.0
    %907 = vmatpush1.msra.mxu0 %v277
    %908 = vmatprep.subr.mxu0 0.0
    %909 = vmatpush1.msra.mxu0 %v278
    %910 = vmatprep.subr.mxu0 0.0
    %911 = vmatpush1.msra.mxu0 %v279
    %912 = vmatprep.subr.mxu0 0.0
    %913 = vmatpush1.msra.mxu0 %v280
    %914 = vmatprep.subr.mxu0 0.0
    %915 = vmatpush1.msra.mxu0 %v281
    %916 = vmatprep.subr.mxu0 0.0
    %917 = vmatpush1.msra.mxu0 %v282
    %918 = vmatprep.subr.mxu0 0.0
    %919 = vmatpush1.msra.mxu0 %v283
    %920 = vmatprep.subr.mxu0 0.0
    %921 = vmatpush1.msra.mxu0 %v284
    %922 = vmatprep.subr.mxu0 0.0
    %923 = vmatpush1.msra.mxu0 %v285
    %924 = vmatprep.subr.mxu0 0.0
    %925 = vmatpush1.msra.mxu0 %v286
    %926 = vmatprep.subr.mxu0 0.0
    %927 = vmatpush1.msra.mxu0 %v287
    %928 = vmatprep.subr.mxu0 0.0
    %929 = vmatpush1.msra.mxu0 %v288
    %930 = vmatprep.subr.mxu0 0.0
    %931 = vmatpush1.msra.mxu0 %v289
    %932 = vmatprep.subr.mxu0 0.0
    %933 = vmatpush1.msra.mxu0 %v290
    %934 = vmatprep.subr.mxu0 0.0
    %935 = vmatpush1.msra.mxu0 %v291
    %936 = vmatprep.subr.mxu0 0.0
    %937 = vmatpush1.msra.mxu0 %v292
    %938 = vmatprep.subr.mxu0 0.0
    %939 = vmatpush1.msra.mxu0 %v293
    %940 = vmatprep.subr.mxu0 0.0
    %941 = vmatpush1.msra.mxu0 %v294
    %942 = vmatprep.subr.mxu0 0.0
    %943 = vmatpush1.msra.mxu0 %v295
    %944 = vmatprep.subr.mxu0 0.0
    %945 = vmatpush1.msra.mxu0 %v296
    %946 = vmatprep.mubr.f32.mxu0 %v375
    %947 = vmatmul.mubr.f32.gmra.mrb[0].mxu0 %v373
    %v948 = vpop.f32.mrb[0].mxu0
    %v949 = vadd.f32 %v879, %v948
    %v950 = vpop.f32.mrb[0].mxu0
    %951 = vdwg.mxu0
    %v952 = vmax.f32 %v949, 0.0
    %v953 = vld [vmem:[%s3] sm:$0xff]
    %v954 = vld [vmem:[%s3 + $0x8] sm:$0xff]
    %v955 = vld [vmem:[%s3 + $0x10] sm:$0xff]
    %v956 = vld [vmem:[%s3 + $0x18] sm:$0xff]
    %v957 = vld [vmem:[%s3 + $0x20] sm:$0xff]
    %v958 = vld [vmem:[%s3 + $0x28] sm:$0xff]
    %v959 = vld [vmem:[%s3 + $0x30] sm:$0xff]
    %v960 = vld [vmem:[%s3 + $0x38] sm:$0xff]
    %v961 = vld [vmem:[%s4] sm:$0x1]
    %v963 = vlaneseq
    %v964 = vshrl.u32 %v963, 7
    %v965 = vsub.s32 0, %v964
    %v966 = vrot.slane %v961, %v965
    %vm968 = vcmask 523264
    %v970 = vsel %vm968, %v952, 0
    %972 = vmatprep.subr.mxu0 0.0
    %973 = vmatpush1.msra.mxu0 %v953
    %974 = vmatprep.subr.mxu0 0.0
    %975 = vmatpush1.msra.mxu0 %v954
    %976 = vmatprep.subr.mxu0 0.0
    %977 = vmatpush1.msra.mxu0 %v955
    %978 = vmatprep.subr.mxu0 0.0
    %979 = vmatpush1.msra.mxu0 %v956
    %980 = vmatprep.subr.mxu0 0.0
    %981 = vmatpush1.msra.mxu0 %v957
    %982 = vmatprep.subr.mxu0 0.0
    %983 = vmatpush1.msra.mxu0 %v958
    %984 = vmatprep.subr.mxu0 0.0
    %985 = vmatpush1.msra.mxu0 %v959
    %986 = vmatprep.subr.mxu0 0.0
    %987 = vmatpush1.msra.mxu0 %v960
    %988 = vmatprep.subr.mxu0 0.0
    %989 = vmatpush1.msra.mxu0 0.0
    %990 = vmatprep.subr.mxu0 0.0
    %991 = vmatpush1.msra.mxu0 0.0
    %992 = vmatprep.subr.mxu0 0.0
    %993 = vmatpush1.msra.mxu0 0.0
    %994 = vmatprep.subr.mxu0 0.0
    %995 = vmatpush1.msra.mxu0 0.0
    %996 = vmatprep.subr.mxu0 0.0
    %997 = vmatpush1.msra.mxu0 0.0
    %998 = vmatprep.subr.mxu0 0.0
    %999 = vmatpush1.msra.mxu0 0.0
    %1000 = vmatprep.subr.mxu0 0.0
    %1001 = vmatpush1.msra.mxu0 0.0
    %1002 = vmatprep.subr.mxu0 0.0
    %1003 = vmatpush1.msra.mxu0 0.0
    %1004 = vmatprep.subr.mxu0 0.0
    %1005 = vmatpush1.msra.mxu0 0.0
    %1006 = vmatprep.subr.mxu0 0.0
    %1007 = vmatpush1.msra.mxu0 0.0
    %1008 = vmatprep.subr.mxu0 0.0
    %1009 = vmatpush1.msra.mxu0 0.0
    %1010 = vmatprep.subr.mxu0 0.0
    %1011 = vmatpush1.msra.mxu0 0.0
    %1012 = vmatprep.subr.mxu0 0.0
    %1013 = vmatpush1.msra.mxu0 0.0
    %1014 = vmatprep.subr.mxu0 0.0
    %1015 = vmatpush1.msra.mxu0 0.0
    %1016 = vmatprep.subr.mxu0 0.0
    %1017 = vmatpush1.msra.mxu0 0.0
    %1018 = vmatprep.subr.mxu0 0.0
    %1019 = vmatpush1.msra.mxu0 0.0
    %1020 = vmatprep.subr.mxu0 0.0
    %1021 = vmatpush1.msra.mxu0 0.0
    %1022 = vmatprep.subr.mxu0 0.0
    %1023 = vmatpush1.msra.mxu0 0.0
    %1024 = vmatprep.subr.mxu0 0.0
    %1025 = vmatpush1.msra.mxu0 0.0
    %1026 = vmatprep.subr.mxu0 0.0
    %1027 = vmatpush1.msra.mxu0 0.0
    %1028 = vmatprep.subr.mxu0 0.0
    %1029 = vmatpush1.msra.mxu0 0.0
    %1030 = vmatprep.subr.mxu0 0.0
    %1031 = vmatpush1.msra.mxu0 0.0
    %1032 = vmatprep.subr.mxu0 0.0
    %1033 = vmatpush1.msra.mxu0 0.0
    %1034 = vmatprep.subr.mxu0 0.0
    %1035 = vmatpush1.msra.mxu0 0.0
    %1036 = vmatprep.mubr.f32.mxu0 0.0
    %1037 = vmatmul.mubr.f32.gmra.mrb[0].mxu0 %v970
    %v1038 = vpop.f32.mrb[0].mxu0
    %v1039 = vadd.f32 %v966, %v1038
    %v1040 = vpop.f32.mrb[0].mxu0
    %1041 = vdwg.mxu0
    %v1042 = vmax.f32 %v1039, 0.0
    %v1043 = vld [vmem:[%s5] sm:$0xff]
    %v1044 = vld [vmem:[%s5 + $0x8] sm:$0xff]
    %v1045 = vld [vmem:[%s5 + $0x10] sm:$0xff]
    %v1046 = vld [vmem:[%s5 + $0x18] sm:$0xff]
    %v1047 = vld [vmem:[%s6] sm:$0x1]
    %v1049 = vlaneseq
    %v1050 = vshrl.u32 %v1049, 7
    %v1051 = vsub.s32 0, %v1050
    %v1052 = vrot.slane %v1047, %v1051
    %vm1054 = vcmask 261120
    %v1056 = vsel %vm1054, %v1042, 0
    %1058 = vmatprep.subr.mxu0 0.0
    %1059 = vmatpush1.msra.mxu0 %v1043
    %1060 = vmatprep.subr.mxu0 0.0
    %1061 = vmatpush1.msra.mxu0 %v1044
    %1062 = vmatprep.subr.mxu0 0.0
    %1063 = vmatpush1.msra.mxu0 %v1045
    %1064 = vmatprep.subr.mxu0 0.0
    %1065 = vmatpush1.msra.mxu0 %v1046
    %1066 = vmatprep.subr.mxu0 0.0
    %1067 = vmatpush1.msra.mxu0 0.0
    %1068 = vmatprep.subr.mxu0 0.0
    %1069 = vmatpush1.msra.mxu0 0.0
    %1070 = vmatprep.subr.mxu0 0.0
    %1071 = vmatpush1.msra.mxu0 0.0
    %1072 = vmatprep.subr.mxu0 0.0
    %1073 = vmatpush1.msra.mxu0 0.0
    %1074 = vmatprep.subr.mxu0 0.0
    %1075 = vmatpush1.msra.mxu0 0.0
    %1076 = vmatprep.subr.mxu0 0.0
    %1077 = vmatpush1.msra.mxu0 0.0
    %1078 = vmatprep.subr.mxu0 0.0
    %1079 = vmatpush1.msra.mxu0 0.0
    %1080 = vmatprep.subr.mxu0 0.0
    %1081 = vmatpush1.msra.mxu0 0.0
    %1082 = vmatprep.subr.mxu0 0.0
    %1083 = vmatpush1.msra.mxu0 0.0
    %1084 = vmatprep.subr.mxu0 0.0
    %1085 = vmatpush1.msra.mxu0 0.0
    %1086 = vmatprep.subr.mxu0 0.0
    %1087 = vmatpush1.msra.mxu0 0.0
    %1088 = vmatprep.subr.mxu0 0.0
    %1089 = vmatpush1.msra.mxu0 0.0
    %1090 = vmatprep.subr.mxu0 0.0
    %1091 = vmatpush1.msra.mxu0 0.0
    %1092 = vmatprep.subr.mxu0 0.0
    %1093 = vmatpush1.msra.mxu0 0.0
    %1094 = vmatprep.subr.mxu0 0.0
    %1095 = vmatpush1.msra.mxu0 0.0
    %1096 = vmatprep.subr.mxu0 0.0
    %1097 = vmatpush1.msra.mxu0 0.0
    %1098 = vmatprep.subr.mxu0 0.0
    %1099 = vmatpush1.msra.mxu0 0.0
    %1100 = vmatprep.subr.mxu0 0.0
    %1101 = vmatpush1.msra.mxu0 0.0
    %1102 = vmatprep.subr.mxu0 0.0
    %1103 = vmatpush1.msra.mxu0 0.0
    %1104 = vmatprep.subr.mxu0 0.0
    %1105 = vmatpush1.msra.mxu0 0.0
    %1106 = vmatprep.subr.mxu0 0.0
    %1107 = vmatpush1.msra.mxu0 0.0
    %1108 = vmatprep.subr.mxu0 0.0
    %1109 = vmatpush1.msra.mxu0 0.0
    %1110 = vmatprep.subr.mxu0 0.0
    %1111 = vmatpush1.msra.mxu0 0.0
    %1112 = vmatprep.subr.mxu0 0.0
    %1113 = vmatpush1.msra.mxu0 0.0
    %1114 = vmatprep.subr.mxu0 0.0
    %1115 = vmatpush1.msra.mxu0 0.0
    %1116 = vmatprep.subr.mxu0 0.0
    %1117 = vmatpush1.msra.mxu0 0.0
    %1118 = vmatprep.subr.mxu0 0.0
    %1119 = vmatpush1.msra.mxu0 0.0
    %1120 = vmatprep.subr.mxu0 0.0
    %1121 = vmatpush1.msra.mxu0 0.0
    %1122 = vmatprep.mubr.f32.mxu0 0.0
    %1123 = vmatmul.mubr.f32.gmra.mrb[0].mxu0 %v1056
    %v1124 = vpop.f32.mrb[0].mxu0
    %v1125 = vadd.f32 %v1052, %v1124
    %v1126 = vpop.f32.mrb[0].mxu0
    %1127 = vdwg.mxu0
    %vm1128 = vcmask 74752
    %v1129 = vsel %vm1128, %v1125, -inf
    %1130 = vmax.xlane.f32.xlu0 %v1129
    %v1131 = vpop.xlane.xlu0 %1130
    %v1132 = vsub.f32 %v1125, %v1131
    %v1133 = vmul.f32 %v1132, 1.442695
    %v1134 = vpow.pop %v1133
    %v1135 = vsel %vm1128, %v1134, 0.0
    %1136 = vadd.xlane.f32.xlu0 %v1135
    %v1137 = vpop.xlane.xlu0 %1136
    %v1138 = vlog2.pop %v1137
    %v1139 = vmul.f32 %v1138, 0.6931472
    %v1140 = vsub.f32 %v1132, %v1139
    %1141 = vst.msk [vmem:[#allocation3] sm:$0x3] %vm1128, %v1140
    %v1142 = vld [vmem:[%s7] sm:$0x1]
    %v1144 = vlaneseq
    %v1145 = vshrl.u32 %v1144, 7
    %v1146 = vsub.s32 0, %v1145
    %v1147 = vrot.slane %v1142, %v1146
    %v1149 = vmul.f32 %v1042, %v1147
    %vm1150 = vcmask 254976
    %v1151 = vsel %vm1150, %v1149, 0.0
    %1152 = vadd.xlane.f32.xlu0 %v1151
    %v1153 = vpop.xlane.xlu0 %1152
    %v1154 = vld [vmem:[#allocation2] sm:$0x1]
    %v1156 = vlaneseq
    %v1157 = vshrl.u32 %v1156, 7
    %v1158 = vsub.s32 0, %v1157
    %v1159 = vrot.slane %v1154, %v1158
    %v1161 = vadd.f32 %v1153, %v1159
    %v1162 = vtanh.pop %v1161
    %vm1163 = vcmask 1024
    %1164 = vst.msk [vmem:[%s10] sm:$0x3] %vm1163, %v1162
    // Predicated region
    $region38: #{mynet_forward.3} parent=1 // pred_check
      _
    $region39: #{mynet_forward.3} parent=1 // pred_check_branch
      %1166 = sbr.rel (0) target = $region41
    $region40: #{mynet_forward.3} parent=1 // pred_region
      %s1168 = ssub.s32 32, 32
      %1169 = vsyncadd [#allocation4], %s1168
      %s1171 = sshll.u32 [#allocation3], 4
      %s1172 = int_to_ptr.vmem [resolvable:$true] %s1171
      %1174 = dma.vmem_to_hbm [thread:$0]  %s1172, 32, %s9, [#allocation4]
    $region41: #{mynet_forward.3} parent=1 // pred_fallthru
      _
    // Predicated region
    $region42: #{mynet_forward.3} parent=1 // pred_check
      _
    $region43: #{mynet_forward.3} parent=1 // pred_check_branch
      %1176 = sbr.rel (0) target = $region45
    $region44: #{mynet_forward.3} parent=1 // pred_region
      _
    $region45: #{mynet_forward.3} parent=1 // pred_fallthru
      _
    // Predicated region
    $region46: #{mynet_forward.3} parent=1 // pred_check
      _
    $region47: #{mynet_forward.3} parent=1 // pred_check_branch
      %1178 = sbr.rel (0) target = $region49
    $region48: #{mynet_forward.3} parent=1 // pred_region
      %1179 = dma.done [#allocation4], 32
    $region49: #{mynet_forward.3} parent=1 // pred_fallthru
      _
    // Predicated region
    $region50: #{mynet_forward.3} parent=1 // pred_check
      _
    $region51: #{mynet_forward.3} parent=1 // pred_check_branch
      %1181 = sbr.rel (0) target = $region53
    $region52: #{mynet_forward.3} parent=1 // pred_region
      _
    $region53: #{mynet_forward.3} parent=1 // pred_fallthru
      _
    %1182 = vsyncpa [#allocation4], 1

// kernel: mynet_forward.2
$region0: #{mynet_forward.2}
  #allocation0 [shape = 'u32[]', space=smem, size = 0x4, offset = 0x4, fixed_abs, tag = 'smem constant byte address 0x4 - core index']
  #allocation1 [shape = 'u32[144,128]{1,0:T(1,128)}', space=vmem, size = 0x12000, scoped, tag = 'internal scratch']
  #allocation2 [shape = 'f32[160,32]{1,0:T(8,128)}', space=vmem, size = 0x14000, scoped, tag = 'scratch operand']
  %s0 = inlined_call_operand.vmem [shape: f32[128,1], index: 0, kind: input, shape index: {}]
  %s1 = inlined_call_operand.vmem [shape: f32[9,32], index: 1, kind: input, shape index: {}]
  %s2 = inlined_call_operand.hbm [shape: f32[1,32], index: 2, kind: input, shape index: {}]
  %s3 = inlined_call_operand.vmem [shape: f32[9,32,32], index: 3, kind: input, shape index: {}]
  %s4 = inlined_call_operand.hbm [shape: f32[1,32], index: 4, kind: input, shape index: {}]
  %s5 = inlined_call_operand.hbm [shape: f32[9,32,32], index: 5, kind: input, shape index: {}]
  %s6 = inlined_call_operand.hbm [shape: f32[1,32], index: 6, kind: input, shape index: {}]
  %s7 = inlined_call_operand.vmem [shape: f32[1,32], index: 7, kind: input, shape index: {}]
  %s8 = inlined_call_operand.hbm [shape: f32[1,32], index: 8, kind: input, shape index: {}]
  %s9 = inlined_call_operand.vmem [shape: f32[128,32], index: 9, kind: output, shape index: {}]
  %s10 = sld [smem:[#allocation0]]
  $region66: #{mynet_forward.2} parent=0
    _
  %s12 = ssub.s32 1, %s10
  %s13 = scalar_select 0, %s12, %s10
  $region1: #{mynet_forward.2} parent=0
    #allocation3 [shape = 'u8[512]{0}', space=vmem, size = 0x400, scoped, tag = 'input window, operand 2, single buffered']
    #allocation4 [shape = 's32[1]{0}', space=sflag, size = 0x4, scoped, tag = 'scoped memory for mynet_forward.2']
    #allocation5 [shape = 'u8[512]{0}', space=vmem, size = 0x400, scoped, tag = 'input window, operand 4, single buffered']
    #allocation6 [shape = 's32[1]{0}', space=sflag, size = 0x4, scoped, tag = 'scoped memory for mynet_forward.2']
    #allocation7 [shape = 'u8[147456]{0}', space=vmem, size = 0x24000, scoped, tag = 'input window, operand 5, single buffered']
    #allocation8 [shape = 'u8[512]{0}', space=vmem, size = 0x400, scoped, tag = 'input window, operand 6, single buffered']
    #allocation9 [shape = 's32[1]{0}', space=sflag, size = 0x4, scoped, tag = 'scoped memory for mynet_forward.2']
    #allocation10 [shape = 'u8[512]{0}', space=vmem, size = 0x400, scoped, tag = 'input window, operand 8, single buffered']
    %14 = vsyncpa [#allocation4], 0
    %15 = vsyncpa [#allocation6], 0
    %16 = vsyncpa [#allocation9], 0
    // Predicated region
    $region2: #{mynet_forward.2} parent=1 // pred_check
      _
    $region3: #{mynet_forward.2} parent=1 // pred_check_branch
      %18 = sbr.rel (0) target = $region5
    $region4: #{mynet_forward.2} parent=1 // pred_region
      _
    $region5: #{mynet_forward.2} parent=1 // pred_fallthru
      _
    // Predicated region
    $region6: #{mynet_forward.2} parent=1 // pred_check
      _
    $region7: #{mynet_forward.2} parent=1 // pred_check_branch
      %20 = sbr.rel (0) target = $region9
    $region8: #{mynet_forward.2} parent=1 // pred_region
      _
    $region9: #{mynet_forward.2} parent=1 // pred_fallthru
      _
    // Predicated region
    $region10: #{mynet_forward.2} parent=1 // pred_check
      _
    $region11: #{mynet_forward.2} parent=1 // pred_check_branch
      %22 = sbr.rel (0) target = $region13
    $region12: #{mynet_forward.2} parent=1 // pred_region
      %s24 = ssub.s32 16, 16
      %25 = vsyncadd [#allocation4], %s24
      %s27 = sshll.u32 [#allocation3], 4
      %s28 = int_to_ptr.vmem [resolvable:$true] %s27
      %30 = dma.hbm_to_vmem [thread:$0]  %s2, 16, %s28, [#allocation4]
    $region13: #{mynet_forward.2} parent=1 // pred_fallthru
      _
    // Predicated region
    $region14: #{mynet_forward.2} parent=1 // pred_check
      _
    $region15: #{mynet_forward.2} parent=1 // pred_check_branch
      %32 = sbr.rel (0) target = $region17
    $region16: #{mynet_forward.2} parent=1 // pred_region
      _
    $region17: #{mynet_forward.2} parent=1 // pred_fallthru
      _
    // Predicated region
    $region18: #{mynet_forward.2} parent=1 // pred_check
      _
    $region19: #{mynet_forward.2} parent=1 // pred_check_branch
      %34 = sbr.rel (0) target = $region21
    $region20: #{mynet_forward.2} parent=1 // pred_region
      %s36 = ssub.s32 16, 16
      %37 = vsyncadd [#allocation6], %s36
      %s39 = sshll.u32 [#allocation5], 4
      %s40 = int_to_ptr.vmem [resolvable:$true] %s39
      %42 = dma.hbm_to_vmem [thread:$0]  %s4, 16, %s40, [#allocation6]
    $region21: #{mynet_forward.2} parent=1 // pred_fallthru
      _
    // Predicated region
    $region22: #{mynet_forward.2} parent=1 // pred_check
      _
    $region23: #{mynet_forward.2} parent=1 // pred_check_branch
      %44 = sbr.rel (0) target = $region25
    $region24: #{mynet_forward.2} parent=1 // pred_region
      %s46 = ssub.s32 4608, 4608
      %47 = vsyncadd [#allocation6], %s46
      %s48 = sshll.u32 [#allocation7], 4
      %s49 = int_to_ptr.vmem [resolvable:$true] %s48
      %54 = dma.hbm_to_vmem [thread:$0]  %s5, 4608, %s49, [#allocation6], 128, 128, 8
    $region25: #{mynet_forward.2} parent=1 // pred_fallthru
      _
    // Predicated region
    $region26: #{mynet_forward.2} parent=1 // pred_check
      _
    $region27: #{mynet_forward.2} parent=1 // pred_check_branch
      %56 = sbr.rel (0) target = $region29
    $region28: #{mynet_forward.2} parent=1 // pred_region
      %s58 = ssub.s32 16, 16
      %59 = vsyncadd [#allocation9], %s58
      %s61 = sshll.u32 [#allocation8], 4
      %s62 = int_to_ptr.vmem [resolvable:$true] %s61
      %64 = dma.hbm_to_vmem [thread:$0]  %s6, 16, %s62, [#allocation9]
    $region29: #{mynet_forward.2} parent=1 // pred_fallthru
      _
    // Predicated region
    $region30: #{mynet_forward.2} parent=1 // pred_check
      _
    $region31: #{mynet_forward.2} parent=1 // pred_check_branch
      %66 = sbr.rel (0) target = $region33
    $region32: #{mynet_forward.2} parent=1 // pred_region
      _
    $region33: #{mynet_forward.2} parent=1 // pred_fallthru
      _
    // Predicated region
    $region34: #{mynet_forward.2} parent=1 // pred_check
      _
    $region35: #{mynet_forward.2} parent=1 // pred_check_branch
      %68 = sbr.rel (0) target = $region37
    $region36: #{mynet_forward.2} parent=1 // pred_region
      %s70 = ssub.s32 16, 16
      %71 = vsyncadd [#allocation9], %s70
      %s73 = sshll.u32 [#allocation10], 4
      %s74 = int_to_ptr.vmem [resolvable:$true] %s73
      %76 = dma.hbm_to_vmem [thread:$0]  %s8, 16, %s74, [#allocation9]
    $region37: #{mynet_forward.2} parent=1 // pred_fallthru
      _
    // Predicated region
    $region38: #{mynet_forward.2} parent=1 // pred_check
      _
    $region39: #{mynet_forward.2} parent=1 // pred_check_branch
      %78 = sbr.rel (0) target = $region41
    $region40: #{mynet_forward.2} parent=1 // pred_region
      %79 = dma.done [#allocation4], 16
    $region41: #{mynet_forward.2} parent=1 // pred_fallthru
      _
    // Predicated region
    $region42: #{mynet_forward.2} parent=1 // pred_check
      _
    $region43: #{mynet_forward.2} parent=1 // pred_check_branch
      %81 = sbr.rel (0) target = $region45
    $region44: #{mynet_forward.2} parent=1 // pred_region
      %82 = dma.done [#allocation6], 16
    $region45: #{mynet_forward.2} parent=1 // pred_fallthru
      _
    // Predicated region
    $region46: #{mynet_forward.2} parent=1 // pred_check
      _
    $region47: #{mynet_forward.2} parent=1 // pred_check_branch
      %84 = sbr.rel (0) target = $region49
    $region48: #{mynet_forward.2} parent=1 // pred_region
      %85 = dma.done [#allocation6], 4608
    $region49: #{mynet_forward.2} parent=1 // pred_fallthru
      _
    // Predicated region
    $region50: #{mynet_forward.2} parent=1 // pred_check
      _
    $region51: #{mynet_forward.2} parent=1 // pred_check_branch
      %87 = sbr.rel (0) target = $region53
    $region52: #{mynet_forward.2} parent=1 // pred_region
      %88 = dma.done [#allocation9], 16
    $region53: #{mynet_forward.2} parent=1 // pred_fallthru
      _
    // Predicated region
    $region54: #{mynet_forward.2} parent=1 // pred_check
      _
    $region55: #{mynet_forward.2} parent=1 // pred_check_branch
      %90 = sbr.rel (0) target = $region57
    $region56: #{mynet_forward.2} parent=1 // pred_region
      %91 = dma.done [#allocation9], 16
    $region57: #{mynet_forward.2} parent=1 // pred_fallthru
      _
    %v92 = vlaneseq
    %v93 = vshrl.u32 %v92, 7
    %v94 = vadd.s32 %v93, 8
    %v95 = vadd.s32 %v93, 16
    %v96 = vadd.s32 %v93, 24
    %v97 = vadd.s32 %v93, 32
    %v98 = vadd.s32 %v93, 40
    %v99 = vadd.s32 %v93, 48
    %v100 = vadd.s32 %v93, 56
    %v101 = vadd.s32 %v93, 64
    %v102 = vadd.s32 %v93, 72
    %v103 = vadd.s32 %v93, 80
    %v104 = vadd.s32 %v93, 88
    %v105 = vadd.s32 %v93, 96
    %v106 = vadd.s32 %v93, 104
    %v107 = vadd.s32 %v93, 112
    %v108 = vadd.s32 %v93, 120
    %v109 = vand.u32 %v93, 7
    %v110 = vand.u32 %v94, 7
    %v111 = vand.u32 %v95, 7
    %v112 = vand.u32 %v96, 7
    %v113 = vand.u32 %v97, 7
    %v114 = vand.u32 %v98, 7
    %v115 = vand.u32 %v99, 7
    %v116 = vand.u32 %v100, 7
    %v117 = vand.u32 %v101, 7
    %v118 = vand.u32 %v102, 7
    %v119 = vand.u32 %v103, 7
    %v120 = vand.u32 %v104, 7
    %v121 = vand.u32 %v105, 7
    %v122 = vand.u32 %v106, 7
    %v123 = vand.u32 %v107, 7
    %v124 = vand.u32 %v108, 7
    %v125 = vshra.s32 %v93, 3
    %v126 = vshra.s32 %v94, 3
    %v127 = vshra.s32 %v95, 3
    %v128 = vshra.s32 %v96, 3
    %v129 = vshra.s32 %v97, 3
    %v130 = vshra.s32 %v98, 3
    %v131 = vshra.s32 %v99, 3
    %v132 = vshra.s32 %v100, 3
    %v133 = vshra.s32 %v101, 3
    %v134 = vshra.s32 %v102, 3
    %v135 = vshra.s32 %v103, 3
    %v136 = vshra.s32 %v104, 3
    %v137 = vshra.s32 %v105, 3
    %v138 = vshra.s32 %v106, 3
    %v139 = vshra.s32 %v107, 3
    %v140 = vshra.s32 %v108, 3
    %v141 = vand.u32 %v125, 7
    %v142 = vand.u32 %v126, 7
    %v143 = vand.u32 %v127, 7
    %v144 = vand.u32 %v128, 7
    %v145 = vand.u32 %v129, 7
    %v146 = vand.u32 %v130, 7
    %v147 = vand.u32 %v131, 7
    %v148 = vand.u32 %v132, 7
    %v149 = vand.u32 %v133, 7
    %v150 = vand.u32 %v134, 7
    %v151 = vand.u32 %v135, 7
    %v152 = vand.u32 %v136, 7
    %v153 = vand.u32 %v137, 7
    %v154 = vand.u32 %v138, 7
    %v155 = vand.u32 %v139, 7
    %v156 = vand.u32 %v140, 7
    %v157 = vadd.s32 %v141, 4294967295
    %v158 = vadd.s32 %v142, 4294967295
    %v159 = vadd.s32 %v143, 4294967295
    %v160 = vadd.s32 %v144, 4294967295
    %v161 = vadd.s32 %v145, 4294967295
    %v162 = vadd.s32 %v146, 4294967295
    %v163 = vadd.s32 %v147, 4294967295
    %v164 = vadd.s32 %v148, 4294967295
    %v165 = vadd.s32 %v149, 4294967295
    %v166 = vadd.s32 %v150, 4294967295
    %v167 = vadd.s32 %v151, 4294967295
    %v168 = vadd.s32 %v152, 4294967295
    %v169 = vadd.s32 %v153, 4294967295
    %v170 = vadd.s32 %v154, 4294967295
    %v171 = vadd.s32 %v155, 4294967295
    %v172 = vadd.s32 %v156, 4294967295
    %vm173 = vcmp.ge.s32.totalorder %v157, 0
    %vm174 = vcmp.ge.s32.totalorder %v158, 0
    %vm175 = vcmp.ge.s32.totalorder %v159, 0
    %vm176 = vcmp.ge.s32.totalorder %v160, 0
    %vm177 = vcmp.ge.s32.totalorder %v161, 0
    %vm178 = vcmp.ge.s32.totalorder %v162, 0
    %vm179 = vcmp.ge.s32.totalorder %v163, 0
    %vm180 = vcmp.ge.s32.totalorder %v164, 0
    %vm181 = vcmp.ge.s32.totalorder %v165, 0
    %vm182 = vcmp.ge.s32.totalorder %v166, 0
    %vm183 = vcmp.ge.s32.totalorder %v167, 0
    %vm184 = vcmp.ge.s32.totalorder %v168, 0
    %vm185 = vcmp.ge.s32.totalorder %v169, 0
    %vm186 = vcmp.ge.s32.totalorder %v170, 0
    %vm187 = vcmp.ge.s32.totalorder %v171, 0
    %vm188 = vcmp.ge.s32.totalorder %v172, 0
    %vm189 = vcmp.lt.s32.totalorder %v157, 8
    %vm190 = vcmp.lt.s32.totalorder %v158, 8
    %vm191 = vcmp.lt.s32.totalorder %v159, 8
    %vm192 = vcmp.lt.s32.totalorder %v160, 8
    %vm193 = vcmp.lt.s32.totalorder %v161, 8
    %vm194 = vcmp.lt.s32.totalorder %v162, 8
    %vm195 = vcmp.lt.s32.totalorder %v163, 8
    %vm196 = vcmp.lt.s32.totalorder %v164, 8
    %vm197 = vcmp.lt.s32.totalorder %v165, 8
    %vm198 = vcmp.lt.s32.totalorder %v166, 8
    %vm199 = vcmp.lt.s32.totalorder %v167, 8
    %vm200 = vcmp.lt.s32.totalorder %v168, 8
    %vm201 = vcmp.lt.s32.totalorder %v169, 8
    %vm202 = vcmp.lt.s32.totalorder %v170, 8
    %vm203 = vcmp.lt.s32.totalorder %v171, 8
    %vm204 = vcmp.lt.s32.totalorder %v172, 8
    %vm205 = vmand %vm173, %vm189
    %vm206 = vmand %vm174, %vm190
    %vm207 = vmand %vm175, %vm191
    %vm208 = vmand %vm176, %vm192
    %vm209 = vmand %vm177, %vm193
    %vm210 = vmand %vm178, %vm194
    %vm211 = vmand %vm179, %vm195
    %vm212 = vmand %vm180, %vm196
    %vm213 = vmand %vm181, %vm197
    %vm214 = vmand %vm182, %vm198
    %vm215 = vmand %vm183, %vm199
    %vm216 = vmand %vm184, %vm200
    %vm217 = vmand %vm185, %vm201
    %vm218 = vmand %vm186, %vm202
    %vm219 = vmand %vm187, %vm203
    %vm220 = vmand %vm188, %vm204
    %v221 = vadd.s32 %v109, 4294967295
    %v222 = vadd.s32 %v110, 4294967295
    %v223 = vadd.s32 %v111, 4294967295
    %v224 = vadd.s32 %v112, 4294967295
    %v225 = vadd.s32 %v113, 4294967295
    %v226 = vadd.s32 %v114, 4294967295
    %v227 = vadd.s32 %v115, 4294967295
    %v228 = vadd.s32 %v116, 4294967295
    %v229 = vadd.s32 %v117, 4294967295
    %v230 = vadd.s32 %v118, 4294967295
    %v231 = vadd.s32 %v119, 4294967295
    %v232 = vadd.s32 %v120, 4294967295
    %v233 = vadd.s32 %v121, 4294967295
    %v234 = vadd.s32 %v122, 4294967295
    %v235 = vadd.s32 %v123, 4294967295
    %v236 = vadd.s32 %v124, 4294967295
    %vm237 = vcmp.ge.s32.totalorder %v221, 0
    %vm238 = vcmp.ge.s32.totalorder %v222, 0
    %vm239 = vcmp.ge.s32.totalorder %v223, 0
    %vm240 = vcmp.ge.s32.totalorder %v224, 0
    %vm241 = vcmp.ge.s32.totalorder %v225, 0
    %vm242 = vcmp.ge.s32.totalorder %v226, 0
    %vm243 = vcmp.ge.s32.totalorder %v227, 0
    %vm244 = vcmp.ge.s32.totalorder %v228, 0
    %vm245 = vcmp.ge.s32.totalorder %v229, 0
    %vm246 = vcmp.ge.s32.totalorder %v230, 0
    %vm247 = vcmp.ge.s32.totalorder %v231, 0
    %vm248 = vcmp.ge.s32.totalorder %v232, 0
    %vm249 = vcmp.ge.s32.totalorder %v233, 0
    %vm250 = vcmp.ge.s32.totalorder %v234, 0
    %vm251 = vcmp.ge.s32.totalorder %v235, 0
    %vm252 = vcmp.ge.s32.totalorder %v236, 0
    %vm253 = vmand %vm205, %vm237
    %vm254 = vmand %vm206, %vm238
    %vm255 = vmand %vm207, %vm239
    %vm256 = vmand %vm208, %vm240
    %vm257 = vmand %vm209, %vm241
    %vm258 = vmand %vm210, %vm242
    %vm259 = vmand %vm211, %vm243
    %vm260 = vmand %vm212, %vm244
    %vm261 = vmand %vm213, %vm245
    %vm262 = vmand %vm214, %vm246
    %vm263 = vmand %vm215, %vm247
    %vm264 = vmand %vm216, %vm248
    %vm265 = vmand %vm217, %vm249
    %vm266 = vmand %vm218, %vm250
    %vm267 = vmand %vm219, %vm251
    %vm268 = vmand %vm220, %vm252
    %vm269 = vcmp.lt.s32.totalorder %v221, 8
    %vm270 = vcmp.lt.s32.totalorder %v222, 8
    %vm271 = vcmp.lt.s32.totalorder %v223, 8
    %vm272 = vcmp.lt.s32.totalorder %v224, 8
    %vm273 = vcmp.lt.s32.totalorder %v225, 8
    %vm274 = vcmp.lt.s32.totalorder %v226, 8
    %vm275 = vcmp.lt.s32.totalorder %v227, 8
    %vm276 = vcmp.lt.s32.totalorder %v228, 8
    %vm277 = vcmp.lt.s32.totalorder %v229, 8
    %vm278 = vcmp.lt.s32.totalorder %v230, 8
    %vm279 = vcmp.lt.s32.totalorder %v231, 8
    %vm280 = vcmp.lt.s32.totalorder %v232, 8
    %vm281 = vcmp.lt.s32.totalorder %v233, 8
    %vm282 = vcmp.lt.s32.totalorder %v234, 8
    %vm283 = vcmp.lt.s32.totalorder %v235, 8
    %vm284 = vcmp.lt.s32.totalorder %v236, 8
    %vm285 = vmand %vm253, %vm269
    %vm286 = vmand %vm254, %vm270
    %vm287 = vmand %vm255, %vm271
    %vm288 = vmand %vm256, %vm272
    %vm289 = vmand %vm257, %vm273
    %vm290 = vmand %vm258, %vm274
    %vm291 = vmand %vm259, %vm275
    %vm292 = vmand %vm260, %vm276
    %vm293 = vmand %vm261, %vm277
    %vm294 = vmand %vm262, %vm278
    %vm295 = vmand %vm263, %vm279
    %vm296 = vmand %vm264, %vm280
    %vm297 = vmand %vm265, %vm281
    %vm298 = vmand %vm266, %vm282
    %vm299 = vmand %vm267, %vm283
    %vm300 = vmand %vm268, %vm284
    %v301 = vsel %vm285, 1, 0
    %v302 = vsel %vm286, 1, 0
    %v303 = vsel %vm287, 1, 0
    %v304 = vsel %vm288, 1, 0
    %v305 = vsel %vm289, 1, 0
    %v306 = vsel %vm290, 1, 0
    %v307 = vsel %vm291, 1, 0
    %v308 = vsel %vm292, 1, 0
    %v309 = vsel %vm293, 1, 0
    %v310 = vsel %vm294, 1, 0
    %v311 = vsel %vm295, 1, 0
    %v312 = vsel %vm296, 1, 0
    %v313 = vsel %vm297, 1, 0
    %v314 = vsel %vm298, 1, 0
    %v315 = vsel %vm299, 1, 0
    %v316 = vsel %vm300, 1, 0
    %v317 = vcvt.s32.f32 %v301
    %v318 = vcvt.s32.f32 %v302
    %v319 = vcvt.s32.f32 %v303
    %v320 = vcvt.s32.f32 %v304
    %v321 = vcvt.s32.f32 %v305
    %v322 = vcvt.s32.f32 %v306
    %v323 = vcvt.s32.f32 %v307
    %v324 = vcvt.s32.f32 %v308
    %v325 = vcvt.s32.f32 %v309
    %v326 = vcvt.s32.f32 %v310
    %v327 = vcvt.s32.f32 %v311
    %v328 = vcvt.s32.f32 %v312
    %v329 = vcvt.s32.f32 %v313
    %v330 = vcvt.s32.f32 %v314
    %v331 = vcvt.s32.f32 %v315
    %v332 = vcvt.s32.f32 %v316
    %vm333 = vcmp.ge.s32.totalorder %v109, 0
    %vm334 = vcmp.ge.s32.totalorder %v110, 0
    %vm335 = vcmp.ge.s32.totalorder %v111, 0
    %vm336 = vcmp.ge.s32.totalorder %v112, 0
    %vm337 = vcmp.ge.s32.totalorder %v113, 0
    %vm338 = vcmp.ge.s32.totalorder %v114, 0
    %vm339 = vcmp.ge.s32.totalorder %v115, 0
    %vm340 = vcmp.ge.s32.totalorder %v116, 0
    %vm341 = vcmp.ge.s32.totalorder %v117, 0
    %vm342 = vcmp.ge.s32.totalorder %v118, 0
    %vm343 = vcmp.ge.s32.totalorder %v119, 0
    %vm344 = vcmp.ge.s32.totalorder %v120, 0
    %vm345 = vcmp.ge.s32.totalorder %v121, 0
    %vm346 = vcmp.ge.s32.totalorder %v122, 0
    %vm347 = vcmp.ge.s32.totalorder %v123, 0
    %vm348 = vcmp.ge.s32.totalorder %v124, 0
    %vm349 = vmand %vm205, %vm333
    %vm350 = vmand %vm206, %vm334
    %vm351 = vmand %vm207, %vm335
    %vm352 = vmand %vm208, %vm336
    %vm353 = vmand %vm209, %vm337
    %vm354 = vmand %vm210, %vm338
    %vm355 = vmand %vm211, %vm339
    %vm356 = vmand %vm212, %vm340
    %vm357 = vmand %vm213, %vm341
    %vm358 = vmand %vm214, %vm342
    %vm359 = vmand %vm215, %vm343
    %vm360 = vmand %vm216, %vm344
    %vm361 = vmand %vm217, %vm345
    %vm362 = vmand %vm218, %vm346
    %vm363 = vmand %vm219, %vm347
    %vm364 = vmand %vm220, %vm348
    %vm365 = vcmp.lt.s32.totalorder %v109, 8
    %vm366 = vcmp.lt.s32.totalorder %v110, 8
    %vm367 = vcmp.lt.s32.totalorder %v111, 8
    %vm368 = vcmp.lt.s32.totalorder %v112, 8
    %vm369 = vcmp.lt.s32.totalorder %v113, 8
    %vm370 = vcmp.lt.s32.totalorder %v114, 8
    %vm371 = vcmp.lt.s32.totalorder %v115, 8
    %vm372 = vcmp.lt.s32.totalorder %v116, 8
    %vm373 = vcmp.lt.s32.totalorder %v117, 8
    %vm374 = vcmp.lt.s32.totalorder %v118, 8
    %vm375 = vcmp.lt.s32.totalorder %v119, 8
    %vm376 = vcmp.lt.s32.totalorder %v120, 8
    %vm377 = vcmp.lt.s32.totalorder %v121, 8
    %vm378 = vcmp.lt.s32.totalorder %v122, 8
    %vm379 = vcmp.lt.s32.totalorder %v123, 8
    %vm380 = vcmp.lt.s32.totalorder %v124, 8
    %vm381 = vmand %vm349, %vm365
    %vm382 = vmand %vm350, %vm366
    %vm383 = vmand %vm351, %vm367
    %vm384 = vmand %vm352, %vm368
    %vm385 = vmand %vm353, %vm369
    %vm386 = vmand %vm354, %vm370
    %vm387 = vmand %vm355, %vm371
    %vm388 = vmand %vm356, %vm372
    %vm389 = vmand %vm357, %vm373
    %vm390 = vmand %vm358, %vm374
    %vm391 = vmand %vm359, %vm375
    %vm392 = vmand %vm360, %vm376
    %vm393 = vmand %vm361, %vm377
    %vm394 = vmand %vm362, %vm378
    %vm395 = vmand %vm363, %vm379
    %vm396 = vmand %vm364, %vm380
    %v397 = vsel %vm381, 1, 0
    %v398 = vsel %vm382, 1, 0
    %v399 = vsel %vm383, 1, 0
    %v400 = vsel %vm384, 1, 0
    %v401 = vsel %vm385, 1, 0
    %v402 = vsel %vm386, 1, 0
    %v403 = vsel %vm387, 1, 0
    %v404 = vsel %vm388, 1, 0
    %v405 = vsel %vm389, 1, 0
    %v406 = vsel %vm390, 1, 0
    %v407 = vsel %vm391, 1, 0
    %v408 = vsel %vm392, 1, 0
    %v409 = vsel %vm393, 1, 0
    %v410 = vsel %vm394, 1, 0
    %v411 = vsel %vm395, 1, 0
    %v412 = vsel %vm396, 1, 0
    %v413 = vcvt.s32.f32 %v397
    %v414 = vcvt.s32.f32 %v398
    %v415 = vcvt.s32.f32 %v399
    %v416 = vcvt.s32.f32 %v400
    %v417 = vcvt.s32.f32 %v401
    %v418 = vcvt.s32.f32 %v402
    %v419 = vcvt.s32.f32 %v403
    %v420 = vcvt.s32.f32 %v404
    %v421 = vcvt.s32.f32 %v405
    %v422 = vcvt.s32.f32 %v406
    %v423 = vcvt.s32.f32 %v407
    %v424 = vcvt.s32.f32 %v408
    %v425 = vcvt.s32.f32 %v409
    %v426 = vcvt.s32.f32 %v410
    %v427 = vcvt.s32.f32 %v411
    %v428 = vcvt.s32.f32 %v412
    %v429 = vadd.s32 %v109, 1
    %v430 = vadd.s32 %v110, 1
    %v431 = vadd.s32 %v111, 1
    %v432 = vadd.s32 %v112, 1
    %v433 = vadd.s32 %v113, 1
    %v434 = vadd.s32 %v114, 1
    %v435 = vadd.s32 %v115, 1
    %v436 = vadd.s32 %v116, 1
    %v437 = vadd.s32 %v117, 1
    %v438 = vadd.s32 %v118, 1
    %v439 = vadd.s32 %v119, 1
    %v440 = vadd.s32 %v120, 1
    %v441 = vadd.s32 %v121, 1
    %v442 = vadd.s32 %v122, 1
    %v443 = vadd.s32 %v123, 1
    %v444 = vadd.s32 %v124, 1
    %vm445 = vcmp.ge.s32.totalorder %v429, 0
    %vm446 = vcmp.ge.s32.totalorder %v430, 0
    %vm447 = vcmp.ge.s32.totalorder %v431, 0
    %vm448 = vcmp.ge.s32.totalorder %v432, 0
    %vm449 = vcmp.ge.s32.totalorder %v433, 0
    %vm450 = vcmp.ge.s32.totalorder %v434, 0
    %vm451 = vcmp.ge.s32.totalorder %v435, 0
    %vm452 = vcmp.ge.s32.totalorder %v436, 0
    %vm453 = vcmp.ge.s32.totalorder %v437, 0
    %vm454 = vcmp.ge.s32.totalorder %v438, 0
    %vm455 = vcmp.ge.s32.totalorder %v439, 0
    %vm456 = vcmp.ge.s32.totalorder %v440, 0
    %vm457 = vcmp.ge.s32.totalorder %v441, 0
    %vm458 = vcmp.ge.s32.totalorder %v442, 0
    %vm459 = vcmp.ge.s32.totalorder %v443, 0
    %vm460 = vcmp.ge.s32.totalorder %v444, 0
    %vm461 = vmand %vm205, %vm445
    %vm462 = vmand %vm206, %vm446
    %vm463 = vmand %vm207, %vm447
    %vm464 = vmand %vm208, %vm448
    %vm465 = vmand %vm209, %vm449
    %vm466 = vmand %vm210, %vm450
    %vm467 = vmand %vm211, %vm451
    %vm468 = vmand %vm212, %vm452
    %vm469 = vmand %vm213, %vm453
    %vm470 = vmand %vm214, %vm454
    %vm471 = vmand %vm215, %vm455
    %vm472 = vmand %vm216, %vm456
    %vm473 = vmand %vm217, %vm457
    %vm474 = vmand %vm218, %vm458
    %vm475 = vmand %vm219, %vm459
    %vm476 = vmand %vm220, %vm460
    %vm477 = vcmp.lt.s32.totalorder %v429, 8
    %vm478 = vcmp.lt.s32.totalorder %v430, 8
    %vm479 = vcmp.lt.s32.totalorder %v431, 8
    %vm480 = vcmp.lt.s32.totalorder %v432, 8
    %vm481 = vcmp.lt.s32.totalorder %v433, 8
    %vm482 = vcmp.lt.s32.totalorder %v434, 8
    %vm483 = vcmp.lt.s32.totalorder %v435, 8
    %vm484 = vcmp.lt.s32.totalorder %v436, 8
    %vm485 = vcmp.lt.s32.totalorder %v437, 8
    %vm486 = vcmp.lt.s32.totalorder %v438, 8
    %vm487 = vcmp.lt.s32.totalorder %v439, 8
    %vm488 = vcmp.lt.s32.totalorder %v440, 8
    %vm489 = vcmp.lt.s32.totalorder %v441, 8
    %vm490 = vcmp.lt.s32.totalorder %v442, 8
    %vm491 = vcmp.lt.s32.totalorder %v443, 8
    %vm492 = vcmp.lt.s32.totalorder %v444, 8
    %vm493 = vmand %vm461, %vm477
    %vm494 = vmand %vm462, %vm478
    %vm495 = vmand %vm463, %vm479
    %vm496 = vmand %vm464, %vm480
    %vm497 = vmand %vm465, %vm481
    %vm498 = vmand %vm466, %vm482
    %vm499 = vmand %vm467, %vm483
    %vm500 = vmand %vm468, %vm484
    %vm501 = vmand %vm469, %vm485
    %vm502 = vmand %vm470, %vm486
    %vm503 = vmand %vm471, %vm487
    %vm504 = vmand %vm472, %vm488
    %vm505 = vmand %vm473, %vm489
    %vm506 = vmand %vm474, %vm490
    %vm507 = vmand %vm475, %vm491
    %vm508 = vmand %vm476, %vm492
    %v509 = vsel %vm493, 1, 0
    %v510 = vsel %vm494, 1, 0
    %v511 = vsel %vm495, 1, 0
    %v512 = vsel %vm496, 1, 0
    %v513 = vsel %vm497, 1, 0
    %v514 = vsel %vm498, 1, 0
    %v515 = vsel %vm499, 1, 0
    %v516 = vsel %vm500, 1, 0
    %v517 = vsel %vm501, 1, 0
    %v518 = vsel %vm502, 1, 0
    %v519 = vsel %vm503, 1, 0
    %v520 = vsel %vm504, 1, 0
    %v521 = vsel %vm505, 1, 0
    %v522 = vsel %vm506, 1, 0
    %v523 = vsel %vm507, 1, 0
    %v524 = vsel %vm508, 1, 0
    %v525 = vcvt.s32.f32 %v509
    %v526 = vcvt.s32.f32 %v510
    %v527 = vcvt.s32.f32 %v511
    %v528 = vcvt.s32.f32 %v512
    %v529 = vcvt.s32.f32 %v513
    %v530 = vcvt.s32.f32 %v514
    %v531 = vcvt.s32.f32 %v515
    %v532 = vcvt.s32.f32 %v516
    %v533 = vcvt.s32.f32 %v517
    %v534 = vcvt.s32.f32 %v518
    %v535 = vcvt.s32.f32 %v519
    %v536 = vcvt.s32.f32 %v520
    %v537 = vcvt.s32.f32 %v521
    %v538 = vcvt.s32.f32 %v522
    %v539 = vcvt.s32.f32 %v523
    %v540 = vcvt.s32.f32 %v524
    %vm541 = vcmp.ge.s32.totalorder %v141, 0
    %vm542 = vcmp.ge.s32.totalorder %v142, 0
    %vm543 = vcmp.ge.s32.totalorder %v143, 0
    %vm544 = vcmp.ge.s32.totalorder %v144, 0
    %vm545 = vcmp.ge.s32.totalorder %v145, 0
    %vm546 = vcmp.ge.s32.totalorder %v146, 0
    %vm547 = vcmp.ge.s32.totalorder %v147, 0
    %vm548 = vcmp.ge.s32.totalorder %v148, 0
    %vm549 = vcmp.ge.s32.totalorder %v149, 0
    %vm550 = vcmp.ge.s32.totalorder %v150, 0
    %vm551 = vcmp.ge.s32.totalorder %v151, 0
    %vm552 = vcmp.ge.s32.totalorder %v152, 0
    %vm553 = vcmp.ge.s32.totalorder %v153, 0
    %vm554 = vcmp.ge.s32.totalorder %v154, 0
    %vm555 = vcmp.ge.s32.totalorder %v155, 0
    %vm556 = vcmp.ge.s32.totalorder %v156, 0
    %vm557 = vcmp.lt.s32.totalorder %v141, 8
    %vm558 = vcmp.lt.s32.totalorder %v142, 8
    %vm559 = vcmp.lt.s32.totalorder %v143, 8
    %vm560 = vcmp.lt.s32.totalorder %v144, 8
    %vm561 = vcmp.lt.s32.totalorder %v145, 8
    %vm562 = vcmp.lt.s32.totalorder %v146, 8
    %vm563 = vcmp.lt.s32.totalorder %v147, 8
    %vm564 = vcmp.lt.s32.totalorder %v148, 8
    %vm565 = vcmp.lt.s32.totalorder %v149, 8
    %vm566 = vcmp.lt.s32.totalorder %v150, 8
    %vm567 = vcmp.lt.s32.totalorder %v151, 8
    %vm568 = vcmp.lt.s32.totalorder %v152, 8
    %vm569 = vcmp.lt.s32.totalorder %v153, 8
    %vm570 = vcmp.lt.s32.totalorder %v154, 8
    %vm571 = vcmp.lt.s32.totalorder %v155, 8
    %vm572 = vcmp.lt.s32.totalorder %v156, 8
    %vm573 = vmand %vm541, %vm557
    %vm574 = vmand %vm542, %vm558
    %vm575 = vmand %vm543, %vm559
    %vm576 = vmand %vm544, %vm560
    %vm577 = vmand %vm545, %vm561
    %vm578 = vmand %vm546, %vm562
    %vm579 = vmand %vm547, %vm563
    %vm580 = vmand %vm548, %vm564
    %vm581 = vmand %vm549, %vm565
    %vm582 = vmand %vm550, %vm566
    %vm583 = vmand %vm551, %vm567
    %vm584 = vmand %vm552, %vm568
    %vm585 = vmand %vm553, %vm569
    %vm586 = vmand %vm554, %vm570
    %vm587 = vmand %vm555, %vm571
    %vm588 = vmand %vm556, %vm572
    %vm589 = vmand %vm573, %vm237
    %vm590 = vmand %vm574, %vm238
    %vm591 = vmand %vm575, %vm239
    %vm592 = vmand %vm576, %vm240
    %vm593 = vmand %vm577, %vm241
    %vm594 = vmand %vm578, %vm242
    %vm595 = vmand %vm579, %vm243
    %vm596 = vmand %vm580, %vm244
    %vm597 = vmand %vm581, %vm245
    %vm598 = vmand %vm582, %vm246
    %vm599 = vmand %vm583, %vm247
    %vm600 = vmand %vm584, %vm248
    %vm601 = vmand %vm585, %vm249
    %vm602 = vmand %vm586, %vm250
    %vm603 = vmand %vm587, %vm251
    %vm604 = vmand %vm588, %vm252
    %vm605 = vmand %vm589, %vm269
    %vm606 = vmand %vm590, %vm270
    %vm607 = vmand %vm591, %vm271
    %vm608 = vmand %vm592, %vm272
    %vm609 = vmand %vm593, %vm273
    %vm610 = vmand %vm594, %vm274
    %vm611 = vmand %vm595, %vm275
    %vm612 = vmand %vm596, %vm276
    %vm613 = vmand %vm597, %vm277
    %vm614 = vmand %vm598, %vm278
    %vm615 = vmand %vm599, %vm279
    %vm616 = vmand %vm600, %vm280
    %vm617 = vmand %vm601, %vm281
    %vm618 = vmand %vm602, %vm282
    %vm619 = vmand %vm603, %vm283
    %vm620 = vmand %vm604, %vm284
    %v621 = vsel %vm605, 1, 0
    %v622 = vsel %vm606, 1, 0
    %v623 = vsel %vm607, 1, 0
    %v624 = vsel %vm608, 1, 0
    %v625 = vsel %vm609, 1, 0
    %v626 = vsel %vm610, 1, 0
    %v627 = vsel %vm611, 1, 0
    %v628 = vsel %vm612, 1, 0
    %v629 = vsel %vm613, 1, 0
    %v630 = vsel %vm614, 1, 0
    %v631 = vsel %vm615, 1, 0
    %v632 = vsel %vm616, 1, 0
    %v633 = vsel %vm617, 1, 0
    %v634 = vsel %vm618, 1, 0
    %v635 = vsel %vm619, 1, 0
    %v636 = vsel %vm620, 1, 0
    %v637 = vcvt.s32.f32 %v621
    %v638 = vcvt.s32.f32 %v622
    %v639 = vcvt.s32.f32 %v623
    %v640 = vcvt.s32.f32 %v624
    %v641 = vcvt.s32.f32 %v625
    %v642 = vcvt.s32.f32 %v626
    %v643 = vcvt.s32.f32 %v627
    %v644 = vcvt.s32.f32 %v628
    %v645 = vcvt.s32.f32 %v629
    %v646 = vcvt.s32.f32 %v630
    %v647 = vcvt.s32.f32 %v631
    %v648 = vcvt.s32.f32 %v632
    %v649 = vcvt.s32.f32 %v633
    %v650 = vcvt.s32.f32 %v634
    %v651 = vcvt.s32.f32 %v635
    %v652 = vcvt.s32.f32 %v636
    %vm653 = vmand %vm573, %vm333
    %vm654 = vmand %vm574, %vm334
    %vm655 = vmand %vm575, %vm335
    %vm656 = vmand %vm576, %vm336
    %vm657 = vmand %vm577, %vm337
    %vm658 = vmand %vm578, %vm338
    %vm659 = vmand %vm579, %vm339
    %vm660 = vmand %vm580, %vm340
    %vm661 = vmand %vm581, %vm341
    %vm662 = vmand %vm582, %vm342
    %vm663 = vmand %vm583, %vm343
    %vm664 = vmand %vm584, %vm344
    %vm665 = vmand %vm585, %vm345
    %vm666 = vmand %vm586, %vm346
    %vm667 = vmand %vm587, %vm347
    %vm668 = vmand %vm588, %vm348
    %vm669 = vmand %vm653, %vm365
    %vm670 = vmand %vm654, %vm366
    %vm671 = vmand %vm655, %vm367
    %vm672 = vmand %vm656, %vm368
    %vm673 = vmand %vm657, %vm369
    %vm674 = vmand %vm658, %vm370
    %vm675 = vmand %vm659, %vm371
    %vm676 = vmand %vm660, %vm372
    %vm677 = vmand %vm661, %vm373
    %vm678 = vmand %vm662, %vm374
    %vm679 = vmand %vm663, %vm375
    %vm680 = vmand %vm664, %vm376
    %vm681 = vmand %vm665, %vm377
    %vm682 = vmand %vm666, %vm378
    %vm683 = vmand %vm667, %vm379
    %vm684 = vmand %vm668, %vm380
    %v685 = vsel %vm669, 1, 0
    %v686 = vsel %vm670, 1, 0
    %v687 = vsel %vm671, 1, 0
    %v688 = vsel %vm672, 1, 0
    %v689 = vsel %vm673, 1, 0
    %v690 = vsel %vm674, 1, 0
    %v691 = vsel %vm675, 1, 0
    %v692 = vsel %vm676, 1, 0
    %v693 = vsel %vm677, 1, 0
    %v694 = vsel %vm678, 1, 0
    %v695 = vsel %vm679, 1, 0
    %v696 = vsel %vm680, 1, 0
    %v697 = vsel %vm681, 1, 0
    %v698 = vsel %vm682, 1, 0
    %v699 = vsel %vm683, 1, 0
    %v700 = vsel %vm684, 1, 0
    %v701 = vcvt.s32.f32 %v685
    %v702 = vcvt.s32.f32 %v686
    %v703 = vcvt.s32.f32 %v687
    %v704 = vcvt.s32.f32 %v688
    %v705 = vcvt.s32.f32 %v689
    %v706 = vcvt.s32.f32 %v690
    %v707 = vcvt.s32.f32 %v691
    %v708 = vcvt.s32.f32 %v692
    %v709 = vcvt.s32.f32 %v693
    %v710 = vcvt.s32.f32 %v694
    %v711 = vcvt.s32.f32 %v695
    %v712 = vcvt.s32.f32 %v696
    %v713 = vcvt.s32.f32 %v697
    %v714 = vcvt.s32.f32 %v698
    %v715 = vcvt.s32.f32 %v699
    %v716 = vcvt.s32.f32 %v700
    %vm717 = vmand %vm573, %vm445
    %vm718 = vmand %vm574, %vm446
    %vm719 = vmand %vm575, %vm447
    %vm720 = vmand %vm576, %vm448
    %vm721 = vmand %vm577, %vm449
    %vm722 = vmand %vm578, %vm450
    %vm723 = vmand %vm579, %vm451
    %vm724 = vmand %vm580, %vm452
    %vm725 = vmand %vm581, %vm453
    %vm726 = vmand %vm582, %vm454
    %vm727 = vmand %vm583, %vm455
    %vm728 = vmand %vm584, %vm456
    %vm729 = vmand %vm585, %vm457
    %vm730 = vmand %vm586, %vm458
    %vm731 = vmand %vm587, %vm459
    %vm732 = vmand %vm588, %vm460
    %vm733 = vmand %vm717, %vm477
    %vm734 = vmand %vm718, %vm478
    %vm735 = vmand %vm719, %vm479
    %vm736 = vmand %vm720, %vm480
    %vm737 = vmand %vm721, %vm481
    %vm738 = vmand %vm722, %vm482
    %vm739 = vmand %vm723, %vm483
    %vm740 = vmand %vm724, %vm484
    %vm741 = vmand %vm725, %vm485
    %vm742 = vmand %vm726, %vm486
    %vm743 = vmand %vm727, %vm487
    %vm744 = vmand %vm728, %vm488
    %vm745 = vmand %vm729, %vm489
    %vm746 = vmand %vm730, %vm490
    %vm747 = vmand %vm731, %vm491
    %vm748 = vmand %vm732, %vm492
    %v749 = vsel %vm733, 1, 0
    %v750 = vsel %vm734, 1, 0
    %v751 = vsel %vm735, 1, 0
    %v752 = vsel %vm736, 1, 0
    %v753 = vsel %vm737, 1, 0
    %v754 = vsel %vm738, 1, 0
    %v755 = vsel %vm739, 1, 0
    %v756 = vsel %vm740, 1, 0
    %v757 = vsel %vm741, 1, 0
    %v758 = vsel %vm742, 1, 0
    %v759 = vsel %vm743, 1, 0
    %v760 = vsel %vm744, 1, 0
    %v761 = vsel %vm745, 1, 0
    %v762 = vsel %vm746, 1, 0
    %v763 = vsel %vm747, 1, 0
    %v764 = vsel %vm748, 1, 0
    %v765 = vcvt.s32.f32 %v749
    %v766 = vcvt.s32.f32 %v750
    %v767 = vcvt.s32.f32 %v751
    %v768 = vcvt.s32.f32 %v752
    %v769 = vcvt.s32.f32 %v753
    %v770 = vcvt.s32.f32 %v754
    %v771 = vcvt.s32.f32 %v755
    %v772 = vcvt.s32.f32 %v756
    %v773 = vcvt.s32.f32 %v757
    %v774 = vcvt.s32.f32 %v758
    %v775 = vcvt.s32.f32 %v759
    %v776 = vcvt.s32.f32 %v760
    %v777 = vcvt.s32.f32 %v761
    %v778 = vcvt.s32.f32 %v762
    %v779 = vcvt.s32.f32 %v763
    %v780 = vcvt.s32.f32 %v764
    %v781 = vadd.s32 %v141, 1
    %v782 = vadd.s32 %v142, 1
    %v783 = vadd.s32 %v143, 1
    %v784 = vadd.s32 %v144, 1
    %v785 = vadd.s32 %v145, 1
    %v786 = vadd.s32 %v146, 1
    %v787 = vadd.s32 %v147, 1
    %v788 = vadd.s32 %v148, 1
    %v789 = vadd.s32 %v149, 1
    %v790 = vadd.s32 %v150, 1
    %v791 = vadd.s32 %v151, 1
    %v792 = vadd.s32 %v152, 1
    %v793 = vadd.s32 %v153, 1
    %v794 = vadd.s32 %v154, 1
    %v795 = vadd.s32 %v155, 1
    %v796 = vadd.s32 %v156, 1
    %vm797 = vcmp.ge.s32.totalorder %v781, 0
    %vm798 = vcmp.ge.s32.totalorder %v782, 0
    %vm799 = vcmp.ge.s32.totalorder %v783, 0
    %vm800 = vcmp.ge.s32.totalorder %v784, 0
    %vm801 = vcmp.ge.s32.totalorder %v785, 0
    %vm802 = vcmp.ge.s32.totalorder %v786, 0
    %vm803 = vcmp.ge.s32.totalorder %v787, 0
    %vm804 = vcmp.ge.s32.totalorder %v788, 0
    %vm805 = vcmp.ge.s32.totalorder %v789, 0
    %vm806 = vcmp.ge.s32.totalorder %v790, 0
    %vm807 = vcmp.ge.s32.totalorder %v791, 0
    %vm808 = vcmp.ge.s32.totalorder %v792, 0
    %vm809 = vcmp.ge.s32.totalorder %v793, 0
    %vm810 = vcmp.ge.s32.totalorder %v794, 0
    %vm811 = vcmp.ge.s32.totalorder %v795, 0
    %vm812 = vcmp.ge.s32.totalorder %v796, 0
    %vm813 = vcmp.lt.s32.totalorder %v781, 8
    %vm814 = vcmp.lt.s32.totalorder %v782, 8
    %vm815 = vcmp.lt.s32.totalorder %v783, 8
    %vm816 = vcmp.lt.s32.totalorder %v784, 8
    %vm817 = vcmp.lt.s32.totalorder %v785, 8
    %vm818 = vcmp.lt.s32.totalorder %v786, 8
    %vm819 = vcmp.lt.s32.totalorder %v787, 8
    %vm820 = vcmp.lt.s32.totalorder %v788, 8
    %vm821 = vcmp.lt.s32.totalorder %v789, 8
    %vm822 = vcmp.lt.s32.totalorder %v790, 8
    %vm823 = vcmp.lt.s32.totalorder %v791, 8
    %vm824 = vcmp.lt.s32.totalorder %v792, 8
    %vm825 = vcmp.lt.s32.totalorder %v793, 8
    %vm826 = vcmp.lt.s32.totalorder %v794, 8
    %vm827 = vcmp.lt.s32.totalorder %v795, 8
    %vm828 = vcmp.lt.s32.totalorder %v796, 8
    %vm829 = vmand %vm797, %vm813
    %vm830 = vmand %vm798, %vm814
    %vm831 = vmand %vm799, %vm815
    %vm832 = vmand %vm800, %vm816
    %vm833 = vmand %vm801, %vm817
    %vm834 = vmand %vm802, %vm818
    %vm835 = vmand %vm803, %vm819
    %vm836 = vmand %vm804, %vm820
    %vm837 = vmand %vm805, %vm821
    %vm838 = vmand %vm806, %vm822
    %vm839 = vmand %vm807, %vm823
    %vm840 = vmand %vm808, %vm824
    %vm841 = vmand %vm809, %vm825
    %vm842 = vmand %vm810, %vm826
    %vm843 = vmand %vm811, %vm827
    %vm844 = vmand %vm812, %vm828
    %vm845 = vmand %vm829, %vm237
    %vm846 = vmand %vm830, %vm238
    %vm847 = vmand %vm831, %vm239
    %vm848 = vmand %vm832, %vm240
    %vm849 = vmand %vm833, %vm241
    %vm850 = vmand %vm834, %vm242
    %vm851 = vmand %vm835, %vm243
    %vm852 = vmand %vm836, %vm244
    %vm853 = vmand %vm837, %vm245
    %vm854 = vmand %vm838, %vm246
    %vm855 = vmand %vm839, %vm247
    %vm856 = vmand %vm840, %vm248
    %vm857 = vmand %vm841, %vm249
    %vm858 = vmand %vm842, %vm250
    %vm859 = vmand %vm843, %vm251
    %vm860 = vmand %vm844, %vm252
    %vm861 = vmand %vm845, %vm269
    %vm862 = vmand %vm846, %vm270
    %vm863 = vmand %vm847, %vm271
    %vm864 = vmand %vm848, %vm272
    %vm865 = vmand %vm849, %vm273
    %vm866 = vmand %vm850, %vm274
    %vm867 = vmand %vm851, %vm275
    %vm868 = vmand %vm852, %vm276
    %vm869 = vmand %vm853, %vm277
    %vm870 = vmand %vm854, %vm278
    %vm871 = vmand %vm855, %vm279
    %vm872 = vmand %vm856, %vm280
    %vm873 = vmand %vm857, %vm281
    %vm874 = vmand %vm858, %vm282
    %vm875 = vmand %vm859, %vm283
    %vm876 = vmand %vm860, %vm284
    %v877 = vsel %vm861, 1, 0
    %v878 = vsel %vm862, 1, 0
    %v879 = vsel %vm863, 1, 0
    %v880 = vsel %vm864, 1, 0
    %v881 = vsel %vm865, 1, 0
    %v882 = vsel %vm866, 1, 0
    %v883 = vsel %vm867, 1, 0
    %v884 = vsel %vm868, 1, 0
    %v885 = vsel %vm869, 1, 0
    %v886 = vsel %vm870, 1, 0
    %v887 = vsel %vm871, 1, 0
    %v888 = vsel %vm872, 1, 0
    %v889 = vsel %vm873, 1, 0
    %v890 = vsel %vm874, 1, 0
    %v891 = vsel %vm875, 1, 0
    %v892 = vsel %vm876, 1, 0
    %v893 = vcvt.s32.f32 %v877
    %v894 = vcvt.s32.f32 %v878
    %v895 = vcvt.s32.f32 %v879
    %v896 = vcvt.s32.f32 %v880
    %v897 = vcvt.s32.f32 %v881
    %v898 = vcvt.s32.f32 %v882
    %v899 = vcvt.s32.f32 %v883
    %v900 = vcvt.s32.f32 %v884
    %v901 = vcvt.s32.f32 %v885
    %v902 = vcvt.s32.f32 %v886
    %v903 = vcvt.s32.f32 %v887
    %v904 = vcvt.s32.f32 %v888
    %v905 = vcvt.s32.f32 %v889
    %v906 = vcvt.s32.f32 %v890
    %v907 = vcvt.s32.f32 %v891
    %v908 = vcvt.s32.f32 %v892
    %vm909 = vmand %vm829, %vm333
    %vm910 = vmand %vm830, %vm334
    %vm911 = vmand %vm831, %vm335
    %vm912 = vmand %vm832, %vm336
    %vm913 = vmand %vm833, %vm337
    %vm914 = vmand %vm834, %vm338
    %vm915 = vmand %vm835, %vm339
    %vm916 = vmand %vm836, %vm340
    %vm917 = vmand %vm837, %vm341
    %vm918 = vmand %vm838, %vm342
    %vm919 = vmand %vm839, %vm343
    %vm920 = vmand %vm840, %vm344
    %vm921 = vmand %vm841, %vm345
    %vm922 = vmand %vm842, %vm346
    %vm923 = vmand %vm843, %vm347
    %vm924 = vmand %vm844, %vm348
    %vm925 = vmand %vm909, %vm365
    %vm926 = vmand %vm910, %vm366
    %vm927 = vmand %vm911, %vm367
    %vm928 = vmand %vm912, %vm368
    %vm929 = vmand %vm913, %vm369
    %vm930 = vmand %vm914, %vm370
    %vm931 = vmand %vm915, %vm371
    %vm932 = vmand %vm916, %vm372
    %vm933 = vmand %vm917, %vm373
    %vm934 = vmand %vm918, %vm374
    %vm935 = vmand %vm919, %vm375
    %vm936 = vmand %vm920, %vm376
    %vm937 = vmand %vm921, %vm377
    %vm938 = vmand %vm922, %vm378
    %vm939 = vmand %vm923, %vm379
    %vm940 = vmand %vm924, %vm380
    %v941 = vsel %vm925, 1, 0
    %v942 = vsel %vm926, 1, 0
    %v943 = vsel %vm927, 1, 0
    %v944 = vsel %vm928, 1, 0
    %v945 = vsel %vm929, 1, 0
    %v946 = vsel %vm930, 1, 0
    %v947 = vsel %vm931, 1, 0
    %v948 = vsel %vm932, 1, 0
    %v949 = vsel %vm933, 1, 0
    %v950 = vsel %vm934, 1, 0
    %v951 = vsel %vm935, 1, 0
    %v952 = vsel %vm936, 1, 0
    %v953 = vsel %vm937, 1, 0
    %v954 = vsel %vm938, 1, 0
    %v955 = vsel %vm939, 1, 0
    %v956 = vsel %vm940, 1, 0
    %v957 = vcvt.s32.f32 %v941
    %v958 = vcvt.s32.f32 %v942
    %v959 = vcvt.s32.f32 %v943
    %v960 = vcvt.s32.f32 %v944
    %v961 = vcvt.s32.f32 %v945
    %v962 = vcvt.s32.f32 %v946
    %v963 = vcvt.s32.f32 %v947
    %v964 = vcvt.s32.f32 %v948
    %v965 = vcvt.s32.f32 %v949
    %v966 = vcvt.s32.f32 %v950
    %v967 = vcvt.s32.f32 %v951
    %v968 = vcvt.s32.f32 %v952
    %v969 = vcvt.s32.f32 %v953
    %v970 = vcvt.s32.f32 %v954
    %v971 = vcvt.s32.f32 %v955
    %v972 = vcvt.s32.f32 %v956
    %vm973 = vmand %vm829, %vm445
    %vm974 = vmand %vm830, %vm446
    %vm975 = vmand %vm831, %vm447
    %vm976 = vmand %vm832, %vm448
    %vm977 = vmand %vm833, %vm449
    %vm978 = vmand %vm834, %vm450
    %vm979 = vmand %vm835, %vm451
    %vm980 = vmand %vm836, %vm452
    %vm981 = vmand %vm837, %vm453
    %vm982 = vmand %vm838, %vm454
    %vm983 = vmand %vm839, %vm455
    %vm984 = vmand %vm840, %vm456
    %vm985 = vmand %vm841, %vm457
    %vm986 = vmand %vm842, %vm458
    %vm987 = vmand %vm843, %vm459
    %vm988 = vmand %vm844, %vm460
    %vm989 = vmand %vm973, %vm477
    %vm990 = vmand %vm974, %vm478
    %vm991 = vmand %vm975, %vm479
    %vm992 = vmand %vm976, %vm480
    %vm993 = vmand %vm977, %vm481
    %vm994 = vmand %vm978, %vm482
    %vm995 = vmand %vm979, %vm483
    %vm996 = vmand %vm980, %vm484
    %vm997 = vmand %vm981, %vm485
    %vm998 = vmand %vm982, %vm486
    %vm999 = vmand %vm983, %vm487
    %vm1000 = vmand %vm984, %vm488
    %vm1001 = vmand %vm985, %vm489
    %vm1002 = vmand %vm986, %vm490
    %vm1003 = vmand %vm987, %vm491
    %vm1004 = vmand %vm988, %vm492
    %v1005 = vsel %vm989, 1, 0
    %v1006 = vsel %vm990, 1, 0
    %v1007 = vsel %vm991, 1, 0
    %v1008 = vsel %vm992, 1, 0
    %v1009 = vsel %vm993, 1, 0
    %v1010 = vsel %vm994, 1, 0
    %v1011 = vsel %vm995, 1, 0
    %v1012 = vsel %vm996, 1, 0
    %v1013 = vsel %vm997, 1, 0
    %v1014 = vsel %vm998, 1, 0
    %v1015 = vsel %vm999, 1, 0
    %v1016 = vsel %vm1000, 1, 0
    %v1017 = vsel %vm1001, 1, 0
    %v1018 = vsel %vm1002, 1, 0
    %v1019 = vsel %vm1003, 1, 0
    %v1020 = vsel %vm1004, 1, 0
    %v1021 = vcvt.s32.f32 %v1005
    %v1022 = vcvt.s32.f32 %v1006
    %v1023 = vcvt.s32.f32 %v1007
    %v1024 = vcvt.s32.f32 %v1008
    %v1025 = vcvt.s32.f32 %v1009
    %v1026 = vcvt.s32.f32 %v1010
    %v1027 = vcvt.s32.f32 %v1011
    %v1028 = vcvt.s32.f32 %v1012
    %v1029 = vcvt.s32.f32 %v1013
    %v1030 = vcvt.s32.f32 %v1014
    %v1031 = vcvt.s32.f32 %v1015
    %v1032 = vcvt.s32.f32 %v1016
    %v1033 = vcvt.s32.f32 %v1017
    %v1034 = vcvt.s32.f32 %v1018
    %v1035 = vcvt.s32.f32 %v1019
    %v1036 = vcvt.s32.f32 %v1020
    %vm1037 = vcmask 261120
    %1038 = vst.msk [vmem:[#allocation2] sm:$0xff] %vm1037, 0.0
    %1039 = vst.msk [vmem:[#allocation2 + $0x8] sm:$0xff] %vm1037, 0.0
    %1040 = vst.msk [vmem:[#allocation2 + $0x10] sm:$0xff] %vm1037, 0.0
    %1041 = vst.msk [vmem:[#allocation2 + $0x18] sm:$0xff] %vm1037, 0.0
    %1042 = vst.msk [vmem:[#allocation2 + $0x20] sm:$0xff] %vm1037, 0.0
    %1043 = vst.msk [vmem:[#allocation2 + $0x28] sm:$0xff] %vm1037, 0.0
    %1044 = vst.msk [vmem:[#allocation2 + $0x30] sm:$0xff] %vm1037, 0.0
    %1045 = vst.msk [vmem:[#allocation2 + $0x38] sm:$0xff] %vm1037, 0.0
    %1046 = vst.msk [vmem:[#allocation2 + $0x40] sm:$0xff] %vm1037, 0.0
    %1047 = vst.msk [vmem:[#allocation2 + $0x48] sm:$0xff] %vm1037, 0.0
    %1048 = vst.msk [vmem:[#allocation2 + $0x50] sm:$0xff] %vm1037, 0.0
    %1049 = vst.msk [vmem:[#allocation2 + $0x58] sm:$0xff] %vm1037, 0.0
    %1050 = vst.msk [vmem:[#allocation2 + $0x60] sm:$0xff] %vm1037, 0.0
    %1051 = vst.msk [vmem:[#allocation2 + $0x68] sm:$0xff] %vm1037, 0.0
    %1052 = vst.msk [vmem:[#allocation2 + $0x70] sm:$0xff] %vm1037, 0.0
    %1053 = vst.msk [vmem:[#allocation2 + $0x78] sm:$0xff] %vm1037, 0.0
    %1054 = vst.msk [vmem:[#allocation2 + $0x80] sm:$0xff] %vm1037, 0.0
    %1055 = vst.msk [vmem:[#allocation2 + $0x88] sm:$0xff] %vm1037, 0.0
    %1056 = vst.msk [vmem:[#allocation2 + $0x90] sm:$0xff] %vm1037, 0.0
    %1057 = vst.msk [vmem:[#allocation2 + $0x98] sm:$0xff] %vm1037, 0.0
    %v1058 = vld [vmem:[%s0] sm:$0xff]
    %v1059 = vld [vmem:[%s0 + $0x8] sm:$0xff]
    %v1060 = vld [vmem:[%s0 + $0x10] sm:$0xff]
    %v1061 = vld [vmem:[%s0 + $0x18] sm:$0xff]
    %v1062 = vld [vmem:[%s0 + $0x20] sm:$0xff]
    %v1063 = vld [vmem:[%s0 + $0x28] sm:$0xff]
    %v1064 = vld [vmem:[%s0 + $0x30] sm:$0xff]
    %v1065 = vld [vmem:[%s0 + $0x38] sm:$0xff]
    %v1066 = vld [vmem:[%s0 + $0x40] sm:$0xff]
    %v1067 = vld [vmem:[%s0 + $0x48] sm:$0xff]
    %v1068 = vld [vmem:[%s0 + $0x50] sm:$0xff]
    %v1069 = vld [vmem:[%s0 + $0x58] sm:$0xff]
    %v1070 = vld [vmem:[%s0 + $0x60] sm:$0xff]
    %v1071 = vld [vmem:[%s0 + $0x68] sm:$0xff]
    %v1072 = vld [vmem:[%s0 + $0x70] sm:$0xff]
    %v1073 = vld [vmem:[%s0 + $0x78] sm:$0xff]
    %1075 = vset.pattern.permute.xlu0 0
    %1076 = vperm.xlu0 %1075, %v1058
    %v1077 = vpop.permute.xlu0 %1076
    %1080 = vset.pattern.permute.xlu0 0
    %1081 = vperm.xlu0 %1080, %v1059
    %v1082 = vpop.permute.xlu0 %1081
    %1085 = vset.pattern.permute.xlu0 0
    %1086 = vperm.xlu0 %1085, %v1060
    %v1087 = vpop.permute.xlu0 %1086
    %1090 = vset.pattern.permute.xlu0 0
    %1091 = vperm.xlu0 %1090, %v1061
    %v1092 = vpop.permute.xlu0 %1091
    %1095 = vset.pattern.permute.xlu0 0
    %1096 = vperm.xlu0 %1095, %v1062
    %v1097 = vpop.permute.xlu0 %1096
    %1100 = vset.pattern.permute.xlu0 0
    %1101 = vperm.xlu0 %1100, %v1063
    %v1102 = vpop.permute.xlu0 %1101
    %1105 = vset.pattern.permute.xlu0 0
    %1106 = vperm.xlu0 %1105, %v1064
    %v1107 = vpop.permute.xlu0 %1106
    %1110 = vset.pattern.permute.xlu0 0
    %1111 = vperm.xlu0 %1110, %v1065
    %v1112 = vpop.permute.xlu0 %1111
    %1115 = vset.pattern.permute.xlu0 0
    %1116 = vperm.xlu0 %1115, %v1066
    %v1117 = vpop.permute.xlu0 %1116
    %1120 = vset.pattern.permute.xlu0 0
    %1121 = vperm.xlu0 %1120, %v1067
    %v1122 = vpop.permute.xlu0 %1121
    %1125 = vset.pattern.permute.xlu0 0
    %1126 = vperm.xlu0 %1125, %v1068
    %v1127 = vpop.permute.xlu0 %1126
    %1130 = vset.pattern.permute.xlu0 0
    %1131 = vperm.xlu0 %1130, %v1069
    %v1132 = vpop.permute.xlu0 %1131
    %1135 = vset.pattern.permute.xlu0 0
    %1136 = vperm.xlu0 %1135, %v1070
    %v1137 = vpop.permute.xlu0 %1136
    %1140 = vset.pattern.permute.xlu0 0
    %1141 = vperm.xlu0 %1140, %v1071
    %v1142 = vpop.permute.xlu0 %1141
    %1145 = vset.pattern.permute.xlu0 0
    %1146 = vperm.xlu0 %1145, %v1072
    %v1147 = vpop.permute.xlu0 %1146
    %1150 = vset.pattern.permute.xlu0 0
    %1151 = vperm.xlu0 %1150, %v1073
    %v1152 = vpop.permute.xlu0 %1151
    %1154 = vst.msk [vmem:[#allocation2 + $0x10] sm:$0xff] %vm1037, %v1077
    %1155 = vst.msk [vmem:[#allocation2 + $0x18] sm:$0xff] %vm1037, %v1082
    %1156 = vst.msk [vmem:[#allocation2 + $0x20] sm:$0xff] %vm1037, %v1087
    %1157 = vst.msk [vmem:[#allocation2 + $0x28] sm:$0xff] %vm1037, %v1092
    %1158 = vst.msk [vmem:[#allocation2 + $0x30] sm:$0xff] %vm1037, %v1097
    %1159 = vst.msk [vmem:[#allocation2 + $0x38] sm:$0xff] %vm1037, %v1102
    %1160 = vst.msk [vmem:[#allocation2 + $0x40] sm:$0xff] %vm1037, %v1107
    %1161 = vst.msk [vmem:[#allocation2 + $0x48] sm:$0xff] %vm1037, %v1112
    %1162 = vst.msk [vmem:[#allocation2 + $0x50] sm:$0xff] %vm1037, %v1117
    %1163 = vst.msk [vmem:[#allocation2 + $0x58] sm:$0xff] %vm1037, %v1122
    %1164 = vst.msk [vmem:[#allocation2 + $0x60] sm:$0xff] %vm1037, %v1127
    %1165 = vst.msk [vmem:[#allocation2 + $0x68] sm:$0xff] %vm1037, %v1132
    %1166 = vst.msk [vmem:[#allocation2 + $0x70] sm:$0xff] %vm1037, %v1137
    %1167 = vst.msk [vmem:[#allocation2 + $0x78] sm:$0xff] %vm1037, %v1142
    %1168 = vst.msk [vmem:[#allocation2 + $0x80] sm:$0xff] %vm1037, %v1147
    %1169 = vst.msk [vmem:[#allocation2 + $0x88] sm:$0xff] %vm1037, %v1152
    %v1170 = vld [vmem:[#allocation2 + $0x7] sm:$0xff]
    %v1171 = vld [vmem:[#allocation2 + $0xf] sm:$0xff]
    %v1172 = vld [vmem:[#allocation2 + $0x17] sm:$0xff]
    %v1173 = vld [vmem:[#allocation2 + $0x1f] sm:$0xff]
    %v1174 = vld [vmem:[#allocation2 + $0x27] sm:$0xff]
    %v1175 = vld [vmem:[#allocation2 + $0x2f] sm:$0xff]
    %v1176 = vld [vmem:[#allocation2 + $0x37] sm:$0xff]
    %v1177 = vld [vmem:[#allocation2 + $0x3f] sm:$0xff]
    %v1178 = vld [vmem:[#allocation2 + $0x47] sm:$0xff]
    %v1179 = vld [vmem:[#allocation2 + $0x4f] sm:$0xff]
    %v1180 = vld [vmem:[#allocation2 + $0x57] sm:$0xff]
    %v1181 = vld [vmem:[#allocation2 + $0x5f] sm:$0xff]
    %v1182 = vld [vmem:[#allocation2 + $0x67] sm:$0xff]
    %v1183 = vld [vmem:[#allocation2 + $0x6f] sm:$0xff]
    %v1184 = vld [vmem:[#allocation2 + $0x77] sm:$0xff]
    %v1185 = vld [vmem:[#allocation2 + $0x7f] sm:$0xff]
    %v1186 = vmul.f32 %v317, %v1170
    %v1187 = vmul.f32 %v318, %v1171
    %v1188 = vmul.f32 %v319, %v1172
    %v1189 = vmul.f32 %v320, %v1173
    %v1190 = vmul.f32 %v321, %v1174
    %v1191 = vmul.f32 %v322, %v1175
    %v1192 = vmul.f32 %v323, %v1176
    %v1193 = vmul.f32 %v324, %v1177
    %v1194 = vmul.f32 %v325, %v1178
    %v1195 = vmul.f32 %v326, %v1179
    %v1196 = vmul.f32 %v327, %v1180
    %v1197 = vmul.f32 %v328, %v1181
    %v1198 = vmul.f32 %v329, %v1182
    %v1199 = vmul.f32 %v330, %v1183
    %v1200 = vmul.f32 %v331, %v1184
    %v1201 = vmul.f32 %v332, %v1185
    %v1202 = vld [vmem:[%s1] sm:$0x1]
    %v1203 = vlaneseq
    %v1204 = vshrl.u32 %v1203, 7
    %v1205 = vsub.s32 0, %v1204
    %v1206 = vrot.slane %v1202, %v1205
    %v1207 = vmul.f32 %v1186, %v1206
    %v1208 = vmul.f32 %v1187, %v1206
    %v1209 = vmul.f32 %v1188, %v1206
    %v1210 = vmul.f32 %v1189, %v1206
    %v1211 = vmul.f32 %v1190, %v1206
    %v1212 = vmul.f32 %v1191, %v1206
    %v1213 = vmul.f32 %v1192, %v1206
    %v1214 = vmul.f32 %v1193, %v1206
    %v1215 = vmul.f32 %v1194, %v1206
    %v1216 = vmul.f32 %v1195, %v1206
    %v1217 = vmul.f32 %v1196, %v1206
    %v1218 = vmul.f32 %v1197, %v1206
    %v1219 = vmul.f32 %v1198, %v1206
    %v1220 = vmul.f32 %v1199, %v1206
    %v1221 = vmul.f32 %v1200, %v1206
    %v1222 = vmul.f32 %v1201, %v1206
    %v1223 = vadd.f32 %v1207, 0.0
    %v1224 = vadd.f32 %v1208, 0.0
    %v1225 = vadd.f32 %v1209, 0.0
    %v1226 = vadd.f32 %v1210, 0.0
    %v1227 = vadd.f32 %v1211, 0.0
    %v1228 = vadd.f32 %v1212, 0.0
    %v1229 = vadd.f32 %v1213, 0.0
    %v1230 = vadd.f32 %v1214, 0.0
    %v1231 = vadd.f32 %v1215, 0.0
    %v1232 = vadd.f32 %v1216, 0.0
    %v1233 = vadd.f32 %v1217, 0.0
    %v1234 = vadd.f32 %v1218, 0.0
    %v1235 = vadd.f32 %v1219, 0.0
    %v1236 = vadd.f32 %v1220, 0.0
    %v1237 = vadd.f32 %v1221, 0.0
    %v1238 = vadd.f32 %v1222, 0.0
    %v1239 = vld [vmem:[#allocation2 + $0x8] sm:$0xff]
    %v1240 = vld [vmem:[#allocation2 + $0x10] sm:$0xff]
    %v1241 = vld [vmem:[#allocation2 + $0x18] sm:$0xff]
    %v1242 = vld [vmem:[#allocation2 + $0x20] sm:$0xff]
    %v1243 = vld [vmem:[#allocation2 + $0x28] sm:$0xff]
    %v1244 = vld [vmem:[#allocation2 + $0x30] sm:$0xff]
    %v1245 = vld [vmem:[#allocation2 + $0x38] sm:$0xff]
    %v1246 = vld [vmem:[#allocation2 + $0x40] sm:$0xff]
    %v1247 = vld [vmem:[#allocation2 + $0x48] sm:$0xff]
    %v1248 = vld [vmem:[#allocation2 + $0x50] sm:$0xff]
    %v1249 = vld [vmem:[#allocation2 + $0x58] sm:$0xff]
    %v1250 = vld [vmem:[#allocation2 + $0x60] sm:$0xff]
    %v1251 = vld [vmem:[#allocation2 + $0x68] sm:$0xff]
    %v1252 = vld [vmem:[#allocation2 + $0x70] sm:$0xff]
    %v1253 = vld [vmem:[#allocation2 + $0x78] sm:$0xff]
    %v1254 = vld [vmem:[#allocation2 + $0x80] sm:$0xff]
    %v1255 = vmul.f32 %v413, %v1239
    %v1256 = vmul.f32 %v414, %v1240
    %v1257 = vmul.f32 %v415, %v1241
    %v1258 = vmul.f32 %v416, %v1242
    %v1259 = vmul.f32 %v417, %v1243
    %v1260 = vmul.f32 %v418, %v1244
    %v1261 = vmul.f32 %v419, %v1245
    %v1262 = vmul.f32 %v420, %v1246
    %v1263 = vmul.f32 %v421, %v1247
    %v1264 = vmul.f32 %v422, %v1248
    %v1265 = vmul.f32 %v423, %v1249
    %v1266 = vmul.f32 %v424, %v1250
    %v1267 = vmul.f32 %v425, %v1251
    %v1268 = vmul.f32 %v426, %v1252
    %v1269 = vmul.f32 %v427, %v1253
    %v1270 = vmul.f32 %v428, %v1254
    %v1271 = vld [vmem:[%s1 + $0x1] sm:$0x1]
    %v1272 = vlaneseq
    %v1273 = vshrl.u32 %v1272, 7
    %v1274 = vsub.s32 0, %v1273
    %v1275 = vrot.slane %v1271, %v1274
    %v1276 = vmul.f32 %v1255, %v1275
    %v1277 = vmul.f32 %v1256, %v1275
    %v1278 = vmul.f32 %v1257, %v1275
    %v1279 = vmul.f32 %v1258, %v1275
    %v1280 = vmul.f32 %v1259, %v1275
    %v1281 = vmul.f32 %v1260, %v1275
    %v1282 = vmul.f32 %v1261, %v1275
    %v1283 = vmul.f32 %v1262, %v1275
    %v1284 = vmul.f32 %v1263, %v1275
    %v1285 = vmul.f32 %v1264, %v1275
    %v1286 = vmul.f32 %v1265, %v1275
    %v1287 = vmul.f32 %v1266, %v1275
    %v1288 = vmul.f32 %v1267, %v1275
    %v1289 = vmul.f32 %v1268, %v1275
    %v1290 = vmul.f32 %v1269, %v1275
    %v1291 = vmul.f32 %v1270, %v1275
    %v1292 = vadd.f32 %v1223, %v1276
    %v1293 = vadd.f32 %v1224, %v1277
    %v1294 = vadd.f32 %v1225, %v1278
    %v1295 = vadd.f32 %v1226, %v1279
    %v1296 = vadd.f32 %v1227, %v1280
    %v1297 = vadd.f32 %v1228, %v1281
    %v1298 = vadd.f32 %v1229, %v1282
    %v1299 = vadd.f32 %v1230, %v1283
    %v1300 = vadd.f32 %v1231, %v1284
    %v1301 = vadd.f32 %v1232, %v1285
    %v1302 = vadd.f32 %v1233, %v1286
    %v1303 = vadd.f32 %v1234, %v1287
    %v1304 = vadd.f32 %v1235, %v1288
    %v1305 = vadd.f32 %v1236, %v1289
    %v1306 = vadd.f32 %v1237, %v1290
    %v1307 = vadd.f32 %v1238, %v1291
    %v1308 = vld [vmem:[#allocation2 + $0x9] sm:$0xff]
    %v1309 = vld [vmem:[#allocation2 + $0x11] sm:$0xff]
    %v1310 = vld [vmem:[#allocation2 + $0x19] sm:$0xff]
    %v1311 = vld [vmem:[#allocation2 + $0x21] sm:$0xff]
    %v1312 = vld [vmem:[#allocation2 + $0x29] sm:$0xff]
    %v1313 = vld [vmem:[#allocation2 + $0x31] sm:$0xff]
    %v1314 = vld [vmem:[#allocation2 + $0x39] sm:$0xff]
    %v1315 = vld [vmem:[#allocation2 + $0x41] sm:$0xff]
    %v1316 = vld [vmem:[#allocation2 + $0x49] sm:$0xff]
    %v1317 = vld [vmem:[#allocation2 + $0x51] sm:$0xff]
    %v1318 = vld [vmem:[#allocation2 + $0x59] sm:$0xff]
    %v1319 = vld [vmem:[#allocation2 + $0x61] sm:$0xff]
    %v1320 = vld [vmem:[#allocation2 + $0x69] sm:$0xff]
    %v1321 = vld [vmem:[#allocation2 + $0x71] sm:$0xff]
    %v1322 = vld [vmem:[#allocation2 + $0x79] sm:$0xff]
    %v1323 = vld [vmem:[#allocation2 + $0x81] sm:$0xff]
    %v1324 = vmul.f32 %v525, %v1308
    %v1325 = vmul.f32 %v526, %v1309
    %v1326 = vmul.f32 %v527, %v1310
    %v1327 = vmul.f32 %v528, %v1311
    %v1328 = vmul.f32 %v529, %v1312
    %v1329 = vmul.f32 %v530, %v1313
    %v1330 = vmul.f32 %v531, %v1314
    %v1331 = vmul.f32 %v532, %v1315
    %v1332 = vmul.f32 %v533, %v1316
    %v1333 = vmul.f32 %v534, %v1317
    %v1334 = vmul.f32 %v535, %v1318
    %v1335 = vmul.f32 %v536, %v1319
    %v1336 = vmul.f32 %v537, %v1320
    %v1337 = vmul.f32 %v538, %v1321
    %v1338 = vmul.f32 %v539, %v1322
    %v1339 = vmul.f32 %v540, %v1323
    %v1340 = vld [vmem:[%s1 + $0x2] sm:$0x1]
    %v1341 = vlaneseq
    %v1342 = vshrl.u32 %v1341, 7
    %v1343 = vsub.s32 0, %v1342
    %v1344 = vrot.slane %v1340, %v1343
    %v1345 = vmul.f32 %v1324, %v1344
    %v1346 = vmul.f32 %v1325, %v1344
    %v1347 = vmul.f32 %v1326, %v1344
    %v1348 = vmul.f32 %v1327, %v1344
    %v1349 = vmul.f32 %v1328, %v1344
    %v1350 = vmul.f32 %v1329, %v1344
    %v1351 = vmul.f32 %v1330, %v1344
    %v1352 = vmul.f32 %v1331, %v1344
    %v1353 = vmul.f32 %v1332, %v1344
    %v1354 = vmul.f32 %v1333, %v1344
    %v1355 = vmul.f32 %v1334, %v1344
    %v1356 = vmul.f32 %v1335, %v1344
    %v1357 = vmul.f32 %v1336, %v1344
    %v1358 = vmul.f32 %v1337, %v1344
    %v1359 = vmul.f32 %v1338, %v1344
    %v1360 = vmul.f32 %v1339, %v1344
    %v1361 = vadd.f32 %v1292, %v1345
    %v1362 = vadd.f32 %v1293, %v1346
    %v1363 = vadd.f32 %v1294, %v1347
    %v1364 = vadd.f32 %v1295, %v1348
    %v1365 = vadd.f32 %v1296, %v1349
    %v1366 = vadd.f32 %v1297, %v1350
    %v1367 = vadd.f32 %v1298, %v1351
    %v1368 = vadd.f32 %v1299, %v1352
    %v1369 = vadd.f32 %v1300, %v1353
    %v1370 = vadd.f32 %v1301, %v1354
    %v1371 = vadd.f32 %v1302, %v1355
    %v1372 = vadd.f32 %v1303, %v1356
    %v1373 = vadd.f32 %v1304, %v1357
    %v1374 = vadd.f32 %v1305, %v1358
    %v1375 = vadd.f32 %v1306, %v1359
    %v1376 = vadd.f32 %v1307, %v1360
    %v1377 = vld [vmem:[#allocation2 + $0x87] sm:$0xff]
    %v1378 = vmul.f32 %v637, %v1171
    %v1379 = vmul.f32 %v638, %v1172
    %v1380 = vmul.f32 %v639, %v1173
    %v1381 = vmul.f32 %v640, %v1174
    %v1382 = vmul.f32 %v641, %v1175
    %v1383 = vmul.f32 %v642, %v1176
    %v1384 = vmul.f32 %v643, %v1177
    %v1385 = vmul.f32 %v644, %v1178
    %v1386 = vmul.f32 %v645, %v1179
    %v1387 = vmul.f32 %v646, %v1180
    %v1388 = vmul.f32 %v647, %v1181
    %v1389 = vmul.f32 %v648, %v1182
    %v1390 = vmul.f32 %v649, %v1183
    %v1391 = vmul.f32 %v650, %v1184
    %v1392 = vmul.f32 %v651, %v1185
    %v1393 = vmul.f32 %v652, %v1377
    %v1394 = vld [vmem:[%s1 + $0x3] sm:$0x1]
    %v1395 = vlaneseq
    %v1396 = vshrl.u32 %v1395, 7
    %v1397 = vsub.s32 0, %v1396
    %v1398 = vrot.slane %v1394, %v1397
    %v1399 = vmul.f32 %v1378, %v1398
    %v1400 = vmul.f32 %v1379, %v1398
    %v1401 = vmul.f32 %v1380, %v1398
    %v1402 = vmul.f32 %v1381, %v1398
    %v1403 = vmul.f32 %v1382, %v1398
    %v1404 = vmul.f32 %v1383, %v1398
    %v1405 = vmul.f32 %v1384, %v1398
    %v1406 = vmul.f32 %v1385, %v1398
    %v1407 = vmul.f32 %v1386, %v1398
    %v1408 = vmul.f32 %v1387, %v1398
    %v1409 = vmul.f32 %v1388, %v1398
    %v1410 = vmul.f32 %v1389, %v1398
    %v1411 = vmul.f32 %v1390, %v1398
    %v1412 = vmul.f32 %v1391, %v1398
    %v1413 = vmul.f32 %v1392, %v1398
    %v1414 = vmul.f32 %v1393, %v1398
    %v1415 = vadd.f32 %v1361, %v1399
    %v1416 = vadd.f32 %v1362, %v1400
    %v1417 = vadd.f32 %v1363, %v1401
    %v1418 = vadd.f32 %v1364, %v1402
    %v1419 = vadd.f32 %v1365, %v1403
    %v1420 = vadd.f32 %v1366, %v1404
    %v1421 = vadd.f32 %v1367, %v1405
    %v1422 = vadd.f32 %v1368, %v1406
    %v1423 = vadd.f32 %v1369, %v1407
    %v1424 = vadd.f32 %v1370, %v1408
    %v1425 = vadd.f32 %v1371, %v1409
    %v1426 = vadd.f32 %v1372, %v1410
    %v1427 = vadd.f32 %v1373, %v1411
    %v1428 = vadd.f32 %v1374, %v1412
    %v1429 = vadd.f32 %v1375, %v1413
    %v1430 = vadd.f32 %v1376, %v1414
    %v1431 = vld [vmem:[#allocation2 + $0x88] sm:$0xff]
    %v1432 = vmul.f32 %v701, %v1240
    %v1433 = vmul.f32 %v702, %v1241
    %v1434 = vmul.f32 %v703, %v1242
    %v1435 = vmul.f32 %v704, %v1243
    %v1436 = vmul.f32 %v705, %v1244
    %v1437 = vmul.f32 %v706, %v1245
    %v1438 = vmul.f32 %v707, %v1246
    %v1439 = vmul.f32 %v708, %v1247
    %v1440 = vmul.f32 %v709, %v1248
    %v1441 = vmul.f32 %v710, %v1249
    %v1442 = vmul.f32 %v711, %v1250
    %v1443 = vmul.f32 %v712, %v1251
    %v1444 = vmul.f32 %v713, %v1252
    %v1445 = vmul.f32 %v714, %v1253
    %v1446 = vmul.f32 %v715, %v1254
    %v1447 = vmul.f32 %v716, %v1431
    %v1448 = vld [vmem:[%s1 + $0x4] sm:$0x1]
    %v1449 = vlaneseq
    %v1450 = vshrl.u32 %v1449, 7
    %v1451 = vsub.s32 0, %v1450
    %v1452 = vrot.slane %v1448, %v1451
    %v1453 = vmul.f32 %v1432, %v1452
    %v1454 = vmul.f32 %v1433, %v1452
    %v1455 = vmul.f32 %v1434, %v1452
    %v1456 = vmul.f32 %v1435, %v1452
    %v1457 = vmul.f32 %v1436, %v1452
    %v1458 = vmul.f32 %v1437, %v1452
    %v1459 = vmul.f32 %v1438, %v1452
    %v1460 = vmul.f32 %v1439, %v1452
    %v1461 = vmul.f32 %v1440, %v1452
    %v1462 = vmul.f32 %v1441, %v1452
    %v1463 = vmul.f32 %v1442, %v1452
    %v1464 = vmul.f32 %v1443, %v1452
    %v1465 = vmul.f32 %v1444, %v1452
    %v1466 = vmul.f32 %v1445, %v1452
    %v1467 = vmul.f32 %v1446, %v1452
    %v1468 = vmul.f32 %v1447, %v1452
    %v1469 = vadd.f32 %v1415, %v1453
    %v1470 = vadd.f32 %v1416, %v1454
    %v1471 = vadd.f32 %v1417, %v1455
    %v1472 = vadd.f32 %v1418, %v1456
    %v1473 = vadd.f32 %v1419, %v1457
    %v1474 = vadd.f32 %v1420, %v1458
    %v1475 = vadd.f32 %v1421, %v1459
    %v1476 = vadd.f32 %v1422, %v1460
    %v1477 = vadd.f32 %v1423, %v1461
    %v1478 = vadd.f32 %v1424, %v1462
    %v1479 = vadd.f32 %v1425, %v1463
    %v1480 = vadd.f32 %v1426, %v1464
    %v1481 = vadd.f32 %v1427, %v1465
    %v1482 = vadd.f32 %v1428, %v1466
    %v1483 = vadd.f32 %v1429, %v1467
    %v1484 = vadd.f32 %v1430, %v1468
    %v1485 = vld [vmem:[#allocation2 + $0x89] sm:$0xff]
    %v1486 = vmul.f32 %v765, %v1309
    %v1487 = vmul.f32 %v766, %v1310
    %v1488 = vmul.f32 %v767, %v1311
    %v1489 = vmul.f32 %v768, %v1312
    %v1490 = vmul.f32 %v769, %v1313
    %v1491 = vmul.f32 %v770, %v1314
    %v1492 = vmul.f32 %v771, %v1315
    %v1493 = vmul.f32 %v772, %v1316
    %v1494 = vmul.f32 %v773, %v1317
    %v1495 = vmul.f32 %v774, %v1318
    %v1496 = vmul.f32 %v775, %v1319
    %v1497 = vmul.f32 %v776, %v1320
    %v1498 = vmul.f32 %v777, %v1321
    %v1499 = vmul.f32 %v778, %v1322
    %v1500 = vmul.f32 %v779, %v1323
    %v1501 = vmul.f32 %v780, %v1485
    %v1502 = vld [vmem:[%s1 + $0x5] sm:$0x1]
    %v1503 = vlaneseq
    %v1504 = vshrl.u32 %v1503, 7
    %v1505 = vsub.s32 0, %v1504
    %v1506 = vrot.slane %v1502, %v1505
    %v1507 = vmul.f32 %v1486, %v1506
    %v1508 = vmul.f32 %v1487, %v1506
    %v1509 = vmul.f32 %v1488, %v1506
    %v1510 = vmul.f32 %v1489, %v1506
    %v1511 = vmul.f32 %v1490, %v1506
    %v1512 = vmul.f32 %v1491, %v1506
    %v1513 = vmul.f32 %v1492, %v1506
    %v1514 = vmul.f32 %v1493, %v1506
    %v1515 = vmul.f32 %v1494, %v1506
    %v1516 = vmul.f32 %v1495, %v1506
    %v1517 = vmul.f32 %v1496, %v1506
    %v1518 = vmul.f32 %v1497, %v1506
    %v1519 = vmul.f32 %v1498, %v1506
    %v1520 = vmul.f32 %v1499, %v1506
    %v1521 = vmul.f32 %v1500, %v1506
    %v1522 = vmul.f32 %v1501, %v1506
    %v1523 = vadd.f32 %v1469, %v1507
    %v1524 = vadd.f32 %v1470, %v1508
    %v1525 = vadd.f32 %v1471, %v1509
    %v1526 = vadd.f32 %v1472, %v1510
    %v1527 = vadd.f32 %v1473, %v1511
    %v1528 = vadd.f32 %v1474, %v1512
    %v1529 = vadd.f32 %v1475, %v1513
    %v1530 = vadd.f32 %v1476, %v1514
    %v1531 = vadd.f32 %v1477, %v1515
    %v1532 = vadd.f32 %v1478, %v1516
    %v1533 = vadd.f32 %v1479, %v1517
    %v1534 = vadd.f32 %v1480, %v1518
    %v1535 = vadd.f32 %v1481, %v1519
    %v1536 = vadd.f32 %v1482, %v1520
    %v1537 = vadd.f32 %v1483, %v1521
    %v1538 = vadd.f32 %v1484, %v1522
    %v1539 = vld [vmem:[#allocation2 + $0x8f] sm:$0xff]
    %v1540 = vmul.f32 %v893, %v1172
    %v1541 = vmul.f32 %v894, %v1173
    %v1542 = vmul.f32 %v895, %v1174
    %v1543 = vmul.f32 %v896, %v1175
    %v1544 = vmul.f32 %v897, %v1176
    %v1545 = vmul.f32 %v898, %v1177
    %v1546 = vmul.f32 %v899, %v1178
    %v1547 = vmul.f32 %v900, %v1179
    %v1548 = vmul.f32 %v901, %v1180
    %v1549 = vmul.f32 %v902, %v1181
    %v1550 = vmul.f32 %v903, %v1182
    %v1551 = vmul.f32 %v904, %v1183
    %v1552 = vmul.f32 %v905, %v1184
    %v1553 = vmul.f32 %v906, %v1185
    %v1554 = vmul.f32 %v907, %v1377
    %v1555 = vmul.f32 %v908, %v1539
    %v1556 = vld [vmem:[%s1 + $0x6] sm:$0x1]
    %v1557 = vlaneseq
    %v1558 = vshrl.u32 %v1557, 7
    %v1559 = vsub.s32 0, %v1558
    %v1560 = vrot.slane %v1556, %v1559
    %v1561 = vmul.f32 %v1540, %v1560
    %v1562 = vmul.f32 %v1541, %v1560
    %v1563 = vmul.f32 %v1542, %v1560
    %v1564 = vmul.f32 %v1543, %v1560
    %v1565 = vmul.f32 %v1544, %v1560
    %v1566 = vmul.f32 %v1545, %v1560
    %v1567 = vmul.f32 %v1546, %v1560
    %v1568 = vmul.f32 %v1547, %v1560
    %v1569 = vmul.f32 %v1548, %v1560
    %v1570 = vmul.f32 %v1549, %v1560
    %v1571 = vmul.f32 %v1550, %v1560
    %v1572 = vmul.f32 %v1551, %v1560
    %v1573 = vmul.f32 %v1552, %v1560
    %v1574 = vmul.f32 %v1553, %v1560
    %v1575 = vmul.f32 %v1554, %v1560
    %v1576 = vmul.f32 %v1555, %v1560
    %v1577 = vadd.f32 %v1523, %v1561
    %v1578 = vadd.f32 %v1524, %v1562
    %v1579 = vadd.f32 %v1525, %v1563
    %v1580 = vadd.f32 %v1526, %v1564
    %v1581 = vadd.f32 %v1527, %v1565
    %v1582 = vadd.f32 %v1528, %v1566
    %v1583 = vadd.f32 %v1529, %v1567
    %v1584 = vadd.f32 %v1530, %v1568
    %v1585 = vadd.f32 %v1531, %v1569
    %v1586 = vadd.f32 %v1532, %v1570
    %v1587 = vadd.f32 %v1533, %v1571
    %v1588 = vadd.f32 %v1534, %v1572
    %v1589 = vadd.f32 %v1535, %v1573
    %v1590 = vadd.f32 %v1536, %v1574
    %v1591 = vadd.f32 %v1537, %v1575
    %v1592 = vadd.f32 %v1538, %v1576
    %v1593 = vld [vmem:[#allocation2 + $0x90] sm:$0xff]
    %v1594 = vmul.f32 %v957, %v1241
    %v1595 = vmul.f32 %v958, %v1242
    %v1596 = vmul.f32 %v959, %v1243
    %v1597 = vmul.f32 %v960, %v1244
    %v1598 = vmul.f32 %v961, %v1245
    %v1599 = vmul.f32 %v962, %v1246
    %v1600 = vmul.f32 %v963, %v1247
    %v1601 = vmul.f32 %v964, %v1248
    %v1602 = vmul.f32 %v965, %v1249
    %v1603 = vmul.f32 %v966, %v1250
    %v1604 = vmul.f32 %v967, %v1251
    %v1605 = vmul.f32 %v968, %v1252
    %v1606 = vmul.f32 %v969, %v1253
    %v1607 = vmul.f32 %v970, %v1254
    %v1608 = vmul.f32 %v971, %v1431
    %v1609 = vmul.f32 %v972, %v1593
    %v1610 = vld [vmem:[%s1 + $0x7] sm:$0x1]
    %v1611 = vlaneseq
    %v1612 = vshrl.u32 %v1611, 7
    %v1613 = vsub.s32 0, %v1612
    %v1614 = vrot.slane %v1610, %v1613
    %v1615 = vmul.f32 %v1594, %v1614
    %v1616 = vmul.f32 %v1595, %v1614
    %v1617 = vmul.f32 %v1596, %v1614
    %v1618 = vmul.f32 %v1597, %v1614
    %v1619 = vmul.f32 %v1598, %v1614
    %v1620 = vmul.f32 %v1599, %v1614
    %v1621 = vmul.f32 %v1600, %v1614
    %v1622 = vmul.f32 %v1601, %v1614
    %v1623 = vmul.f32 %v1602, %v1614
    %v1624 = vmul.f32 %v1603, %v1614
    %v1625 = vmul.f32 %v1604, %v1614
    %v1626 = vmul.f32 %v1605, %v1614
    %v1627 = vmul.f32 %v1606, %v1614
    %v1628 = vmul.f32 %v1607, %v1614
    %v1629 = vmul.f32 %v1608, %v1614
    %v1630 = vmul.f32 %v1609, %v1614
    %v1631 = vadd.f32 %v1577, %v1615
    %v1632 = vadd.f32 %v1578, %v1616
    %v1633 = vadd.f32 %v1579, %v1617
    %v1634 = vadd.f32 %v1580, %v1618
    %v1635 = vadd.f32 %v1581, %v1619
    %v1636 = vadd.f32 %v1582, %v1620
    %v1637 = vadd.f32 %v1583, %v1621
    %v1638 = vadd.f32 %v1584, %v1622
    %v1639 = vadd.f32 %v1585, %v1623
    %v1640 = vadd.f32 %v1586, %v1624
    %v1641 = vadd.f32 %v1587, %v1625
    %v1642 = vadd.f32 %v1588, %v1626
    %v1643 = vadd.f32 %v1589, %v1627
    %v1644 = vadd.f32 %v1590, %v1628
    %v1645 = vadd.f32 %v1591, %v1629
    %v1646 = vadd.f32 %v1592, %v1630
    %v1647 = vld [vmem:[#allocation2 + $0x91] sm:$0xff]
    %v1648 = vmul.f32 %v1021, %v1310
    %v1649 = vmul.f32 %v1022, %v1311
    %v1650 = vmul.f32 %v1023, %v1312
    %v1651 = vmul.f32 %v1024, %v1313
    %v1652 = vmul.f32 %v1025, %v1314
    %v1653 = vmul.f32 %v1026, %v1315
    %v1654 = vmul.f32 %v1027, %v1316
    %v1655 = vmul.f32 %v1028, %v1317
    %v1656 = vmul.f32 %v1029, %v1318
    %v1657 = vmul.f32 %v1030, %v1319
    %v1658 = vmul.f32 %v1031, %v1320
    %v1659 = vmul.f32 %v1032, %v1321
    %v1660 = vmul.f32 %v1033, %v1322
    %v1661 = vmul.f32 %v1034, %v1323
    %v1662 = vmul.f32 %v1035, %v1485
    %v1663 = vmul.f32 %v1036, %v1647
    %v1664 = vld [vmem:[%s1 + $0x8] sm:$0x1]
    %v1665 = vlaneseq
    %v1666 = vshrl.u32 %v1665, 7
    %v1667 = vsub.s32 0, %v1666
    %v1668 = vrot.slane %v1664, %v1667
    %v1669 = vmul.f32 %v1648, %v1668
    %v1670 = vmul.f32 %v1649, %v1668
    %v1671 = vmul.f32 %v1650, %v1668
    %v1672 = vmul.f32 %v1651, %v1668
    %v1673 = vmul.f32 %v1652, %v1668
    %v1674 = vmul.f32 %v1653, %v1668
    %v1675 = vmul.f32 %v1654, %v1668
    %v1676 = vmul.f32 %v1655, %v1668
    %v1677 = vmul.f32 %v1656, %v1668
    %v1678 = vmul.f32 %v1657, %v1668
    %v1679 = vmul.f32 %v1658, %v1668
    %v1680 = vmul.f32 %v1659, %v1668
    %v1681 = vmul.f32 %v1660, %v1668
    %v1682 = vmul.f32 %v1661, %v1668
    %v1683 = vmul.f32 %v1662, %v1668
    %v1684 = vmul.f32 %v1663, %v1668
    %v1685 = vadd.f32 %v1631, %v1669
    %v1686 = vadd.f32 %v1632, %v1670
    %v1687 = vadd.f32 %v1633, %v1671
    %v1688 = vadd.f32 %v1634, %v1672
    %v1689 = vadd.f32 %v1635, %v1673
    %v1690 = vadd.f32 %v1636, %v1674
    %v1691 = vadd.f32 %v1637, %v1675
    %v1692 = vadd.f32 %v1638, %v1676
    %v1693 = vadd.f32 %v1639, %v1677
    %v1694 = vadd.f32 %v1640, %v1678
    %v1695 = vadd.f32 %v1641, %v1679
    %v1696 = vadd.f32 %v1642, %v1680
    %v1697 = vadd.f32 %v1643, %v1681
    %v1698 = vadd.f32 %v1644, %v1682
    %v1699 = vadd.f32 %v1645, %v1683
    %v1700 = vadd.f32 %v1646, %v1684
    %v1701 = vld [vmem:[#allocation3] sm:$0x1]
    %v1703 = vlaneseq
    %v1704 = vshrl.u32 %v1703, 7
    %v1705 = vsub.s32 0, %v1704
    %v1706 = vrot.slane %v1701, %v1705
    %v1708 = vadd.f32 %v1685, %v1706
    %v1709 = vadd.f32 %v1686, %v1706
    %v1710 = vadd.f32 %v1687, %v1706
    %v1711 = vadd.f32 %v1688, %v1706
    %v1712 = vadd.f32 %v1689, %v1706
    %v1713 = vadd.f32 %v1690, %v1706
    %v1714 = vadd.f32 %v1691, %v1706
    %v1715 = vadd.f32 %v1692, %v1706
    %v1716 = vadd.f32 %v1693, %v1706
    %v1717 = vadd.f32 %v1694, %v1706
    %v1718 = vadd.f32 %v1695, %v1706
    %v1719 = vadd.f32 %v1696, %v1706
    %v1720 = vadd.f32 %v1697, %v1706
    %v1721 = vadd.f32 %v1698, %v1706
    %v1722 = vadd.f32 %v1699, %v1706
    %v1723 = vadd.f32 %v1700, %v1706
    %v1724 = vmax.f32 %v1708, 0.0
    %v1725 = vmax.f32 %v1709, 0.0
    %v1726 = vmax.f32 %v1710, 0.0
    %v1727 = vmax.f32 %v1711, 0.0
    %v1728 = vmax.f32 %v1712, 0.0
    %v1729 = vmax.f32 %v1713, 0.0
    %v1730 = vmax.f32 %v1714, 0.0
    %v1731 = vmax.f32 %v1715, 0.0
    %v1732 = vmax.f32 %v1716, 0.0
    %v1733 = vmax.f32 %v1717, 0.0
    %v1734 = vmax.f32 %v1718, 0.0
    %v1735 = vmax.f32 %v1719, 0.0
    %v1736 = vmax.f32 %v1720, 0.0
    %v1737 = vmax.f32 %v1721, 0.0
    %v1738 = vmax.f32 %v1722, 0.0
    %v1739 = vmax.f32 %v1723, 0.0
    %1740 = vst.msk [vmem:[#allocation2 + $0x10] sm:$0xff] %vm1037, %v1724
    %1741 = vst.msk [vmem:[#allocation2 + $0x18] sm:$0xff] %vm1037, %v1725
    %1742 = vst.msk [vmem:[#allocation2 + $0x20] sm:$0xff] %vm1037, %v1726
    %1743 = vst.msk [vmem:[#allocation2 + $0x28] sm:$0xff] %vm1037, %v1727
    %1744 = vst.msk [vmem:[#allocation2 + $0x30] sm:$0xff] %vm1037, %v1728
    %1745 = vst.msk [vmem:[#allocation2 + $0x38] sm:$0xff] %vm1037, %v1729
    %1746 = vst.msk [vmem:[#allocation2 + $0x40] sm:$0xff] %vm1037, %v1730
    %1747 = vst.msk [vmem:[#allocation2 + $0x48] sm:$0xff] %vm1037, %v1731
    %1748 = vst.msk [vmem:[#allocation2 + $0x50] sm:$0xff] %vm1037, %v1732
    %1749 = vst.msk [vmem:[#allocation2 + $0x58] sm:$0xff] %vm1037, %v1733
    %1750 = vst.msk [vmem:[#allocation2 + $0x60] sm:$0xff] %vm1037, %v1734
    %1751 = vst.msk [vmem:[#allocation2 + $0x68] sm:$0xff] %vm1037, %v1735
    %1752 = vst.msk [vmem:[#allocation2 + $0x70] sm:$0xff] %vm1037, %v1736
    %1753 = vst.msk [vmem:[#allocation2 + $0x78] sm:$0xff] %vm1037, %v1737
    %1754 = vst.msk [vmem:[#allocation2 + $0x80] sm:$0xff] %vm1037, %v1738
    %1755 = vst.msk [vmem:[#allocation2 + $0x88] sm:$0xff] %vm1037, %v1739
    %v1756 = vld [vmem:[#allocation2 + $0x7] sm:$0xff]
    %v1757 = vld [vmem:[#allocation2 + $0xf] sm:$0xff]
    %v1758 = vld [vmem:[#allocation2 + $0x17] sm:$0xff]
    %v1759 = vld [vmem:[#allocation2 + $0x1f] sm:$0xff]
    %v1760 = vld [vmem:[#allocation2 + $0x27] sm:$0xff]
    %v1761 = vld [vmem:[#allocation2 + $0x2f] sm:$0xff]
    %v1762 = vld [vmem:[#allocation2 + $0x37] sm:$0xff]
    %v1763 = vld [vmem:[#allocation2 + $0x3f] sm:$0xff]
    %v1764 = vld [vmem:[#allocation2 + $0x47] sm:$0xff]
    %v1765 = vld [vmem:[#allocation2 + $0x4f] sm:$0xff]
    %v1766 = vld [vmem:[#allocation2 + $0x57] sm:$0xff]
    %v1767 = vld [vmem:[#allocation2 + $0x5f] sm:$0xff]
    %v1768 = vld [vmem:[#allocation2 + $0x67] sm:$0xff]
    %v1769 = vld [vmem:[#allocation2 + $0x6f] sm:$0xff]
    %v1770 = vld [vmem:[#allocation2 + $0x77] sm:$0xff]
    %v1771 = vld [vmem:[#allocation2 + $0x7f] sm:$0xff]
    %v1772 = vmul.f32 %v317, %v1756
    %v1773 = vmul.f32 %v318, %v1757
    %v1774 = vmul.f32 %v319, %v1758
    %v1775 = vmul.f32 %v320, %v1759
    %v1776 = vmul.f32 %v321, %v1760
    %v1777 = vmul.f32 %v322, %v1761
    %v1778 = vmul.f32 %v323, %v1762
    %v1779 = vmul.f32 %v324, %v1763
    %v1780 = vmul.f32 %v325, %v1764
    %v1781 = vmul.f32 %v326, %v1765
    %v1782 = vmul.f32 %v327, %v1766
    %v1783 = vmul.f32 %v328, %v1767
    %v1784 = vmul.f32 %v329, %v1768
    %v1785 = vmul.f32 %v330, %v1769
    %v1786 = vmul.f32 %v331, %v1770
    %v1787 = vmul.f32 %v332, %v1771
    %v1788 = vld [vmem:[%s3] sm:$0xff]
    %v1789 = vld [vmem:[%s3 + $0x8] sm:$0xff]
    %v1790 = vld [vmem:[%s3 + $0x10] sm:$0xff]
    %v1791 = vld [vmem:[%s3 + $0x18] sm:$0xff]
    %v1792 = vld [vmem:[#allocation2 + $0x8] sm:$0xff]
    %v1793 = vld [vmem:[#allocation2 + $0x10] sm:$0xff]
    %v1794 = vld [vmem:[#allocation2 + $0x18] sm:$0xff]
    %v1795 = vld [vmem:[#allocation2 + $0x20] sm:$0xff]
    %v1796 = vld [vmem:[#allocation2 + $0x28] sm:$0xff]
    %v1797 = vld [vmem:[#allocation2 + $0x30] sm:$0xff]
    %v1798 = vld [vmem:[#allocation2 + $0x38] sm:$0xff]
    %v1799 = vld [vmem:[#allocation2 + $0x40] sm:$0xff]
    %v1800 = vld [vmem:[#allocation2 + $0x48] sm:$0xff]
    %v1801 = vld [vmem:[#allocation2 + $0x50] sm:$0xff]
    %v1802 = vld [vmem:[#allocation2 + $0x58] sm:$0xff]
    %v1803 = vld [vmem:[#allocation2 + $0x60] sm:$0xff]
    %v1804 = vld [vmem:[#allocation2 + $0x68] sm:$0xff]
    %v1805 = vld [vmem:[#allocation2 + $0x70] sm:$0xff]
    %v1806 = vld [vmem:[#allocation2 + $0x78] sm:$0xff]
    %v1807 = vld [vmem:[#allocation2 + $0x80] sm:$0xff]
    %v1808 = vmul.f32 %v413, %v1792
    %v1809 = vmul.f32 %v414, %v1793
    %v1810 = vmul.f32 %v415, %v1794
    %v1811 = vmul.f32 %v416, %v1795
    %v1812 = vmul.f32 %v417, %v1796
    %v1813 = vmul.f32 %v418, %v1797
    %v1814 = vmul.f32 %v419, %v1798
    %v1815 = vmul.f32 %v420, %v1799
    %v1816 = vmul.f32 %v421, %v1800
    %v1817 = vmul.f32 %v422, %v1801
    %v1818 = vmul.f32 %v423, %v1802
    %v1819 = vmul.f32 %v424, %v1803
    %v1820 = vmul.f32 %v425, %v1804
    %v1821 = vmul.f32 %v426, %v1805
    %v1822 = vmul.f32 %v427, %v1806
    %v1823 = vmul.f32 %v428, %v1807
    %s1824 = scalar_lea.vmem %s3, 32
    %v1825 = vld [vmem:[%s1824] sm:$0xff]
    %v1826 = vld [vmem:[%s1824 + $0x8] sm:$0xff]
    %v1827 = vld [vmem:[%s1824 + $0x10] sm:$0xff]
    %v1828 = vld [vmem:[%s1824 + $0x18] sm:$0xff]
    %v1830 = vsel %vm1037, %v1808, 0
    %v1833 = vsel %vm1037, %v1809, 0
    %v1836 = vsel %vm1037, %v1810, 0
    %v1839 = vsel %vm1037, %v1811, 0
    %v1842 = vsel %vm1037, %v1812, 0
    %v1845 = vsel %vm1037, %v1813, 0
    %v1848 = vsel %vm1037, %v1814, 0
    %v1851 = vsel %vm1037, %v1815, 0
    %v1854 = vsel %vm1037, %v1816, 0
    %v1857 = vsel %vm1037, %v1817, 0
    %v1860 = vsel %vm1037, %v1818, 0
    %v1863 = vsel %vm1037, %v1819, 0
    %v1866 = vsel %vm1037, %v1820, 0
    %v1869 = vsel %vm1037, %v1821, 0
    %v1872 = vsel %vm1037, %v1822, 0
    %v1875 = vsel %vm1037, %v1823, 0
    %1877 = vmatprep.subr.mxu0 0.0
    %1878 = vmatpush1.msra.mxu0 %v1825
    %1879 = vmatprep.subr.mxu0 0.0
    %1880 = vmatpush1.msra.mxu0 %v1826
    %1881 = vmatprep.subr.mxu0 0.0
    %1882 = vmatpush1.msra.mxu0 %v1827
    %1883 = vmatprep.subr.mxu0 0.0
    %1884 = vmatpush1.msra.mxu0 %v1828
    %1885 = vmatprep.subr.mxu0 0.0
    %1886 = vmatpush1.msra.mxu0 0.0
    %1887 = vmatprep.subr.mxu0 0.0
    %1888 = vmatpush1.msra.mxu0 0.0
    %1889 = vmatprep.subr.mxu0 0.0
    %1890 = vmatpush1.msra.mxu0 0.0
    %1891 = vmatprep.subr.mxu0 0.0
    %1892 = vmatpush1.msra.mxu0 0.0
    %1893 = vmatprep.subr.mxu0 0.0
    %1894 = vmatpush1.msra.mxu0 0.0
    %1895 = vmatprep.subr.mxu0 0.0
    %1896 = vmatpush1.msra.mxu0 0.0
    %1897 = vmatprep.subr.mxu0 0.0
    %1898 = vmatpush1.msra.mxu0 0.0
    %1899 = vmatprep.subr.mxu0 0.0
    %1900 = vmatpush1.msra.mxu0 0.0
    %1901 = vmatprep.subr.mxu0 0.0
    %1902 = vmatpush1.msra.mxu0 0.0
    %1903 = vmatprep.subr.mxu0 0.0
    %1904 = vmatpush1.msra.mxu0 0.0
    %1905 = vmatprep.subr.mxu0 0.0
    %1906 = vmatpush1.msra.mxu0 0.0
    %1907 = vmatprep.subr.mxu0 0.0
    %1908 = vmatpush1.msra.mxu0 0.0
    %1909 = vmatprep.subr.mxu0 0.0
    %1910 = vmatpush1.msra.mxu0 0.0
    %1911 = vmatprep.subr.mxu0 0.0
    %1912 = vmatpush1.msra.mxu0 0.0
    %1913 = vmatprep.subr.mxu0 0.0
    %1914 = vmatpush1.msra.mxu0 0.0
    %1915 = vmatprep.subr.mxu0 0.0
    %1916 = vmatpush1.msra.mxu0 0.0
    %1917 = vmatprep.subr.mxu0 0.0
    %1918 = vmatpush1.msra.mxu0 0.0
    %1919 = vmatprep.subr.mxu0 0.0
    %1920 = vmatpush1.msra.mxu0 0.0
    %1921 = vmatprep.subr.mxu0 0.0
    %1922 = vmatpush1.msra.mxu0 0.0
    %1923 = vmatprep.subr.mxu0 0.0
    %1924 = vmatpush1.msra.mxu0 0.0
    %1925 = vmatprep.subr.mxu0 0.0
    %1926 = vmatpush1.msra.mxu0 0.0
    %1927 = vmatprep.subr.mxu0 0.0
    %1928 = vmatpush1.msra.mxu0 0.0
    %1929 = vmatprep.subr.mxu0 0.0
    %1930 = vmatpush1.msra.mxu0 0.0
    %1931 = vmatprep.subr.mxu0 0.0
    %1932 = vmatpush1.msra.mxu0 0.0
    %1933 = vmatprep.subr.mxu0 0.0
    %1934 = vmatpush1.msra.mxu0 0.0
    %1935 = vmatprep.subr.mxu0 0.0
    %1936 = vmatpush1.msra.mxu0 0.0
    %1937 = vmatprep.subr.mxu0 0.0
    %1938 = vmatpush1.msra.mxu0 0.0
    %1939 = vmatprep.subr.mxu0 0.0
    %1940 = vmatpush1.msra.mxu0 0.0
    %1941 = vmatprep.mubr.f32.mxu0 0.0
    %1942 = vmatmul.mubr.f32.gmra.mrb[0].mxu0 %v1830
    %v1943 = vpop.f32.mrb[0].mxu0
    %v1944 = vadd.f32 0.0, %v1943
    %v1945 = vpop.f32.mrb[0].mxu0
    %1946 = vmatprep.mubr.f32.mxu0 0.0
    %1947 = vmatmul.mubr.f32.gmra.mrb[0].mxu0 %v1833
    %v1948 = vpop.f32.mrb[0].mxu0
    %v1949 = vadd.f32 0.0, %v1948
    %v1950 = vpop.f32.mrb[0].mxu0
    %1951 = vmatprep.mubr.f32.mxu0 0.0
    %1952 = vmatmul.mubr.f32.gmra.mrb[0].mxu0 %v1836
    %v1953 = vpop.f32.mrb[0].mxu0
    %v1954 = vadd.f32 0.0, %v1953
    %v1955 = vpop.f32.mrb[0].mxu0
    %1956 = vmatprep.mubr.f32.mxu0 0.0
    %1957 = vmatmul.mubr.f32.gmra.mrb[0].mxu0 %v1839
    %v1958 = vpop.f32.mrb[0].mxu0
    %v1959 = vadd.f32 0.0, %v1958
    %v1960 = vpop.f32.mrb[0].mxu0
    %1961 = vmatprep.mubr.f32.mxu0 0.0
    %1962 = vmatmul.mubr.f32.gmra.mrb[0].mxu0 %v1842
    %v1963 = vpop.f32.mrb[0].mxu0
    %v1964 = vadd.f32 0.0, %v1963
    %v1965 = vpop.f32.mrb[0].mxu0
    %1966 = vmatprep.mubr.f32.mxu0 0.0
    %1967 = vmatmul.mubr.f32.gmra.mrb[0].mxu0 %v1845
    %v1968 = vpop.f32.mrb[0].mxu0
    %v1969 = vadd.f32 0.0, %v1968
    %v1970 = vpop.f32.mrb[0].mxu0
    %1971 = vmatprep.mubr.f32.mxu0 0.0
    %1972 = vmatmul.mubr.f32.gmra.mrb[0].mxu0 %v1848
    %v1973 = vpop.f32.mrb[0].mxu0
    %v1974 = vadd.f32 0.0, %v1973
    %v1975 = vpop.f32.mrb[0].mxu0
    %1976 = vmatprep.mubr.f32.mxu0 0.0
    %1977 = vmatmul.mubr.f32.gmra.mrb[0].mxu0 %v1851
    %v1978 = vpop.f32.mrb[0].mxu0
    %v1979 = vadd.f32 0.0, %v1978
    %v1980 = vpop.f32.mrb[0].mxu0
    %1981 = vmatprep.mubr.f32.mxu0 0.0
    %1982 = vmatmul.mubr.f32.gmra.mrb[0].mxu0 %v1854
    %v1983 = vpop.f32.mrb[0].mxu0
    %v1984 = vadd.f32 0.0, %v1983
    %v1985 = vpop.f32.mrb[0].mxu0
    %1986 = vmatprep.mubr.f32.mxu0 0.0
    %1987 = vmatmul.mubr.f32.gmra.mrb[0].mxu0 %v1857
    %v1988 = vpop.f32.mrb[0].mxu0
    %v1989 = vadd.f32 0.0, %v1988
    %v1990 = vpop.f32.mrb[0].mxu0
    %1991 = vmatprep.mubr.f32.mxu0 0.0
    %1992 = vmatmul.mubr.f32.gmra.mrb[0].mxu0 %v1860
    %v1993 = vpop.f32.mrb[0].mxu0
    %v1994 = vadd.f32 0.0, %v1993
    %v1995 = vpop.f32.mrb[0].mxu0
    %1996 = vmatprep.mubr.f32.mxu0 0.0
    %1997 = vmatmul.mubr.f32.gmra.mrb[0].mxu0 %v1863
    %v1998 = vpop.f32.mrb[0].mxu0
    %v1999 = vadd.f32 0.0, %v1998
    %v2000 = vpop.f32.mrb[0].mxu0
    %2001 = vmatprep.mubr.f32.mxu0 0.0
    %2002 = vmatmul.mubr.f32.gmra.mrb[0].mxu0 %v1866
    %v2003 = vpop.f32.mrb[0].mxu0
    %v2004 = vadd.f32 0.0, %v2003
    %v2005 = vpop.f32.mrb[0].mxu0
    %2006 = vmatprep.mubr.f32.mxu0 0.0
    %2007 = vmatmul.mubr.f32.gmra.mrb[0].mxu0 %v1869
    %v2008 = vpop.f32.mrb[0].mxu0
    %v2009 = vadd.f32 0.0, %v2008
    %v2010 = vpop.f32.mrb[0].mxu0
    %2011 = vmatprep.mubr.f32.mxu0 0.0
    %2012 = vmatmul.mubr.f32.gmra.mrb[0].mxu0 %v1872
    %v2013 = vpop.f32.mrb[0].mxu0
    %v2014 = vadd.f32 0.0, %v2013
    %v2015 = vpop.f32.mrb[0].mxu0
    %2016 = vmatprep.mubr.f32.mxu0 0.0
    %2017 = vmatmul.mubr.f32.gmra.mrb[0].mxu0 %v1875
    %v2018 = vpop.f32.mrb[0].mxu0
    %v2019 = vadd.f32 0.0, %v2018
    %v2020 = vpop.f32.mrb[0].mxu0
    %2021 = vdwg.mxu0
    %v2023 = vsel %vm1037, %v1772, 0
    %v2026 = vsel %vm1037, %v1773, 0
    %v2029 = vsel %vm1037, %v1774, 0
    %v2032 = vsel %vm1037, %v1775, 0
    %v2035 = vsel %vm1037, %v1776, 0
    %v2038 = vsel %vm1037, %v1777, 0
    %v2041 = vsel %vm1037, %v1778, 0
    %v2044 = vsel %vm1037, %v1779, 0
    %v2047 = vsel %vm1037, %v1780, 0
    %v2050 = vsel %vm1037, %v1781, 0
    %v2053 = vsel %vm1037, %v1782, 0
    %v2056 = vsel %vm1037, %v1783, 0
    %v2059 = vsel %vm1037, %v1784, 0
    %v2062 = vsel %vm1037, %v1785, 0
    %v2065 = vsel %vm1037, %v1786, 0
    %v2068 = vsel %vm1037, %v1787, 0
    %2070 = vmatprep.subr.mxu0 0.0
    %2071 = vmatpush1.msra.mxu0 %v1788
    %2072 = vmatprep.subr.mxu0 0.0
    %2073 = vmatpush1.msra.mxu0 %v1789
    %2074 = vmatprep.subr.mxu0 0.0
    %2075 = vmatpush1.msra.mxu0 %v1790
    %2076 = vmatprep.subr.mxu0 0.0
    %2077 = vmatpush1.msra.mxu0 %v1791
    %2078 = vmatprep.subr.mxu0 0.0
    %2079 = vmatpush1.msra.mxu0 0.0
    %2080 = vmatprep.subr.mxu0 0.0
    %2081 = vmatpush1.msra.mxu0 0.0
    %2082 = vmatprep.subr.mxu0 0.0
    %2083 = vmatpush1.msra.mxu0 0.0
    %2084 = vmatprep.subr.mxu0 0.0
    %2085 = vmatpush1.msra.mxu0 0.0
    %2086 = vmatprep.subr.mxu0 0.0
    %2087 = vmatpush1.msra.mxu0 0.0
    %2088 = vmatprep.subr.mxu0 0.0
    %2089 = vmatpush1.msra.mxu0 0.0
    %2090 = vmatprep.subr.mxu0 0.0
    %2091 = vmatpush1.msra.mxu0 0.0
    %2092 = vmatprep.subr.mxu0 0.0
    %2093 = vmatpush1.msra.mxu0 0.0
    %2094 = vmatprep.subr.mxu0 0.0
    %2095 = vmatpush1.msra.mxu0 0.0
    %2096 = vmatprep.subr.mxu0 0.0
    %2097 = vmatpush1.msra.mxu0 0.0
    %2098 = vmatprep.subr.mxu0 0.0
    %2099 = vmatpush1.msra.mxu0 0.0
    %2100 = vmatprep.subr.mxu0 0.0
    %2101 = vmatpush1.msra.mxu0 0.0
    %2102 = vmatprep.subr.mxu0 0.0
    %2103 = vmatpush1.msra.mxu0 0.0
    %2104 = vmatprep.subr.mxu0 0.0
    %2105 = vmatpush1.msra.mxu0 0.0
    %2106 = vmatprep.subr.mxu0 0.0
    %2107 = vmatpush1.msra.mxu0 0.0
    %2108 = vmatprep.subr.mxu0 0.0
    %2109 = vmatpush1.msra.mxu0 0.0
    %2110 = vmatprep.subr.mxu0 0.0
    %2111 = vmatpush1.msra.mxu0 0.0
    %2112 = vmatprep.subr.mxu0 0.0
    %2113 = vmatpush1.msra.mxu0 0.0
    %2114 = vmatprep.subr.mxu0 0.0
    %2115 = vmatpush1.msra.mxu0 0.0
    %2116 = vmatprep.subr.mxu0 0.0
    %2117 = vmatpush1.msra.mxu0 0.0
    %2118 = vmatprep.subr.mxu0 0.0
    %2119 = vmatpush1.msra.mxu0 0.0
    %2120 = vmatprep.subr.mxu0 0.0
    %2121 = vmatpush1.msra.mxu0 0.0
    %2122 = vmatprep.subr.mxu0 0.0
    %2123 = vmatpush1.msra.mxu0 0.0
    %2124 = vmatprep.subr.mxu0 0.0
    %2125 = vmatpush1.msra.mxu0 0.0
    %2126 = vmatprep.subr.mxu0 0.0
    %2127 = vmatpush1.msra.mxu0 0.0
    %2128 = vmatprep.subr.mxu0 0.0
    %2129 = vmatpush1.msra.mxu0 0.0
    %2130 = vmatprep.subr.mxu0 0.0
    %2131 = vmatpush1.msra.mxu0 0.0
    %2132 = vmatprep.subr.mxu0 0.0
    %2133 = vmatpush1.msra.mxu0 0.0
    %2134 = vmatprep.mubr.f32.mxu0 0.0
    %2135 = vmatmul.mubr.f32.gmra.mrb[0].mxu0 %v2023
    %v2136 = vpop.f32.mrb[0].mxu0
    %v2137 = vadd.f32 %v1944, %v2136
    %v2138 = vpop.f32.mrb[0].mxu0
    %2139 = vmatprep.mubr.f32.mxu0 0.0
    %2140 = vmatmul.mubr.f32.gmra.mrb[0].mxu0 %v2026
    %v2141 = vpop.f32.mrb[0].mxu0
    %v2142 = vadd.f32 %v1949, %v2141
    %v2143 = vpop.f32.mrb[0].mxu0
    %2144 = vmatprep.mubr.f32.mxu0 0.0
    %2145 = vmatmul.mubr.f32.gmra.mrb[0].mxu0 %v2029
    %v2146 = vpop.f32.mrb[0].mxu0
    %v2147 = vadd.f32 %v1954, %v2146
    %v2148 = vpop.f32.mrb[0].mxu0
    %2149 = vmatprep.mubr.f32.mxu0 0.0
    %2150 = vmatmul.mubr.f32.gmra.mrb[0].mxu0 %v2032
    %v2151 = vpop.f32.mrb[0].mxu0
    %v2152 = vadd.f32 %v1959, %v2151
    %v2153 = vpop.f32.mrb[0].mxu0
    %2154 = vmatprep.mubr.f32.mxu0 0.0
    %2155 = vmatmul.mubr.f32.gmra.mrb[0].mxu0 %v2035
    %v2156 = vpop.f32.mrb[0].mxu0
    %v2157 = vadd.f32 %v1964, %v2156
    %v2158 = vpop.f32.mrb[0].mxu0
    %2159 = vmatprep.mubr.f32.mxu0 0.0
    %2160 = vmatmul.mubr.f32.gmra.mrb[0].mxu0 %v2038
    %v2161 = vpop.f32.mrb[0].mxu0
    %v2162 = vadd.f32 %v1969, %v2161
    %v2163 = vpop.f32.mrb[0].mxu0
    %2164 = vmatprep.mubr.f32.mxu0 0.0
    %2165 = vmatmul.mubr.f32.gmra.mrb[0].mxu0 %v2041
    %v2166 = vpop.f32.mrb[0].mxu0
    %v2167 = vadd.f32 %v1974, %v2166
    %v2168 = vpop.f32.mrb[0].mxu0
    %2169 = vmatprep.mubr.f32.mxu0 0.0
    %2170 = vmatmul.mubr.f32.gmra.mrb[0].mxu0 %v2044
    %v2171 = vpop.f32.mrb[0].mxu0
    %v2172 = vadd.f32 %v1979, %v2171
    %v2173 = vpop.f32.mrb[0].mxu0
    %2174 = vmatprep.mubr.f32.mxu0 0.0
    %2175 = vmatmul.mubr.f32.gmra.mrb[0].mxu0 %v2047
    %v2176 = vpop.f32.mrb[0].mxu0
    %v2177 = vadd.f32 %v1984, %v2176
    %v2178 = vpop.f32.mrb[0].mxu0
    %2179 = vmatprep.mubr.f32.mxu0 0.0
    %2180 = vmatmul.mubr.f32.gmra.mrb[0].mxu0 %v2050
    %v2181 = vpop.f32.mrb[0].mxu0
    %v2182 = vadd.f32 %v1989, %v2181
    %v2183 = vpop.f32.mrb[0].mxu0
    %2184 = vmatprep.mubr.f32.mxu0 0.0
    %2185 = vmatmul.mubr.f32.gmra.mrb[0].mxu0 %v2053
    %v2186 = vpop.f32.mrb[0].mxu0
    %v2187 = vadd.f32 %v1994, %v2186
    %v2188 = vpop.f32.mrb[0].mxu0
    %2189 = vmatprep.mubr.f32.mxu0 0.0
    %2190 = vmatmul.mubr.f32.gmra.mrb[0].mxu0 %v2056
    %v2191 = vpop.f32.mrb[0].mxu0
    %v2192 = vadd.f32 %v1999, %v2191
    %v2193 = vpop.f32.mrb[0].mxu0
    %2194 = vmatprep.mubr.f32.mxu0 0.0
    %2195 = vmatmul.mubr.f32.gmra.mrb[0].mxu0 %v2059
    %v2196 = vpop.f32.mrb[0].mxu0
    %v2197 = vadd.f32 %v2004, %v2196
    %v2198 = vpop.f32.mrb[0].mxu0
    %2199 = vmatprep.mubr.f32.mxu0 0.0
    %2200 = vmatmul.mubr.f32.gmra.mrb[0].mxu0 %v2062
    %v2201 = vpop.f32.mrb[0].mxu0
    %v2202 = vadd.f32 %v2009, %v2201
    %v2203 = vpop.f32.mrb[0].mxu0
    %2204 = vmatprep.mubr.f32.mxu0 0.0
    %2205 = vmatmul.mubr.f32.gmra.mrb[0].mxu0 %v2065
    %v2206 = vpop.f32.mrb[0].mxu0
    %v2207 = vadd.f32 %v2014, %v2206
    %v2208 = vpop.f32.mrb[0].mxu0
    %2209 = vmatprep.mubr.f32.mxu0 0.0
    %2210 = vmatmul.mubr.f32.gmra.mrb[0].mxu0 %v2068
    %v2211 = vpop.f32.mrb[0].mxu0
    %v2212 = vadd.f32 %v2019, %v2211
    %v2213 = vpop.f32.mrb[0].mxu0
    %2214 = vdwg.mxu0
    %v2215 = vld [vmem:[#allocation2 + $0x9] sm:$0xff]
    %v2216 = vld [vmem:[#allocation2 + $0x11] sm:$0xff]
    %v2217 = vld [vmem:[#allocation2 + $0x19] sm:$0xff]
    %v2218 = vld [vmem:[#allocation2 + $0x21] sm:$0xff]
    %v2219 = vld [vmem:[#allocation2 + $0x29] sm:$0xff]
    %v2220 = vld [vmem:[#allocation2 + $0x31] sm:$0xff]
    %v2221 = vld [vmem:[#allocation2 + $0x39] sm:$0xff]
    %v2222 = vld [vmem:[#allocation2 + $0x41] sm:$0xff]
    %v2223 = vld [vmem:[#allocation2 + $0x49] sm:$0xff]
    %v2224 = vld [vmem:[#allocation2 + $0x51] sm:$0xff]
    %v2225 = vld [vmem:[#allocation2 + $0x59] sm:$0xff]
    %v2226 = vld [vmem:[#allocation2 + $0x61] sm:$0xff]
    %v2227 = vld [vmem:[#allocation2 + $0x69] sm:$0xff]
    %v2228 = vld [vmem:[#allocation2 + $0x71] sm:$0xff]
    %v2229 = vld [vmem:[#allocation2 + $0x79] sm:$0xff]
    %v2230 = vld [vmem:[#allocation2 + $0x81] sm:$0xff]
    %v2231 = vmul.f32 %v525, %v2215
    %v2232 = vmul.f32 %v526, %v2216
    %v2233 = vmul.f32 %v527, %v2217
    %v2234 = vmul.f32 %v528, %v2218
    %v2235 = vmul.f32 %v529, %v2219
    %v2236 = vmul.f32 %v530, %v2220
    %v2237 = vmul.f32 %v531, %v2221
    %v2238 = vmul.f32 %v532, %v2222
    %v2239 = vmul.f32 %v533, %v2223
    %v2240 = vmul.f32 %v534, %v2224
    %v2241 = vmul.f32 %v535, %v2225
    %v2242 = vmul.f32 %v536, %v2226
    %v2243 = vmul.f32 %v537, %v2227
    %v2244 = vmul.f32 %v538, %v2228
    %v2245 = vmul.f32 %v539, %v2229
    %v2246 = vmul.f32 %v540, %v2230
    %s2247 = scalar_lea.vmem %s3, 64
    %v2248 = vld [vmem:[%s2247] sm:$0xff]
    %v2249 = vld [vmem:[%s2247 + $0x8] sm:$0xff]
    %v2250 = vld [vmem:[%s2247 + $0x10] sm:$0xff]
    %v2251 = vld [vmem:[%s2247 + $0x18] sm:$0xff]
    %v2253 = vsel %vm1037, %v2231, 0
    %v2256 = vsel %vm1037, %v2232, 0
    %v2259 = vsel %vm1037, %v2233, 0
    %v2262 = vsel %vm1037, %v2234, 0
    %v2265 = vsel %vm1037, %v2235, 0
    %v2268 = vsel %vm1037, %v2236, 0
    %v2271 = vsel %vm1037, %v2237, 0
    %v2274 = vsel %vm1037, %v2238, 0
    %v2277 = vsel %vm1037, %v2239, 0
    %v2280 = vsel %vm1037, %v2240, 0
    %v2283 = vsel %vm1037, %v2241, 0
    %v2286 = vsel %vm1037, %v2242, 0
    %v2289 = vsel %vm1037, %v2243, 0
    %v2292 = vsel %vm1037, %v2244, 0
    %v2295 = vsel %vm1037, %v2245, 0
    %v2298 = vsel %vm1037, %v2246, 0
    %2300 = vmatprep.subr.mxu0 0.0
    %2301 = vmatpush1.msra.mxu0 %v2248
    %2302 = vmatprep.subr.mxu0 0.0
    %2303 = vmatpush1.msra.mxu0 %v2249
    %2304 = vmatprep.subr.mxu0 0.0
    %2305 = vmatpush1.msra.mxu0 %v2250
    %2306 = vmatprep.subr.mxu0 0.0
    %2307 = vmatpush1.msra.mxu0 %v2251
    %2308 = vmatprep.subr.mxu0 0.0
    %2309 = vmatpush1.msra.mxu0 0.0
    %2310 = vmatprep.subr.mxu0 0.0
    %2311 = vmatpush1.msra.mxu0 0.0
    %2312 = vmatprep.subr.mxu0 0.0
    %2313 = vmatpush1.msra.mxu0 0.0
    %2314 = vmatprep.subr.mxu0 0.0
    %2315 = vmatpush1.msra.mxu0 0.0
    %2316 = vmatprep.subr.mxu0 0.0
    %2317 = vmatpush1.msra.mxu0 0.0
    %2318 = vmatprep.subr.mxu0 0.0
    %2319 = vmatpush1.msra.mxu0 0.0
    %2320 = vmatprep.subr.mxu0 0.0
    %2321 = vmatpush1.msra.mxu0 0.0
    %2322 = vmatprep.subr.mxu0 0.0
    %2323 = vmatpush1.msra.mxu0 0.0
    %2324 = vmatprep.subr.mxu0 0.0
    %2325 = vmatpush1.msra.mxu0 0.0
    %2326 = vmatprep.subr.mxu0 0.0
    %2327 = vmatpush1.msra.mxu0 0.0
    %2328 = vmatprep.subr.mxu0 0.0
    %2329 = vmatpush1.msra.mxu0 0.0
    %2330 = vmatprep.subr.mxu0 0.0
    %2331 = vmatpush1.msra.mxu0 0.0
    %2332 = vmatprep.subr.mxu0 0.0
    %2333 = vmatpush1.msra.mxu0 0.0
    %2334 = vmatprep.subr.mxu0 0.0
    %2335 = vmatpush1.msra.mxu0 0.0
    %2336 = vmatprep.subr.mxu0 0.0
    %2337 = vmatpush1.msra.mxu0 0.0
    %2338 = vmatprep.subr.mxu0 0.0
    %2339 = vmatpush1.msra.mxu0 0.0
    %2340 = vmatprep.subr.mxu0 0.0
    %2341 = vmatpush1.msra.mxu0 0.0
    %2342 = vmatprep.subr.mxu0 0.0
    %2343 = vmatpush1.msra.mxu0 0.0
    %2344 = vmatprep.subr.mxu0 0.0
    %2345 = vmatpush1.msra.mxu0 0.0
    %2346 = vmatprep.subr.mxu0 0.0
    %2347 = vmatpush1.msra.mxu0 0.0
    %2348 = vmatprep.subr.mxu0 0.0
    %2349 = vmatpush1.msra.mxu0 0.0
    %2350 = vmatprep.subr.mxu0 0.0
    %2351 = vmatpush1.msra.mxu0 0.0
    %2352 = vmatprep.subr.mxu0 0.0
    %2353 = vmatpush1.msra.mxu0 0.0
    %2354 = vmatprep.subr.mxu0 0.0
    %2355 = vmatpush1.msra.mxu0 0.0
    %2356 = vmatprep.subr.mxu0 0.0
    %2357 = vmatpush1.msra.mxu0 0.0
    %2358 = vmatprep.subr.mxu0 0.0
    %2359 = vmatpush1.msra.mxu0 0.0
    %2360 = vmatprep.subr.mxu0 0.0
    %2361 = vmatpush1.msra.mxu0 0.0
    %2362 = vmatprep.subr.mxu0 0.0
    %2363 = vmatpush1.msra.mxu0 0.0
    %2364 = vmatprep.mubr.f32.mxu0 0.0
    %2365 = vmatmul.mubr.f32.gmra.mrb[0].mxu0 %v2253
    %v2366 = vpop.f32.mrb[0].mxu0
    %v2367 = vadd.f32 0.0, %v2366
    %v2368 = vpop.f32.mrb[0].mxu0
    %2369 = vmatprep.mubr.f32.mxu0 0.0
    %2370 = vmatmul.mubr.f32.gmra.mrb[0].mxu0 %v2256
    %v2371 = vpop.f32.mrb[0].mxu0
    %v2372 = vadd.f32 0.0, %v2371
    %v2373 = vpop.f32.mrb[0].mxu0
    %2374 = vmatprep.mubr.f32.mxu0 0.0
    %2375 = vmatmul.mubr.f32.gmra.mrb[0].mxu0 %v2259
    %v2376 = vpop.f32.mrb[0].mxu0
    %v2377 = vadd.f32 0.0, %v2376
    %v2378 = vpop.f32.mrb[0].mxu0
    %2379 = vmatprep.mubr.f32.mxu0 0.0
    %2380 = vmatmul.mubr.f32.gmra.mrb[0].mxu0 %v2262
    %v2381 = vpop.f32.mrb[0].mxu0
    %v2382 = vadd.f32 0.0, %v2381
    %v2383 = vpop.f32.mrb[0].mxu0
    %2384 = vmatprep.mubr.f32.mxu0 0.0
    %2385 = vmatmul.mubr.f32.gmra.mrb[0].mxu0 %v2265
    %v2386 = vpop.f32.mrb[0].mxu0
    %v2387 = vadd.f32 0.0, %v2386
    %v2388 = vpop.f32.mrb[0].mxu0
    %2389 = vmatprep.mubr.f32.mxu0 0.0
    %2390 = vmatmul.mubr.f32.gmra.mrb[0].mxu0 %v2268
    %v2391 = vpop.f32.mrb[0].mxu0
    %v2392 = vadd.f32 0.0, %v2391
    %v2393 = vpop.f32.mrb[0].mxu0
    %2394 = vmatprep.mubr.f32.mxu0 0.0
    %2395 = vmatmul.mubr.f32.gmra.mrb[0].mxu0 %v2271
    %v2396 = vpop.f32.mrb[0].mxu0
    %v2397 = vadd.f32 0.0, %v2396
    %v2398 = vpop.f32.mrb[0].mxu0
    %2399 = vmatprep.mubr.f32.mxu0 0.0
    %2400 = vmatmul.mubr.f32.gmra.mrb[0].mxu0 %v2274
    %v2401 = vpop.f32.mrb[0].mxu0
    %v2402 = vadd.f32 0.0, %v2401
    %v2403 = vpop.f32.mrb[0].mxu0
    %2404 = vmatprep.mubr.f32.mxu0 0.0
    %2405 = vmatmul.mubr.f32.gmra.mrb[0].mxu0 %v2277
    %v2406 = vpop.f32.mrb[0].mxu0
    %v2407 = vadd.f32 0.0, %v2406
    %v2408 = vpop.f32.mrb[0].mxu0
    %2409 = vmatprep.mubr.f32.mxu0 0.0
    %2410 = vmatmul.mubr.f32.gmra.mrb[0].mxu0 %v2280
    %v2411 = vpop.f32.mrb[0].mxu0
    %v2412 = vadd.f32 0.0, %v2411
    %v2413 = vpop.f32.mrb[0].mxu0
    %2414 = vmatprep.mubr.f32.mxu0 0.0
    %2415 = vmatmul.mubr.f32.gmra.mrb[0].mxu0 %v2283
    %v2416 = vpop.f32.mrb[0].mxu0
    %v2417 = vadd.f32 0.0, %v2416
    %v2418 = vpop.f32.mrb[0].mxu0
    %2419 = vmatprep.mubr.f32.mxu0 0.0
    %2420 = vmatmul.mubr.f32.gmra.mrb[0].mxu0 %v2286
    %v2421 = vpop.f32.mrb[0].mxu0
    %v2422 = vadd.f32 0.0, %v2421
    %v2423 = vpop.f32.mrb[0].mxu0
    %2424 = vmatprep.mubr.f32.mxu0 0.0
    %2425 = vmatmul.mubr.f32.gmra.mrb[0].mxu0 %v2289
    %v2426 = vpop.f32.mrb[0].mxu0
    %v2427 = vadd.f32 0.0, %v2426
    %v2428 = vpop.f32.mrb[0].mxu0
    %2429 = vmatprep.mubr.f32.mxu0 0.0
    %2430 = vmatmul.mubr.f32.gmra.mrb[0].mxu0 %v2292
    %v2431 = vpop.f32.mrb[0].mxu0
    %v2432 = vadd.f32 0.0, %v2431
    %v2433 = vpop.f32.mrb[0].mxu0
    %2434 = vmatprep.mubr.f32.mxu0 0.0
    %2435 = vmatmul.mubr.f32.gmra.mrb[0].mxu0 %v2295
    %v2436 = vpop.f32.mrb[0].mxu0
    %v2437 = vadd.f32 0.0, %v2436
    %v2438 = vpop.f32.mrb[0].mxu0
    %2439 = vmatprep.mubr.f32.mxu0 0.0
    %2440 = vmatmul.mubr.f32.gmra.mrb[0].mxu0 %v2298
    %v2441 = vpop.f32.mrb[0].mxu0
    %v2442 = vadd.f32 0.0, %v2441
    %v2443 = vpop.f32.mrb[0].mxu0
    %2444 = vdwg.mxu0
    %v2445 = vadd.f32 %v2137, %v2367
    %v2446 = vadd.f32 %v2142, %v2372
    %v2447 = vadd.f32 %v2147, %v2377
    %v2448 = vadd.f32 %v2152, %v2382
    %v2449 = vadd.f32 %v2157, %v2387
    %v2450 = vadd.f32 %v2162, %v2392
    %v2451 = vadd.f32 %v2167, %v2397
    %v2452 = vadd.f32 %v2172, %v2402
    %v2453 = vadd.f32 %v2177, %v2407
    %v2454 = vadd.f32 %v2182, %v2412
    %v2455 = vadd.f32 %v2187, %v2417
    %v2456 = vadd.f32 %v2192, %v2422
    %v2457 = vadd.f32 %v2197, %v2427
    %v2458 = vadd.f32 %v2202, %v2432
    %v2459 = vadd.f32 %v2207, %v2437
    %v2460 = vadd.f32 %v2212, %v2442
    %v2461 = vld [vmem:[#allocation2 + $0xf] sm:$0xff]
    %v2462 = vld [vmem:[#allocation2 + $0x17] sm:$0xff]
    %v2463 = vld [vmem:[#allocation2 + $0x1f] sm:$0xff]
    %v2464 = vld [vmem:[#allocation2 + $0x27] sm:$0xff]
    %v2465 = vld [vmem:[#allocation2 + $0x2f] sm:$0xff]
    %v2466 = vld [vmem:[#allocation2 + $0x37] sm:$0xff]
    %v2467 = vld [vmem:[#allocation2 + $0x3f] sm:$0xff]
    %v2468 = vld [vmem:[#allocation2 + $0x47] sm:$0xff]
    %v2469 = vld [vmem:[#allocation2 + $0x4f] sm:$0xff]
    %v2470 = vld [vmem:[#allocation2 + $0x57] sm:$0xff]
    %v2471 = vld [vmem:[#allocation2 + $0x5f] sm:$0xff]
    %v2472 = vld [vmem:[#allocation2 + $0x67] sm:$0xff]
    %v2473 = vld [vmem:[#allocation2 + $0x6f] sm:$0xff]
    %v2474 = vld [vmem:[#allocation2 + $0x77] sm:$0xff]
    %v2475 = vld [vmem:[#allocation2 + $0x7f] sm:$0xff]
    %v2476 = vld [vmem:[#allocation2 + $0x87] sm:$0xff]
    %v2477 = vmul.f32 %v637, %v2461
    %v2478 = vmul.f32 %v638, %v2462
    %v2479 = vmul.f32 %v639, %v2463
    %v2480 = vmul.f32 %v640, %v2464
    %v2481 = vmul.f32 %v641, %v2465
    %v2482 = vmul.f32 %v642, %v2466
    %v2483 = vmul.f32 %v643, %v2467
    %v2484 = vmul.f32 %v644, %v2468
    %v2485 = vmul.f32 %v645, %v2469
    %v2486 = vmul.f32 %v646, %v2470
    %v2487 = vmul.f32 %v647, %v2471
    %v2488 = vmul.f32 %v648, %v2472
    %v2489 = vmul.f32 %v649, %v2473
    %v2490 = vmul.f32 %v650, %v2474
    %v2491 = vmul.f32 %v651, %v2475
    %v2492 = vmul.f32 %v652, %v2476
    %s2493 = scalar_lea.vmem %s3, 96
    %v2494 = vld [vmem:[%s2493] sm:$0xff]
    %v2495 = vld [vmem:[%s2493 + $0x8] sm:$0xff]
    %v2496 = vld [vmem:[%s2493 + $0x10] sm:$0xff]
    %v2497 = vld [vmem:[%s2493 + $0x18] sm:$0xff]
    %v2499 = vsel %vm1037, %v2477, 0
    %v2502 = vsel %vm1037, %v2478, 0
    %v2505 = vsel %vm1037, %v2479, 0
    %v2508 = vsel %vm1037, %v2480, 0
    %v2511 = vsel %vm1037, %v2481, 0
    %v2514 = vsel %vm1037, %v2482, 0
    %v2517 = vsel %vm1037, %v2483, 0
    %v2520 = vsel %vm1037, %v2484, 0
    %v2523 = vsel %vm1037, %v2485, 0
    %v2526 = vsel %vm1037, %v2486, 0
    %v2529 = vsel %vm1037, %v2487, 0
    %v2532 = vsel %vm1037, %v2488, 0
    %v2535 = vsel %vm1037, %v2489, 0
    %v2538 = vsel %vm1037, %v2490, 0
    %v2541 = vsel %vm1037, %v2491, 0
    %v2544 = vsel %vm1037, %v2492, 0
    %2546 = vmatprep.subr.mxu0 0.0
    %2547 = vmatpush1.msra.mxu0 %v2494
    %2548 = vmatprep.subr.mxu0 0.0
    %2549 = vmatpush1.msra.mxu0 %v2495
    %2550 = vmatprep.subr.mxu0 0.0
    %2551 = vmatpush1.msra.mxu0 %v2496
    %2552 = vmatprep.subr.mxu0 0.0
    %2553 = vmatpush1.msra.mxu0 %v2497
    %2554 = vmatprep.subr.mxu0 0.0
    %2555 = vmatpush1.msra.mxu0 0.0
    %2556 = vmatprep.subr.mxu0 0.0
    %2557 = vmatpush1.msra.mxu0 0.0
    %2558 = vmatprep.subr.mxu0 0.0
    %2559 = vmatpush1.msra.mxu0 0.0
    %2560 = vmatprep.subr.mxu0 0.0
    %2561 = vmatpush1.msra.mxu0 0.0
    %2562 = vmatprep.subr.mxu0 0.0
    %2563 = vmatpush1.msra.mxu0 0.0
    %2564 = vmatprep.subr.mxu0 0.0
    %2565 = vmatpush1.msra.mxu0 0.0
    %2566 = vmatprep.subr.mxu0 0.0
    %2567 = vmatpush1.msra.mxu0 0.0
    %2568 = vmatprep.subr.mxu0 0.0
    %2569 = vmatpush1.msra.mxu0 0.0
    %2570 = vmatprep.subr.mxu0 0.0
    %2571 = vmatpush1.msra.mxu0 0.0
    %2572 = vmatprep.subr.mxu0 0.0
    %2573 = vmatpush1.msra.mxu0 0.0
    %2574 = vmatprep.subr.mxu0 0.0
    %2575 = vmatpush1.msra.mxu0 0.0
    %2576 = vmatprep.subr.mxu0 0.0
    %2577 = vmatpush1.msra.mxu0 0.0
    %2578 = vmatprep.subr.mxu0 0.0
    %2579 = vmatpush1.msra.mxu0 0.0
    %2580 = vmatprep.subr.mxu0 0.0
    %2581 = vmatpush1.msra.mxu0 0.0
    %2582 = vmatprep.subr.mxu0 0.0
    %2583 = vmatpush1.msra.mxu0 0.0
    %2584 = vmatprep.subr.mxu0 0.0
    %2585 = vmatpush1.msra.mxu0 0.0
    %2586 = vmatprep.subr.mxu0 0.0
    %2587 = vmatpush1.msra.mxu0 0.0
    %2588 = vmatprep.subr.mxu0 0.0
    %2589 = vmatpush1.msra.mxu0 0.0
    %2590 = vmatprep.subr.mxu0 0.0
    %2591 = vmatpush1.msra.mxu0 0.0
    %2592 = vmatprep.subr.mxu0 0.0
    %2593 = vmatpush1.msra.mxu0 0.0
    %2594 = vmatprep.subr.mxu0 0.0
    %2595 = vmatpush1.msra.mxu0 0.0
    %2596 = vmatprep.subr.mxu0 0.0
    %2597 = vmatpush1.msra.mxu0 0.0
    %2598 = vmatprep.subr.mxu0 0.0
    %2599 = vmatpush1.msra.mxu0 0.0
    %2600 = vmatprep.subr.mxu0 0.0
    %2601 = vmatpush1.msra.mxu0 0.0
    %2602 = vmatprep.subr.mxu0 0.0
    %2603 = vmatpush1.msra.mxu0 0.0
    %2604 = vmatprep.subr.mxu0 0.0
    %2605 = vmatpush1.msra.mxu0 0.0
    %2606 = vmatprep.subr.mxu0 0.0
    %2607 = vmatpush1.msra.mxu0 0.0
    %2608 = vmatprep.subr.mxu0 0.0
    %2609 = vmatpush1.msra.mxu0 0.0
    %2610 = vmatprep.mubr.f32.mxu0 0.0
    %2611 = vmatmul.mubr.f32.gmra.mrb[0].mxu0 %v2499
    %v2612 = vpop.f32.mrb[0].mxu0
    %v2613 = vadd.f32 0.0, %v2612
    %v2614 = vpop.f32.mrb[0].mxu0
    %2615 = vmatprep.mubr.f32.mxu0 0.0
    %2616 = vmatmul.mubr.f32.gmra.mrb[0].mxu0 %v2502
    %v2617 = vpop.f32.mrb[0].mxu0
    %v2618 = vadd.f32 0.0, %v2617
    %v2619 = vpop.f32.mrb[0].mxu0
    %2620 = vmatprep.mubr.f32.mxu0 0.0
    %2621 = vmatmul.mubr.f32.gmra.mrb[0].mxu0 %v2505
    %v2622 = vpop.f32.mrb[0].mxu0
    %v2623 = vadd.f32 0.0, %v2622
    %v2624 = vpop.f32.mrb[0].mxu0
    %2625 = vmatprep.mubr.f32.mxu0 0.0
    %2626 = vmatmul.mubr.f32.gmra.mrb[0].mxu0 %v2508
    %v2627 = vpop.f32.mrb[0].mxu0
    %v2628 = vadd.f32 0.0, %v2627
    %v2629 = vpop.f32.mrb[0].mxu0
    %2630 = vmatprep.mubr.f32.mxu0 0.0
    %2631 = vmatmul.mubr.f32.gmra.mrb[0].mxu0 %v2511
    %v2632 = vpop.f32.mrb[0].mxu0
    %v2633 = vadd.f32 0.0, %v2632
    %v2634 = vpop.f32.mrb[0].mxu0
    %2635 = vmatprep.mubr.f32.mxu0 0.0
    %2636 = vmatmul.mubr.f32.gmra.mrb[0].mxu0 %v2514
    %v2637 = vpop.f32.mrb[0].mxu0
    %v2638 = vadd.f32 0.0, %v2637
    %v2639 = vpop.f32.mrb[0].mxu0
    %2640 = vmatprep.mubr.f32.mxu0 0.0
    %2641 = vmatmul.mubr.f32.gmra.mrb[0].mxu0 %v2517
    %v2642 = vpop.f32.mrb[0].mxu0
    %v2643 = vadd.f32 0.0, %v2642
    %v2644 = vpop.f32.mrb[0].mxu0
    %2645 = vmatprep.mubr.f32.mxu0 0.0
    %2646 = vmatmul.mubr.f32.gmra.mrb[0].mxu0 %v2520
    %v2647 = vpop.f32.mrb[0].mxu0
    %v2648 = vadd.f32 0.0, %v2647
    %v2649 = vpop.f32.mrb[0].mxu0
    %2650 = vmatprep.mubr.f32.mxu0 0.0
    %2651 = vmatmul.mubr.f32.gmra.mrb[0].mxu0 %v2523
    %v2652 = vpop.f32.mrb[0].mxu0
    %v2653 = vadd.f32 0.0, %v2652
    %v2654 = vpop.f32.mrb[0].mxu0
    %2655 = vmatprep.mubr.f32.mxu0 0.0
    %2656 = vmatmul.mubr.f32.gmra.mrb[0].mxu0 %v2526
    %v2657 = vpop.f32.mrb[0].mxu0
    %v2658 = vadd.f32 0.0, %v2657
    %v2659 = vpop.f32.mrb[0].mxu0
    %2660 = vmatprep.mubr.f32.mxu0 0.0
    %2661 = vmatmul.mubr.f32.gmra.mrb[0].mxu0 %v2529
    %v2662 = vpop.f32.mrb[0].mxu0
    %v2663 = vadd.f32 0.0, %v2662
    %v2664 = vpop.f32.mrb[0].mxu0
    %2665 = vmatprep.mubr.f32.mxu0 0.0
    %2666 = vmatmul.mubr.f32.gmra.mrb[0].mxu0 %v2532
    %v2667 = vpop.f32.mrb[0].mxu0
    %v2668 = vadd.f32 0.0, %v2667
    %v2669 = vpop.f32.mrb[0].mxu0
    %2670 = vmatprep.mubr.f32.mxu0 0.0
    %2671 = vmatmul.mubr.f32.gmra.mrb[0].mxu0 %v2535
    %v2672 = vpop.f32.mrb[0].mxu0
    %v2673 = vadd.f32 0.0, %v2672
    %v2674 = vpop.f32.mrb[0].mxu0
    %2675 = vmatprep.mubr.f32.mxu0 0.0
    %2676 = vmatmul.mubr.f32.gmra.mrb[0].mxu0 %v2538
    %v2677 = vpop.f32.mrb[0].mxu0
    %v2678 = vadd.f32 0.0, %v2677
    %v2679 = vpop.f32.mrb[0].mxu0
    %2680 = vmatprep.mubr.f32.mxu0 0.0
    %2681 = vmatmul.mubr.f32.gmra.mrb[0].mxu0 %v2541
    %v2682 = vpop.f32.mrb[0].mxu0
    %v2683 = vadd.f32 0.0, %v2682
    %v2684 = vpop.f32.mrb[0].mxu0
    %2685 = vmatprep.mubr.f32.mxu0 0.0
    %2686 = vmatmul.mubr.f32.gmra.mrb[0].mxu0 %v2544
    %v2687 = vpop.f32.mrb[0].mxu0
    %v2688 = vadd.f32 0.0, %v2687
    %v2689 = vpop.f32.mrb[0].mxu0
    %2690 = vdwg.mxu0
    %v2691 = vadd.f32 %v2445, %v2613
    %v2692 = vadd.f32 %v2446, %v2618
    %v2693 = vadd.f32 %v2447, %v2623
    %v2694 = vadd.f32 %v2448, %v2628
    %v2695 = vadd.f32 %v2449, %v2633
    %v2696 = vadd.f32 %v2450, %v2638
    %v2697 = vadd.f32 %v2451, %v2643
    %v2698 = vadd.f32 %v2452, %v2648
    %v2699 = vadd.f32 %v2453, %v2653
    %v2700 = vadd.f32 %v2454, %v2658
    %v2701 = vadd.f32 %v2455, %v2663
    %v2702 = vadd.f32 %v2456, %v2668
    %v2703 = vadd.f32 %v2457, %v2673
    %v2704 = vadd.f32 %v2458, %v2678
    %v2705 = vadd.f32 %v2459, %v2683
    %v2706 = vadd.f32 %v2460, %v2688
    %v2707 = vld [vmem:[#allocation2 + $0x10] sm:$0xff]
    %v2708 = vld [vmem:[#allocation2 + $0x18] sm:$0xff]
    %v2709 = vld [vmem:[#allocation2 + $0x20] sm:$0xff]
    %v2710 = vld [vmem:[#allocation2 + $0x28] sm:$0xff]
    %v2711 = vld [vmem:[#allocation2 + $0x30] sm:$0xff]
    %v2712 = vld [vmem:[#allocation2 + $0x38] sm:$0xff]
    %v2713 = vld [vmem:[#allocation2 + $0x40] sm:$0xff]
    %v2714 = vld [vmem:[#allocation2 + $0x48] sm:$0xff]
    %v2715 = vld [vmem:[#allocation2 + $0x50] sm:$0xff]
    %v2716 = vld [vmem:[#allocation2 + $0x58] sm:$0xff]
    %v2717 = vld [vmem:[#allocation2 + $0x60] sm:$0xff]
    %v2718 = vld [vmem:[#allocation2 + $0x68] sm:$0xff]
    %v2719 = vld [vmem:[#allocation2 + $0x70] sm:$0xff]
    %v2720 = vld [vmem:[#allocation2 + $0x78] sm:$0xff]
    %v2721 = vld [vmem:[#allocation2 + $0x80] sm:$0xff]
    %v2722 = vld [vmem:[#allocation2 + $0x88] sm:$0xff]
    %v2723 = vmul.f32 %v701, %v2707
    %v2724 = vmul.f32 %v702, %v2708
    %v2725 = vmul.f32 %v703, %v2709
    %v2726 = vmul.f32 %v704, %v2710
    %v2727 = vmul.f32 %v705, %v2711
    %v2728 = vmul.f32 %v706, %v2712
    %v2729 = vmul.f32 %v707, %v2713
    %v2730 = vmul.f32 %v708, %v2714
    %v2731 = vmul.f32 %v709, %v2715
    %v2732 = vmul.f32 %v710, %v2716
    %v2733 = vmul.f32 %v711, %v2717
    %v2734 = vmul.f32 %v712, %v2718
    %v2735 = vmul.f32 %v713, %v2719
    %v2736 = vmul.f32 %v714, %v2720
    %v2737 = vmul.f32 %v715, %v2721
    %v2738 = vmul.f32 %v716, %v2722
    %s2739 = scalar_lea.vmem %s3, 128
    %v2740 = vld [vmem:[%s2739] sm:$0xff]
    %v2741 = vld [vmem:[%s2739 + $0x8] sm:$0xff]
    %v2742 = vld [vmem:[%s2739 + $0x10] sm:$0xff]
    %v2743 = vld [vmem:[%s2739 + $0x18] sm:$0xff]
    %v2745 = vsel %vm1037, %v2723, 0
    %v2748 = vsel %vm1037, %v2724, 0
    %v2751 = vsel %vm1037, %v2725, 0
    %v2754 = vsel %vm1037, %v2726, 0
    %v2757 = vsel %vm1037, %v2727, 0
    %v2760 = vsel %vm1037, %v2728, 0
    %v2763 = vsel %vm1037, %v2729, 0
    %v2766 = vsel %vm1037, %v2730, 0
    %v2769 = vsel %vm1037, %v2731, 0
    %v2772 = vsel %vm1037, %v2732, 0
    %v2775 = vsel %vm1037, %v2733, 0
    %v2778 = vsel %vm1037, %v2734, 0
    %v2781 = vsel %vm1037, %v2735, 0
    %v2784 = vsel %vm1037, %v2736, 0
    %v2787 = vsel %vm1037, %v2737, 0
    %v2790 = vsel %vm1037, %v2738, 0
    %2792 = vmatprep.subr.mxu0 0.0
    %2793 = vmatpush1.msra.mxu0 %v2740
    %2794 = vmatprep.subr.mxu0 0.0
    %2795 = vmatpush1.msra.mxu0 %v2741
    %2796 = vmatprep.subr.mxu0 0.0
    %2797 = vmatpush1.msra.mxu0 %v2742
    %2798 = vmatprep.subr.mxu0 0.0
    %2799 = vmatpush1.msra.mxu0 %v2743
    %2800 = vmatprep.subr.mxu0 0.0
    %2801 = vmatpush1.msra.mxu0 0.0
    %2802 = vmatprep.subr.mxu0 0.0
    %2803 = vmatpush1.msra.mxu0 0.0
    %2804 = vmatprep.subr.mxu0 0.0
    %2805 = vmatpush1.msra.mxu0 0.0
    %2806 = vmatprep.subr.mxu0 0.0
    %2807 = vmatpush1.msra.mxu0 0.0
    %2808 = vmatprep.subr.mxu0 0.0
    %2809 = vmatpush1.msra.mxu0 0.0
    %2810 = vmatprep.subr.mxu0 0.0
    %2811 = vmatpush1.msra.mxu0 0.0
    %2812 = vmatprep.subr.mxu0 0.0
    %2813 = vmatpush1.msra.mxu0 0.0
    %2814 = vmatprep.subr.mxu0 0.0
    %2815 = vmatpush1.msra.mxu0 0.0
    %2816 = vmatprep.subr.mxu0 0.0
    %2817 = vmatpush1.msra.mxu0 0.0
    %2818 = vmatprep.subr.mxu0 0.0
    %2819 = vmatpush1.msra.mxu0 0.0
    %2820 = vmatprep.subr.mxu0 0.0
    %2821 = vmatpush1.msra.mxu0 0.0
    %2822 = vmatprep.subr.mxu0 0.0
    %2823 = vmatpush1.msra.mxu0 0.0
    %2824 = vmatprep.subr.mxu0 0.0
    %2825 = vmatpush1.msra.mxu0 0.0
    %2826 = vmatprep.subr.mxu0 0.0
    %2827 = vmatpush1.msra.mxu0 0.0
    %2828 = vmatprep.subr.mxu0 0.0
    %2829 = vmatpush1.msra.mxu0 0.0
    %2830 = vmatprep.subr.mxu0 0.0
    %2831 = vmatpush1.msra.mxu0 0.0
    %2832 = vmatprep.subr.mxu0 0.0
    %2833 = vmatpush1.msra.mxu0 0.0
    %2834 = vmatprep.subr.mxu0 0.0
    %2835 = vmatpush1.msra.mxu0 0.0
    %2836 = vmatprep.subr.mxu0 0.0
    %2837 = vmatpush1.msra.mxu0 0.0
    %2838 = vmatprep.subr.mxu0 0.0
    %2839 = vmatpush1.msra.mxu0 0.0
    %2840 = vmatprep.subr.mxu0 0.0
    %2841 = vmatpush1.msra.mxu0 0.0
    %2842 = vmatprep.subr.mxu0 0.0
    %2843 = vmatpush1.msra.mxu0 0.0
    %2844 = vmatprep.subr.mxu0 0.0
    %2845 = vmatpush1.msra.mxu0 0.0
    %2846 = vmatprep.subr.mxu0 0.0
    %2847 = vmatpush1.msra.mxu0 0.0
    %2848 = vmatprep.subr.mxu0 0.0
    %2849 = vmatpush1.msra.mxu0 0.0
    %2850 = vmatprep.subr.mxu0 0.0
    %2851 = vmatpush1.msra.mxu0 0.0
    %2852 = vmatprep.subr.mxu0 0.0
    %2853 = vmatpush1.msra.mxu0 0.0
    %2854 = vmatprep.subr.mxu0 0.0
    %2855 = vmatpush1.msra.mxu0 0.0
    %2856 = vmatprep.mubr.f32.mxu0 0.0
    %2857 = vmatmul.mubr.f32.gmra.mrb[0].mxu0 %v2745
    %v2858 = vpop.f32.mrb[0].mxu0
    %v2859 = vadd.f32 0.0, %v2858
    %v2860 = vpop.f32.mrb[0].mxu0
    %2861 = vmatprep.mubr.f32.mxu0 0.0
    %2862 = vmatmul.mubr.f32.gmra.mrb[0].mxu0 %v2748
    %v2863 = vpop.f32.mrb[0].mxu0
    %v2864 = vadd.f32 0.0, %v2863
    %v2865 = vpop.f32.mrb[0].mxu0
    %2866 = vmatprep.mubr.f32.mxu0 0.0
    %2867 = vmatmul.mubr.f32.gmra.mrb[0].mxu0 %v2751
    %v2868 = vpop.f32.mrb[0].mxu0
    %v2869 = vadd.f32 0.0, %v2868
    %v2870 = vpop.f32.mrb[0].mxu0
    %2871 = vmatprep.mubr.f32.mxu0 0.0
    %2872 = vmatmul.mubr.f32.gmra.mrb[0].mxu0 %v2754
    %v2873 = vpop.f32.mrb[0].mxu0
    %v2874 = vadd.f32 0.0, %v2873
    %v2875 = vpop.f32.mrb[0].mxu0
    %2876 = vmatprep.mubr.f32.mxu0 0.0
    %2877 = vmatmul.mubr.f32.gmra.mrb[0].mxu0 %v2757
    %v2878 = vpop.f32.mrb[0].mxu0
    %v2879 = vadd.f32 0.0, %v2878
    %v2880 = vpop.f32.mrb[0].mxu0
    %2881 = vmatprep.mubr.f32.mxu0 0.0
    %2882 = vmatmul.mubr.f32.gmra.mrb[0].mxu0 %v2760
    %v2883 = vpop.f32.mrb[0].mxu0
    %v2884 = vadd.f32 0.0, %v2883
    %v2885 = vpop.f32.mrb[0].mxu0
    %2886 = vmatprep.mubr.f32.mxu0 0.0
    %2887 = vmatmul.mubr.f32.gmra.mrb[0].mxu0 %v2763
    %v2888 = vpop.f32.mrb[0].mxu0
    %v2889 = vadd.f32 0.0, %v2888
    %v2890 = vpop.f32.mrb[0].mxu0
    %2891 = vmatprep.mubr.f32.mxu0 0.0
    %2892 = vmatmul.mubr.f32.gmra.mrb[0].mxu0 %v2766
    %v2893 = vpop.f32.mrb[0].mxu0
    %v2894 = vadd.f32 0.0, %v2893
    %v2895 = vpop.f32.mrb[0].mxu0
    %2896 = vmatprep.mubr.f32.mxu0 0.0
    %2897 = vmatmul.mubr.f32.gmra.mrb[0].mxu0 %v2769
    %v2898 = vpop.f32.mrb[0].mxu0
    %v2899 = vadd.f32 0.0, %v2898
    %v2900 = vpop.f32.mrb[0].mxu0
    %2901 = vmatprep.mubr.f32.mxu0 0.0
    %2902 = vmatmul.mubr.f32.gmra.mrb[0].mxu0 %v2772
    %v2903 = vpop.f32.mrb[0].mxu0
    %v2904 = vadd.f32 0.0, %v2903
    %v2905 = vpop.f32.mrb[0].mxu0
    %2906 = vmatprep.mubr.f32.mxu0 0.0
    %2907 = vmatmul.mubr.f32.gmra.mrb[0].mxu0 %v2775
    %v2908 = vpop.f32.mrb[0].mxu0
    %v2909 = vadd.f32 0.0, %v2908
    %v2910 = vpop.f32.mrb[0].mxu0
    %2911 = vmatprep.mubr.f32.mxu0 0.0
    %2912 = vmatmul.mubr.f32.gmra.mrb[0].mxu0 %v2778
    %v2913 = vpop.f32.mrb[0].mxu0
    %v2914 = vadd.f32 0.0, %v2913
    %v2915 = vpop.f32.mrb[0].mxu0
    %2916 = vmatprep.mubr.f32.mxu0 0.0
    %2917 = vmatmul.mubr.f32.gmra.mrb[0].mxu0 %v2781
    %v2918 = vpop.f32.mrb[0].mxu0
    %v2919 = vadd.f32 0.0, %v2918
    %v2920 = vpop.f32.mrb[0].mxu0
    %2921 = vmatprep.mubr.f32.mxu0 0.0
    %2922 = vmatmul.mubr.f32.gmra.mrb[0].mxu0 %v2784
    %v2923 = vpop.f32.mrb[0].mxu0
    %v2924 = vadd.f32 0.0, %v2923
    %v2925 = vpop.f32.mrb[0].mxu0
    %2926 = vmatprep.mubr.f32.mxu0 0.0
    %2927 = vmatmul.mubr.f32.gmra.mrb[0].mxu0 %v2787
    %v2928 = vpop.f32.mrb[0].mxu0
    %v2929 = vadd.f32 0.0, %v2928
    %v2930 = vpop.f32.mrb[0].mxu0
    %2931 = vmatprep.mubr.f32.mxu0 0.0
    %2932 = vmatmul.mubr.f32.gmra.mrb[0].mxu0 %v2790
    %v2933 = vpop.f32.mrb[0].mxu0
    %v2934 = vadd.f32 0.0, %v2933
    %v2935 = vpop.f32.mrb[0].mxu0
    %2936 = vdwg.mxu0
    %v2937 = vadd.f32 %v2691, %v2859
    %v2938 = vadd.f32 %v2692, %v2864
    %v2939 = vadd.f32 %v2693, %v2869
    %v2940 = vadd.f32 %v2694, %v2874
    %v2941 = vadd.f32 %v2695, %v2879
    %v2942 = vadd.f32 %v2696, %v2884
    %v2943 = vadd.f32 %v2697, %v2889
    %v2944 = vadd.f32 %v2698, %v2894
    %v2945 = vadd.f32 %v2699, %v2899
    %v2946 = vadd.f32 %v2700, %v2904
    %v2947 = vadd.f32 %v2701, %v2909
    %v2948 = vadd.f32 %v2702, %v2914
    %v2949 = vadd.f32 %v2703, %v2919
    %v2950 = vadd.f32 %v2704, %v2924
    %v2951 = vadd.f32 %v2705, %v2929
    %v2952 = vadd.f32 %v2706, %v2934
    %v2953 = vld [vmem:[#allocation2 + $0x11] sm:$0xff]
    %v2954 = vld [vmem:[#allocation2 + $0x19] sm:$0xff]
    %v2955 = vld [vmem:[#allocation2 + $0x21] sm:$0xff]
    %v2956 = vld [vmem:[#allocation2 + $0x29] sm:$0xff]
    %v2957 = vld [vmem:[#allocation2 + $0x31] sm:$0xff]
    %v2958 = vld [vmem:[#allocation2 + $0x39] sm:$0xff]
    %v2959 = vld [vmem:[#allocation2 + $0x41] sm:$0xff]
    %v2960 = vld [vmem:[#allocation2 + $0x49] sm:$0xff]
    %v2961 = vld [vmem:[#allocation2 + $0x51] sm:$0xff]
    %v2962 = vld [vmem:[#allocation2 + $0x59] sm:$0xff]
    %v2963 = vld [vmem:[#allocation2 + $0x61] sm:$0xff]
    %v2964 = vld [vmem:[#allocation2 + $0x69] sm:$0xff]
    %v2965 = vld [vmem:[#allocation2 + $0x71] sm:$0xff]
    %v2966 = vld [vmem:[#allocation2 + $0x79] sm:$0xff]
    %v2967 = vld [vmem:[#allocation2 + $0x81] sm:$0xff]
    %v2968 = vld [vmem:[#allocation2 + $0x89] sm:$0xff]
    %v2969 = vmul.f32 %v765, %v2953
    %v2970 = vmul.f32 %v766, %v2954
    %v2971 = vmul.f32 %v767, %v2955
    %v2972 = vmul.f32 %v768, %v2956
    %v2973 = vmul.f32 %v769, %v2957
    %v2974 = vmul.f32 %v770, %v2958
    %v2975 = vmul.f32 %v771, %v2959
    %v2976 = vmul.f32 %v772, %v2960
    %v2977 = vmul.f32 %v773, %v2961
    %v2978 = vmul.f32 %v774, %v2962
    %v2979 = vmul.f32 %v775, %v2963
    %v2980 = vmul.f32 %v776, %v2964
    %v2981 = vmul.f32 %v777, %v2965
    %v2982 = vmul.f32 %v778, %v2966
    %v2983 = vmul.f32 %v779, %v2967
    %v2984 = vmul.f32 %v780, %v2968
    %s2985 = scalar_lea.vmem %s3, 160
    %v2986 = vld [vmem:[%s2985] sm:$0xff]
    %v2987 = vld [vmem:[%s2985 + $0x8] sm:$0xff]
    %v2988 = vld [vmem:[%s2985 + $0x10] sm:$0xff]
    %v2989 = vld [vmem:[%s2985 + $0x18] sm:$0xff]
    %v2991 = vsel %vm1037, %v2969, 0
    %v2994 = vsel %vm1037, %v2970, 0
    %v2997 = vsel %vm1037, %v2971, 0
    %v3000 = vsel %vm1037, %v2972, 0
    %v3003 = vsel %vm1037, %v2973, 0
    %v3006 = vsel %vm1037, %v2974, 0
    %v3009 = vsel %vm1037, %v2975, 0
    %v3012 = vsel %vm1037, %v2976, 0
    %v3015 = vsel %vm1037, %v2977, 0
    %v3018 = vsel %vm1037, %v2978, 0
    %v3021 = vsel %vm1037, %v2979, 0
    %v3024 = vsel %vm1037, %v2980, 0
    %v3027 = vsel %vm1037, %v2981, 0
    %v3030 = vsel %vm1037, %v2982, 0
    %v3033 = vsel %vm1037, %v2983, 0
    %v3036 = vsel %vm1037, %v2984, 0
    %3038 = vmatprep.subr.mxu0 0.0
    %3039 = vmatpush1.msra.mxu0 %v2986
    %3040 = vmatprep.subr.mxu0 0.0
    %3041 = vmatpush1.msra.mxu0 %v2987
    %3042 = vmatprep.subr.mxu0 0.0
    %3043 = vmatpush1.msra.mxu0 %v2988
    %3044 = vmatprep.subr.mxu0 0.0
    %3045 = vmatpush1.msra.mxu0 %v2989
    %3046 = vmatprep.subr.mxu0 0.0
    %3047 = vmatpush1.msra.mxu0 0.0
    %3048 = vmatprep.subr.mxu0 0.0
    %3049 = vmatpush1.msra.mxu0 0.0
    %3050 = vmatprep.subr.mxu0 0.0
    %3051 = vmatpush1.msra.mxu0 0.0
    %3052 = vmatprep.subr.mxu0 0.0
    %3053 = vmatpush1.msra.mxu0 0.0
    %3054 = vmatprep.subr.mxu0 0.0
    %3055 = vmatpush1.msra.mxu0 0.0
    %3056 = vmatprep.subr.mxu0 0.0
    %3057 = vmatpush1.msra.mxu0 0.0
    %3058 = vmatprep.subr.mxu0 0.0
    %3059 = vmatpush1.msra.mxu0 0.0
    %3060 = vmatprep.subr.mxu0 0.0
    %3061 = vmatpush1.msra.mxu0 0.0
    %3062 = vmatprep.subr.mxu0 0.0
    %3063 = vmatpush1.msra.mxu0 0.0
    %3064 = vmatprep.subr.mxu0 0.0
    %3065 = vmatpush1.msra.mxu0 0.0
    %3066 = vmatprep.subr.mxu0 0.0
    %3067 = vmatpush1.msra.mxu0 0.0
    %3068 = vmatprep.subr.mxu0 0.0
    %3069 = vmatpush1.msra.mxu0 0.0
    %3070 = vmatprep.subr.mxu0 0.0
    %3071 = vmatpush1.msra.mxu0 0.0
    %3072 = vmatprep.subr.mxu0 0.0
    %3073 = vmatpush1.msra.mxu0 0.0
    %3074 = vmatprep.subr.mxu0 0.0
    %3075 = vmatpush1.msra.mxu0 0.0
    %3076 = vmatprep.subr.mxu0 0.0
    %3077 = vmatpush1.msra.mxu0 0.0
    %3078 = vmatprep.subr.mxu0 0.0
    %3079 = vmatpush1.msra.mxu0 0.0
    %3080 = vmatprep.subr.mxu0 0.0
    %3081 = vmatpush1.msra.mxu0 0.0
    %3082 = vmatprep.subr.mxu0 0.0
    %3083 = vmatpush1.msra.mxu0 0.0
    %3084 = vmatprep.subr.mxu0 0.0
    %3085 = vmatpush1.msra.mxu0 0.0
    %3086 = vmatprep.subr.mxu0 0.0
    %3087 = vmatpush1.msra.mxu0 0.0
    %3088 = vmatprep.subr.mxu0 0.0
    %3089 = vmatpush1.msra.mxu0 0.0
    %3090 = vmatprep.subr.mxu0 0.0
    %3091 = vmatpush1.msra.mxu0 0.0
    %3092 = vmatprep.subr.mxu0 0.0
    %3093 = vmatpush1.msra.mxu0 0.0
    %3094 = vmatprep.subr.mxu0 0.0
    %3095 = vmatpush1.msra.mxu0 0.0
    %3096 = vmatprep.subr.mxu0 0.0
    %3097 = vmatpush1.msra.mxu0 0.0
    %3098 = vmatprep.subr.mxu0 0.0
    %3099 = vmatpush1.msra.mxu0 0.0
    %3100 = vmatprep.subr.mxu0 0.0
    %3101 = vmatpush1.msra.mxu0 0.0
    %3102 = vmatprep.mubr.f32.mxu0 0.0
    %3103 = vmatmul.mubr.f32.gmra.mrb[0].mxu0 %v2991
    %v3104 = vpop.f32.mrb[0].mxu0
    %v3105 = vadd.f32 0.0, %v3104
    %v3106 = vpop.f32.mrb[0].mxu0
    %3107 = vmatprep.mubr.f32.mxu0 0.0
    %3108 = vmatmul.mubr.f32.gmra.mrb[0].mxu0 %v2994
    %v3109 = vpop.f32.mrb[0].mxu0
    %v3110 = vadd.f32 0.0, %v3109
    %v3111 = vpop.f32.mrb[0].mxu0
    %3112 = vmatprep.mubr.f32.mxu0 0.0
    %3113 = vmatmul.mubr.f32.gmra.mrb[0].mxu0 %v2997
    %v3114 = vpop.f32.mrb[0].mxu0
    %v3115 = vadd.f32 0.0, %v3114
    %v3116 = vpop.f32.mrb[0].mxu0
    %3117 = vmatprep.mubr.f32.mxu0 0.0
    %3118 = vmatmul.mubr.f32.gmra.mrb[0].mxu0 %v3000
    %v3119 = vpop.f32.mrb[0].mxu0
    %v3120 = vadd.f32 0.0, %v3119
    %v3121 = vpop.f32.mrb[0].mxu0
    %3122 = vmatprep.mubr.f32.mxu0 0.0
    %3123 = vmatmul.mubr.f32.gmra.mrb[0].mxu0 %v3003
    %v3124 = vpop.f32.mrb[0].mxu0
    %v3125 = vadd.f32 0.0, %v3124
    %v3126 = vpop.f32.mrb[0].mxu0
    %3127 = vmatprep.mubr.f32.mxu0 0.0
    %3128 = vmatmul.mubr.f32.gmra.mrb[0].mxu0 %v3006
    %v3129 = vpop.f32.mrb[0].mxu0
    %v3130 = vadd.f32 0.0, %v3129
    %v3131 = vpop.f32.mrb[0].mxu0
    %3132 = vmatprep.mubr.f32.mxu0 0.0
    %3133 = vmatmul.mubr.f32.gmra.mrb[0].mxu0 %v3009
    %v3134 = vpop.f32.mrb[0].mxu0
    %v3135 = vadd.f32 0.0, %v3134
    %v3136 = vpop.f32.mrb[0].mxu0
    %3137 = vmatprep.mubr.f32.mxu0 0.0
    %3138 = vmatmul.mubr.f32.gmra.mrb[0].mxu0 %v3012
    %v3139 = vpop.f32.mrb[0].mxu0
    %v3140 = vadd.f32 0.0, %v3139
    %v3141 = vpop.f32.mrb[0].mxu0
    %3142 = vmatprep.mubr.f32.mxu0 0.0
    %3143 = vmatmul.mubr.f32.gmra.mrb[0].mxu0 %v3015
    %v3144 = vpop.f32.mrb[0].mxu0
    %v3145 = vadd.f32 0.0, %v3144
    %v3146 = vpop.f32.mrb[0].mxu0
    %3147 = vmatprep.mubr.f32.mxu0 0.0
    %3148 = vmatmul.mubr.f32.gmra.mrb[0].mxu0 %v3018
    %v3149 = vpop.f32.mrb[0].mxu0
    %v3150 = vadd.f32 0.0, %v3149
    %v3151 = vpop.f32.mrb[0].mxu0
    %3152 = vmatprep.mubr.f32.mxu0 0.0
    %3153 = vmatmul.mubr.f32.gmra.mrb[0].mxu0 %v3021
    %v3154 = vpop.f32.mrb[0].mxu0
    %v3155 = vadd.f32 0.0, %v3154
    %v3156 = vpop.f32.mrb[0].mxu0
    %3157 = vmatprep.mubr.f32.mxu0 0.0
    %3158 = vmatmul.mubr.f32.gmra.mrb[0].mxu0 %v3024
    %v3159 = vpop.f32.mrb[0].mxu0
    %v3160 = vadd.f32 0.0, %v3159
    %v3161 = vpop.f32.mrb[0].mxu0
    %3162 = vmatprep.mubr.f32.mxu0 0.0
    %3163 = vmatmul.mubr.f32.gmra.mrb[0].mxu0 %v3027
    %v3164 = vpop.f32.mrb[0].mxu0
    %v3165 = vadd.f32 0.0, %v3164
    %v3166 = vpop.f32.mrb[0].mxu0
    %3167 = vmatprep.mubr.f32.mxu0 0.0
    %3168 = vmatmul.mubr.f32.gmra.mrb[0].mxu0 %v3030
    %v3169 = vpop.f32.mrb[0].mxu0
    %v3170 = vadd.f32 0.0, %v3169
    %v3171 = vpop.f32.mrb[0].mxu0
    %3172 = vmatprep.mubr.f32.mxu0 0.0
    %3173 = vmatmul.mubr.f32.gmra.mrb[0].mxu0 %v3033
    %v3174 = vpop.f32.mrb[0].mxu0
    %v3175 = vadd.f32 0.0, %v3174
    %v3176 = vpop.f32.mrb[0].mxu0
    %3177 = vmatprep.mubr.f32.mxu0 0.0
    %3178 = vmatmul.mubr.f32.gmra.mrb[0].mxu0 %v3036
    %v3179 = vpop.f32.mrb[0].mxu0
    %v3180 = vadd.f32 0.0, %v3179
    %v3181 = vpop.f32.mrb[0].mxu0
    %3182 = vdwg.mxu0
    %v3183 = vadd.f32 %v2937, %v3105
    %v3184 = vadd.f32 %v2938, %v3110
    %v3185 = vadd.f32 %v2939, %v3115
    %v3186 = vadd.f32 %v2940, %v3120
    %v3187 = vadd.f32 %v2941, %v3125
    %v3188 = vadd.f32 %v2942, %v3130
    %v3189 = vadd.f32 %v2943, %v3135
    %v3190 = vadd.f32 %v2944, %v3140
    %v3191 = vadd.f32 %v2945, %v3145
    %v3192 = vadd.f32 %v2946, %v3150
    %v3193 = vadd.f32 %v2947, %v3155
    %v3194 = vadd.f32 %v2948, %v3160
    %v3195 = vadd.f32 %v2949, %v3165
    %v3196 = vadd.f32 %v2950, %v3170
    %v3197 = vadd.f32 %v2951, %v3175
    %v3198 = vadd.f32 %v2952, %v3180
    %v3199 = vld [vmem:[#allocation2 + $0x17] sm:$0xff]
    %v3200 = vld [vmem:[#allocation2 + $0x1f] sm:$0xff]
    %v3201 = vld [vmem:[#allocation2 + $0x27] sm:$0xff]
    %v3202 = vld [vmem:[#allocation2 + $0x2f] sm:$0xff]
    %v3203 = vld [vmem:[#allocation2 + $0x37] sm:$0xff]
    %v3204 = vld [vmem:[#allocation2 + $0x3f] sm:$0xff]
    %v3205 = vld [vmem:[#allocation2 + $0x47] sm:$0xff]
    %v3206 = vld [vmem:[#allocation2 + $0x4f] sm:$0xff]
    %v3207 = vld [vmem:[#allocation2 + $0x57] sm:$0xff]
    %v3208 = vld [vmem:[#allocation2 + $0x5f] sm:$0xff]
    %v3209 = vld [vmem:[#allocation2 + $0x67] sm:$0xff]
    %v3210 = vld [vmem:[#allocation2 + $0x6f] sm:$0xff]
    %v3211 = vld [vmem:[#allocation2 + $0x77] sm:$0xff]
    %v3212 = vld [vmem:[#allocation2 + $0x7f] sm:$0xff]
    %v3213 = vld [vmem:[#allocation2 + $0x87] sm:$0xff]
    %v3214 = vld [vmem:[#allocation2 + $0x8f] sm:$0xff]
    %v3215 = vmul.f32 %v893, %v3199
    %v3216 = vmul.f32 %v894, %v3200
    %v3217 = vmul.f32 %v895, %v3201
    %v3218 = vmul.f32 %v896, %v3202
    %v3219 = vmul.f32 %v897, %v3203
    %v3220 = vmul.f32 %v898, %v3204
    %v3221 = vmul.f32 %v899, %v3205
    %v3222 = vmul.f32 %v900, %v3206
    %v3223 = vmul.f32 %v901, %v3207
    %v3224 = vmul.f32 %v902, %v3208
    %v3225 = vmul.f32 %v903, %v3209
    %v3226 = vmul.f32 %v904, %v3210
    %v3227 = vmul.f32 %v905, %v3211
    %v3228 = vmul.f32 %v906, %v3212
    %v3229 = vmul.f32 %v907, %v3213
    %v3230 = vmul.f32 %v908, %v3214
    %s3231 = scalar_lea.vmem %s3, 192
    %v3232 = vld [vmem:[%s3231] sm:$0xff]
    %v3233 = vld [vmem:[%s3231 + $0x8] sm:$0xff]
    %v3234 = vld [vmem:[%s3231 + $0x10] sm:$0xff]
    %v3235 = vld [vmem:[%s3231 + $0x18] sm:$0xff]
    %v3237 = vsel %vm1037, %v3215, 0
    %v3240 = vsel %vm1037, %v3216, 0
    %v3243 = vsel %vm1037, %v3217, 0
    %v3246 = vsel %vm1037, %v3218, 0
    %v3249 = vsel %vm1037, %v3219, 0
    %v3252 = vsel %vm1037, %v3220, 0
    %v3255 = vsel %vm1037, %v3221, 0
    %v3258 = vsel %vm1037, %v3222, 0
    %v3261 = vsel %vm1037, %v3223, 0
    %v3264 = vsel %vm1037, %v3224, 0
    %v3267 = vsel %vm1037, %v3225, 0
    %v3270 = vsel %vm1037, %v3226, 0
    %v3273 = vsel %vm1037, %v3227, 0
    %v3276 = vsel %vm1037, %v3228, 0
    %v3279 = vsel %vm1037, %v3229, 0
    %v3282 = vsel %vm1037, %v3230, 0
    %3284 = vmatprep.subr.mxu0 0.0
    %3285 = vmatpush1.msra.mxu0 %v3232
    %3286 = vmatprep.subr.mxu0 0.0
    %3287 = vmatpush1.msra.mxu0 %v3233
    %3288 = vmatprep.subr.mxu0 0.0
    %3289 = vmatpush1.msra.mxu0 %v3234
    %3290 = vmatprep.subr.mxu0 0.0
    %3291 = vmatpush1.msra.mxu0 %v3235
    %3292 = vmatprep.subr.mxu0 0.0
    %3293 = vmatpush1.msra.mxu0 0.0
    %3294 = vmatprep.subr.mxu0 0.0
    %3295 = vmatpush1.msra.mxu0 0.0
    %3296 = vmatprep.subr.mxu0 0.0
    %3297 = vmatpush1.msra.mxu0 0.0
    %3298 = vmatprep.subr.mxu0 0.0
    %3299 = vmatpush1.msra.mxu0 0.0
    %3300 = vmatprep.subr.mxu0 0.0
    %3301 = vmatpush1.msra.mxu0 0.0
    %3302 = vmatprep.subr.mxu0 0.0
    %3303 = vmatpush1.msra.mxu0 0.0
    %3304 = vmatprep.subr.mxu0 0.0
    %3305 = vmatpush1.msra.mxu0 0.0
    %3306 = vmatprep.subr.mxu0 0.0
    %3307 = vmatpush1.msra.mxu0 0.0
    %3308 = vmatprep.subr.mxu0 0.0
    %3309 = vmatpush1.msra.mxu0 0.0
    %3310 = vmatprep.subr.mxu0 0.0
    %3311 = vmatpush1.msra.mxu0 0.0
    %3312 = vmatprep.subr.mxu0 0.0
    %3313 = vmatpush1.msra.mxu0 0.0
    %3314 = vmatprep.subr.mxu0 0.0
    %3315 = vmatpush1.msra.mxu0 0.0
    %3316 = vmatprep.subr.mxu0 0.0
    %3317 = vmatpush1.msra.mxu0 0.0
    %3318 = vmatprep.subr.mxu0 0.0
    %3319 = vmatpush1.msra.mxu0 0.0
    %3320 = vmatprep.subr.mxu0 0.0
    %3321 = vmatpush1.msra.mxu0 0.0
    %3322 = vmatprep.subr.mxu0 0.0
    %3323 = vmatpush1.msra.mxu0 0.0
    %3324 = vmatprep.subr.mxu0 0.0
    %3325 = vmatpush1.msra.mxu0 0.0
    %3326 = vmatprep.subr.mxu0 0.0
    %3327 = vmatpush1.msra.mxu0 0.0
    %3328 = vmatprep.subr.mxu0 0.0
    %3329 = vmatpush1.msra.mxu0 0.0
    %3330 = vmatprep.subr.mxu0 0.0
    %3331 = vmatpush1.msra.mxu0 0.0
    %3332 = vmatprep.subr.mxu0 0.0
    %3333 = vmatpush1.msra.mxu0 0.0
    %3334 = vmatprep.subr.mxu0 0.0
    %3335 = vmatpush1.msra.mxu0 0.0
    %3336 = vmatprep.subr.mxu0 0.0
    %3337 = vmatpush1.msra.mxu0 0.0
    %3338 = vmatprep.subr.mxu0 0.0
    %3339 = vmatpush1.msra.mxu0 0.0
    %3340 = vmatprep.subr.mxu0 0.0
    %3341 = vmatpush1.msra.mxu0 0.0
    %3342 = vmatprep.subr.mxu0 0.0
    %3343 = vmatpush1.msra.mxu0 0.0
    %3344 = vmatprep.subr.mxu0 0.0
    %3345 = vmatpush1.msra.mxu0 0.0
    %3346 = vmatprep.subr.mxu0 0.0
    %3347 = vmatpush1.msra.mxu0 0.0
    %3348 = vmatprep.mubr.f32.mxu0 0.0
    %3349 = vmatmul.mubr.f32.gmra.mrb[0].mxu0 %v3237
    %v3350 = vpop.f32.mrb[0].mxu0
    %v3351 = vadd.f32 0.0, %v3350
    %v3352 = vpop.f32.mrb[0].mxu0
    %3353 = vmatprep.mubr.f32.mxu0 0.0
    %3354 = vmatmul.mubr.f32.gmra.mrb[0].mxu0 %v3240
    %v3355 = vpop.f32.mrb[0].mxu0
    %v3356 = vadd.f32 0.0, %v3355
    %v3357 = vpop.f32.mrb[0].mxu0
    %3358 = vmatprep.mubr.f32.mxu0 0.0
    %3359 = vmatmul.mubr.f32.gmra.mrb[0].mxu0 %v3243
    %v3360 = vpop.f32.mrb[0].mxu0
    %v3361 = vadd.f32 0.0, %v3360
    %v3362 = vpop.f32.mrb[0].mxu0
    %3363 = vmatprep.mubr.f32.mxu0 0.0
    %3364 = vmatmul.mubr.f32.gmra.mrb[0].mxu0 %v3246
    %v3365 = vpop.f32.mrb[0].mxu0
    %v3366 = vadd.f32 0.0, %v3365
    %v3367 = vpop.f32.mrb[0].mxu0
    %3368 = vmatprep.mubr.f32.mxu0 0.0
    %3369 = vmatmul.mubr.f32.gmra.mrb[0].mxu0 %v3249
    %v3370 = vpop.f32.mrb[0].mxu0
    %v3371 = vadd.f32 0.0, %v3370
    %v3372 = vpop.f32.mrb[0].mxu0
    %3373 = vmatprep.mubr.f32.mxu0 0.0
    %3374 = vmatmul.mubr.f32.gmra.mrb[0].mxu0 %v3252
    %v3375 = vpop.f32.mrb[0].mxu0
    %v3376 = vadd.f32 0.0, %v3375
    %v3377 = vpop.f32.mrb[0].mxu0
    %3378 = vmatprep.mubr.f32.mxu0 0.0
    %3379 = vmatmul.mubr.f32.gmra.mrb[0].mxu0 %v3255
    %v3380 = vpop.f32.mrb[0].mxu0
    %v3381 = vadd.f32 0.0, %v3380
    %v3382 = vpop.f32.mrb[0].mxu0
    %3383 = vmatprep.mubr.f32.mxu0 0.0
    %3384 = vmatmul.mubr.f32.gmra.mrb[0].mxu0 %v3258
    %v3385 = vpop.f32.mrb[0].mxu0
    %v3386 = vadd.f32 0.0, %v3385
    %v3387 = vpop.f32.mrb[0].mxu0
    %3388 = vmatprep.mubr.f32.mxu0 0.0
    %3389 = vmatmul.mubr.f32.gmra.mrb[0].mxu0 %v3261
    %v3390 = vpop.f32.mrb[0].mxu0
    %v3391 = vadd.f32 0.0, %v3390
    %v3392 = vpop.f32.mrb[0].mxu0
    %3393 = vmatprep.mubr.f32.mxu0 0.0
    %3394 = vmatmul.mubr.f32.gmra.mrb[0].mxu0 %v3264
    %v3395 = vpop.f32.mrb[0].mxu0
    %v3396 = vadd.f32 0.0, %v3395
    %v3397 = vpop.f32.mrb[0].mxu0
    %3398 = vmatprep.mubr.f32.mxu0 0.0
    %3399 = vmatmul.mubr.f32.gmra.mrb[0].mxu0 %v3267
    %v3400 = vpop.f32.mrb[0].mxu0
    %v3401 = vadd.f32 0.0, %v3400
    %v3402 = vpop.f32.mrb[0].mxu0
    %3403 = vmatprep.mubr.f32.mxu0 0.0
    %3404 = vmatmul.mubr.f32.gmra.mrb[0].mxu0 %v3270
    %v3405 = vpop.f32.mrb[0].mxu0
    %v3406 = vadd.f32 0.0, %v3405
    %v3407 = vpop.f32.mrb[0].mxu0
    %3408 = vmatprep.mubr.f32.mxu0 0.0
    %3409 = vmatmul.mubr.f32.gmra.mrb[0].mxu0 %v3273
    %v3410 = vpop.f32.mrb[0].mxu0
    %v3411 = vadd.f32 0.0, %v3410
    %v3412 = vpop.f32.mrb[0].mxu0
    %3413 = vmatprep.mubr.f32.mxu0 0.0
    %3414 = vmatmul.mubr.f32.gmra.mrb[0].mxu0 %v3276
    %v3415 = vpop.f32.mrb[0].mxu0
    %v3416 = vadd.f32 0.0, %v3415
    %v3417 = vpop.f32.mrb[0].mxu0
    %3418 = vmatprep.mubr.f32.mxu0 0.0
    %3419 = vmatmul.mubr.f32.gmra.mrb[0].mxu0 %v3279
    %v3420 = vpop.f32.mrb[0].mxu0
    %v3421 = vadd.f32 0.0, %v3420
    %v3422 = vpop.f32.mrb[0].mxu0
    %3423 = vmatprep.mubr.f32.mxu0 0.0
    %3424 = vmatmul.mubr.f32.gmra.mrb[0].mxu0 %v3282
    %v3425 = vpop.f32.mrb[0].mxu0
    %v3426 = vadd.f32 0.0, %v3425
    %v3427 = vpop.f32.mrb[0].mxu0
    %3428 = vdwg.mxu0
    %v3429 = vadd.f32 %v3183, %v3351
    %v3430 = vadd.f32 %v3184, %v3356
    %v3431 = vadd.f32 %v3185, %v3361
    %v3432 = vadd.f32 %v3186, %v3366
    %v3433 = vadd.f32 %v3187, %v3371
    %v3434 = vadd.f32 %v3188, %v3376
    %v3435 = vadd.f32 %v3189, %v3381
    %v3436 = vadd.f32 %v3190, %v3386
    %v3437 = vadd.f32 %v3191, %v3391
    %v3438 = vadd.f32 %v3192, %v3396
    %v3439 = vadd.f32 %v3193, %v3401
    %v3440 = vadd.f32 %v3194, %v3406
    %v3441 = vadd.f32 %v3195, %v3411
    %v3442 = vadd.f32 %v3196, %v3416
    %v3443 = vadd.f32 %v3197, %v3421
    %v3444 = vadd.f32 %v3198, %v3426
    %v3445 = vld [vmem:[#allocation2 + $0x18] sm:$0xff]
    %v3446 = vld [vmem:[#allocation2 + $0x20] sm:$0xff]
    %v3447 = vld [vmem:[#allocation2 + $0x28] sm:$0xff]
    %v3448 = vld [vmem:[#allocation2 + $0x30] sm:$0xff]
    %v3449 = vld [vmem:[#allocation2 + $0x38] sm:$0xff]
    %v3450 = vld [vmem:[#allocation2 + $0x40] sm:$0xff]
    %v3451 = vld [vmem:[#allocation2 + $0x48] sm:$0xff]
    %v3452 = vld [vmem:[#allocation2 + $0x50] sm:$0xff]
    %v3453 = vld [vmem:[#allocation2 + $0x58] sm:$0xff]
    %v3454 = vld [vmem:[#allocation2 + $0x60] sm:$0xff]
    %v3455 = vld [vmem:[#allocation2 + $0x68] sm:$0xff]
    %v3456 = vld [vmem:[#allocation2 + $0x70] sm:$0xff]
    %v3457 = vld [vmem:[#allocation2 + $0x78] sm:$0xff]
    %v3458 = vld [vmem:[#allocation2 + $0x80] sm:$0xff]
    %v3459 = vld [vmem:[#allocation2 + $0x88] sm:$0xff]
    %v3460 = vld [vmem:[#allocation2 + $0x90] sm:$0xff]
    %v3461 = vmul.f32 %v957, %v3445
    %v3462 = vmul.f32 %v958, %v3446
    %v3463 = vmul.f32 %v959, %v3447
    %v3464 = vmul.f32 %v960, %v3448
    %v3465 = vmul.f32 %v961, %v3449
    %v3466 = vmul.f32 %v962, %v3450
    %v3467 = vmul.f32 %v963, %v3451
    %v3468 = vmul.f32 %v964, %v3452
    %v3469 = vmul.f32 %v965, %v3453
    %v3470 = vmul.f32 %v966, %v3454
    %v3471 = vmul.f32 %v967, %v3455
    %v3472 = vmul.f32 %v968, %v3456
    %v3473 = vmul.f32 %v969, %v3457
    %v3474 = vmul.f32 %v970, %v3458
    %v3475 = vmul.f32 %v971, %v3459
    %v3476 = vmul.f32 %v972, %v3460
    %s3477 = scalar_lea.vmem %s3, 224
    %v3478 = vld [vmem:[%s3477] sm:$0xff]
    %v3479 = vld [vmem:[%s3477 + $0x8] sm:$0xff]
    %v3480 = vld [vmem:[%s3477 + $0x10] sm:$0xff]
    %v3481 = vld [vmem:[%s3477 + $0x18] sm:$0xff]
    %v3483 = vsel %vm1037, %v3461, 0
    %v3486 = vsel %vm1037, %v3462, 0
    %v3489 = vsel %vm1037, %v3463, 0
    %v3492 = vsel %vm1037, %v3464, 0
    %v3495 = vsel %vm1037, %v3465, 0
    %v3498 = vsel %vm1037, %v3466, 0
    %v3501 = vsel %vm1037, %v3467, 0
    %v3504 = vsel %vm1037, %v3468, 0
    %v3507 = vsel %vm1037, %v3469, 0
    %v3510 = vsel %vm1037, %v3470, 0
    %v3513 = vsel %vm1037, %v3471, 0
    %v3516 = vsel %vm1037, %v3472, 0
    %v3519 = vsel %vm1037, %v3473, 0
    %v3522 = vsel %vm1037, %v3474, 0
    %v3525 = vsel %vm1037, %v3475, 0
    %v3528 = vsel %vm1037, %v3476, 0
    %3530 = vmatprep.subr.mxu0 0.0
    %3531 = vmatpush1.msra.mxu0 %v3478
    %3532 = vmatprep.subr.mxu0 0.0
    %3533 = vmatpush1.msra.mxu0 %v3479
    %3534 = vmatprep.subr.mxu0 0.0
    %3535 = vmatpush1.msra.mxu0 %v3480
    %3536 = vmatprep.subr.mxu0 0.0
    %3537 = vmatpush1.msra.mxu0 %v3481
    %3538 = vmatprep.subr.mxu0 0.0
    %3539 = vmatpush1.msra.mxu0 0.0
    %3540 = vmatprep.subr.mxu0 0.0
    %3541 = vmatpush1.msra.mxu0 0.0
    %3542 = vmatprep.subr.mxu0 0.0
    %3543 = vmatpush1.msra.mxu0 0.0
    %3544 = vmatprep.subr.mxu0 0.0
    %3545 = vmatpush1.msra.mxu0 0.0
    %3546 = vmatprep.subr.mxu0 0.0
    %3547 = vmatpush1.msra.mxu0 0.0
    %3548 = vmatprep.subr.mxu0 0.0
    %3549 = vmatpush1.msra.mxu0 0.0
    %3550 = vmatprep.subr.mxu0 0.0
    %3551 = vmatpush1.msra.mxu0 0.0
    %3552 = vmatprep.subr.mxu0 0.0
    %3553 = vmatpush1.msra.mxu0 0.0
    %3554 = vmatprep.subr.mxu0 0.0
    %3555 = vmatpush1.msra.mxu0 0.0
    %3556 = vmatprep.subr.mxu0 0.0
    %3557 = vmatpush1.msra.mxu0 0.0
    %3558 = vmatprep.subr.mxu0 0.0
    %3559 = vmatpush1.msra.mxu0 0.0
    %3560 = vmatprep.subr.mxu0 0.0
    %3561 = vmatpush1.msra.mxu0 0.0
    %3562 = vmatprep.subr.mxu0 0.0
    %3563 = vmatpush1.msra.mxu0 0.0
    %3564 = vmatprep.subr.mxu0 0.0
    %3565 = vmatpush1.msra.mxu0 0.0
    %3566 = vmatprep.subr.mxu0 0.0
    %3567 = vmatpush1.msra.mxu0 0.0
    %3568 = vmatprep.subr.mxu0 0.0
    %3569 = vmatpush1.msra.mxu0 0.0
    %3570 = vmatprep.subr.mxu0 0.0
    %3571 = vmatpush1.msra.mxu0 0.0
    %3572 = vmatprep.subr.mxu0 0.0
    %3573 = vmatpush1.msra.mxu0 0.0
    %3574 = vmatprep.subr.mxu0 0.0
    %3575 = vmatpush1.msra.mxu0 0.0
    %3576 = vmatprep.subr.mxu0 0.0
    %3577 = vmatpush1.msra.mxu0 0.0
    %3578 = vmatprep.subr.mxu0 0.0
    %3579 = vmatpush1.msra.mxu0 0.0
    %3580 = vmatprep.subr.mxu0 0.0
    %3581 = vmatpush1.msra.mxu0 0.0
    %3582 = vmatprep.subr.mxu0 0.0
    %3583 = vmatpush1.msra.mxu0 0.0
    %3584 = vmatprep.subr.mxu0 0.0
    %3585 = vmatpush1.msra.mxu0 0.0
    %3586 = vmatprep.subr.mxu0 0.0
    %3587 = vmatpush1.msra.mxu0 0.0
    %3588 = vmatprep.subr.mxu0 0.0
    %3589 = vmatpush1.msra.mxu0 0.0
    %3590 = vmatprep.subr.mxu0 0.0
    %3591 = vmatpush1.msra.mxu0 0.0
    %3592 = vmatprep.subr.mxu0 0.0
    %3593 = vmatpush1.msra.mxu0 0.0
    %3594 = vmatprep.mubr.f32.mxu0 0.0
    %3595 = vmatmul.mubr.f32.gmra.mrb[0].mxu0 %v3483
    %v3596 = vpop.f32.mrb[0].mxu0
    %v3597 = vadd.f32 0.0, %v3596
    %v3598 = vpop.f32.mrb[0].mxu0
    %3599 = vmatprep.mubr.f32.mxu0 0.0
    %3600 = vmatmul.mubr.f32.gmra.mrb[0].mxu0 %v3486
    %v3601 = vpop.f32.mrb[0].mxu0
    %v3602 = vadd.f32 0.0, %v3601
    %v3603 = vpop.f32.mrb[0].mxu0
    %3604 = vmatprep.mubr.f32.mxu0 0.0
    %3605 = vmatmul.mubr.f32.gmra.mrb[0].mxu0 %v3489
    %v3606 = vpop.f32.mrb[0].mxu0
    %v3607 = vadd.f32 0.0, %v3606
    %v3608 = vpop.f32.mrb[0].mxu0
    %3609 = vmatprep.mubr.f32.mxu0 0.0
    %3610 = vmatmul.mubr.f32.gmra.mrb[0].mxu0 %v3492
    %v3611 = vpop.f32.mrb[0].mxu0
    %v3612 = vadd.f32 0.0, %v3611
    %v3613 = vpop.f32.mrb[0].mxu0
    %3614 = vmatprep.mubr.f32.mxu0 0.0
    %3615 = vmatmul.mubr.f32.gmra.mrb[0].mxu0 %v3495
    %v3616 = vpop.f32.mrb[0].mxu0
    %v3617 = vadd.f32 0.0, %v3616
    %v3618 = vpop.f32.mrb[0].mxu0
    %3619 = vmatprep.mubr.f32.mxu0 0.0
    %3620 = vmatmul.mubr.f32.gmra.mrb[0].mxu0 %v3498
    %v3621 = vpop.f32.mrb[0].mxu0
    %v3622 = vadd.f32 0.0, %v3621
    %v3623 = vpop.f32.mrb[0].mxu0
    %3624 = vmatprep.mubr.f32.mxu0 0.0
    %3625 = vmatmul.mubr.f32.gmra.mrb[0].mxu0 %v3501
    %v3626 = vpop.f32.mrb[0].mxu0
    %v3627 = vadd.f32 0.0, %v3626
    %v3628 = vpop.f32.mrb[0].mxu0
    %3629 = vmatprep.mubr.f32.mxu0 0.0
    %3630 = vmatmul.mubr.f32.gmra.mrb[0].mxu0 %v3504
    %v3631 = vpop.f32.mrb[0].mxu0
    %v3632 = vadd.f32 0.0, %v3631
    %v3633 = vpop.f32.mrb[0].mxu0
    %3634 = vmatprep.mubr.f32.mxu0 0.0
    %3635 = vmatmul.mubr.f32.gmra.mrb[0].mxu0 %v3507
    %v3636 = vpop.f32.mrb[0].mxu0
    %v3637 = vadd.f32 0.0, %v3636
    %v3638 = vpop.f32.mrb[0].mxu0
    %3639 = vmatprep.mubr.f32.mxu0 0.0
    %3640 = vmatmul.mubr.f32.gmra.mrb[0].mxu0 %v3510
    %v3641 = vpop.f32.mrb[0].mxu0
    %v3642 = vadd.f32 0.0, %v3641
    %v3643 = vpop.f32.mrb[0].mxu0
    %3644 = vmatprep.mubr.f32.mxu0 0.0
    %3645 = vmatmul.mubr.f32.gmra.mrb[0].mxu0 %v3513
    %v3646 = vpop.f32.mrb[0].mxu0
    %v3647 = vadd.f32 0.0, %v3646
    %v3648 = vpop.f32.mrb[0].mxu0
    %3649 = vmatprep.mubr.f32.mxu0 0.0
    %3650 = vmatmul.mubr.f32.gmra.mrb[0].mxu0 %v3516
    %v3651 = vpop.f32.mrb[0].mxu0
    %v3652 = vadd.f32 0.0, %v3651
    %v3653 = vpop.f32.mrb[0].mxu0
    %3654 = vmatprep.mubr.f32.mxu0 0.0
    %3655 = vmatmul.mubr.f32.gmra.mrb[0].mxu0 %v3519
    %v3656 = vpop.f32.mrb[0].mxu0
    %v3657 = vadd.f32 0.0, %v3656
    %v3658 = vpop.f32.mrb[0].mxu0
    %3659 = vmatprep.mubr.f32.mxu0 0.0
    %3660 = vmatmul.mubr.f32.gmra.mrb[0].mxu0 %v3522
    %v3661 = vpop.f32.mrb[0].mxu0
    %v3662 = vadd.f32 0.0, %v3661
    %v3663 = vpop.f32.mrb[0].mxu0
    %3664 = vmatprep.mubr.f32.mxu0 0.0
    %3665 = vmatmul.mubr.f32.gmra.mrb[0].mxu0 %v3525
    %v3666 = vpop.f32.mrb[0].mxu0
    %v3667 = vadd.f32 0.0, %v3666
    %v3668 = vpop.f32.mrb[0].mxu0
    %3669 = vmatprep.mubr.f32.mxu0 0.0
    %3670 = vmatmul.mubr.f32.gmra.mrb[0].mxu0 %v3528
    %v3671 = vpop.f32.mrb[0].mxu0
    %v3672 = vadd.f32 0.0, %v3671
    %v3673 = vpop.f32.mrb[0].mxu0
    %3674 = vdwg.mxu0
    %v3675 = vadd.f32 %v3429, %v3597
    %v3676 = vadd.f32 %v3430, %v3602
    %v3677 = vadd.f32 %v3431, %v3607
    %v3678 = vadd.f32 %v3432, %v3612
    %v3679 = vadd.f32 %v3433, %v3617
    %v3680 = vadd.f32 %v3434, %v3622
    %v3681 = vadd.f32 %v3435, %v3627
    %v3682 = vadd.f32 %v3436, %v3632
    %v3683 = vadd.f32 %v3437, %v3637
    %v3684 = vadd.f32 %v3438, %v3642
    %v3685 = vadd.f32 %v3439, %v3647
    %v3686 = vadd.f32 %v3440, %v3652
    %v3687 = vadd.f32 %v3441, %v3657
    %v3688 = vadd.f32 %v3442, %v3662
    %v3689 = vadd.f32 %v3443, %v3667
    %v3690 = vadd.f32 %v3444, %v3672
    %v3691 = vld [vmem:[#allocation2 + $0x19] sm:$0xff]
    %v3692 = vld [vmem:[#allocation2 + $0x21] sm:$0xff]
    %v3693 = vld [vmem:[#allocation2 + $0x29] sm:$0xff]
    %v3694 = vld [vmem:[#allocation2 + $0x31] sm:$0xff]
    %v3695 = vld [vmem:[#allocation2 + $0x39] sm:$0xff]
    %v3696 = vld [vmem:[#allocation2 + $0x41] sm:$0xff]
    %v3697 = vld [vmem:[#allocation2 + $0x49] sm:$0xff]
    %v3698 = vld [vmem:[#allocation2 + $0x51] sm:$0xff]
    %v3699 = vld [vmem:[#allocation2 + $0x59] sm:$0xff]
    %v3700 = vld [vmem:[#allocation2 + $0x61] sm:$0xff]
    %v3701 = vld [vmem:[#allocation2 + $0x69] sm:$0xff]
    %v3702 = vld [vmem:[#allocation2 + $0x71] sm:$0xff]
    %v3703 = vld [vmem:[#allocation2 + $0x79] sm:$0xff]
    %v3704 = vld [vmem:[#allocation2 + $0x81] sm:$0xff]
    %v3705 = vld [vmem:[#allocation2 + $0x89] sm:$0xff]
    %v3706 = vld [vmem:[#allocation2 + $0x91] sm:$0xff]
    %v3707 = vmul.f32 %v1021, %v3691
    %v3708 = vmul.f32 %v1022, %v3692
    %v3709 = vmul.f32 %v1023, %v3693
    %v3710 = vmul.f32 %v1024, %v3694
    %v3711 = vmul.f32 %v1025, %v3695
    %v3712 = vmul.f32 %v1026, %v3696
    %v3713 = vmul.f32 %v1027, %v3697
    %v3714 = vmul.f32 %v1028, %v3698
    %v3715 = vmul.f32 %v1029, %v3699
    %v3716 = vmul.f32 %v1030, %v3700
    %v3717 = vmul.f32 %v1031, %v3701
    %v3718 = vmul.f32 %v1032, %v3702
    %v3719 = vmul.f32 %v1033, %v3703
    %v3720 = vmul.f32 %v1034, %v3704
    %v3721 = vmul.f32 %v1035, %v3705
    %v3722 = vmul.f32 %v1036, %v3706
    %s3723 = scalar_lea.vmem %s3, 256
    %v3724 = vld [vmem:[%s3723] sm:$0xff]
    %v3725 = vld [vmem:[%s3723 + $0x8] sm:$0xff]
    %v3726 = vld [vmem:[%s3723 + $0x10] sm:$0xff]
    %v3727 = vld [vmem:[%s3723 + $0x18] sm:$0xff]
    %v3729 = vsel %vm1037, %v3707, 0
    %v3732 = vsel %vm1037, %v3708, 0
    %v3735 = vsel %vm1037, %v3709, 0
    %v3738 = vsel %vm1037, %v3710, 0
    %v3741 = vsel %vm1037, %v3711, 0
    %v3744 = vsel %vm1037, %v3712, 0
    %v3747 = vsel %vm1037, %v3713, 0
    %v3750 = vsel %vm1037, %v3714, 0
    %v3753 = vsel %vm1037, %v3715, 0
    %v3756 = vsel %vm1037, %v3716, 0
    %v3759 = vsel %vm1037, %v3717, 0
    %v3762 = vsel %vm1037, %v3718, 0
    %v3765 = vsel %vm1037, %v3719, 0
    %v3768 = vsel %vm1037, %v3720, 0
    %v3771 = vsel %vm1037, %v3721, 0
    %v3774 = vsel %vm1037, %v3722, 0
    %3776 = vmatprep.subr.mxu0 0.0
    %3777 = vmatpush1.msra.mxu0 %v3724
    %3778 = vmatprep.subr.mxu0 0.0
    %3779 = vmatpush1.msra.mxu0 %v3725
    %3780 = vmatprep.subr.mxu0 0.0
    %3781 = vmatpush1.msra.mxu0 %v3726
    %3782 = vmatprep.subr.mxu0 0.0
    %3783 = vmatpush1.msra.mxu0 %v3727
    %3784 = vmatprep.subr.mxu0 0.0
    %3785 = vmatpush1.msra.mxu0 0.0
    %3786 = vmatprep.subr.mxu0 0.0
    %3787 = vmatpush1.msra.mxu0 0.0
    %3788 = vmatprep.subr.mxu0 0.0
    %3789 = vmatpush1.msra.mxu0 0.0
    %3790 = vmatprep.subr.mxu0 0.0
    %3791 = vmatpush1.msra.mxu0 0.0
    %3792 = vmatprep.subr.mxu0 0.0
    %3793 = vmatpush1.msra.mxu0 0.0
    %3794 = vmatprep.subr.mxu0 0.0
    %3795 = vmatpush1.msra.mxu0 0.0
    %3796 = vmatprep.subr.mxu0 0.0
    %3797 = vmatpush1.msra.mxu0 0.0
    %3798 = vmatprep.subr.mxu0 0.0
    %3799 = vmatpush1.msra.mxu0 0.0
    %3800 = vmatprep.subr.mxu0 0.0
    %3801 = vmatpush1.msra.mxu0 0.0
    %3802 = vmatprep.subr.mxu0 0.0
    %3803 = vmatpush1.msra.mxu0 0.0
    %3804 = vmatprep.subr.mxu0 0.0
    %3805 = vmatpush1.msra.mxu0 0.0
    %3806 = vmatprep.subr.mxu0 0.0
    %3807 = vmatpush1.msra.mxu0 0.0
    %3808 = vmatprep.subr.mxu0 0.0
    %3809 = vmatpush1.msra.mxu0 0.0
    %3810 = vmatprep.subr.mxu0 0.0
    %3811 = vmatpush1.msra.mxu0 0.0
    %3812 = vmatprep.subr.mxu0 0.0
    %3813 = vmatpush1.msra.mxu0 0.0
    %3814 = vmatprep.subr.mxu0 0.0
    %3815 = vmatpush1.msra.mxu0 0.0
    %3816 = vmatprep.subr.mxu0 0.0
    %3817 = vmatpush1.msra.mxu0 0.0
    %3818 = vmatprep.subr.mxu0 0.0
    %3819 = vmatpush1.msra.mxu0 0.0
    %3820 = vmatprep.subr.mxu0 0.0
    %3821 = vmatpush1.msra.mxu0 0.0
    %3822 = vmatprep.subr.mxu0 0.0
    %3823 = vmatpush1.msra.mxu0 0.0
    %3824 = vmatprep.subr.mxu0 0.0
    %3825 = vmatpush1.msra.mxu0 0.0
    %3826 = vmatprep.subr.mxu0 0.0
    %3827 = vmatpush1.msra.mxu0 0.0
    %3828 = vmatprep.subr.mxu0 0.0
    %3829 = vmatpush1.msra.mxu0 0.0
    %3830 = vmatprep.subr.mxu0 0.0
    %3831 = vmatpush1.msra.mxu0 0.0
    %3832 = vmatprep.subr.mxu0 0.0
    %3833 = vmatpush1.msra.mxu0 0.0
    %3834 = vmatprep.subr.mxu0 0.0
    %3835 = vmatpush1.msra.mxu0 0.0
    %3836 = vmatprep.subr.mxu0 0.0
    %3837 = vmatpush1.msra.mxu0 0.0
    %3838 = vmatprep.subr.mxu0 0.0
    %3839 = vmatpush1.msra.mxu0 0.0
    %3840 = vmatprep.mubr.f32.mxu0 0.0
    %3841 = vmatmul.mubr.f32.gmra.mrb[0].mxu0 %v3729
    %v3842 = vpop.f32.mrb[0].mxu0
    %v3843 = vadd.f32 0.0, %v3842
    %v3844 = vpop.f32.mrb[0].mxu0
    %3845 = vmatprep.mubr.f32.mxu0 0.0
    %3846 = vmatmul.mubr.f32.gmra.mrb[0].mxu0 %v3732
    %v3847 = vpop.f32.mrb[0].mxu0
    %v3848 = vadd.f32 0.0, %v3847
    %v3849 = vpop.f32.mrb[0].mxu0
    %3850 = vmatprep.mubr.f32.mxu0 0.0
    %3851 = vmatmul.mubr.f32.gmra.mrb[0].mxu0 %v3735
    %v3852 = vpop.f32.mrb[0].mxu0
    %v3853 = vadd.f32 0.0, %v3852
    %v3854 = vpop.f32.mrb[0].mxu0
    %3855 = vmatprep.mubr.f32.mxu0 0.0
    %3856 = vmatmul.mubr.f32.gmra.mrb[0].mxu0 %v3738
    %v3857 = vpop.f32.mrb[0].mxu0
    %v3858 = vadd.f32 0.0, %v3857
    %v3859 = vpop.f32.mrb[0].mxu0
    %3860 = vmatprep.mubr.f32.mxu0 0.0
    %3861 = vmatmul.mubr.f32.gmra.mrb[0].mxu0 %v3741
    %v3862 = vpop.f32.mrb[0].mxu0
    %v3863 = vadd.f32 0.0, %v3862
    %v3864 = vpop.f32.mrb[0].mxu0
    %3865 = vmatprep.mubr.f32.mxu0 0.0
    %3866 = vmatmul.mubr.f32.gmra.mrb[0].mxu0 %v3744
    %v3867 = vpop.f32.mrb[0].mxu0
    %v3868 = vadd.f32 0.0, %v3867
    %v3869 = vpop.f32.mrb[0].mxu0
    %3870 = vmatprep.mubr.f32.mxu0 0.0
    %3871 = vmatmul.mubr.f32.gmra.mrb[0].mxu0 %v3747
    %v3872 = vpop.f32.mrb[0].mxu0
    %v3873 = vadd.f32 0.0, %v3872
    %v3874 = vpop.f32.mrb[0].mxu0
    %3875 = vmatprep.mubr.f32.mxu0 0.0
    %3876 = vmatmul.mubr.f32.gmra.mrb[0].mxu0 %v3750
    %v3877 = vpop.f32.mrb[0].mxu0
    %v3878 = vadd.f32 0.0, %v3877
    %v3879 = vpop.f32.mrb[0].mxu0
    %3880 = vmatprep.mubr.f32.mxu0 0.0
    %3881 = vmatmul.mubr.f32.gmra.mrb[0].mxu0 %v3753
    %v3882 = vpop.f32.mrb[0].mxu0
    %v3883 = vadd.f32 0.0, %v3882
    %v3884 = vpop.f32.mrb[0].mxu0
    %3885 = vmatprep.mubr.f32.mxu0 0.0
    %3886 = vmatmul.mubr.f32.gmra.mrb[0].mxu0 %v3756
    %v3887 = vpop.f32.mrb[0].mxu0
    %v3888 = vadd.f32 0.0, %v3887
    %v3889 = vpop.f32.mrb[0].mxu0
    %3890 = vmatprep.mubr.f32.mxu0 0.0
    %3891 = vmatmul.mubr.f32.gmra.mrb[0].mxu0 %v3759
    %v3892 = vpop.f32.mrb[0].mxu0
    %v3893 = vadd.f32 0.0, %v3892
    %v3894 = vpop.f32.mrb[0].mxu0
    %3895 = vmatprep.mubr.f32.mxu0 0.0
    %3896 = vmatmul.mubr.f32.gmra.mrb[0].mxu0 %v3762
    %v3897 = vpop.f32.mrb[0].mxu0
    %v3898 = vadd.f32 0.0, %v3897
    %v3899 = vpop.f32.mrb[0].mxu0
    %3900 = vmatprep.mubr.f32.mxu0 0.0
    %3901 = vmatmul.mubr.f32.gmra.mrb[0].mxu0 %v3765
    %v3902 = vpop.f32.mrb[0].mxu0
    %v3903 = vadd.f32 0.0, %v3902
    %v3904 = vpop.f32.mrb[0].mxu0
    %3905 = vmatprep.mubr.f32.mxu0 0.0
    %3906 = vmatmul.mubr.f32.gmra.mrb[0].mxu0 %v3768
    %v3907 = vpop.f32.mrb[0].mxu0
    %v3908 = vadd.f32 0.0, %v3907
    %v3909 = vpop.f32.mrb[0].mxu0
    %3910 = vmatprep.mubr.f32.mxu0 0.0
    %3911 = vmatmul.mubr.f32.gmra.mrb[0].mxu0 %v3771
    %v3912 = vpop.f32.mrb[0].mxu0
    %v3913 = vadd.f32 0.0, %v3912
    %v3914 = vpop.f32.mrb[0].mxu0
    %3915 = vmatprep.mubr.f32.mxu0 0.0
    %3916 = vmatmul.mubr.f32.gmra.mrb[0].mxu0 %v3774
    %v3917 = vpop.f32.mrb[0].mxu0
    %v3918 = vadd.f32 0.0, %v3917
    %v3919 = vpop.f32.mrb[0].mxu0
    %3920 = vdwg.mxu0
    %v3921 = vadd.f32 %v3675, %v3843
    %v3922 = vadd.f32 %v3676, %v3848
    %v3923 = vadd.f32 %v3677, %v3853
    %v3924 = vadd.f32 %v3678, %v3858
    %v3925 = vadd.f32 %v3679, %v3863
    %v3926 = vadd.f32 %v3680, %v3868
    %v3927 = vadd.f32 %v3681, %v3873
    %v3928 = vadd.f32 %v3682, %v3878
    %v3929 = vadd.f32 %v3683, %v3883
    %v3930 = vadd.f32 %v3684, %v3888
    %v3931 = vadd.f32 %v3685, %v3893
    %v3932 = vadd.f32 %v3686, %v3898
    %v3933 = vadd.f32 %v3687, %v3903
    %v3934 = vadd.f32 %v3688, %v3908
    %v3935 = vadd.f32 %v3689, %v3913
    %v3936 = vadd.f32 %v3690, %v3918
    %v3937 = vld [vmem:[#allocation5] sm:$0x1]
    %v3939 = vlaneseq
    %v3940 = vshrl.u32 %v3939, 7
    %v3941 = vsub.s32 0, %v3940
    %v3942 = vrot.slane %v3937, %v3941
    %v3944 = vadd.f32 %v3921, %v3942
    %v3945 = vadd.f32 %v3922, %v3942
    %v3946 = vadd.f32 %v3923, %v3942
    %v3947 = vadd.f32 %v3924, %v3942
    %v3948 = vadd.f32 %v3925, %v3942
    %v3949 = vadd.f32 %v3926, %v3942
    %v3950 = vadd.f32 %v3927, %v3942
    %v3951 = vadd.f32 %v3928, %v3942
    %v3952 = vadd.f32 %v3929, %v3942
    %v3953 = vadd.f32 %v3930, %v3942
    %v3954 = vadd.f32 %v3931, %v3942
    %v3955 = vadd.f32 %v3932, %v3942
    %v3956 = vadd.f32 %v3933, %v3942
    %v3957 = vadd.f32 %v3934, %v3942
    %v3958 = vadd.f32 %v3935, %v3942
    %v3959 = vadd.f32 %v3936, %v3942
    %v3960 = vmax.f32 %v3944, 0.0
    %v3961 = vmax.f32 %v3945, 0.0
    %v3962 = vmax.f32 %v3946, 0.0
    %v3963 = vmax.f32 %v3947, 0.0
    %v3964 = vmax.f32 %v3948, 0.0
    %v3965 = vmax.f32 %v3949, 0.0
    %v3966 = vmax.f32 %v3950, 0.0
    %v3967 = vmax.f32 %v3951, 0.0
    %v3968 = vmax.f32 %v3952, 0.0
    %v3969 = vmax.f32 %v3953, 0.0
    %v3970 = vmax.f32 %v3954, 0.0
    %v3971 = vmax.f32 %v3955, 0.0
    %v3972 = vmax.f32 %v3956, 0.0
    %v3973 = vmax.f32 %v3957, 0.0
    %v3974 = vmax.f32 %v3958, 0.0
    %v3975 = vmax.f32 %v3959, 0.0
    %3976 = vst.msk [vmem:[#allocation2 + $0x10] sm:$0xff] %vm1037, %v3960
    %3977 = vst.msk [vmem:[#allocation2 + $0x18] sm:$0xff] %vm1037, %v3961
    %3978 = vst.msk [vmem:[#allocation2 + $0x20] sm:$0xff] %vm1037, %v3962
    %3979 = vst.msk [vmem:[#allocation2 + $0x28] sm:$0xff] %vm1037, %v3963
    %3980 = vst.msk [vmem:[#allocation2 + $0x30] sm:$0xff] %vm1037, %v3964
    %3981 = vst.msk [vmem:[#allocation2 + $0x38] sm:$0xff] %vm1037, %v3965
    %3982 = vst.msk [vmem:[#allocation2 + $0x40] sm:$0xff] %vm1037, %v3966
    %3983 = vst.msk [vmem:[#allocation2 + $0x48] sm:$0xff] %vm1037, %v3967
    %3984 = vst.msk [vmem:[#allocation2 + $0x50] sm:$0xff] %vm1037, %v3968
    %3985 = vst.msk [vmem:[#allocation2 + $0x58] sm:$0xff] %vm1037, %v3969
    %3986 = vst.msk [vmem:[#allocation2 + $0x60] sm:$0xff] %vm1037, %v3970
    %3987 = vst.msk [vmem:[#allocation2 + $0x68] sm:$0xff] %vm1037, %v3971
    %3988 = vst.msk [vmem:[#allocation2 + $0x70] sm:$0xff] %vm1037, %v3972
    %3989 = vst.msk [vmem:[#allocation2 + $0x78] sm:$0xff] %vm1037, %v3973
    %3990 = vst.msk [vmem:[#allocation2 + $0x80] sm:$0xff] %vm1037, %v3974
    %3991 = vst.msk [vmem:[#allocation2 + $0x88] sm:$0xff] %vm1037, %v3975
    %v3992 = vld [vmem:[#allocation2 + $0x7] sm:$0xff]
    %v3993 = vld [vmem:[#allocation2 + $0xf] sm:$0xff]
    %v3994 = vld [vmem:[#allocation2 + $0x17] sm:$0xff]
    %v3995 = vld [vmem:[#allocation2 + $0x1f] sm:$0xff]
    %v3996 = vld [vmem:[#allocation2 + $0x27] sm:$0xff]
    %v3997 = vld [vmem:[#allocation2 + $0x2f] sm:$0xff]
    %v3998 = vld [vmem:[#allocation2 + $0x37] sm:$0xff]
    %v3999 = vld [vmem:[#allocation2 + $0x3f] sm:$0xff]
    %v4000 = vld [vmem:[#allocation2 + $0x47] sm:$0xff]
    %v4001 = vld [vmem:[#allocation2 + $0x4f] sm:$0xff]
    %v4002 = vld [vmem:[#allocation2 + $0x57] sm:$0xff]
    %v4003 = vld [vmem:[#allocation2 + $0x5f] sm:$0xff]
    %v4004 = vld [vmem:[#allocation2 + $0x67] sm:$0xff]
    %v4005 = vld [vmem:[#allocation2 + $0x6f] sm:$0xff]
    %v4006 = vld [vmem:[#allocation2 + $0x77] sm:$0xff]
    %v4007 = vld [vmem:[#allocation2 + $0x7f] sm:$0xff]
    %v4008 = vmul.f32 %v317, %v3992
    %v4009 = vmul.f32 %v318, %v3993
    %v4010 = vmul.f32 %v319, %v3994
    %v4011 = vmul.f32 %v320, %v3995
    %v4012 = vmul.f32 %v321, %v3996
    %v4013 = vmul.f32 %v322, %v3997
    %v4014 = vmul.f32 %v323, %v3998
    %v4015 = vmul.f32 %v324, %v3999
    %v4016 = vmul.f32 %v325, %v4000
    %v4017 = vmul.f32 %v326, %v4001
    %v4018 = vmul.f32 %v327, %v4002
    %v4019 = vmul.f32 %v328, %v4003
    %v4020 = vmul.f32 %v329, %v4004
    %v4021 = vmul.f32 %v330, %v4005
    %v4022 = vmul.f32 %v331, %v4006
    %v4023 = vmul.f32 %v332, %v4007
    %v4024 = vld [vmem:[#allocation7] sm:$0xff]
    %v4025 = vld [vmem:[#allocation7 + $0x8] sm:$0xff]
    %v4026 = vld [vmem:[#allocation7 + $0x10] sm:$0xff]
    %v4027 = vld [vmem:[#allocation7 + $0x18] sm:$0xff]
    %v4028 = vld [vmem:[#allocation2 + $0x8] sm:$0xff]
    %v4029 = vld [vmem:[#allocation2 + $0x10] sm:$0xff]
    %v4030 = vld [vmem:[#allocation2 + $0x18] sm:$0xff]
    %v4031 = vld [vmem:[#allocation2 + $0x20] sm:$0xff]
    %v4032 = vld [vmem:[#allocation2 + $0x28] sm:$0xff]
    %v4033 = vld [vmem:[#allocation2 + $0x30] sm:$0xff]
    %v4034 = vld [vmem:[#allocation2 + $0x38] sm:$0xff]
    %v4035 = vld [vmem:[#allocation2 + $0x40] sm:$0xff]
    %v4036 = vld [vmem:[#allocation2 + $0x48] sm:$0xff]
    %v4037 = vld [vmem:[#allocation2 + $0x50] sm:$0xff]
    %v4038 = vld [vmem:[#allocation2 + $0x58] sm:$0xff]
    %v4039 = vld [vmem:[#allocation2 + $0x60] sm:$0xff]
    %v4040 = vld [vmem:[#allocation2 + $0x68] sm:$0xff]
    %v4041 = vld [vmem:[#allocation2 + $0x70] sm:$0xff]
    %v4042 = vld [vmem:[#allocation2 + $0x78] sm:$0xff]
    %v4043 = vld [vmem:[#allocation2 + $0x80] sm:$0xff]
    %v4044 = vmul.f32 %v413, %v4028
    %v4045 = vmul.f32 %v414, %v4029
    %v4046 = vmul.f32 %v415, %v4030
    %v4047 = vmul.f32 %v416, %v4031
    %v4048 = vmul.f32 %v417, %v4032
    %v4049 = vmul.f32 %v418, %v4033
    %v4050 = vmul.f32 %v419, %v4034
    %v4051 = vmul.f32 %v420, %v4035
    %v4052 = vmul.f32 %v421, %v4036
    %v4053 = vmul.f32 %v422, %v4037
    %v4054 = vmul.f32 %v423, %v4038
    %v4055 = vmul.f32 %v424, %v4039
    %v4056 = vmul.f32 %v425, %v4040
    %v4057 = vmul.f32 %v426, %v4041
    %v4058 = vmul.f32 %v427, %v4042
    %v4059 = vmul.f32 %v428, %v4043
    %s4060 = scalar_lea.vmem [#allocation7], 32
    %v4061 = vld [vmem:[%s4060] sm:$0xff]
    %v4062 = vld [vmem:[%s4060 + $0x8] sm:$0xff]
    %v4063 = vld [vmem:[%s4060 + $0x10] sm:$0xff]
    %v4064 = vld [vmem:[%s4060 + $0x18] sm:$0xff]
    %v4066 = vsel %vm1037, %v4044, 0
    %v4069 = vsel %vm1037, %v4045, 0
    %v4072 = vsel %vm1037, %v4046, 0
    %v4075 = vsel %vm1037, %v4047, 0
    %v4078 = vsel %vm1037, %v4048, 0
    %v4081 = vsel %vm1037, %v4049, 0
    %v4084 = vsel %vm1037, %v4050, 0
    %v4087 = vsel %vm1037, %v4051, 0
    %v4090 = vsel %vm1037, %v4052, 0
    %v4093 = vsel %vm1037, %v4053, 0
    %v4096 = vsel %vm1037, %v4054, 0
    %v4099 = vsel %vm1037, %v4055, 0
    %v4102 = vsel %vm1037, %v4056, 0
    %v4105 = vsel %vm1037, %v4057, 0
    %v4108 = vsel %vm1037, %v4058, 0
    %v4111 = vsel %vm1037, %v4059, 0
    %4113 = vmatprep.subr.mxu0 0.0
    %4114 = vmatpush1.msra.mxu0 %v4061
    %4115 = vmatprep.subr.mxu0 0.0
    %4116 = vmatpush1.msra.mxu0 %v4062
    %4117 = vmatprep.subr.mxu0 0.0
    %4118 = vmatpush1.msra.mxu0 %v4063
    %4119 = vmatprep.subr.mxu0 0.0
    %4120 = vmatpush1.msra.mxu0 %v4064
    %4121 = vmatprep.subr.mxu0 0.0
    %4122 = vmatpush1.msra.mxu0 0.0
    %4123 = vmatprep.subr.mxu0 0.0
    %4124 = vmatpush1.msra.mxu0 0.0
    %4125 = vmatprep.subr.mxu0 0.0
    %4126 = vmatpush1.msra.mxu0 0.0
    %4127 = vmatprep.subr.mxu0 0.0
    %4128 = vmatpush1.msra.mxu0 0.0
    %4129 = vmatprep.subr.mxu0 0.0
    %4130 = vmatpush1.msra.mxu0 0.0
    %4131 = vmatprep.subr.mxu0 0.0
    %4132 = vmatpush1.msra.mxu0 0.0
    %4133 = vmatprep.subr.mxu0 0.0
    %4134 = vmatpush1.msra.mxu0 0.0
    %4135 = vmatprep.subr.mxu0 0.0
    %4136 = vmatpush1.msra.mxu0 0.0
    %4137 = vmatprep.subr.mxu0 0.0
    %4138 = vmatpush1.msra.mxu0 0.0
    %4139 = vmatprep.subr.mxu0 0.0
    %4140 = vmatpush1.msra.mxu0 0.0
    %4141 = vmatprep.subr.mxu0 0.0
    %4142 = vmatpush1.msra.mxu0 0.0
    %4143 = vmatprep.subr.mxu0 0.0
    %4144 = vmatpush1.msra.mxu0 0.0
    %4145 = vmatprep.subr.mxu0 0.0
    %4146 = vmatpush1.msra.mxu0 0.0
    %4147 = vmatprep.subr.mxu0 0.0
    %4148 = vmatpush1.msra.mxu0 0.0
    %4149 = vmatprep.subr.mxu0 0.0
    %4150 = vmatpush1.msra.mxu0 0.0
    %4151 = vmatprep.subr.mxu0 0.0
    %4152 = vmatpush1.msra.mxu0 0.0
    %4153 = vmatprep.subr.mxu0 0.0
    %4154 = vmatpush1.msra.mxu0 0.0
    %4155 = vmatprep.subr.mxu0 0.0
    %4156 = vmatpush1.msra.mxu0 0.0
    %4157 = vmatprep.subr.mxu0 0.0
    %4158 = vmatpush1.msra.mxu0 0.0
    %4159 = vmatprep.subr.mxu0 0.0
    %4160 = vmatpush1.msra.mxu0 0.0
    %4161 = vmatprep.subr.mxu0 0.0
    %4162 = vmatpush1.msra.mxu0 0.0
    %4163 = vmatprep.subr.mxu0 0.0
    %4164 = vmatpush1.msra.mxu0 0.0
    %4165 = vmatprep.subr.mxu0 0.0
    %4166 = vmatpush1.msra.mxu0 0.0
    %4167 = vmatprep.subr.mxu0 0.0
    %4168 = vmatpush1.msra.mxu0 0.0
    %4169 = vmatprep.subr.mxu0 0.0
    %4170 = vmatpush1.msra.mxu0 0.0
    %4171 = vmatprep.subr.mxu0 0.0
    %4172 = vmatpush1.msra.mxu0 0.0
    %4173 = vmatprep.subr.mxu0 0.0
    %4174 = vmatpush1.msra.mxu0 0.0
    %4175 = vmatprep.subr.mxu0 0.0
    %4176 = vmatpush1.msra.mxu0 0.0
    %4177 = vmatprep.mubr.f32.mxu0 0.0
    %4178 = vmatmul.mubr.f32.gmra.mrb[0].mxu0 %v4066
    %v4179 = vpop.f32.mrb[0].mxu0
    %v4180 = vadd.f32 0.0, %v4179
    %v4181 = vpop.f32.mrb[0].mxu0
    %4182 = vmatprep.mubr.f32.mxu0 0.0
    %4183 = vmatmul.mubr.f32.gmra.mrb[0].mxu0 %v4069
    %v4184 = vpop.f32.mrb[0].mxu0
    %v4185 = vadd.f32 0.0, %v4184
    %v4186 = vpop.f32.mrb[0].mxu0
    %4187 = vmatprep.mubr.f32.mxu0 0.0
    %4188 = vmatmul.mubr.f32.gmra.mrb[0].mxu0 %v4072
    %v4189 = vpop.f32.mrb[0].mxu0
    %v4190 = vadd.f32 0.0, %v4189
    %v4191 = vpop.f32.mrb[0].mxu0
    %4192 = vmatprep.mubr.f32.mxu0 0.0
    %4193 = vmatmul.mubr.f32.gmra.mrb[0].mxu0 %v4075
    %v4194 = vpop.f32.mrb[0].mxu0
    %v4195 = vadd.f32 0.0, %v4194
    %v4196 = vpop.f32.mrb[0].mxu0
    %4197 = vmatprep.mubr.f32.mxu0 0.0
    %4198 = vmatmul.mubr.f32.gmra.mrb[0].mxu0 %v4078
    %v4199 = vpop.f32.mrb[0].mxu0
    %v4200 = vadd.f32 0.0, %v4199
    %v4201 = vpop.f32.mrb[0].mxu0
    %4202 = vmatprep.mubr.f32.mxu0 0.0
    %4203 = vmatmul.mubr.f32.gmra.mrb[0].mxu0 %v4081
    %v4204 = vpop.f32.mrb[0].mxu0
    %v4205 = vadd.f32 0.0, %v4204
    %v4206 = vpop.f32.mrb[0].mxu0
    %4207 = vmatprep.mubr.f32.mxu0 0.0
    %4208 = vmatmul.mubr.f32.gmra.mrb[0].mxu0 %v4084
    %v4209 = vpop.f32.mrb[0].mxu0
    %v4210 = vadd.f32 0.0, %v4209
    %v4211 = vpop.f32.mrb[0].mxu0
    %4212 = vmatprep.mubr.f32.mxu0 0.0
    %4213 = vmatmul.mubr.f32.gmra.mrb[0].mxu0 %v4087
    %v4214 = vpop.f32.mrb[0].mxu0
    %v4215 = vadd.f32 0.0, %v4214
    %v4216 = vpop.f32.mrb[0].mxu0
    %4217 = vmatprep.mubr.f32.mxu0 0.0
    %4218 = vmatmul.mubr.f32.gmra.mrb[0].mxu0 %v4090
    %v4219 = vpop.f32.mrb[0].mxu0
    %v4220 = vadd.f32 0.0, %v4219
    %v4221 = vpop.f32.mrb[0].mxu0
    %4222 = vmatprep.mubr.f32.mxu0 0.0
    %4223 = vmatmul.mubr.f32.gmra.mrb[0].mxu0 %v4093
    %v4224 = vpop.f32.mrb[0].mxu0
    %v4225 = vadd.f32 0.0, %v4224
    %v4226 = vpop.f32.mrb[0].mxu0
    %4227 = vmatprep.mubr.f32.mxu0 0.0
    %4228 = vmatmul.mubr.f32.gmra.mrb[0].mxu0 %v4096
    %v4229 = vpop.f32.mrb[0].mxu0
    %v4230 = vadd.f32 0.0, %v4229
    %v4231 = vpop.f32.mrb[0].mxu0
    %4232 = vmatprep.mubr.f32.mxu0 0.0
    %4233 = vmatmul.mubr.f32.gmra.mrb[0].mxu0 %v4099
    %v4234 = vpop.f32.mrb[0].mxu0
    %v4235 = vadd.f32 0.0, %v4234
    %v4236 = vpop.f32.mrb[0].mxu0
    %4237 = vmatprep.mubr.f32.mxu0 0.0
    %4238 = vmatmul.mubr.f32.gmra.mrb[0].mxu0 %v4102
    %v4239 = vpop.f32.mrb[0].mxu0
    %v4240 = vadd.f32 0.0, %v4239
    %v4241 = vpop.f32.mrb[0].mxu0
    %4242 = vmatprep.mubr.f32.mxu0 0.0
    %4243 = vmatmul.mubr.f32.gmra.mrb[0].mxu0 %v4105
    %v4244 = vpop.f32.mrb[0].mxu0
    %v4245 = vadd.f32 0.0, %v4244
    %v4246 = vpop.f32.mrb[0].mxu0
    %4247 = vmatprep.mubr.f32.mxu0 0.0
    %4248 = vmatmul.mubr.f32.gmra.mrb[0].mxu0 %v4108
    %v4249 = vpop.f32.mrb[0].mxu0
    %v4250 = vadd.f32 0.0, %v4249
    %v4251 = vpop.f32.mrb[0].mxu0
    %4252 = vmatprep.mubr.f32.mxu0 0.0
    %4253 = vmatmul.mubr.f32.gmra.mrb[0].mxu0 %v4111
    %v4254 = vpop.f32.mrb[0].mxu0
    %v4255 = vadd.f32 0.0, %v4254
    %v4256 = vpop.f32.mrb[0].mxu0
    %4257 = vdwg.mxu0
    %v4259 = vsel %vm1037, %v4008, 0
    %v4262 = vsel %vm1037, %v4009, 0
    %v4265 = vsel %vm1037, %v4010, 0
    %v4268 = vsel %vm1037, %v4011, 0
    %v4271 = vsel %vm1037, %v4012, 0
    %v4274 = vsel %vm1037, %v4013, 0
    %v4277 = vsel %vm1037, %v4014, 0
    %v4280 = vsel %vm1037, %v4015, 0
    %v4283 = vsel %vm1037, %v4016, 0
    %v4286 = vsel %vm1037, %v4017, 0
    %v4289 = vsel %vm1037, %v4018, 0
    %v4292 = vsel %vm1037, %v4019, 0
    %v4295 = vsel %vm1037, %v4020, 0
    %v4298 = vsel %vm1037, %v4021, 0
    %v4301 = vsel %vm1037, %v4022, 0
    %v4304 = vsel %vm1037, %v4023, 0
    %4306 = vmatprep.subr.mxu0 0.0
    %4307 = vmatpush1.msra.mxu0 %v4024
    %4308 = vmatprep.subr.mxu0 0.0
    %4309 = vmatpush1.msra.mxu0 %v4025
    %4310 = vmatprep.subr.mxu0 0.0
    %4311 = vmatpush1.msra.mxu0 %v4026
    %4312 = vmatprep.subr.mxu0 0.0
    %4313 = vmatpush1.msra.mxu0 %v4027
    %4314 = vmatprep.subr.mxu0 0.0
    %4315 = vmatpush1.msra.mxu0 0.0
    %4316 = vmatprep.subr.mxu0 0.0
    %4317 = vmatpush1.msra.mxu0 0.0
    %4318 = vmatprep.subr.mxu0 0.0
    %4319 = vmatpush1.msra.mxu0 0.0
    %4320 = vmatprep.subr.mxu0 0.0
    %4321 = vmatpush1.msra.mxu0 0.0
    %4322 = vmatprep.subr.mxu0 0.0
    %4323 = vmatpush1.msra.mxu0 0.0
    %4324 = vmatprep.subr.mxu0 0.0
    %4325 = vmatpush1.msra.mxu0 0.0
    %4326 = vmatprep.subr.mxu0 0.0
    %4327 = vmatpush1.msra.mxu0 0.0
    %4328 = vmatprep.subr.mxu0 0.0
    %4329 = vmatpush1.msra.mxu0 0.0
    %4330 = vmatprep.subr.mxu0 0.0
    %4331 = vmatpush1.msra.mxu0 0.0
    %4332 = vmatprep.subr.mxu0 0.0
    %4333 = vmatpush1.msra.mxu0 0.0
    %4334 = vmatprep.subr.mxu0 0.0
    %4335 = vmatpush1.msra.mxu0 0.0
    %4336 = vmatprep.subr.mxu0 0.0
    %4337 = vmatpush1.msra.mxu0 0.0
    %4338 = vmatprep.subr.mxu0 0.0
    %4339 = vmatpush1.msra.mxu0 0.0
    %4340 = vmatprep.subr.mxu0 0.0
    %4341 = vmatpush1.msra.mxu0 0.0
    %4342 = vmatprep.subr.mxu0 0.0
    %4343 = vmatpush1.msra.mxu0 0.0
    %4344 = vmatprep.subr.mxu0 0.0
    %4345 = vmatpush1.msra.mxu0 0.0
    %4346 = vmatprep.subr.mxu0 0.0
    %4347 = vmatpush1.msra.mxu0 0.0
    %4348 = vmatprep.subr.mxu0 0.0
    %4349 = vmatpush1.msra.mxu0 0.0
    %4350 = vmatprep.subr.mxu0 0.0
    %4351 = vmatpush1.msra.mxu0 0.0
    %4352 = vmatprep.subr.mxu0 0.0
    %4353 = vmatpush1.msra.mxu0 0.0
    %4354 = vmatprep.subr.mxu0 0.0
    %4355 = vmatpush1.msra.mxu0 0.0
    %4356 = vmatprep.subr.mxu0 0.0
    %4357 = vmatpush1.msra.mxu0 0.0
    %4358 = vmatprep.subr.mxu0 0.0
    %4359 = vmatpush1.msra.mxu0 0.0
    %4360 = vmatprep.subr.mxu0 0.0
    %4361 = vmatpush1.msra.mxu0 0.0
    %4362 = vmatprep.subr.mxu0 0.0
    %4363 = vmatpush1.msra.mxu0 0.0
    %4364 = vmatprep.subr.mxu0 0.0
    %4365 = vmatpush1.msra.mxu0 0.0
    %4366 = vmatprep.subr.mxu0 0.0
    %4367 = vmatpush1.msra.mxu0 0.0
    %4368 = vmatprep.subr.mxu0 0.0
    %4369 = vmatpush1.msra.mxu0 0.0
    %4370 = vmatprep.mubr.f32.mxu0 0.0
    %4371 = vmatmul.mubr.f32.gmra.mrb[0].mxu0 %v4259
    %v4372 = vpop.f32.mrb[0].mxu0
    %v4373 = vadd.f32 %v4180, %v4372
    %v4374 = vpop.f32.mrb[0].mxu0
    %4375 = vmatprep.mubr.f32.mxu0 0.0
    %4376 = vmatmul.mubr.f32.gmra.mrb[0].mxu0 %v4262
    %v4377 = vpop.f32.mrb[0].mxu0
    %v4378 = vadd.f32 %v4185, %v4377
    %v4379 = vpop.f32.mrb[0].mxu0
    %4380 = vmatprep.mubr.f32.mxu0 0.0
    %4381 = vmatmul.mubr.f32.gmra.mrb[0].mxu0 %v4265
    %v4382 = vpop.f32.mrb[0].mxu0
    %v4383 = vadd.f32 %v4190, %v4382
    %v4384 = vpop.f32.mrb[0].mxu0
    %4385 = vmatprep.mubr.f32.mxu0 0.0
    %4386 = vmatmul.mubr.f32.gmra.mrb[0].mxu0 %v4268
    %v4387 = vpop.f32.mrb[0].mxu0
    %v4388 = vadd.f32 %v4195, %v4387
    %v4389 = vpop.f32.mrb[0].mxu0
    %4390 = vmatprep.mubr.f32.mxu0 0.0
    %4391 = vmatmul.mubr.f32.gmra.mrb[0].mxu0 %v4271
    %v4392 = vpop.f32.mrb[0].mxu0
    %v4393 = vadd.f32 %v4200, %v4392
    %v4394 = vpop.f32.mrb[0].mxu0
    %4395 = vmatprep.mubr.f32.mxu0 0.0
    %4396 = vmatmul.mubr.f32.gmra.mrb[0].mxu0 %v4274
    %v4397 = vpop.f32.mrb[0].mxu0
    %v4398 = vadd.f32 %v4205, %v4397
    %v4399 = vpop.f32.mrb[0].mxu0
    %4400 = vmatprep.mubr.f32.mxu0 0.0
    %4401 = vmatmul.mubr.f32.gmra.mrb[0].mxu0 %v4277
    %v4402 = vpop.f32.mrb[0].mxu0
    %v4403 = vadd.f32 %v4210, %v4402
    %v4404 = vpop.f32.mrb[0].mxu0
    %4405 = vmatprep.mubr.f32.mxu0 0.0
    %4406 = vmatmul.mubr.f32.gmra.mrb[0].mxu0 %v4280
    %v4407 = vpop.f32.mrb[0].mxu0
    %v4408 = vadd.f32 %v4215, %v4407
    %v4409 = vpop.f32.mrb[0].mxu0
    %4410 = vmatprep.mubr.f32.mxu0 0.0
    %4411 = vmatmul.mubr.f32.gmra.mrb[0].mxu0 %v4283
    %v4412 = vpop.f32.mrb[0].mxu0
    %v4413 = vadd.f32 %v4220, %v4412
    %v4414 = vpop.f32.mrb[0].mxu0
    %4415 = vmatprep.mubr.f32.mxu0 0.0
    %4416 = vmatmul.mubr.f32.gmra.mrb[0].mxu0 %v4286
    %v4417 = vpop.f32.mrb[0].mxu0
    %v4418 = vadd.f32 %v4225, %v4417
    %v4419 = vpop.f32.mrb[0].mxu0
    %4420 = vmatprep.mubr.f32.mxu0 0.0
    %4421 = vmatmul.mubr.f32.gmra.mrb[0].mxu0 %v4289
    %v4422 = vpop.f32.mrb[0].mxu0
    %v4423 = vadd.f32 %v4230, %v4422
    %v4424 = vpop.f32.mrb[0].mxu0
    %4425 = vmatprep.mubr.f32.mxu0 0.0
    %4426 = vmatmul.mubr.f32.gmra.mrb[0].mxu0 %v4292
    %v4427 = vpop.f32.mrb[0].mxu0
    %v4428 = vadd.f32 %v4235, %v4427
    %v4429 = vpop.f32.mrb[0].mxu0
    %4430 = vmatprep.mubr.f32.mxu0 0.0
    %4431 = vmatmul.mubr.f32.gmra.mrb[0].mxu0 %v4295
    %v4432 = vpop.f32.mrb[0].mxu0
    %v4433 = vadd.f32 %v4240, %v4432
    %v4434 = vpop.f32.mrb[0].mxu0
    %4435 = vmatprep.mubr.f32.mxu0 0.0
    %4436 = vmatmul.mubr.f32.gmra.mrb[0].mxu0 %v4298
    %v4437 = vpop.f32.mrb[0].mxu0
    %v4438 = vadd.f32 %v4245, %v4437
    %v4439 = vpop.f32.mrb[0].mxu0
    %4440 = vmatprep.mubr.f32.mxu0 0.0
    %4441 = vmatmul.mubr.f32.gmra.mrb[0].mxu0 %v4301
    %v4442 = vpop.f32.mrb[0].mxu0
    %v4443 = vadd.f32 %v4250, %v4442
    %v4444 = vpop.f32.mrb[0].mxu0
    %4445 = vmatprep.mubr.f32.mxu0 0.0
    %4446 = vmatmul.mubr.f32.gmra.mrb[0].mxu0 %v4304
    %v4447 = vpop.f32.mrb[0].mxu0
    %v4448 = vadd.f32 %v4255, %v4447
    %v4449 = vpop.f32.mrb[0].mxu0
    %4450 = vdwg.mxu0
    %v4451 = vld [vmem:[#allocation2 + $0x9] sm:$0xff]
    %v4452 = vld [vmem:[#allocation2 + $0x11] sm:$0xff]
    %v4453 = vld [vmem:[#allocation2 + $0x19] sm:$0xff]
    %v4454 = vld [vmem:[#allocation2 + $0x21] sm:$0xff]
    %v4455 = vld [vmem:[#allocation2 + $0x29] sm:$0xff]
    %v4456 = vld [vmem:[#allocation2 + $0x31] sm:$0xff]
    %v4457 = vld [vmem:[#allocation2 + $0x39] sm:$0xff]
    %v4458 = vld [vmem:[#allocation2 + $0x41] sm:$0xff]
    %v4459 = vld [vmem:[#allocation2 + $0x49] sm:$0xff]
    %v4460 = vld [vmem:[#allocation2 + $0x51] sm:$0xff]
    %v4461 = vld [vmem:[#allocation2 + $0x59] sm:$0xff]
    %v4462 = vld [vmem:[#allocation2 + $0x61] sm:$0xff]
    %v4463 = vld [vmem:[#allocation2 + $0x69] sm:$0xff]
    %v4464 = vld [vmem:[#allocation2 + $0x71] sm:$0xff]
    %v4465 = vld [vmem:[#allocation2 + $0x79] sm:$0xff]
    %v4466 = vld [vmem:[#allocation2 + $0x81] sm:$0xff]
    %v4467 = vmul.f32 %v525, %v4451
    %v4468 = vmul.f32 %v526, %v4452
    %v4469 = vmul.f32 %v527, %v4453
    %v4470 = vmul.f32 %v528, %v4454
    %v4471 = vmul.f32 %v529, %v4455
    %v4472 = vmul.f32 %v530, %v4456
    %v4473 = vmul.f32 %v531, %v4457
    %v4474 = vmul.f32 %v532, %v4458
    %v4475 = vmul.f32 %v533, %v4459
    %v4476 = vmul.f32 %v534, %v4460
    %v4477 = vmul.f32 %v535, %v4461
    %v4478 = vmul.f32 %v536, %v4462
    %v4479 = vmul.f32 %v537, %v4463
    %v4480 = vmul.f32 %v538, %v4464
    %v4481 = vmul.f32 %v539, %v4465
    %v4482 = vmul.f32 %v540, %v4466
    %s4483 = scalar_lea.vmem [#allocation7], 64
    %v4484 = vld [vmem:[%s4483] sm:$0xff]
    %v4485 = vld [vmem:[%s4483 + $0x8] sm:$0xff]
    %v4486 = vld [vmem:[%s4483 + $0x10] sm:$0xff]
    %v4487 = vld [vmem:[%s4483 + $0x18] sm:$0xff]
    %v4489 = vsel %vm1037, %v4467, 0
    %v4492 = vsel %vm1037, %v4468, 0
    %v4495 = vsel %vm1037, %v4469, 0
    %v4498 = vsel %vm1037, %v4470, 0
    %v4501 = vsel %vm1037, %v4471, 0
    %v4504 = vsel %vm1037, %v4472, 0
    %v4507 = vsel %vm1037, %v4473, 0
    %v4510 = vsel %vm1037, %v4474, 0
    %v4513 = vsel %vm1037, %v4475, 0
    %v4516 = vsel %vm1037, %v4476, 0
    %v4519 = vsel %vm1037, %v4477, 0
    %v4522 = vsel %vm1037, %v4478, 0
    %v4525 = vsel %vm1037, %v4479, 0
    %v4528 = vsel %vm1037, %v4480, 0
    %v4531 = vsel %vm1037, %v4481, 0
    %v4534 = vsel %vm1037, %v4482, 0
    %4536 = vmatprep.subr.mxu0 0.0
    %4537 = vmatpush1.msra.mxu0 %v4484
    %4538 = vmatprep.subr.mxu0 0.0
    %4539 = vmatpush1.msra.mxu0 %v4485
    %4540 = vmatprep.subr.mxu0 0.0
    %4541 = vmatpush1.msra.mxu0 %v4486
    %4542 = vmatprep.subr.mxu0 0.0
    %4543 = vmatpush1.msra.mxu0 %v4487
    %4544 = vmatprep.subr.mxu0 0.0
    %4545 = vmatpush1.msra.mxu0 0.0
    %4546 = vmatprep.subr.mxu0 0.0
    %4547 = vmatpush1.msra.mxu0 0.0
    %4548 = vmatprep.subr.mxu0 0.0
    %4549 = vmatpush1.msra.mxu0 0.0
    %4550 = vmatprep.subr.mxu0 0.0
    %4551 = vmatpush1.msra.mxu0 0.0
    %4552 = vmatprep.subr.mxu0 0.0
    %4553 = vmatpush1.msra.mxu0 0.0
    %4554 = vmatprep.subr.mxu0 0.0
    %4555 = vmatpush1.msra.mxu0 0.0
    %4556 = vmatprep.subr.mxu0 0.0
    %4557 = vmatpush1.msra.mxu0 0.0
    %4558 = vmatprep.subr.mxu0 0.0
    %4559 = vmatpush1.msra.mxu0 0.0
    %4560 = vmatprep.subr.mxu0 0.0
    %4561 = vmatpush1.msra.mxu0 0.0
    %4562 = vmatprep.subr.mxu0 0.0
    %4563 = vmatpush1.msra.mxu0 0.0
    %4564 = vmatprep.subr.mxu0 0.0
    %4565 = vmatpush1.msra.mxu0 0.0
    %4566 = vmatprep.subr.mxu0 0.0
    %4567 = vmatpush1.msra.mxu0 0.0
    %4568 = vmatprep.subr.mxu0 0.0
    %4569 = vmatpush1.msra.mxu0 0.0
    %4570 = vmatprep.subr.mxu0 0.0
    %4571 = vmatpush1.msra.mxu0 0.0
    %4572 = vmatprep.subr.mxu0 0.0
    %4573 = vmatpush1.msra.mxu0 0.0
    %4574 = vmatprep.subr.mxu0 0.0
    %4575 = vmatpush1.msra.mxu0 0.0
    %4576 = vmatprep.subr.mxu0 0.0
    %4577 = vmatpush1.msra.mxu0 0.0
    %4578 = vmatprep.subr.mxu0 0.0
    %4579 = vmatpush1.msra.mxu0 0.0
    %4580 = vmatprep.subr.mxu0 0.0
    %4581 = vmatpush1.msra.mxu0 0.0
    %4582 = vmatprep.subr.mxu0 0.0
    %4583 = vmatpush1.msra.mxu0 0.0
    %4584 = vmatprep.subr.mxu0 0.0
    %4585 = vmatpush1.msra.mxu0 0.0
    %4586 = vmatprep.subr.mxu0 0.0
    %4587 = vmatpush1.msra.mxu0 0.0
    %4588 = vmatprep.subr.mxu0 0.0
    %4589 = vmatpush1.msra.mxu0 0.0
    %4590 = vmatprep.subr.mxu0 0.0
    %4591 = vmatpush1.msra.mxu0 0.0
    %4592 = vmatprep.subr.mxu0 0.0
    %4593 = vmatpush1.msra.mxu0 0.0
    %4594 = vmatprep.subr.mxu0 0.0
    %4595 = vmatpush1.msra.mxu0 0.0
    %4596 = vmatprep.subr.mxu0 0.0
    %4597 = vmatpush1.msra.mxu0 0.0
    %4598 = vmatprep.subr.mxu0 0.0
    %4599 = vmatpush1.msra.mxu0 0.0
    %4600 = vmatprep.mubr.f32.mxu0 0.0
    %4601 = vmatmul.mubr.f32.gmra.mrb[0].mxu0 %v4489
    %v4602 = vpop.f32.mrb[0].mxu0
    %v4603 = vadd.f32 0.0, %v4602
    %v4604 = vpop.f32.mrb[0].mxu0
    %4605 = vmatprep.mubr.f32.mxu0 0.0
    %4606 = vmatmul.mubr.f32.gmra.mrb[0].mxu0 %v4492
    %v4607 = vpop.f32.mrb[0].mxu0
    %v4608 = vadd.f32 0.0, %v4607
    %v4609 = vpop.f32.mrb[0].mxu0
    %4610 = vmatprep.mubr.f32.mxu0 0.0
    %4611 = vmatmul.mubr.f32.gmra.mrb[0].mxu0 %v4495
    %v4612 = vpop.f32.mrb[0].mxu0
    %v4613 = vadd.f32 0.0, %v4612
    %v4614 = vpop.f32.mrb[0].mxu0
    %4615 = vmatprep.mubr.f32.mxu0 0.0
    %4616 = vmatmul.mubr.f32.gmra.mrb[0].mxu0 %v4498
    %v4617 = vpop.f32.mrb[0].mxu0
    %v4618 = vadd.f32 0.0, %v4617
    %v4619 = vpop.f32.mrb[0].mxu0
    %4620 = vmatprep.mubr.f32.mxu0 0.0
    %4621 = vmatmul.mubr.f32.gmra.mrb[0].mxu0 %v4501
    %v4622 = vpop.f32.mrb[0].mxu0
    %v4623 = vadd.f32 0.0, %v4622
    %v4624 = vpop.f32.mrb[0].mxu0
    %4625 = vmatprep.mubr.f32.mxu0 0.0
    %4626 = vmatmul.mubr.f32.gmra.mrb[0].mxu0 %v4504
    %v4627 = vpop.f32.mrb[0].mxu0
    %v4628 = vadd.f32 0.0, %v4627
    %v4629 = vpop.f32.mrb[0].mxu0
    %4630 = vmatprep.mubr.f32.mxu0 0.0
    %4631 = vmatmul.mubr.f32.gmra.mrb[0].mxu0 %v4507
    %v4632 = vpop.f32.mrb[0].mxu0
    %v4633 = vadd.f32 0.0, %v4632
    %v4634 = vpop.f32.mrb[0].mxu0
    %4635 = vmatprep.mubr.f32.mxu0 0.0
    %4636 = vmatmul.mubr.f32.gmra.mrb[0].mxu0 %v4510
    %v4637 = vpop.f32.mrb[0].mxu0
    %v4638 = vadd.f32 0.0, %v4637
    %v4639 = vpop.f32.mrb[0].mxu0
    %4640 = vmatprep.mubr.f32.mxu0 0.0
    %4641 = vmatmul.mubr.f32.gmra.mrb[0].mxu0 %v4513
    %v4642 = vpop.f32.mrb[0].mxu0
    %v4643 = vadd.f32 0.0, %v4642
    %v4644 = vpop.f32.mrb[0].mxu0
    %4645 = vmatprep.mubr.f32.mxu0 0.0
    %4646 = vmatmul.mubr.f32.gmra.mrb[0].mxu0 %v4516
    %v4647 = vpop.f32.mrb[0].mxu0
    %v4648 = vadd.f32 0.0, %v4647
    %v4649 = vpop.f32.mrb[0].mxu0
    %4650 = vmatprep.mubr.f32.mxu0 0.0
    %4651 = vmatmul.mubr.f32.gmra.mrb[0].mxu0 %v4519
    %v4652 = vpop.f32.mrb[0].mxu0
    %v4653 = vadd.f32 0.0, %v4652
    %v4654 = vpop.f32.mrb[0].mxu0
    %4655 = vmatprep.mubr.f32.mxu0 0.0
    %4656 = vmatmul.mubr.f32.gmra.mrb[0].mxu0 %v4522
    %v4657 = vpop.f32.mrb[0].mxu0
    %v4658 = vadd.f32 0.0, %v4657
    %v4659 = vpop.f32.mrb[0].mxu0
    %4660 = vmatprep.mubr.f32.mxu0 0.0
    %4661 = vmatmul.mubr.f32.gmra.mrb[0].mxu0 %v4525
    %v4662 = vpop.f32.mrb[0].mxu0
    %v4663 = vadd.f32 0.0, %v4662
    %v4664 = vpop.f32.mrb[0].mxu0
    %4665 = vmatprep.mubr.f32.mxu0 0.0
    %4666 = vmatmul.mubr.f32.gmra.mrb[0].mxu0 %v4528
    %v4667 = vpop.f32.mrb[0].mxu0
    %v4668 = vadd.f32 0.0, %v4667
    %v4669 = vpop.f32.mrb[0].mxu0
    %4670 = vmatprep.mubr.f32.mxu0 0.0
    %4671 = vmatmul.mubr.f32.gmra.mrb[0].mxu0 %v4531
    %v4672 = vpop.f32.mrb[0].mxu0
    %v4673 = vadd.f32 0.0, %v4672
    %v4674 = vpop.f32.mrb[0].mxu0
    %4675 = vmatprep.mubr.f32.mxu0 0.0
    %4676 = vmatmul.mubr.f32.gmra.mrb[0].mxu0 %v4534
    %v4677 = vpop.f32.mrb[0].mxu0
    %v4678 = vadd.f32 0.0, %v4677
    %v4679 = vpop.f32.mrb[0].mxu0
    %4680 = vdwg.mxu0
    %v4681 = vadd.f32 %v4373, %v4603
    %v4682 = vadd.f32 %v4378, %v4608
    %v4683 = vadd.f32 %v4383, %v4613
    %v4684 = vadd.f32 %v4388, %v4618
    %v4685 = vadd.f32 %v4393, %v4623
    %v4686 = vadd.f32 %v4398, %v4628
    %v4687 = vadd.f32 %v4403, %v4633
    %v4688 = vadd.f32 %v4408, %v4638
    %v4689 = vadd.f32 %v4413, %v4643
    %v4690 = vadd.f32 %v4418, %v4648
    %v4691 = vadd.f32 %v4423, %v4653
    %v4692 = vadd.f32 %v4428, %v4658
    %v4693 = vadd.f32 %v4433, %v4663
    %v4694 = vadd.f32 %v4438, %v4668
    %v4695 = vadd.f32 %v4443, %v4673
    %v4696 = vadd.f32 %v4448, %v4678
    %v4697 = vld [vmem:[#allocation2 + $0xf] sm:$0xff]
    %v4698 = vld [vmem:[#allocation2 + $0x17] sm:$0xff]
    %v4699 = vld [vmem:[#allocation2 + $0x1f] sm:$0xff]
    %v4700 = vld [vmem:[#allocation2 + $0x27] sm:$0xff]
    %v4701 = vld [vmem:[#allocation2 + $0x2f] sm:$0xff]
    %v4702 = vld [vmem:[#allocation2 + $0x37] sm:$0xff]
    %v4703 = vld [vmem:[#allocation2 + $0x3f] sm:$0xff]
    %v4704 = vld [vmem:[#allocation2 + $0x47] sm:$0xff]
    %v4705 = vld [vmem:[#allocation2 + $0x4f] sm:$0xff]
    %v4706 = vld [vmem:[#allocation2 + $0x57] sm:$0xff]
    %v4707 = vld [vmem:[#allocation2 + $0x5f] sm:$0xff]
    %v4708 = vld [vmem:[#allocation2 + $0x67] sm:$0xff]
    %v4709 = vld [vmem:[#allocation2 + $0x6f] sm:$0xff]
    %v4710 = vld [vmem:[#allocation2 + $0x77] sm:$0xff]
    %v4711 = vld [vmem:[#allocation2 + $0x7f] sm:$0xff]
    %v4712 = vld [vmem:[#allocation2 + $0x87] sm:$0xff]
    %v4713 = vmul.f32 %v637, %v4697
    %v4714 = vmul.f32 %v638, %v4698
    %v4715 = vmul.f32 %v639, %v4699
    %v4716 = vmul.f32 %v640, %v4700
    %v4717 = vmul.f32 %v641, %v4701
    %v4718 = vmul.f32 %v642, %v4702
    %v4719 = vmul.f32 %v643, %v4703
    %v4720 = vmul.f32 %v644, %v4704
    %v4721 = vmul.f32 %v645, %v4705
    %v4722 = vmul.f32 %v646, %v4706
    %v4723 = vmul.f32 %v647, %v4707
    %v4724 = vmul.f32 %v648, %v4708
    %v4725 = vmul.f32 %v649, %v4709
    %v4726 = vmul.f32 %v650, %v4710
    %v4727 = vmul.f32 %v651, %v4711
    %v4728 = vmul.f32 %v652, %v4712
    %s4729 = scalar_lea.vmem [#allocation7], 96
    %v4730 = vld [vmem:[%s4729] sm:$0xff]
    %v4731 = vld [vmem:[%s4729 + $0x8] sm:$0xff]
    %v4732 = vld [vmem:[%s4729 + $0x10] sm:$0xff]
    %v4733 = vld [vmem:[%s4729 + $0x18] sm:$0xff]
    %v4735 = vsel %vm1037, %v4713, 0
    %v4738 = vsel %vm1037, %v4714, 0
    %v4741 = vsel %vm1037, %v4715, 0
    %v4744 = vsel %vm1037, %v4716, 0
    %v4747 = vsel %vm1037, %v4717, 0
    %v4750 = vsel %vm1037, %v4718, 0
    %v4753 = vsel %vm1037, %v4719, 0
    %v4756 = vsel %vm1037, %v4720, 0
    %v4759 = vsel %vm1037, %v4721, 0
    %v4762 = vsel %vm1037, %v4722, 0
    %v4765 = vsel %vm1037, %v4723, 0
    %v4768 = vsel %vm1037, %v4724, 0
    %v4771 = vsel %vm1037, %v4725, 0
    %v4774 = vsel %vm1037, %v4726, 0
    %v4777 = vsel %vm1037, %v4727, 0
    %v4780 = vsel %vm1037, %v4728, 0
    %4782 = vmatprep.subr.mxu0 0.0
    %4783 = vmatpush1.msra.mxu0 %v4730
    %4784 = vmatprep.subr.mxu0 0.0
    %4785 = vmatpush1.msra.mxu0 %v4731
    %4786 = vmatprep.subr.mxu0 0.0
    %4787 = vmatpush1.msra.mxu0 %v4732
    %4788 = vmatprep.subr.mxu0 0.0
    %4789 = vmatpush1.msra.mxu0 %v4733
    %4790 = vmatprep.subr.mxu0 0.0
    %4791 = vmatpush1.msra.mxu0 0.0
    %4792 = vmatprep.subr.mxu0 0.0
    %4793 = vmatpush1.msra.mxu0 0.0
    %4794 = vmatprep.subr.mxu0 0.0
    %4795 = vmatpush1.msra.mxu0 0.0
    %4796 = vmatprep.subr.mxu0 0.0
    %4797 = vmatpush1.msra.mxu0 0.0
    %4798 = vmatprep.subr.mxu0 0.0
    %4799 = vmatpush1.msra.mxu0 0.0
    %4800 = vmatprep.subr.mxu0 0.0
    %4801 = vmatpush1.msra.mxu0 0.0
    %4802 = vmatprep.subr.mxu0 0.0
    %4803 = vmatpush1.msra.mxu0 0.0
    %4804 = vmatprep.subr.mxu0 0.0
    %4805 = vmatpush1.msra.mxu0 0.0
    %4806 = vmatprep.subr.mxu0 0.0
    %4807 = vmatpush1.msra.mxu0 0.0
    %4808 = vmatprep.subr.mxu0 0.0
    %4809 = vmatpush1.msra.mxu0 0.0
    %4810 = vmatprep.subr.mxu0 0.0
    %4811 = vmatpush1.msra.mxu0 0.0
    %4812 = vmatprep.subr.mxu0 0.0
    %4813 = vmatpush1.msra.mxu0 0.0
    %4814 = vmatprep.subr.mxu0 0.0
    %4815 = vmatpush1.msra.mxu0 0.0
    %4816 = vmatprep.subr.mxu0 0.0
    %4817 = vmatpush1.msra.mxu0 0.0
    %4818 = vmatprep.subr.mxu0 0.0
    %4819 = vmatpush1.msra.mxu0 0.0
    %4820 = vmatprep.subr.mxu0 0.0
    %4821 = vmatpush1.msra.mxu0 0.0
    %4822 = vmatprep.subr.mxu0 0.0
    %4823 = vmatpush1.msra.mxu0 0.0
    %4824 = vmatprep.subr.mxu0 0.0
    %4825 = vmatpush1.msra.mxu0 0.0
    %4826 = vmatprep.subr.mxu0 0.0
    %4827 = vmatpush1.msra.mxu0 0.0
    %4828 = vmatprep.subr.mxu0 0.0
    %4829 = vmatpush1.msra.mxu0 0.0
    %4830 = vmatprep.subr.mxu0 0.0
    %4831 = vmatpush1.msra.mxu0 0.0
    %4832 = vmatprep.subr.mxu0 0.0
    %4833 = vmatpush1.msra.mxu0 0.0
    %4834 = vmatprep.subr.mxu0 0.0
    %4835 = vmatpush1.msra.mxu0 0.0
    %4836 = vmatprep.subr.mxu0 0.0
    %4837 = vmatpush1.msra.mxu0 0.0
    %4838 = vmatprep.subr.mxu0 0.0
    %4839 = vmatpush1.msra.mxu0 0.0
    %4840 = vmatprep.subr.mxu0 0.0
    %4841 = vmatpush1.msra.mxu0 0.0
    %4842 = vmatprep.subr.mxu0 0.0
    %4843 = vmatpush1.msra.mxu0 0.0
    %4844 = vmatprep.subr.mxu0 0.0
    %4845 = vmatpush1.msra.mxu0 0.0
    %4846 = vmatprep.mubr.f32.mxu0 0.0
    %4847 = vmatmul.mubr.f32.gmra.mrb[0].mxu0 %v4735
    %v4848 = vpop.f32.mrb[0].mxu0
    %v4849 = vadd.f32 0.0, %v4848
    %v4850 = vpop.f32.mrb[0].mxu0
    %4851 = vmatprep.mubr.f32.mxu0 0.0
    %4852 = vmatmul.mubr.f32.gmra.mrb[0].mxu0 %v4738
    %v4853 = vpop.f32.mrb[0].mxu0
    %v4854 = vadd.f32 0.0, %v4853
    %v4855 = vpop.f32.mrb[0].mxu0
    %4856 = vmatprep.mubr.f32.mxu0 0.0
    %4857 = vmatmul.mubr.f32.gmra.mrb[0].mxu0 %v4741
    %v4858 = vpop.f32.mrb[0].mxu0
    %v4859 = vadd.f32 0.0, %v4858
    %v4860 = vpop.f32.mrb[0].mxu0
    %4861 = vmatprep.mubr.f32.mxu0 0.0
    %4862 = vmatmul.mubr.f32.gmra.mrb[0].mxu0 %v4744
    %v4863 = vpop.f32.mrb[0].mxu0
    %v4864 = vadd.f32 0.0, %v4863
    %v4865 = vpop.f32.mrb[0].mxu0
    %4866 = vmatprep.mubr.f32.mxu0 0.0
    %4867 = vmatmul.mubr.f32.gmra.mrb[0].mxu0 %v4747
    %v4868 = vpop.f32.mrb[0].mxu0
    %v4869 = vadd.f32 0.0, %v4868
    %v4870 = vpop.f32.mrb[0].mxu0
    %4871 = vmatprep.mubr.f32.mxu0 0.0
    %4872 = vmatmul.mubr.f32.gmra.mrb[0].mxu0 %v4750
    %v4873 = vpop.f32.mrb[0].mxu0
    %v4874 = vadd.f32 0.0, %v4873
    %v4875 = vpop.f32.mrb[0].mxu0
    %4876 = vmatprep.mubr.f32.mxu0 0.0
    %4877 = vmatmul.mubr.f32.gmra.mrb[0].mxu0 %v4753
    %v4878 = vpop.f32.mrb[0].mxu0
    %v4879 = vadd.f32 0.0, %v4878
    %v4880 = vpop.f32.mrb[0].mxu0
    %4881 = vmatprep.mubr.f32.mxu0 0.0
    %4882 = vmatmul.mubr.f32.gmra.mrb[0].mxu0 %v4756
    %v4883 = vpop.f32.mrb[0].mxu0
    %v4884 = vadd.f32 0.0, %v4883
    %v4885 = vpop.f32.mrb[0].mxu0
    %4886 = vmatprep.mubr.f32.mxu0 0.0
    %4887 = vmatmul.mubr.f32.gmra.mrb[0].mxu0 %v4759
    %v4888 = vpop.f32.mrb[0].mxu0
    %v4889 = vadd.f32 0.0, %v4888
    %v4890 = vpop.f32.mrb[0].mxu0
    %4891 = vmatprep.mubr.f32.mxu0 0.0
    %4892 = vmatmul.mubr.f32.gmra.mrb[0].mxu0 %v4762
    %v4893 = vpop.f32.mrb[0].mxu0
    %v4894 = vadd.f32 0.0, %v4893
    %v4895 = vpop.f32.mrb[0].mxu0
    %4896 = vmatprep.mubr.f32.mxu0 0.0
    %4897 = vmatmul.mubr.f32.gmra.mrb[0].mxu0 %v4765
    %v4898 = vpop.f32.mrb[0].mxu0
    %v4899 = vadd.f32 0.0, %v4898
    %v4900 = vpop.f32.mrb[0].mxu0
    %4901 = vmatprep.mubr.f32.mxu0 0.0
    %4902 = vmatmul.mubr.f32.gmra.mrb[0].mxu0 %v4768
    %v4903 = vpop.f32.mrb[0].mxu0
    %v4904 = vadd.f32 0.0, %v4903
    %v4905 = vpop.f32.mrb[0].mxu0
    %4906 = vmatprep.mubr.f32.mxu0 0.0
    %4907 = vmatmul.mubr.f32.gmra.mrb[0].mxu0 %v4771
    %v4908 = vpop.f32.mrb[0].mxu0
    %v4909 = vadd.f32 0.0, %v4908
    %v4910 = vpop.f32.mrb[0].mxu0
    %4911 = vmatprep.mubr.f32.mxu0 0.0
    %4912 = vmatmul.mubr.f32.gmra.mrb[0].mxu0 %v4774
    %v4913 = vpop.f32.mrb[0].mxu0
    %v4914 = vadd.f32 0.0, %v4913
    %v4915 = vpop.f32.mrb[0].mxu0
    %4916 = vmatprep.mubr.f32.mxu0 0.0
    %4917 = vmatmul.mubr.f32.gmra.mrb[0].mxu0 %v4777
    %v4918 = vpop.f32.mrb[0].mxu0
    %v4919 = vadd.f32 0.0, %v4918
    %v4920 = vpop.f32.mrb[0].mxu0
    %4921 = vmatprep.mubr.f32.mxu0 0.0
    %4922 = vmatmul.mubr.f32.gmra.mrb[0].mxu0 %v4780
    %v4923 = vpop.f32.mrb[0].mxu0
    %v4924 = vadd.f32 0.0, %v4923
    %v4925 = vpop.f32.mrb[0].mxu0
    %4926 = vdwg.mxu0
    %v4927 = vadd.f32 %v4681, %v4849
    %v4928 = vadd.f32 %v4682, %v4854
    %v4929 = vadd.f32 %v4683, %v4859
    %v4930 = vadd.f32 %v4684, %v4864
    %v4931 = vadd.f32 %v4685, %v4869
    %v4932 = vadd.f32 %v4686, %v4874
    %v4933 = vadd.f32 %v4687, %v4879
    %v4934 = vadd.f32 %v4688, %v4884
    %v4935 = vadd.f32 %v4689, %v4889
    %v4936 = vadd.f32 %v4690, %v4894
    %v4937 = vadd.f32 %v4691, %v4899
    %v4938 = vadd.f32 %v4692, %v4904
    %v4939 = vadd.f32 %v4693, %v4909
    %v4940 = vadd.f32 %v4694, %v4914
    %v4941 = vadd.f32 %v4695, %v4919
    %v4942 = vadd.f32 %v4696, %v4924
    %v4943 = vld [vmem:[#allocation2 + $0x10] sm:$0xff]
    %v4944 = vld [vmem:[#allocation2 + $0x18] sm:$0xff]
    %v4945 = vld [vmem:[#allocation2 + $0x20] sm:$0xff]
    %v4946 = vld [vmem:[#allocation2 + $0x28] sm:$0xff]
    %v4947 = vld [vmem:[#allocation2 + $0x30] sm:$0xff]
    %v4948 = vld [vmem:[#allocation2 + $0x38] sm:$0xff]
    %v4949 = vld [vmem:[#allocation2 + $0x40] sm:$0xff]
    %v4950 = vld [vmem:[#allocation2 + $0x48] sm:$0xff]
    %v4951 = vld [vmem:[#allocation2 + $0x50] sm:$0xff]
    %v4952 = vld [vmem:[#allocation2 + $0x58] sm:$0xff]
    %v4953 = vld [vmem:[#allocation2 + $0x60] sm:$0xff]
    %v4954 = vld [vmem:[#allocation2 + $0x68] sm:$0xff]
    %v4955 = vld [vmem:[#allocation2 + $0x70] sm:$0xff]
    %v4956 = vld [vmem:[#allocation2 + $0x78] sm:$0xff]
    %v4957 = vld [vmem:[#allocation2 + $0x80] sm:$0xff]
    %v4958 = vld [vmem:[#allocation2 + $0x88] sm:$0xff]
    %v4959 = vmul.f32 %v701, %v4943
    %v4960 = vmul.f32 %v702, %v4944
    %v4961 = vmul.f32 %v703, %v4945
    %v4962 = vmul.f32 %v704, %v4946
    %v4963 = vmul.f32 %v705, %v4947
    %v4964 = vmul.f32 %v706, %v4948
    %v4965 = vmul.f32 %v707, %v4949
    %v4966 = vmul.f32 %v708, %v4950
    %v4967 = vmul.f32 %v709, %v4951
    %v4968 = vmul.f32 %v710, %v4952
    %v4969 = vmul.f32 %v711, %v4953
    %v4970 = vmul.f32 %v712, %v4954
    %v4971 = vmul.f32 %v713, %v4955
    %v4972 = vmul.f32 %v714, %v4956
    %v4973 = vmul.f32 %v715, %v4957
    %v4974 = vmul.f32 %v716, %v4958
    %s4975 = scalar_lea.vmem [#allocation7], 128
    %v4976 = vld [vmem:[%s4975] sm:$0xff]
    %v4977 = vld [vmem:[%s4975 + $0x8] sm:$0xff]
    %v4978 = vld [vmem:[%s4975 + $0x10] sm:$0xff]
    %v4979 = vld [vmem:[%s4975 + $0x18] sm:$0xff]
    %v4981 = vsel %vm1037, %v4959, 0
    %v4984 = vsel %vm1037, %v4960, 0
    %v4987 = vsel %vm1037, %v4961, 0
    %v4990 = vsel %vm1037, %v4962, 0
    %v4993 = vsel %vm1037, %v4963, 0
    %v4996 = vsel %vm1037, %v4964, 0
    %v4999 = vsel %vm1037, %v4965, 0
    %v5002 = vsel %vm1037, %v4966, 0
    %v5005 = vsel %vm1037, %v4967, 0
    %v5008 = vsel %vm1037, %v4968, 0
    %v5011 = vsel %vm1037, %v4969, 0
    %v5014 = vsel %vm1037, %v4970, 0
    %v5017 = vsel %vm1037, %v4971, 0
    %v5020 = vsel %vm1037, %v4972, 0
    %v5023 = vsel %vm1037, %v4973, 0
    %v5026 = vsel %vm1037, %v4974, 0
    %5028 = vmatprep.subr.mxu0 0.0
    %5029 = vmatpush1.msra.mxu0 %v4976
    %5030 = vmatprep.subr.mxu0 0.0
    %5031 = vmatpush1.msra.mxu0 %v4977
    %5032 = vmatprep.subr.mxu0 0.0
    %5033 = vmatpush1.msra.mxu0 %v4978
    %5034 = vmatprep.subr.mxu0 0.0
    %5035 = vmatpush1.msra.mxu0 %v4979
    %5036 = vmatprep.subr.mxu0 0.0
    %5037 = vmatpush1.msra.mxu0 0.0
    %5038 = vmatprep.subr.mxu0 0.0
    %5039 = vmatpush1.msra.mxu0 0.0
    %5040 = vmatprep.subr.mxu0 0.0
    %5041 = vmatpush1.msra.mxu0 0.0
    %5042 = vmatprep.subr.mxu0 0.0
    %5043 = vmatpush1.msra.mxu0 0.0
    %5044 = vmatprep.subr.mxu0 0.0
    %5045 = vmatpush1.msra.mxu0 0.0
    %5046 = vmatprep.subr.mxu0 0.0
    %5047 = vmatpush1.msra.mxu0 0.0
    %5048 = vmatprep.subr.mxu0 0.0
    %5049 = vmatpush1.msra.mxu0 0.0
    %5050 = vmatprep.subr.mxu0 0.0
    %5051 = vmatpush1.msra.mxu0 0.0
    %5052 = vmatprep.subr.mxu0 0.0
    %5053 = vmatpush1.msra.mxu0 0.0
    %5054 = vmatprep.subr.mxu0 0.0
    %5055 = vmatpush1.msra.mxu0 0.0
    %5056 = vmatprep.subr.mxu0 0.0
    %5057 = vmatpush1.msra.mxu0 0.0
    %5058 = vmatprep.subr.mxu0 0.0
    %5059 = vmatpush1.msra.mxu0 0.0
    %5060 = vmatprep.subr.mxu0 0.0
    %5061 = vmatpush1.msra.mxu0 0.0
    %5062 = vmatprep.subr.mxu0 0.0
    %5063 = vmatpush1.msra.mxu0 0.0
    %5064 = vmatprep.subr.mxu0 0.0
    %5065 = vmatpush1.msra.mxu0 0.0
    %5066 = vmatprep.subr.mxu0 0.0
    %5067 = vmatpush1.msra.mxu0 0.0
    %5068 = vmatprep.subr.mxu0 0.0
    %5069 = vmatpush1.msra.mxu0 0.0
    %5070 = vmatprep.subr.mxu0 0.0
    %5071 = vmatpush1.msra.mxu0 0.0
    %5072 = vmatprep.subr.mxu0 0.0
    %5073 = vmatpush1.msra.mxu0 0.0
    %5074 = vmatprep.subr.mxu0 0.0
    %5075 = vmatpush1.msra.mxu0 0.0
    %5076 = vmatprep.subr.mxu0 0.0
    %5077 = vmatpush1.msra.mxu0 0.0
    %5078 = vmatprep.subr.mxu0 0.0
    %5079 = vmatpush1.msra.mxu0 0.0
    %5080 = vmatprep.subr.mxu0 0.0
    %5081 = vmatpush1.msra.mxu0 0.0
    %5082 = vmatprep.subr.mxu0 0.0
    %5083 = vmatpush1.msra.mxu0 0.0
    %5084 = vmatprep.subr.mxu0 0.0
    %5085 = vmatpush1.msra.mxu0 0.0
    %5086 = vmatprep.subr.mxu0 0.0
    %5087 = vmatpush1.msra.mxu0 0.0
    %5088 = vmatprep.subr.mxu0 0.0
    %5089 = vmatpush1.msra.mxu0 0.0
    %5090 = vmatprep.subr.mxu0 0.0
    %5091 = vmatpush1.msra.mxu0 0.0
    %5092 = vmatprep.mubr.f32.mxu0 0.0
    %5093 = vmatmul.mubr.f32.gmra.mrb[0].mxu0 %v4981
    %v5094 = vpop.f32.mrb[0].mxu0
    %v5095 = vadd.f32 0.0, %v5094
    %v5096 = vpop.f32.mrb[0].mxu0
    %5097 = vmatprep.mubr.f32.mxu0 0.0
    %5098 = vmatmul.mubr.f32.gmra.mrb[0].mxu0 %v4984
    %v5099 = vpop.f32.mrb[0].mxu0
    %v5100 = vadd.f32 0.0, %v5099
    %v5101 = vpop.f32.mrb[0].mxu0
    %5102 = vmatprep.mubr.f32.mxu0 0.0
    %5103 = vmatmul.mubr.f32.gmra.mrb[0].mxu0 %v4987
    %v5104 = vpop.f32.mrb[0].mxu0
    %v5105 = vadd.f32 0.0, %v5104
    %v5106 = vpop.f32.mrb[0].mxu0
    %5107 = vmatprep.mubr.f32.mxu0 0.0
    %5108 = vmatmul.mubr.f32.gmra.mrb[0].mxu0 %v4990
    %v5109 = vpop.f32.mrb[0].mxu0
    %v5110 = vadd.f32 0.0, %v5109
    %v5111 = vpop.f32.mrb[0].mxu0
    %5112 = vmatprep.mubr.f32.mxu0 0.0
    %5113 = vmatmul.mubr.f32.gmra.mrb[0].mxu0 %v4993
    %v5114 = vpop.f32.mrb[0].mxu0
    %v5115 = vadd.f32 0.0, %v5114
    %v5116 = vpop.f32.mrb[0].mxu0
    %5117 = vmatprep.mubr.f32.mxu0 0.0
    %5118 = vmatmul.mubr.f32.gmra.mrb[0].mxu0 %v4996
    %v5119 = vpop.f32.mrb[0].mxu0
    %v5120 = vadd.f32 0.0, %v5119
    %v5121 = vpop.f32.mrb[0].mxu0
    %5122 = vmatprep.mubr.f32.mxu0 0.0
    %5123 = vmatmul.mubr.f32.gmra.mrb[0].mxu0 %v4999
    %v5124 = vpop.f32.mrb[0].mxu0
    %v5125 = vadd.f32 0.0, %v5124
    %v5126 = vpop.f32.mrb[0].mxu0
    %5127 = vmatprep.mubr.f32.mxu0 0.0
    %5128 = vmatmul.mubr.f32.gmra.mrb[0].mxu0 %v5002
    %v5129 = vpop.f32.mrb[0].mxu0
    %v5130 = vadd.f32 0.0, %v5129
    %v5131 = vpop.f32.mrb[0].mxu0
    %5132 = vmatprep.mubr.f32.mxu0 0.0
    %5133 = vmatmul.mubr.f32.gmra.mrb[0].mxu0 %v5005
    %v5134 = vpop.f32.mrb[0].mxu0
    %v5135 = vadd.f32 0.0, %v5134
    %v5136 = vpop.f32.mrb[0].mxu0
    %5137 = vmatprep.mubr.f32.mxu0 0.0
    %5138 = vmatmul.mubr.f32.gmra.mrb[0].mxu0 %v5008
    %v5139 = vpop.f32.mrb[0].mxu0
    %v5140 = vadd.f32 0.0, %v5139
    %v5141 = vpop.f32.mrb[0].mxu0
    %5142 = vmatprep.mubr.f32.mxu0 0.0
    %5143 = vmatmul.mubr.f32.gmra.mrb[0].mxu0 %v5011
    %v5144 = vpop.f32.mrb[0].mxu0
    %v5145 = vadd.f32 0.0, %v5144
    %v5146 = vpop.f32.mrb[0].mxu0
    %5147 = vmatprep.mubr.f32.mxu0 0.0
    %5148 = vmatmul.mubr.f32.gmra.mrb[0].mxu0 %v5014
    %v5149 = vpop.f32.mrb[0].mxu0
    %v5150 = vadd.f32 0.0, %v5149
    %v5151 = vpop.f32.mrb[0].mxu0
    %5152 = vmatprep.mubr.f32.mxu0 0.0
    %5153 = vmatmul.mubr.f32.gmra.mrb[0].mxu0 %v5017
    %v5154 = vpop.f32.mrb[0].mxu0
    %v5155 = vadd.f32 0.0, %v5154
    %v5156 = vpop.f32.mrb[0].mxu0
    %5157 = vmatprep.mubr.f32.mxu0 0.0
    %5158 = vmatmul.mubr.f32.gmra.mrb[0].mxu0 %v5020
    %v5159 = vpop.f32.mrb[0].mxu0
    %v5160 = vadd.f32 0.0, %v5159
    %v5161 = vpop.f32.mrb[0].mxu0
    %5162 = vmatprep.mubr.f32.mxu0 0.0
    %5163 = vmatmul.mubr.f32.gmra.mrb[0].mxu0 %v5023
    %v5164 = vpop.f32.mrb[0].mxu0
    %v5165 = vadd.f32 0.0, %v5164
    %v5166 = vpop.f32.mrb[0].mxu0
    %5167 = vmatprep.mubr.f32.mxu0 0.0
    %5168 = vmatmul.mubr.f32.gmra.mrb[0].mxu0 %v5026
    %v5169 = vpop.f32.mrb[0].mxu0
    %v5170 = vadd.f32 0.0, %v5169
    %v5171 = vpop.f32.mrb[0].mxu0
    %5172 = vdwg.mxu0
    %v5173 = vadd.f32 %v4927, %v5095
    %v5174 = vadd.f32 %v4928, %v5100
    %v5175 = vadd.f32 %v4929, %v5105
    %v5176 = vadd.f32 %v4930, %v5110
    %v5177 = vadd.f32 %v4931, %v5115
    %v5178 = vadd.f32 %v4932, %v5120
    %v5179 = vadd.f32 %v4933, %v5125
    %v5180 = vadd.f32 %v4934, %v5130
    %v5181 = vadd.f32 %v4935, %v5135
    %v5182 = vadd.f32 %v4936, %v5140
    %v5183 = vadd.f32 %v4937, %v5145
    %v5184 = vadd.f32 %v4938, %v5150
    %v5185 = vadd.f32 %v4939, %v5155
    %v5186 = vadd.f32 %v4940, %v5160
    %v5187 = vadd.f32 %v4941, %v5165
    %v5188 = vadd.f32 %v4942, %v5170
    %v5189 = vld [vmem:[#allocation2 + $0x11] sm:$0xff]
    %v5190 = vld [vmem:[#allocation2 + $0x19] sm:$0xff]
    %v5191 = vld [vmem:[#allocation2 + $0x21] sm:$0xff]
    %v5192 = vld [vmem:[#allocation2 + $0x29] sm:$0xff]
    %v5193 = vld [vmem:[#allocation2 + $0x31] sm:$0xff]
    %v5194 = vld [vmem:[#allocation2 + $0x39] sm:$0xff]
    %v5195 = vld [vmem:[#allocation2 + $0x41] sm:$0xff]
    %v5196 = vld [vmem:[#allocation2 + $0x49] sm:$0xff]
    %v5197 = vld [vmem:[#allocation2 + $0x51] sm:$0xff]
    %v5198 = vld [vmem:[#allocation2 + $0x59] sm:$0xff]
    %v5199 = vld [vmem:[#allocation2 + $0x61] sm:$0xff]
    %v5200 = vld [vmem:[#allocation2 + $0x69] sm:$0xff]
    %v5201 = vld [vmem:[#allocation2 + $0x71] sm:$0xff]
    %v5202 = vld [vmem:[#allocation2 + $0x79] sm:$0xff]
    %v5203 = vld [vmem:[#allocation2 + $0x81] sm:$0xff]
    %v5204 = vld [vmem:[#allocation2 + $0x89] sm:$0xff]
    %v5205 = vmul.f32 %v765, %v5189
    %v5206 = vmul.f32 %v766, %v5190
    %v5207 = vmul.f32 %v767, %v5191
    %v5208 = vmul.f32 %v768, %v5192
    %v5209 = vmul.f32 %v769, %v5193
    %v5210 = vmul.f32 %v770, %v5194
    %v5211 = vmul.f32 %v771, %v5195
    %v5212 = vmul.f32 %v772, %v5196
    %v5213 = vmul.f32 %v773, %v5197
    %v5214 = vmul.f32 %v774, %v5198
    %v5215 = vmul.f32 %v775, %v5199
    %v5216 = vmul.f32 %v776, %v5200
    %v5217 = vmul.f32 %v777, %v5201
    %v5218 = vmul.f32 %v778, %v5202
    %v5219 = vmul.f32 %v779, %v5203
    %v5220 = vmul.f32 %v780, %v5204
    %s5221 = scalar_lea.vmem [#allocation7], 160
    %v5222 = vld [vmem:[%s5221] sm:$0xff]
    %v5223 = vld [vmem:[%s5221 + $0x8] sm:$0xff]
    %v5224 = vld [vmem:[%s5221 + $0x10] sm:$0xff]
    %v5225 = vld [vmem:[%s5221 + $0x18] sm:$0xff]
    %v5227 = vsel %vm1037, %v5205, 0
    %v5230 = vsel %vm1037, %v5206, 0
    %v5233 = vsel %vm1037, %v5207, 0
    %v5236 = vsel %vm1037, %v5208, 0
    %v5239 = vsel %vm1037, %v5209, 0
    %v5242 = vsel %vm1037, %v5210, 0
    %v5245 = vsel %vm1037, %v5211, 0
    %v5248 = vsel %vm1037, %v5212, 0
    %v5251 = vsel %vm1037, %v5213, 0
    %v5254 = vsel %vm1037, %v5214, 0
    %v5257 = vsel %vm1037, %v5215, 0
    %v5260 = vsel %vm1037, %v5216, 0
    %v5263 = vsel %vm1037, %v5217, 0
    %v5266 = vsel %vm1037, %v5218, 0
    %v5269 = vsel %vm1037, %v5219, 0
    %v5272 = vsel %vm1037, %v5220, 0
    %5274 = vmatprep.subr.mxu0 0.0
    %5275 = vmatpush1.msra.mxu0 %v5222
    %5276 = vmatprep.subr.mxu0 0.0
    %5277 = vmatpush1.msra.mxu0 %v5223
    %5278 = vmatprep.subr.mxu0 0.0
    %5279 = vmatpush1.msra.mxu0 %v5224
    %5280 = vmatprep.subr.mxu0 0.0
    %5281 = vmatpush1.msra.mxu0 %v5225
    %5282 = vmatprep.subr.mxu0 0.0
    %5283 = vmatpush1.msra.mxu0 0.0
    %5284 = vmatprep.subr.mxu0 0.0
    %5285 = vmatpush1.msra.mxu0 0.0
    %5286 = vmatprep.subr.mxu0 0.0
    %5287 = vmatpush1.msra.mxu0 0.0
    %5288 = vmatprep.subr.mxu0 0.0
    %5289 = vmatpush1.msra.mxu0 0.0
    %5290 = vmatprep.subr.mxu0 0.0
    %5291 = vmatpush1.msra.mxu0 0.0
    %5292 = vmatprep.subr.mxu0 0.0
    %5293 = vmatpush1.msra.mxu0 0.0
    %5294 = vmatprep.subr.mxu0 0.0
    %5295 = vmatpush1.msra.mxu0 0.0
    %5296 = vmatprep.subr.mxu0 0.0
    %5297 = vmatpush1.msra.mxu0 0.0
    %5298 = vmatprep.subr.mxu0 0.0
    %5299 = vmatpush1.msra.mxu0 0.0
    %5300 = vmatprep.subr.mxu0 0.0
    %5301 = vmatpush1.msra.mxu0 0.0
    %5302 = vmatprep.subr.mxu0 0.0
    %5303 = vmatpush1.msra.mxu0 0.0
    %5304 = vmatprep.subr.mxu0 0.0
    %5305 = vmatpush1.msra.mxu0 0.0
    %5306 = vmatprep.subr.mxu0 0.0
    %5307 = vmatpush1.msra.mxu0 0.0
    %5308 = vmatprep.subr.mxu0 0.0
    %5309 = vmatpush1.msra.mxu0 0.0
    %5310 = vmatprep.subr.mxu0 0.0
    %5311 = vmatpush1.msra.mxu0 0.0
    %5312 = vmatprep.subr.mxu0 0.0
    %5313 = vmatpush1.msra.mxu0 0.0
    %5314 = vmatprep.subr.mxu0 0.0
    %5315 = vmatpush1.msra.mxu0 0.0
    %5316 = vmatprep.subr.mxu0 0.0
    %5317 = vmatpush1.msra.mxu0 0.0
    %5318 = vmatprep.subr.mxu0 0.0
    %5319 = vmatpush1.msra.mxu0 0.0
    %5320 = vmatprep.subr.mxu0 0.0
    %5321 = vmatpush1.msra.mxu0 0.0
    %5322 = vmatprep.subr.mxu0 0.0
    %5323 = vmatpush1.msra.mxu0 0.0
    %5324 = vmatprep.subr.mxu0 0.0
    %5325 = vmatpush1.msra.mxu0 0.0
    %5326 = vmatprep.subr.mxu0 0.0
    %5327 = vmatpush1.msra.mxu0 0.0
    %5328 = vmatprep.subr.mxu0 0.0
    %5329 = vmatpush1.msra.mxu0 0.0
    %5330 = vmatprep.subr.mxu0 0.0
    %5331 = vmatpush1.msra.mxu0 0.0
    %5332 = vmatprep.subr.mxu0 0.0
    %5333 = vmatpush1.msra.mxu0 0.0
    %5334 = vmatprep.subr.mxu0 0.0
    %5335 = vmatpush1.msra.mxu0 0.0
    %5336 = vmatprep.subr.mxu0 0.0
    %5337 = vmatpush1.msra.mxu0 0.0
    %5338 = vmatprep.mubr.f32.mxu0 0.0
    %5339 = vmatmul.mubr.f32.gmra.mrb[0].mxu0 %v5227
    %v5340 = vpop.f32.mrb[0].mxu0
    %v5341 = vadd.f32 0.0, %v5340
    %v5342 = vpop.f32.mrb[0].mxu0
    %5343 = vmatprep.mubr.f32.mxu0 0.0
    %5344 = vmatmul.mubr.f32.gmra.mrb[0].mxu0 %v5230
    %v5345 = vpop.f32.mrb[0].mxu0
    %v5346 = vadd.f32 0.0, %v5345
    %v5347 = vpop.f32.mrb[0].mxu0
    %5348 = vmatprep.mubr.f32.mxu0 0.0
    %5349 = vmatmul.mubr.f32.gmra.mrb[0].mxu0 %v5233
    %v5350 = vpop.f32.mrb[0].mxu0
    %v5351 = vadd.f32 0.0, %v5350
    %v5352 = vpop.f32.mrb[0].mxu0
    %5353 = vmatprep.mubr.f32.mxu0 0.0
    %5354 = vmatmul.mubr.f32.gmra.mrb[0].mxu0 %v5236
    %v5355 = vpop.f32.mrb[0].mxu0
    %v5356 = vadd.f32 0.0, %v5355
    %v5357 = vpop.f32.mrb[0].mxu0
    %5358 = vmatprep.mubr.f32.mxu0 0.0
    %5359 = vmatmul.mubr.f32.gmra.mrb[0].mxu0 %v5239
    %v5360 = vpop.f32.mrb[0].mxu0
    %v5361 = vadd.f32 0.0, %v5360
    %v5362 = vpop.f32.mrb[0].mxu0
    %5363 = vmatprep.mubr.f32.mxu0 0.0
    %5364 = vmatmul.mubr.f32.gmra.mrb[0].mxu0 %v5242
    %v5365 = vpop.f32.mrb[0].mxu0
    %v5366 = vadd.f32 0.0, %v5365
    %v5367 = vpop.f32.mrb[0].mxu0
    %5368 = vmatprep.mubr.f32.mxu0 0.0
    %5369 = vmatmul.mubr.f32.gmra.mrb[0].mxu0 %v5245
    %v5370 = vpop.f32.mrb[0].mxu0
    %v5371 = vadd.f32 0.0, %v5370
    %v5372 = vpop.f32.mrb[0].mxu0
    %5373 = vmatprep.mubr.f32.mxu0 0.0
    %5374 = vmatmul.mubr.f32.gmra.mrb[0].mxu0 %v5248
    %v5375 = vpop.f32.mrb[0].mxu0
    %v5376 = vadd.f32 0.0, %v5375
    %v5377 = vpop.f32.mrb[0].mxu0
    %5378 = vmatprep.mubr.f32.mxu0 0.0
    %5379 = vmatmul.mubr.f32.gmra.mrb[0].mxu0 %v5251
    %v5380 = vpop.f32.mrb[0].mxu0
    %v5381 = vadd.f32 0.0, %v5380
    %v5382 = vpop.f32.mrb[0].mxu0
    %5383 = vmatprep.mubr.f32.mxu0 0.0
    %5384 = vmatmul.mubr.f32.gmra.mrb[0].mxu0 %v5254
    %v5385 = vpop.f32.mrb[0].mxu0
    %v5386 = vadd.f32 0.0, %v5385
    %v5387 = vpop.f32.mrb[0].mxu0
    %5388 = vmatprep.mubr.f32.mxu0 0.0
    %5389 = vmatmul.mubr.f32.gmra.mrb[0].mxu0 %v5257
    %v5390 = vpop.f32.mrb[0].mxu0
    %v5391 = vadd.f32 0.0, %v5390
    %v5392 = vpop.f32.mrb[0].mxu0
    %5393 = vmatprep.mubr.f32.mxu0 0.0
    %5394 = vmatmul.mubr.f32.gmra.mrb[0].mxu0 %v5260
    %v5395 = vpop.f32.mrb[0].mxu0
    %v5396 = vadd.f32 0.0, %v5395
    %v5397 = vpop.f32.mrb[0].mxu0
    %5398 = vmatprep.mubr.f32.mxu0 0.0
    %5399 = vmatmul.mubr.f32.gmra.mrb[0].mxu0 %v5263
    %v5400 = vpop.f32.mrb[0].mxu0
    %v5401 = vadd.f32 0.0, %v5400
    %v5402 = vpop.f32.mrb[0].mxu0
    %5403 = vmatprep.mubr.f32.mxu0 0.0
    %5404 = vmatmul.mubr.f32.gmra.mrb[0].mxu0 %v5266
    %v5405 = vpop.f32.mrb[0].mxu0
    %v5406 = vadd.f32 0.0, %v5405
    %v5407 = vpop.f32.mrb[0].mxu0
    %5408 = vmatprep.mubr.f32.mxu0 0.0
    %5409 = vmatmul.mubr.f32.gmra.mrb[0].mxu0 %v5269
    %v5410 = vpop.f32.mrb[0].mxu0
    %v5411 = vadd.f32 0.0, %v5410
    %v5412 = vpop.f32.mrb[0].mxu0
    %5413 = vmatprep.mubr.f32.mxu0 0.0
    %5414 = vmatmul.mubr.f32.gmra.mrb[0].mxu0 %v5272
    %v5415 = vpop.f32.mrb[0].mxu0
    %v5416 = vadd.f32 0.0, %v5415
    %v5417 = vpop.f32.mrb[0].mxu0
    %5418 = vdwg.mxu0
    %v5419 = vadd.f32 %v5173, %v5341
    %v5420 = vadd.f32 %v5174, %v5346
    %v5421 = vadd.f32 %v5175, %v5351
    %v5422 = vadd.f32 %v5176, %v5356
    %v5423 = vadd.f32 %v5177, %v5361
    %v5424 = vadd.f32 %v5178, %v5366
    %v5425 = vadd.f32 %v5179, %v5371
    %v5426 = vadd.f32 %v5180, %v5376
    %v5427 = vadd.f32 %v5181, %v5381
    %v5428 = vadd.f32 %v5182, %v5386
    %v5429 = vadd.f32 %v5183, %v5391
    %v5430 = vadd.f32 %v5184, %v5396
    %v5431 = vadd.f32 %v5185, %v5401
    %v5432 = vadd.f32 %v5186, %v5406
    %v5433 = vadd.f32 %v5187, %v5411
    %v5434 = vadd.f32 %v5188, %v5416
    %v5435 = vld [vmem:[#allocation2 + $0x17] sm:$0xff]
    %v5436 = vld [vmem:[#allocation2 + $0x1f] sm:$0xff]
    %v5437 = vld [vmem:[#allocation2 + $0x27] sm:$0xff]
    %v5438 = vld [vmem:[#allocation2 + $0x2f] sm:$0xff]
    %v5439 = vld [vmem:[#allocation2 + $0x37] sm:$0xff]
    %v5440 = vld [vmem:[#allocation2 + $0x3f] sm:$0xff]
    %v5441 = vld [vmem:[#allocation2 + $0x47] sm:$0xff]
    %v5442 = vld [vmem:[#allocation2 + $0x4f] sm:$0xff]
    %v5443 = vld [vmem:[#allocation2 + $0x57] sm:$0xff]
    %v5444 = vld [vmem:[#allocation2 + $0x5f] sm:$0xff]
    %v5445 = vld [vmem:[#allocation2 + $0x67] sm:$0xff]
    %v5446 = vld [vmem:[#allocation2 + $0x6f] sm:$0xff]
    %v5447 = vld [vmem:[#allocation2 + $0x77] sm:$0xff]
    %v5448 = vld [vmem:[#allocation2 + $0x7f] sm:$0xff]
    %v5449 = vld [vmem:[#allocation2 + $0x87] sm:$0xff]
    %v5450 = vld [vmem:[#allocation2 + $0x8f] sm:$0xff]
    %v5451 = vmul.f32 %v893, %v5435
    %v5452 = vmul.f32 %v894, %v5436
    %v5453 = vmul.f32 %v895, %v5437
    %v5454 = vmul.f32 %v896, %v5438
    %v5455 = vmul.f32 %v897, %v5439
    %v5456 = vmul.f32 %v898, %v5440
    %v5457 = vmul.f32 %v899, %v5441
    %v5458 = vmul.f32 %v900, %v5442
    %v5459 = vmul.f32 %v901, %v5443
    %v5460 = vmul.f32 %v902, %v5444
    %v5461 = vmul.f32 %v903, %v5445
    %v5462 = vmul.f32 %v904, %v5446
    %v5463 = vmul.f32 %v905, %v5447
    %v5464 = vmul.f32 %v906, %v5448
    %v5465 = vmul.f32 %v907, %v5449
    %v5466 = vmul.f32 %v908, %v5450
    %s5467 = scalar_lea.vmem [#allocation7], 192
    %v5468 = vld [vmem:[%s5467] sm:$0xff]
    %v5469 = vld [vmem:[%s5467 + $0x8] sm:$0xff]
    %v5470 = vld [vmem:[%s5467 + $0x10] sm:$0xff]
    %v5471 = vld [vmem:[%s5467 + $0x18] sm:$0xff]
    %v5473 = vsel %vm1037, %v5451, 0
    %v5476 = vsel %vm1037, %v5452, 0
    %v5479 = vsel %vm1037, %v5453, 0
    %v5482 = vsel %vm1037, %v5454, 0
    %v5485 = vsel %vm1037, %v5455, 0
    %v5488 = vsel %vm1037, %v5456, 0
    %v5491 = vsel %vm1037, %v5457, 0
    %v5494 = vsel %vm1037, %v5458, 0
    %v5497 = vsel %vm1037, %v5459, 0
    %v5500 = vsel %vm1037, %v5460, 0
    %v5503 = vsel %vm1037, %v5461, 0
    %v5506 = vsel %vm1037, %v5462, 0
    %v5509 = vsel %vm1037, %v5463, 0
    %v5512 = vsel %vm1037, %v5464, 0
    %v5515 = vsel %vm1037, %v5465, 0
    %v5518 = vsel %vm1037, %v5466, 0
    %5520 = vmatprep.subr.mxu0 0.0
    %5521 = vmatpush1.msra.mxu0 %v5468
    %5522 = vmatprep.subr.mxu0 0.0
    %5523 = vmatpush1.msra.mxu0 %v5469
    %5524 = vmatprep.subr.mxu0 0.0
    %5525 = vmatpush1.msra.mxu0 %v5470
    %5526 = vmatprep.subr.mxu0 0.0
    %5527 = vmatpush1.msra.mxu0 %v5471
    %5528 = vmatprep.subr.mxu0 0.0
    %5529 = vmatpush1.msra.mxu0 0.0
    %5530 = vmatprep.subr.mxu0 0.0
    %5531 = vmatpush1.msra.mxu0 0.0
    %5532 = vmatprep.subr.mxu0 0.0
    %5533 = vmatpush1.msra.mxu0 0.0
    %5534 = vmatprep.subr.mxu0 0.0
    %5535 = vmatpush1.msra.mxu0 0.0
    %5536 = vmatprep.subr.mxu0 0.0
    %5537 = vmatpush1.msra.mxu0 0.0
    %5538 = vmatprep.subr.mxu0 0.0
    %5539 = vmatpush1.msra.mxu0 0.0
    %5540 = vmatprep.subr.mxu0 0.0
    %5541 = vmatpush1.msra.mxu0 0.0
    %5542 = vmatprep.subr.mxu0 0.0
    %5543 = vmatpush1.msra.mxu0 0.0
    %5544 = vmatprep.subr.mxu0 0.0
    %5545 = vmatpush1.msra.mxu0 0.0
    %5546 = vmatprep.subr.mxu0 0.0
    %5547 = vmatpush1.msra.mxu0 0.0
    %5548 = vmatprep.subr.mxu0 0.0
    %5549 = vmatpush1.msra.mxu0 0.0
    %5550 = vmatprep.subr.mxu0 0.0
    %5551 = vmatpush1.msra.mxu0 0.0
    %5552 = vmatprep.subr.mxu0 0.0
    %5553 = vmatpush1.msra.mxu0 0.0
    %5554 = vmatprep.subr.mxu0 0.0
    %5555 = vmatpush1.msra.mxu0 0.0
    %5556 = vmatprep.subr.mxu0 0.0
    %5557 = vmatpush1.msra.mxu0 0.0
    %5558 = vmatprep.subr.mxu0 0.0
    %5559 = vmatpush1.msra.mxu0 0.0
    %5560 = vmatprep.subr.mxu0 0.0
    %5561 = vmatpush1.msra.mxu0 0.0
    %5562 = vmatprep.subr.mxu0 0.0
    %5563 = vmatpush1.msra.mxu0 0.0
    %5564 = vmatprep.subr.mxu0 0.0
    %5565 = vmatpush1.msra.mxu0 0.0
    %5566 = vmatprep.subr.mxu0 0.0
    %5567 = vmatpush1.msra.mxu0 0.0
    %5568 = vmatprep.subr.mxu0 0.0
    %5569 = vmatpush1.msra.mxu0 0.0
    %5570 = vmatprep.subr.mxu0 0.0
    %5571 = vmatpush1.msra.mxu0 0.0
    %5572 = vmatprep.subr.mxu0 0.0
    %5573 = vmatpush1.msra.mxu0 0.0
    %5574 = vmatprep.subr.mxu0 0.0
    %5575 = vmatpush1.msra.mxu0 0.0
    %5576 = vmatprep.subr.mxu0 0.0
    %5577 = vmatpush1.msra.mxu0 0.0
    %5578 = vmatprep.subr.mxu0 0.0
    %5579 = vmatpush1.msra.mxu0 0.0
    %5580 = vmatprep.subr.mxu0 0.0
    %5581 = vmatpush1.msra.mxu0 0.0
    %5582 = vmatprep.subr.mxu0 0.0
    %5583 = vmatpush1.msra.mxu0 0.0
    %5584 = vmatprep.mubr.f32.mxu0 0.0
    %5585 = vmatmul.mubr.f32.gmra.mrb[0].mxu0 %v5473
    %v5586 = vpop.f32.mrb[0].mxu0
    %v5587 = vadd.f32 0.0, %v5586
    %v5588 = vpop.f32.mrb[0].mxu0
    %5589 = vmatprep.mubr.f32.mxu0 0.0
    %5590 = vmatmul.mubr.f32.gmra.mrb[0].mxu0 %v5476
    %v5591 = vpop.f32.mrb[0].mxu0
    %v5592 = vadd.f32 0.0, %v5591
    %v5593 = vpop.f32.mrb[0].mxu0
    %5594 = vmatprep.mubr.f32.mxu0 0.0
    %5595 = vmatmul.mubr.f32.gmra.mrb[0].mxu0 %v5479
    %v5596 = vpop.f32.mrb[0].mxu0
    %v5597 = vadd.f32 0.0, %v5596
    %v5598 = vpop.f32.mrb[0].mxu0
    %5599 = vmatprep.mubr.f32.mxu0 0.0
    %5600 = vmatmul.mubr.f32.gmra.mrb[0].mxu0 %v5482
    %v5601 = vpop.f32.mrb[0].mxu0
    %v5602 = vadd.f32 0.0, %v5601
    %v5603 = vpop.f32.mrb[0].mxu0
    %5604 = vmatprep.mubr.f32.mxu0 0.0
    %5605 = vmatmul.mubr.f32.gmra.mrb[0].mxu0 %v5485
    %v5606 = vpop.f32.mrb[0].mxu0
    %v5607 = vadd.f32 0.0, %v5606
    %v5608 = vpop.f32.mrb[0].mxu0
    %5609 = vmatprep.mubr.f32.mxu0 0.0
    %5610 = vmatmul.mubr.f32.gmra.mrb[0].mxu0 %v5488
    %v5611 = vpop.f32.mrb[0].mxu0
    %v5612 = vadd.f32 0.0, %v5611
    %v5613 = vpop.f32.mrb[0].mxu0
    %5614 = vmatprep.mubr.f32.mxu0 0.0
    %5615 = vmatmul.mubr.f32.gmra.mrb[0].mxu0 %v5491
    %v5616 = vpop.f32.mrb[0].mxu0
    %v5617 = vadd.f32 0.0, %v5616
    %v5618 = vpop.f32.mrb[0].mxu0
    %5619 = vmatprep.mubr.f32.mxu0 0.0
    %5620 = vmatmul.mubr.f32.gmra.mrb[0].mxu0 %v5494
    %v5621 = vpop.f32.mrb[0].mxu0
    %v5622 = vadd.f32 0.0, %v5621
    %v5623 = vpop.f32.mrb[0].mxu0
    %5624 = vmatprep.mubr.f32.mxu0 0.0
    %5625 = vmatmul.mubr.f32.gmra.mrb[0].mxu0 %v5497
    %v5626 = vpop.f32.mrb[0].mxu0
    %v5627 = vadd.f32 0.0, %v5626
    %v5628 = vpop.f32.mrb[0].mxu0
    %5629 = vmatprep.mubr.f32.mxu0 0.0
    %5630 = vmatmul.mubr.f32.gmra.mrb[0].mxu0 %v5500
    %v5631 = vpop.f32.mrb[0].mxu0
    %v5632 = vadd.f32 0.0, %v5631
    %v5633 = vpop.f32.mrb[0].mxu0
    %5634 = vmatprep.mubr.f32.mxu0 0.0
    %5635 = vmatmul.mubr.f32.gmra.mrb[0].mxu0 %v5503
    %v5636 = vpop.f32.mrb[0].mxu0
    %v5637 = vadd.f32 0.0, %v5636
    %v5638 = vpop.f32.mrb[0].mxu0
    %5639 = vmatprep.mubr.f32.mxu0 0.0
    %5640 = vmatmul.mubr.f32.gmra.mrb[0].mxu0 %v5506
    %v5641 = vpop.f32.mrb[0].mxu0
    %v5642 = vadd.f32 0.0, %v5641
    %v5643 = vpop.f32.mrb[0].mxu0
    %5644 = vmatprep.mubr.f32.mxu0 0.0
    %5645 = vmatmul.mubr.f32.gmra.mrb[0].mxu0 %v5509
    %v5646 = vpop.f32.mrb[0].mxu0
    %v5647 = vadd.f32 0.0, %v5646
    %v5648 = vpop.f32.mrb[0].mxu0
    %5649 = vmatprep.mubr.f32.mxu0 0.0
    %5650 = vmatmul.mubr.f32.gmra.mrb[0].mxu0 %v5512
    %v5651 = vpop.f32.mrb[0].mxu0
    %v5652 = vadd.f32 0.0, %v5651
    %v5653 = vpop.f32.mrb[0].mxu0
    %5654 = vmatprep.mubr.f32.mxu0 0.0
    %5655 = vmatmul.mubr.f32.gmra.mrb[0].mxu0 %v5515
    %v5656 = vpop.f32.mrb[0].mxu0
    %v5657 = vadd.f32 0.0, %v5656
    %v5658 = vpop.f32.mrb[0].mxu0
    %5659 = vmatprep.mubr.f32.mxu0 0.0
    %5660 = vmatmul.mubr.f32.gmra.mrb[0].mxu0 %v5518
    %v5661 = vpop.f32.mrb[0].mxu0
    %v5662 = vadd.f32 0.0, %v5661
    %v5663 = vpop.f32.mrb[0].mxu0
    %5664 = vdwg.mxu0
    %v5665 = vadd.f32 %v5419, %v5587
    %v5666 = vadd.f32 %v5420, %v5592
    %v5667 = vadd.f32 %v5421, %v5597
    %v5668 = vadd.f32 %v5422, %v5602
    %v5669 = vadd.f32 %v5423, %v5607
    %v5670 = vadd.f32 %v5424, %v5612
    %v5671 = vadd.f32 %v5425, %v5617
    %v5672 = vadd.f32 %v5426, %v5622
    %v5673 = vadd.f32 %v5427, %v5627
    %v5674 = vadd.f32 %v5428, %v5632
    %v5675 = vadd.f32 %v5429, %v5637
    %v5676 = vadd.f32 %v5430, %v5642
    %v5677 = vadd.f32 %v5431, %v5647
    %v5678 = vadd.f32 %v5432, %v5652
    %v5679 = vadd.f32 %v5433, %v5657
    %v5680 = vadd.f32 %v5434, %v5662
    %v5681 = vld [vmem:[#allocation2 + $0x18] sm:$0xff]
    %v5682 = vld [vmem:[#allocation2 + $0x20] sm:$0xff]
    %v5683 = vld [vmem:[#allocation2 + $0x28] sm:$0xff]
    %v5684 = vld [vmem:[#allocation2 + $0x30] sm:$0xff]
    %v5685 = vld [vmem:[#allocation2 + $0x38] sm:$0xff]
    %v5686 = vld [vmem:[#allocation2 + $0x40] sm:$0xff]
    %v5687 = vld [vmem:[#allocation2 + $0x48] sm:$0xff]
    %v5688 = vld [vmem:[#allocation2 + $0x50] sm:$0xff]
    %v5689 = vld [vmem:[#allocation2 + $0x58] sm:$0xff]
    %v5690 = vld [vmem:[#allocation2 + $0x60] sm:$0xff]
    %v5691 = vld [vmem:[#allocation2 + $0x68] sm:$0xff]
    %v5692 = vld [vmem:[#allocation2 + $0x70] sm:$0xff]
    %v5693 = vld [vmem:[#allocation2 + $0x78] sm:$0xff]
    %v5694 = vld [vmem:[#allocation2 + $0x80] sm:$0xff]
    %v5695 = vld [vmem:[#allocation2 + $0x88] sm:$0xff]
    %v5696 = vld [vmem:[#allocation2 + $0x90] sm:$0xff]
    %v5697 = vmul.f32 %v957, %v5681
    %v5698 = vmul.f32 %v958, %v5682
    %v5699 = vmul.f32 %v959, %v5683
    %v5700 = vmul.f32 %v960, %v5684
    %v5701 = vmul.f32 %v961, %v5685
    %v5702 = vmul.f32 %v962, %v5686
    %v5703 = vmul.f32 %v963, %v5687
    %v5704 = vmul.f32 %v964, %v5688
    %v5705 = vmul.f32 %v965, %v5689
    %v5706 = vmul.f32 %v966, %v5690
    %v5707 = vmul.f32 %v967, %v5691
    %v5708 = vmul.f32 %v968, %v5692
    %v5709 = vmul.f32 %v969, %v5693
    %v5710 = vmul.f32 %v970, %v5694
    %v5711 = vmul.f32 %v971, %v5695
    %v5712 = vmul.f32 %v972, %v5696
    %s5713 = scalar_lea.vmem [#allocation7], 224
    %v5714 = vld [vmem:[%s5713] sm:$0xff]
    %v5715 = vld [vmem:[%s5713 + $0x8] sm:$0xff]
    %v5716 = vld [vmem:[%s5713 + $0x10] sm:$0xff]
    %v5717 = vld [vmem:[%s5713 + $0x18] sm:$0xff]
    %v5719 = vsel %vm1037, %v5697, 0
    %v5722 = vsel %vm1037, %v5698, 0
    %v5725 = vsel %vm1037, %v5699, 0
    %v5728 = vsel %vm1037, %v5700, 0
    %v5731 = vsel %vm1037, %v5701, 0
    %v5734 = vsel %vm1037, %v5702, 0
    %v5737 = vsel %vm1037, %v5703, 0
    %v5740 = vsel %vm1037, %v5704, 0
    %v5743 = vsel %vm1037, %v5705, 0
    %v5746 = vsel %vm1037, %v5706, 0
    %v5749 = vsel %vm1037, %v5707, 0
    %v5752 = vsel %vm1037, %v5708, 0
    %v5755 = vsel %vm1037, %v5709, 0
    %v5758 = vsel %vm1037, %v5710, 0
    %v5761 = vsel %vm1037, %v5711, 0
    %v5764 = vsel %vm1037, %v5712, 0
    %5766 = vmatprep.subr.mxu0 0.0
    %5767 = vmatpush1.msra.mxu0 %v5714
    %5768 = vmatprep.subr.mxu0 0.0
    %5769 = vmatpush1.msra.mxu0 %v5715
    %5770 = vmatprep.subr.mxu0 0.0
    %5771 = vmatpush1.msra.mxu0 %v5716
    %5772 = vmatprep.subr.mxu0 0.0
    %5773 = vmatpush1.msra.mxu0 %v5717
    %5774 = vmatprep.subr.mxu0 0.0
    %5775 = vmatpush1.msra.mxu0 0.0
    %5776 = vmatprep.subr.mxu0 0.0
    %5777 = vmatpush1.msra.mxu0 0.0
    %5778 = vmatprep.subr.mxu0 0.0
    %5779 = vmatpush1.msra.mxu0 0.0
    %5780 = vmatprep.subr.mxu0 0.0
    %5781 = vmatpush1.msra.mxu0 0.0
    %5782 = vmatprep.subr.mxu0 0.0
    %5783 = vmatpush1.msra.mxu0 0.0
    %5784 = vmatprep.subr.mxu0 0.0
    %5785 = vmatpush1.msra.mxu0 0.0
    %5786 = vmatprep.subr.mxu0 0.0
    %5787 = vmatpush1.msra.mxu0 0.0
    %5788 = vmatprep.subr.mxu0 0.0
    %5789 = vmatpush1.msra.mxu0 0.0
    %5790 = vmatprep.subr.mxu0 0.0
    %5791 = vmatpush1.msra.mxu0 0.0
    %5792 = vmatprep.subr.mxu0 0.0
    %5793 = vmatpush1.msra.mxu0 0.0
    %5794 = vmatprep.subr.mxu0 0.0
    %5795 = vmatpush1.msra.mxu0 0.0
    %5796 = vmatprep.subr.mxu0 0.0
    %5797 = vmatpush1.msra.mxu0 0.0
    %5798 = vmatprep.subr.mxu0 0.0
    %5799 = vmatpush1.msra.mxu0 0.0
    %5800 = vmatprep.subr.mxu0 0.0
    %5801 = vmatpush1.msra.mxu0 0.0
    %5802 = vmatprep.subr.mxu0 0.0
    %5803 = vmatpush1.msra.mxu0 0.0
    %5804 = vmatprep.subr.mxu0 0.0
    %5805 = vmatpush1.msra.mxu0 0.0
    %5806 = vmatprep.subr.mxu0 0.0
    %5807 = vmatpush1.msra.mxu0 0.0
    %5808 = vmatprep.subr.mxu0 0.0
    %5809 = vmatpush1.msra.mxu0 0.0
    %5810 = vmatprep.subr.mxu0 0.0
    %5811 = vmatpush1.msra.mxu0 0.0
    %5812 = vmatprep.subr.mxu0 0.0
    %5813 = vmatpush1.msra.mxu0 0.0
    %5814 = vmatprep.subr.mxu0 0.0
    %5815 = vmatpush1.msra.mxu0 0.0
    %5816 = vmatprep.subr.mxu0 0.0
    %5817 = vmatpush1.msra.mxu0 0.0
    %5818 = vmatprep.subr.mxu0 0.0
    %5819 = vmatpush1.msra.mxu0 0.0
    %5820 = vmatprep.subr.mxu0 0.0
    %5821 = vmatpush1.msra.mxu0 0.0
    %5822 = vmatprep.subr.mxu0 0.0
    %5823 = vmatpush1.msra.mxu0 0.0
    %5824 = vmatprep.subr.mxu0 0.0
    %5825 = vmatpush1.msra.mxu0 0.0
    %5826 = vmatprep.subr.mxu0 0.0
    %5827 = vmatpush1.msra.mxu0 0.0
    %5828 = vmatprep.subr.mxu0 0.0
    %5829 = vmatpush1.msra.mxu0 0.0
    %5830 = vmatprep.mubr.f32.mxu0 0.0
    %5831 = vmatmul.mubr.f32.gmra.mrb[0].mxu0 %v5719
    %v5832 = vpop.f32.mrb[0].mxu0
    %v5833 = vadd.f32 0.0, %v5832
    %v5834 = vpop.f32.mrb[0].mxu0
    %5835 = vmatprep.mubr.f32.mxu0 0.0
    %5836 = vmatmul.mubr.f32.gmra.mrb[0].mxu0 %v5722
    %v5837 = vpop.f32.mrb[0].mxu0
    %v5838 = vadd.f32 0.0, %v5837
    %v5839 = vpop.f32.mrb[0].mxu0
    %5840 = vmatprep.mubr.f32.mxu0 0.0
    %5841 = vmatmul.mubr.f32.gmra.mrb[0].mxu0 %v5725
    %v5842 = vpop.f32.mrb[0].mxu0
    %v5843 = vadd.f32 0.0, %v5842
    %v5844 = vpop.f32.mrb[0].mxu0
    %5845 = vmatprep.mubr.f32.mxu0 0.0
    %5846 = vmatmul.mubr.f32.gmra.mrb[0].mxu0 %v5728
    %v5847 = vpop.f32.mrb[0].mxu0
    %v5848 = vadd.f32 0.0, %v5847
    %v5849 = vpop.f32.mrb[0].mxu0
    %5850 = vmatprep.mubr.f32.mxu0 0.0
    %5851 = vmatmul.mubr.f32.gmra.mrb[0].mxu0 %v5731
    %v5852 = vpop.f32.mrb[0].mxu0
    %v5853 = vadd.f32 0.0, %v5852
    %v5854 = vpop.f32.mrb[0].mxu0
    %5855 = vmatprep.mubr.f32.mxu0 0.0
    %5856 = vmatmul.mubr.f32.gmra.mrb[0].mxu0 %v5734
    %v5857 = vpop.f32.mrb[0].mxu0
    %v5858 = vadd.f32 0.0, %v5857
    %v5859 = vpop.f32.mrb[0].mxu0
    %5860 = vmatprep.mubr.f32.mxu0 0.0
    %5861 = vmatmul.mubr.f32.gmra.mrb[0].mxu0 %v5737
    %v5862 = vpop.f32.mrb[0].mxu0
    %v5863 = vadd.f32 0.0, %v5862
    %v5864 = vpop.f32.mrb[0].mxu0
    %5865 = vmatprep.mubr.f32.mxu0 0.0
    %5866 = vmatmul.mubr.f32.gmra.mrb[0].mxu0 %v5740
    %v5867 = vpop.f32.mrb[0].mxu0
    %v5868 = vadd.f32 0.0, %v5867
    %v5869 = vpop.f32.mrb[0].mxu0
    %5870 = vmatprep.mubr.f32.mxu0 0.0
    %5871 = vmatmul.mubr.f32.gmra.mrb[0].mxu0 %v5743
    %v5872 = vpop.f32.mrb[0].mxu0
    %v5873 = vadd.f32 0.0, %v5872
    %v5874 = vpop.f32.mrb[0].mxu0
    %5875 = vmatprep.mubr.f32.mxu0 0.0
    %5876 = vmatmul.mubr.f32.gmra.mrb[0].mxu0 %v5746
    %v5877 = vpop.f32.mrb[0].mxu0
    %v5878 = vadd.f32 0.0, %v5877
    %v5879 = vpop.f32.mrb[0].mxu0
    %5880 = vmatprep.mubr.f32.mxu0 0.0
    %5881 = vmatmul.mubr.f32.gmra.mrb[0].mxu0 %v5749
    %v5882 = vpop.f32.mrb[0].mxu0
    %v5883 = vadd.f32 0.0, %v5882
    %v5884 = vpop.f32.mrb[0].mxu0
    %5885 = vmatprep.mubr.f32.mxu0 0.0
    %5886 = vmatmul.mubr.f32.gmra.mrb[0].mxu0 %v5752
    %v5887 = vpop.f32.mrb[0].mxu0
    %v5888 = vadd.f32 0.0, %v5887
    %v5889 = vpop.f32.mrb[0].mxu0
    %5890 = vmatprep.mubr.f32.mxu0 0.0
    %5891 = vmatmul.mubr.f32.gmra.mrb[0].mxu0 %v5755
    %v5892 = vpop.f32.mrb[0].mxu0
    %v5893 = vadd.f32 0.0, %v5892
    %v5894 = vpop.f32.mrb[0].mxu0
    %5895 = vmatprep.mubr.f32.mxu0 0.0
    %5896 = vmatmul.mubr.f32.gmra.mrb[0].mxu0 %v5758
    %v5897 = vpop.f32.mrb[0].mxu0
    %v5898 = vadd.f32 0.0, %v5897
    %v5899 = vpop.f32.mrb[0].mxu0
    %5900 = vmatprep.mubr.f32.mxu0 0.0
    %5901 = vmatmul.mubr.f32.gmra.mrb[0].mxu0 %v5761
    %v5902 = vpop.f32.mrb[0].mxu0
    %v5903 = vadd.f32 0.0, %v5902
    %v5904 = vpop.f32.mrb[0].mxu0
    %5905 = vmatprep.mubr.f32.mxu0 0.0
    %5906 = vmatmul.mubr.f32.gmra.mrb[0].mxu0 %v5764
    %v5907 = vpop.f32.mrb[0].mxu0
    %v5908 = vadd.f32 0.0, %v5907
    %v5909 = vpop.f32.mrb[0].mxu0
    %5910 = vdwg.mxu0
    %v5911 = vadd.f32 %v5665, %v5833
    %v5912 = vadd.f32 %v5666, %v5838
    %v5913 = vadd.f32 %v5667, %v5843
    %v5914 = vadd.f32 %v5668, %v5848
    %v5915 = vadd.f32 %v5669, %v5853
    %v5916 = vadd.f32 %v5670, %v5858
    %v5917 = vadd.f32 %v5671, %v5863
    %v5918 = vadd.f32 %v5672, %v5868
    %v5919 = vadd.f32 %v5673, %v5873
    %v5920 = vadd.f32 %v5674, %v5878
    %v5921 = vadd.f32 %v5675, %v5883
    %v5922 = vadd.f32 %v5676, %v5888
    %v5923 = vadd.f32 %v5677, %v5893
    %v5924 = vadd.f32 %v5678, %v5898
    %v5925 = vadd.f32 %v5679, %v5903
    %v5926 = vadd.f32 %v5680, %v5908
    %v5927 = vld [vmem:[#allocation2 + $0x19] sm:$0xff]
    %v5928 = vld [vmem:[#allocation2 + $0x21] sm:$0xff]
    %v5929 = vld [vmem:[#allocation2 + $0x29] sm:$0xff]
    %v5930 = vld [vmem:[#allocation2 + $0x31] sm:$0xff]
    %v5931 = vld [vmem:[#allocation2 + $0x39] sm:$0xff]
    %v5932 = vld [vmem:[#allocation2 + $0x41] sm:$0xff]
    %v5933 = vld [vmem:[#allocation2 + $0x49] sm:$0xff]
    %v5934 = vld [vmem:[#allocation2 + $0x51] sm:$0xff]
    %v5935 = vld [vmem:[#allocation2 + $0x59] sm:$0xff]
    %v5936 = vld [vmem:[#allocation2 + $0x61] sm:$0xff]
    %v5937 = vld [vmem:[#allocation2 + $0x69] sm:$0xff]
    %v5938 = vld [vmem:[#allocation2 + $0x71] sm:$0xff]
    %v5939 = vld [vmem:[#allocation2 + $0x79] sm:$0xff]
    %v5940 = vld [vmem:[#allocation2 + $0x81] sm:$0xff]
    %v5941 = vld [vmem:[#allocation2 + $0x89] sm:$0xff]
    %v5942 = vld [vmem:[#allocation2 + $0x91] sm:$0xff]
    %v5943 = vmul.f32 %v1021, %v5927
    %v5944 = vmul.f32 %v1022, %v5928
    %v5945 = vmul.f32 %v1023, %v5929
    %v5946 = vmul.f32 %v1024, %v5930
    %v5947 = vmul.f32 %v1025, %v5931
    %v5948 = vmul.f32 %v1026, %v5932
    %v5949 = vmul.f32 %v1027, %v5933
    %v5950 = vmul.f32 %v1028, %v5934
    %v5951 = vmul.f32 %v1029, %v5935
    %v5952 = vmul.f32 %v1030, %v5936
    %v5953 = vmul.f32 %v1031, %v5937
    %v5954 = vmul.f32 %v1032, %v5938
    %v5955 = vmul.f32 %v1033, %v5939
    %v5956 = vmul.f32 %v1034, %v5940
    %v5957 = vmul.f32 %v1035, %v5941
    %v5958 = vmul.f32 %v1036, %v5942
    %s5959 = scalar_lea.vmem [#allocation7], 256
    %v5960 = vld [vmem:[%s5959] sm:$0xff]
    %v5961 = vld [vmem:[%s5959 + $0x8] sm:$0xff]
    %v5962 = vld [vmem:[%s5959 + $0x10] sm:$0xff]
    %v5963 = vld [vmem:[%s5959 + $0x18] sm:$0xff]
    %v5965 = vsel %vm1037, %v5943, 0
    %v5968 = vsel %vm1037, %v5944, 0
    %v5971 = vsel %vm1037, %v5945, 0
    %v5974 = vsel %vm1037, %v5946, 0
    %v5977 = vsel %vm1037, %v5947, 0
    %v5980 = vsel %vm1037, %v5948, 0
    %v5983 = vsel %vm1037, %v5949, 0
    %v5986 = vsel %vm1037, %v5950, 0
    %v5989 = vsel %vm1037, %v5951, 0
    %v5992 = vsel %vm1037, %v5952, 0
    %v5995 = vsel %vm1037, %v5953, 0
    %v5998 = vsel %vm1037, %v5954, 0
    %v6001 = vsel %vm1037, %v5955, 0
    %v6004 = vsel %vm1037, %v5956, 0
    %v6007 = vsel %vm1037, %v5957, 0
    %v6010 = vsel %vm1037, %v5958, 0
    %6012 = vmatprep.subr.mxu0 0.0
    %6013 = vmatpush1.msra.mxu0 %v5960
    %6014 = vmatprep.subr.mxu0 0.0
    %6015 = vmatpush1.msra.mxu0 %v5961
    %6016 = vmatprep.subr.mxu0 0.0
    %6017 = vmatpush1.msra.mxu0 %v5962
    %6018 = vmatprep.subr.mxu0 0.0
    %6019 = vmatpush1.msra.mxu0 %v5963
    %6020 = vmatprep.subr.mxu0 0.0
    %6021 = vmatpush1.msra.mxu0 0.0
    %6022 = vmatprep.subr.mxu0 0.0
    %6023 = vmatpush1.msra.mxu0 0.0
    %6024 = vmatprep.subr.mxu0 0.0
    %6025 = vmatpush1.msra.mxu0 0.0
    %6026 = vmatprep.subr.mxu0 0.0
    %6027 = vmatpush1.msra.mxu0 0.0
    %6028 = vmatprep.subr.mxu0 0.0
    %6029 = vmatpush1.msra.mxu0 0.0
    %6030 = vmatprep.subr.mxu0 0.0
    %6031 = vmatpush1.msra.mxu0 0.0
    %6032 = vmatprep.subr.mxu0 0.0
    %6033 = vmatpush1.msra.mxu0 0.0
    %6034 = vmatprep.subr.mxu0 0.0
    %6035 = vmatpush1.msra.mxu0 0.0
    %6036 = vmatprep.subr.mxu0 0.0
    %6037 = vmatpush1.msra.mxu0 0.0
    %6038 = vmatprep.subr.mxu0 0.0
    %6039 = vmatpush1.msra.mxu0 0.0
    %6040 = vmatprep.subr.mxu0 0.0
    %6041 = vmatpush1.msra.mxu0 0.0
    %6042 = vmatprep.subr.mxu0 0.0
    %6043 = vmatpush1.msra.mxu0 0.0
    %6044 = vmatprep.subr.mxu0 0.0
    %6045 = vmatpush1.msra.mxu0 0.0
    %6046 = vmatprep.subr.mxu0 0.0
    %6047 = vmatpush1.msra.mxu0 0.0
    %6048 = vmatprep.subr.mxu0 0.0
    %6049 = vmatpush1.msra.mxu0 0.0
    %6050 = vmatprep.subr.mxu0 0.0
    %6051 = vmatpush1.msra.mxu0 0.0
    %6052 = vmatprep.subr.mxu0 0.0
    %6053 = vmatpush1.msra.mxu0 0.0
    %6054 = vmatprep.subr.mxu0 0.0
    %6055 = vmatpush1.msra.mxu0 0.0
    %6056 = vmatprep.subr.mxu0 0.0
    %6057 = vmatpush1.msra.mxu0 0.0
    %6058 = vmatprep.subr.mxu0 0.0
    %6059 = vmatpush1.msra.mxu0 0.0
    %6060 = vmatprep.subr.mxu0 0.0
    %6061 = vmatpush1.msra.mxu0 0.0
    %6062 = vmatprep.subr.mxu0 0.0
    %6063 = vmatpush1.msra.mxu0 0.0
    %6064 = vmatprep.subr.mxu0 0.0
    %6065 = vmatpush1.msra.mxu0 0.0
    %6066 = vmatprep.subr.mxu0 0.0
    %6067 = vmatpush1.msra.mxu0 0.0
    %6068 = vmatprep.subr.mxu0 0.0
    %6069 = vmatpush1.msra.mxu0 0.0
    %6070 = vmatprep.subr.mxu0 0.0
    %6071 = vmatpush1.msra.mxu0 0.0
    %6072 = vmatprep.subr.mxu0 0.0
    %6073 = vmatpush1.msra.mxu0 0.0
    %6074 = vmatprep.subr.mxu0 0.0
    %6075 = vmatpush1.msra.mxu0 0.0
    %6076 = vmatprep.mubr.f32.mxu0 0.0
    %6077 = vmatmul.mubr.f32.gmra.mrb[0].mxu0 %v5965
    %v6078 = vpop.f32.mrb[0].mxu0
    %v6079 = vadd.f32 0.0, %v6078
    %v6080 = vpop.f32.mrb[0].mxu0
    %6081 = vmatprep.mubr.f32.mxu0 0.0
    %6082 = vmatmul.mubr.f32.gmra.mrb[0].mxu0 %v5968
    %v6083 = vpop.f32.mrb[0].mxu0
    %v6084 = vadd.f32 0.0, %v6083
    %v6085 = vpop.f32.mrb[0].mxu0
    %6086 = vmatprep.mubr.f32.mxu0 0.0
    %6087 = vmatmul.mubr.f32.gmra.mrb[0].mxu0 %v5971
    %v6088 = vpop.f32.mrb[0].mxu0
    %v6089 = vadd.f32 0.0, %v6088
    %v6090 = vpop.f32.mrb[0].mxu0
    %6091 = vmatprep.mubr.f32.mxu0 0.0
    %6092 = vmatmul.mubr.f32.gmra.mrb[0].mxu0 %v5974
    %v6093 = vpop.f32.mrb[0].mxu0
    %v6094 = vadd.f32 0.0, %v6093
    %v6095 = vpop.f32.mrb[0].mxu0
    %6096 = vmatprep.mubr.f32.mxu0 0.0
    %6097 = vmatmul.mubr.f32.gmra.mrb[0].mxu0 %v5977
    %v6098 = vpop.f32.mrb[0].mxu0
    %v6099 = vadd.f32 0.0, %v6098
    %v6100 = vpop.f32.mrb[0].mxu0
    %6101 = vmatprep.mubr.f32.mxu0 0.0
    %6102 = vmatmul.mubr.f32.gmra.mrb[0].mxu0 %v5980
    %v6103 = vpop.f32.mrb[0].mxu0
    %v6104 = vadd.f32 0.0, %v6103
    %v6105 = vpop.f32.mrb[0].mxu0
    %6106 = vmatprep.mubr.f32.mxu0 0.0
    %6107 = vmatmul.mubr.f32.gmra.mrb[0].mxu0 %v5983
    %v6108 = vpop.f32.mrb[0].mxu0
    %v6109 = vadd.f32 0.0, %v6108
    %v6110 = vpop.f32.mrb[0].mxu0
    %6111 = vmatprep.mubr.f32.mxu0 0.0
    %6112 = vmatmul.mubr.f32.gmra.mrb[0].mxu0 %v5986
    %v6113 = vpop.f32.mrb[0].mxu0
    %v6114 = vadd.f32 0.0, %v6113
    %v6115 = vpop.f32.mrb[0].mxu0
    %6116 = vmatprep.mubr.f32.mxu0 0.0
    %6117 = vmatmul.mubr.f32.gmra.mrb[0].mxu0 %v5989
    %v6118 = vpop.f32.mrb[0].mxu0
    %v6119 = vadd.f32 0.0, %v6118
    %v6120 = vpop.f32.mrb[0].mxu0
    %6121 = vmatprep.mubr.f32.mxu0 0.0
    %6122 = vmatmul.mubr.f32.gmra.mrb[0].mxu0 %v5992
    %v6123 = vpop.f32.mrb[0].mxu0
    %v6124 = vadd.f32 0.0, %v6123
    %v6125 = vpop.f32.mrb[0].mxu0
    %6126 = vmatprep.mubr.f32.mxu0 0.0
    %6127 = vmatmul.mubr.f32.gmra.mrb[0].mxu0 %v5995
    %v6128 = vpop.f32.mrb[0].mxu0
    %v6129 = vadd.f32 0.0, %v6128
    %v6130 = vpop.f32.mrb[0].mxu0
    %6131 = vmatprep.mubr.f32.mxu0 0.0
    %6132 = vmatmul.mubr.f32.gmra.mrb[0].mxu0 %v5998
    %v6133 = vpop.f32.mrb[0].mxu0
    %v6134 = vadd.f32 0.0, %v6133
    %v6135 = vpop.f32.mrb[0].mxu0
    %6136 = vmatprep.mubr.f32.mxu0 0.0
    %6137 = vmatmul.mubr.f32.gmra.mrb[0].mxu0 %v6001
    %v6138 = vpop.f32.mrb[0].mxu0
    %v6139 = vadd.f32 0.0, %v6138
    %v6140 = vpop.f32.mrb[0].mxu0
    %6141 = vmatprep.mubr.f32.mxu0 0.0
    %6142 = vmatmul.mubr.f32.gmra.mrb[0].mxu0 %v6004
    %v6143 = vpop.f32.mrb[0].mxu0
    %v6144 = vadd.f32 0.0, %v6143
    %v6145 = vpop.f32.mrb[0].mxu0
    %6146 = vmatprep.mubr.f32.mxu0 0.0
    %6147 = vmatmul.mubr.f32.gmra.mrb[0].mxu0 %v6007
    %v6148 = vpop.f32.mrb[0].mxu0
    %v6149 = vadd.f32 0.0, %v6148
    %v6150 = vpop.f32.mrb[0].mxu0
    %6151 = vmatprep.mubr.f32.mxu0 0.0
    %6152 = vmatmul.mubr.f32.gmra.mrb[0].mxu0 %v6010
    %v6153 = vpop.f32.mrb[0].mxu0
    %v6154 = vadd.f32 0.0, %v6153
    %v6155 = vpop.f32.mrb[0].mxu0
    %6156 = vdwg.mxu0
    %v6157 = vadd.f32 %v5911, %v6079
    %v6158 = vadd.f32 %v5912, %v6084
    %v6159 = vadd.f32 %v5913, %v6089
    %v6160 = vadd.f32 %v5914, %v6094
    %v6161 = vadd.f32 %v5915, %v6099
    %v6162 = vadd.f32 %v5916, %v6104
    %v6163 = vadd.f32 %v5917, %v6109
    %v6164 = vadd.f32 %v5918, %v6114
    %v6165 = vadd.f32 %v5919, %v6119
    %v6166 = vadd.f32 %v5920, %v6124
    %v6167 = vadd.f32 %v5921, %v6129
    %v6168 = vadd.f32 %v5922, %v6134
    %v6169 = vadd.f32 %v5923, %v6139
    %v6170 = vadd.f32 %v5924, %v6144
    %v6171 = vadd.f32 %v5925, %v6149
    %v6172 = vadd.f32 %v5926, %v6154
    %v6173 = vld [vmem:[%s7] sm:$0x1]
    %v6175 = vlaneseq
    %v6176 = vshrl.u32 %v6175, 7
    %v6177 = vsub.s32 0, %v6176
    %v6178 = vrot.slane %v6173, %v6177
    %v6180 = vmul.f32 %v1077, %v6178
    %v6181 = vmul.f32 %v1082, %v6178
    %v6182 = vmul.f32 %v1087, %v6178
    %v6183 = vmul.f32 %v1092, %v6178
    %v6184 = vmul.f32 %v1097, %v6178
    %v6185 = vmul.f32 %v1102, %v6178
    %v6186 = vmul.f32 %v1107, %v6178
    %v6187 = vmul.f32 %v1112, %v6178
    %v6188 = vmul.f32 %v1117, %v6178
    %v6189 = vmul.f32 %v1122, %v6178
    %v6190 = vmul.f32 %v1127, %v6178
    %v6191 = vmul.f32 %v1132, %v6178
    %v6192 = vmul.f32 %v1137, %v6178
    %v6193 = vmul.f32 %v1142, %v6178
    %v6194 = vmul.f32 %v1147, %v6178
    %v6195 = vmul.f32 %v1152, %v6178
    %v6196 = vld [vmem:[#allocation10] sm:$0x1]
    %v6198 = vlaneseq
    %v6199 = vshrl.u32 %v6198, 7
    %v6200 = vsub.s32 0, %v6199
    %v6201 = vrot.slane %v6196, %v6200
    %v6203 = vadd.f32 %v6180, %v6201
    %v6204 = vadd.f32 %v6181, %v6201
    %v6205 = vadd.f32 %v6182, %v6201
    %v6206 = vadd.f32 %v6183, %v6201
    %v6207 = vadd.f32 %v6184, %v6201
    %v6208 = vadd.f32 %v6185, %v6201
    %v6209 = vadd.f32 %v6186, %v6201
    %v6210 = vadd.f32 %v6187, %v6201
    %v6211 = vadd.f32 %v6188, %v6201
    %v6212 = vadd.f32 %v6189, %v6201
    %v6213 = vadd.f32 %v6190, %v6201
    %v6214 = vadd.f32 %v6191, %v6201
    %v6215 = vadd.f32 %v6192, %v6201
    %v6216 = vadd.f32 %v6193, %v6201
    %v6217 = vadd.f32 %v6194, %v6201
    %v6218 = vadd.f32 %v6195, %v6201
    %v6219 = vld [vmem:[#allocation8] sm:$0x1]
    %v6221 = vlaneseq
    %v6222 = vshrl.u32 %v6221, 7
    %v6223 = vsub.s32 0, %v6222
    %v6224 = vrot.slane %v6219, %v6223
    %v6226 = vadd.f32 %v6157, %v6224
    %v6227 = vadd.f32 %v6158, %v6224
    %v6228 = vadd.f32 %v6159, %v6224
    %v6229 = vadd.f32 %v6160, %v6224
    %v6230 = vadd.f32 %v6161, %v6224
    %v6231 = vadd.f32 %v6162, %v6224
    %v6232 = vadd.f32 %v6163, %v6224
    %v6233 = vadd.f32 %v6164, %v6224
    %v6234 = vadd.f32 %v6165, %v6224
    %v6235 = vadd.f32 %v6166, %v6224
    %v6236 = vadd.f32 %v6167, %v6224
    %v6237 = vadd.f32 %v6168, %v6224
    %v6238 = vadd.f32 %v6169, %v6224
    %v6239 = vadd.f32 %v6170, %v6224
    %v6240 = vadd.f32 %v6171, %v6224
    %v6241 = vadd.f32 %v6172, %v6224
    %v6242 = vadd.f32 %v6226, %v6203
    %v6243 = vadd.f32 %v6227, %v6204
    %v6244 = vadd.f32 %v6228, %v6205
    %v6245 = vadd.f32 %v6229, %v6206
    %v6246 = vadd.f32 %v6230, %v6207
    %v6247 = vadd.f32 %v6231, %v6208
    %v6248 = vadd.f32 %v6232, %v6209
    %v6249 = vadd.f32 %v6233, %v6210
    %v6250 = vadd.f32 %v6234, %v6211
    %v6251 = vadd.f32 %v6235, %v6212
    %v6252 = vadd.f32 %v6236, %v6213
    %v6253 = vadd.f32 %v6237, %v6214
    %v6254 = vadd.f32 %v6238, %v6215
    %v6255 = vadd.f32 %v6239, %v6216
    %v6256 = vadd.f32 %v6240, %v6217
    %v6257 = vadd.f32 %v6241, %v6218
    %v6258 = vmax.f32 %v6242, 0.0
    %v6259 = vmax.f32 %v6243, 0.0
    %v6260 = vmax.f32 %v6244, 0.0
    %v6261 = vmax.f32 %v6245, 0.0
    %v6262 = vmax.f32 %v6246, 0.0
    %v6263 = vmax.f32 %v6247, 0.0
    %v6264 = vmax.f32 %v6248, 0.0
    %v6265 = vmax.f32 %v6249, 0.0
    %v6266 = vmax.f32 %v6250, 0.0
    %v6267 = vmax.f32 %v6251, 0.0
    %v6268 = vmax.f32 %v6252, 0.0
    %v6269 = vmax.f32 %v6253, 0.0
    %v6270 = vmax.f32 %v6254, 0.0
    %v6271 = vmax.f32 %v6255, 0.0
    %v6272 = vmax.f32 %v6256, 0.0
    %v6273 = vmax.f32 %v6257, 0.0
    %6274 = vst.msk [vmem:[%s9] sm:$0xff] %vm1037, %v6258
    %6275 = vst.msk [vmem:[%s9 + $0x8] sm:$0xff] %vm1037, %v6259
    %6276 = vst.msk [vmem:[%s9 + $0x10] sm:$0xff] %vm1037, %v6260
    %6277 = vst.msk [vmem:[%s9 + $0x18] sm:$0xff] %vm1037, %v6261
    %6278 = vst.msk [vmem:[%s9 + $0x20] sm:$0xff] %vm1037, %v6262
    %6279 = vst.msk [vmem:[%s9 + $0x28] sm:$0xff] %vm1037, %v6263
    %6280 = vst.msk [vmem:[%s9 + $0x30] sm:$0xff] %vm1037, %v6264
    %6281 = vst.msk [vmem:[%s9 + $0x38] sm:$0xff] %vm1037, %v6265
    %6282 = vst.msk [vmem:[%s9 + $0x40] sm:$0xff] %vm1037, %v6266
    %6283 = vst.msk [vmem:[%s9 + $0x48] sm:$0xff] %vm1037, %v6267
    %6284 = vst.msk [vmem:[%s9 + $0x50] sm:$0xff] %vm1037, %v6268
    %6285 = vst.msk [vmem:[%s9 + $0x58] sm:$0xff] %vm1037, %v6269
    %6286 = vst.msk [vmem:[%s9 + $0x60] sm:$0xff] %vm1037, %v6270
    %6287 = vst.msk [vmem:[%s9 + $0x68] sm:$0xff] %vm1037, %v6271
    %6288 = vst.msk [vmem:[%s9 + $0x70] sm:$0xff] %vm1037, %v6272
    %6289 = vst.msk [vmem:[%s9 + $0x78] sm:$0xff] %vm1037, %v6273
    // Predicated region
    $region58: #{mynet_forward.2} parent=1 // pred_check
      _
    $region59: #{mynet_forward.2} parent=1 // pred_check_branch
      %6291 = sbr.rel (0) target = $region61
    $region60: #{mynet_forward.2} parent=1 // pred_region
      _
    $region61: #{mynet_forward.2} parent=1 // pred_fallthru
      _
    // Predicated region
    $region62: #{mynet_forward.2} parent=1 // pred_check
      _
    $region63: #{mynet_forward.2} parent=1 // pred_check_branch
      %6293 = sbr.rel (0) target = $region65
    $region64: #{mynet_forward.2} parent=1 // pred_region
      _
    $region65: #{mynet_forward.2} parent=1 // pred_fallthru
      _
    %6294 = vsyncpa [#allocation4], 1
    %6295 = vsyncpa [#allocation6], 1
    %6296 = vsyncpa [#allocation9], 1

</llo_original>
